<compile_context>
chip_gen: v6e
topology: v6e:2x2x1
jax: 0.10.0
libtpu: 0.0.40
codegen_flags: <defaults>
</compile_context>

<pallas_src>
import functools

import numpy as np
import jax
import jax.numpy as jnp
from jax.experimental import pallas as pl
from jax.experimental.pallas import tpu as pltpu

LANE = 128


def _round_up(v, m):
    return ((v + m - 1) // m) * m


# ----------------------------- fused Bottleneck kernel -----------------------------

def _make_bottleneck_kernel(H, W, add_residual):
    """cv1(3x3 Conv+BN+SiLU) -> cv2(3x3 Conv+BN+SiLU) -> optional residual add."""

    def kernel(x_ref, w1_ref, s1_ref, b1_ref, w2_ref, s2_ref, b2_ref,
               o_ref, xpad_ref, tpad_ref):
        # x_ref   : (1, H, W, Cp1)        input image (channels padded to 128)
        # w1_ref  : (9*Cp1, Cpm)          per-tap weights for cv1 (taps stacked on K)
        # w2_ref  : (9*Cpm, Cp2)          per-tap weights for cv2
        # s*/b*   : (1, C*)               folded BatchNorm scale / bias
        # o_ref   : (1, H, W, Cp2)
        # xpad_ref: (H+2, W+2, Cp1) VMEM  scratch: x with zero halo
        # tpad_ref: (H+2, W+2, Cpm) VMEM  scratch: cv1 output with zero halo
        cp1 = x_ref.shape[-1]
        cpm = s1_ref.shape[-1]
        cp2 = s2_ref.shape[-1]

        def conv3x3(pad_ref, w_ref, cin, cout):
            # Nine accumulated MXU dots; tap slices are static so they lower to
            # cheap (sublane-shifted) VMEM reads.  No im2col slab is built.
            padded = pad_ref[...]
            acc = jnp.zeros((H * W, cout), jnp.float32)
            for dy in range(3):
                for dx in range(3):
                    t = dy * 3 + dx
                    tap = padded[dy:dy + H, dx:dx + W, :].reshape(H * W, cin)
                    acc = acc + jnp.dot(tap, w_ref[t * cin:(t + 1) * cin, :],
                                        preferred_element_type=jnp.float32)
            return acc

        # In-kernel 'same' padding: zero the halo scratch, write the interior.
        xpad_ref[...] = jnp.zeros_like(xpad_ref)
        xpad_ref[1:H + 1, 1:W + 1, :] = x_ref[0]

        # ---- cv1: 3x3 conv + folded BN + SiLU (result stays in VMEM) ----
        y1 = conv3x3(xpad_ref, w1_ref, cp1, cpm)
        y1 = y1 * s1_ref[...] + b1_ref[...]
        y1 = y1 * jax.nn.sigmoid(y1)                      # SiLU
        tpad_ref[...] = jnp.zeros_like(tpad_ref)
        tpad_ref[1:H + 1, 1:W + 1, :] = y1.reshape(H, W, cpm)

        # ---- cv2: 3x3 conv + folded BN + SiLU (+ shortcut) ----
        y2 = conv3x3(tpad_ref, w2_ref, cpm, cp2)
        y2 = y2 * s2_ref[...] + b2_ref[...]
        y2 = y2 * jax.nn.sigmoid(y2)                      # SiLU
        if add_residual:
            y2 = y2 + x_ref[0].reshape(H * W, cp2)        # Bottleneck shortcut
        o_ref[0] = y2.reshape(H, W, cp2)

    return kernel


# ----------------------------- wrapper -----------------------------

def prepare_bottleneck_params(p):
    """One-time re-layout: pad channels to the 128-lane width, tap-stacked weights."""
    c_mid, c1 = p["cv1"]["w_oihw"].shape[:2]
    c2 = p["cv2"]["w_oihw"].shape[0]
    cp1, cpm, cp2 = (_round_up(c, LANE) for c in (c1, c_mid, c2))

    def pack_w(w_oihw, cin_p, cout_p):
        w = jnp.transpose(w_oihw, (2, 3, 1, 0))           # OIHW -> HWIO
        kh, kw, cin, cout = w.shape
        w = jnp.pad(w, ((0, 0), (0, 0), (0, cin_p - cin), (0, cout_p - cout)))
        return w.reshape(kh * kw * cin_p, cout_p)         # (9*Cin_p, Cout_p)

    def pack_v(v, cout_p):
        return jnp.pad(v, (0, cout_p - v.shape[0])).reshape(1, cout_p)

    return {
        "w1": pack_w(p["cv1"]["w_oihw"], cp1, cpm),
        "s1": pack_v(p["cv1"]["scale"], cpm),
        "b1": pack_v(p["cv1"]["bias"], cpm),
        "w2": pack_w(p["cv2"]["w_oihw"], cpm, cp2),
        "s2": pack_v(p["cv2"]["scale"], cp2),
        "b2": pack_v(p["cv2"]["bias"], cp2),
    }


@functools.partial(jax.jit, static_argnames=("c2", "add"))
def bottleneck_forward(x_nchw, kp, *, c2, add):
    N, C1, H, W = x_nchw.shape
    cp1 = kp["w1"].shape[0] // 9
    cpm = kp["w1"].shape[1]
    cp2 = kp["w2"].shape[1]

    x = jnp.transpose(x_nchw, (0, 2, 3, 1))                         # NCHW -> NHWC
    x = jnp.pad(x, ((0, 0), (0, 0), (0, 0), (0, cp1 - C1)))         # lane-dense channels

    out = pl.pallas_call(
        _make_bottleneck_kernel(H, W, add),
        out_shape=jax.ShapeDtypeStruct((N, H, W, cp2), jnp.float32),
        grid=(N,),
        in_specs=[
            pl.BlockSpec((1, H, W, cp1), lambda n: (n, 0, 0, 0)),
            pl.BlockSpec((9 * cp1, cpm), lambda n: (0, 0)),
            pl.BlockSpec((1, cpm), lambda n: (0, 0)),
            pl.BlockSpec((1, cpm), lambda n: (0, 0)),
            pl.BlockSpec((9 * cpm, cp2), lambda n: (0, 0)),
            pl.BlockSpec((1, cp2), lambda n: (0, 0)),
            pl.BlockSpec((1, cp2), lambda n: (0, 0)),
        ],
        out_specs=pl.BlockSpec((1, H, W, cp2), lambda n: (n, 0, 0, 0)),
        scratch_shapes=[
            pltpu.VMEM((H + 2, W + 2, cp1), jnp.float32),           # padded x
            pltpu.VMEM((H + 2, W + 2, cpm), jnp.float32),           # padded cv1 output
        ],
        compiler_params=pltpu.CompilerParams(
            dimension_semantics=("parallel",),                      # v7x: 2 TCs
            vmem_limit_bytes=32 * 1024 * 1024),
    )(x, kp["w1"], kp["s1"], kp["b1"], kp["w2"], kp["s2"], kp["b2"])

    out = out[..., :c2]                                             # drop channel pad
    return jnp.transpose(out, (0, 3, 1, 2))                         # NHWC -> NCHW


# ----------------------------- parameter setup -----------------------------

def make_conv_block_params(key, cin, cout, k):
    """Conv2d(no bias) + folded BatchNorm2d (eps=1e-3, as in ultralytics Conv)."""
    kw_, kg, kb, km, kv = jax.random.split(key, 5)
    w = jax.random.normal(kw_, (cout, cin, k, k), jnp.float32) / np.sqrt(cin * k * k)
    gamma = jax.random.uniform(kg, (cout,), jnp.float32, 0.5, 1.5)
    beta = jax.random.normal(kb, (cout,), jnp.float32) * 0.1
    mean = jax.random.normal(km, (cout,), jnp.float32) * 0.1
    var = jax.random.uniform(kv, (cout,), jnp.float32, 0.5, 1.5)
    scale = gamma / jnp.sqrt(var + 1e-3)
    bias = beta - mean * scale
    return {"w_oihw": w, "scale": scale, "bias": bias}


def make_bottleneck_params(key, c1, c2, shortcut=True, e=0.5):
    c_ = int(c2 * e)
    k1, k2 = jax.random.split(key)
    return {
        "cv1": make_conv_block_params(k1, c1, c_, 3),
        "cv2": make_conv_block_params(k2, c_, c2, 3),
        "add": bool(shortcut and c1 == c2),
        "c2": c2,
    }


# ----------------------------- pure-JAX reference -----------------------------

def _ref_conv_block(x, p):
    y = jax.lax.conv_general_dilated(
        x, p["w_oihw"], (1, 1), [(1, 1), (1, 1)],
        dimension_numbers=("NCHW", "OIHW", "NCHW"))
    y = y * p["scale"][None, :, None, None] + p["bias"][None, :, None, None]
    return y * jax.nn.sigmoid(y)


def bottleneck_reference(x, p):
    y = _ref_conv_block(_ref_conv_block(x, p["cv1"]), p["cv2"])
    return x + y if p["add"] else y


# ----------------------------- main -----------------------------

if __name__ == "__main__":
    key = jax.random.PRNGKey(0)
    kx, kpa, kpb = jax.random.split(key, 3)

    N, H, W = 2, 16, 16
    x = jax.random.normal(kx, (N, 8, H, W), jnp.float32)

    # Case 1: Bottleneck(c1=8, c2=8, shortcut=True) -> residual add active.
    p1 = make_bottleneck_params(kpa, 8, 8, shortcut=True, e=0.5)
    kp1 = prepare_bottleneck_params(p1)
    out1 = jax.block_until_ready(bottleneck_forward(x, kp1, c2=8, add=p1["add"]))
    ref1 = jax.block_until_ready(bottleneck_reference(x, p1))
    assert out1.shape == ref1.shape == (N, 8, H, W), (out1.shape, ref1.shape)
    np.testing.assert_allclose(np.asarray(out1), np.asarray(ref1),
                               rtol=1e-3, atol=1e-3)

    # Case 2: Bottleneck(c1=8, c2=16, shortcut=True) -> c1 != c2, shortcut disabled.
    p2 = make_bottleneck_params(kpb, 8, 16, shortcut=True, e=0.5)
    kp2 = prepare_bottleneck_params(p2)
    out2 = jax.block_until_ready(bottleneck_forward(x, kp2, c2=16, add=p2["add"]))
    ref2 = jax.block_until_ready(bottleneck_reference(x, p2))
    assert out2.shape == ref2.shape == (N, 16, H, W), (out2.shape, ref2.shape)
    np.testing.assert_allclose(np.asarray(out2), np.asarray(ref2),
                               rtol=1e-3, atol=1e-3)

    print("KERNEL_OK")
</pallas_src>

<mosaic_0001>
module attributes {stable_mosaic.version = 11 : i64} {
  func.func @kernel(%arg0: i32, %arg1: memref<1x16x16x128xf32, #tpu.memory_space<vmem>>, %arg2: memref<1152x128xf32, #tpu.memory_space<vmem>>, %arg3: memref<1x128xf32, #tpu.memory_space<vmem>>, %arg4: memref<1x128xf32, #tpu.memory_space<vmem>>, %arg5: memref<1152x128xf32, #tpu.memory_space<vmem>>, %arg6: memref<1x128xf32, #tpu.memory_space<vmem>>, %arg7: memref<1x128xf32, #tpu.memory_space<vmem>>, %arg8: memref<1x16x16x128xf32, #tpu.memory_space<vmem>>, %arg9: memref<18x18x128xf32, #tpu.memory_space<vmem>>, %arg10: memref<18x18x128xf32, #tpu.memory_space<vmem>>) attributes {dimension_semantics = [#tpu.dimension_semantics<parallel>], iteration_bounds = array<i64: 2>, scalar_prefetch = 0 : i64, scratch_operands = 2 : i64, tpu.core_type = #tpu.core_type<tc>, window_params = [{transform_indices = @transform_0, window_bounds = array<i64: 1, 16, 16, 128>}, {pipeline_mode = #tpu.pipeline_mode<synchronous>, transform_indices = @transform_1, window_bounds = array<i64: 1152, 128>}, {pipeline_mode = #tpu.pipeline_mode<synchronous>, transform_indices = @transform_2, window_bounds = array<i64: 1, 128>}, {pipeline_mode = #tpu.pipeline_mode<synchronous>, transform_indices = @transform_3, window_bounds = array<i64: 1, 128>}, {pipeline_mode = #tpu.pipeline_mode<synchronous>, transform_indices = @transform_4, window_bounds = array<i64: 1152, 128>}, {pipeline_mode = #tpu.pipeline_mode<synchronous>, transform_indices = @transform_5, window_bounds = array<i64: 1, 128>}, {pipeline_mode = #tpu.pipeline_mode<synchronous>, transform_indices = @transform_6, window_bounds = array<i64: 1, 128>}, {transform_indices = @transform_7, window_bounds = array<i64: 1, 16, 16, 128>}]} {
    %cst = arith.constant 0.000000e+00 : f32
    %0 = vector.broadcast %cst : f32 to vector<18x18x128xf32>
    %c0 = arith.constant 0 : index
    %c0_0 = arith.constant 0 : index
    %c0_1 = arith.constant 0 : index
    %1 = vector.load %arg9[%c0, %c0_0, %c0_1] : memref<18x18x128xf32, #tpu.memory_space<vmem>>, vector<18x18x128xf32>
    tpu.vector_store %arg9[%c0, %c0_0, %c0_1], %0 {strides = array<i32>} : memref<18x18x128xf32, #tpu.memory_space<vmem>>, vector<18x18x128xf32>,
    %c0_2 = arith.constant 0 : index
    %c0_3 = arith.constant 0 : index
    %c0_4 = arith.constant 0 : index
    %c0_5 = arith.constant 0 : index
    %2 = vector.load %arg1[%c0_2, %c0_3, %c0_4, %c0_5] : memref<1x16x16x128xf32, #tpu.memory_space<vmem>>, vector<1x16x16x128xf32>
    %3 = vector.shape_cast %2 : vector<1x16x16x128xf32> to vector<16x16x128xf32>
    %c1 = arith.constant 1 : index
    %c1_6 = arith.constant 1 : index
    %c0_7 = arith.constant 0 : index
    %4 = vector.load %arg9[%c1, %c1_6, %c0_7] : memref<18x18x128xf32, #tpu.memory_space<vmem>>, vector<16x16x128xf32>
    tpu.vector_store %arg9[%c1, %c1_6, %c0_7], %3 {strides = array<i32>} : memref<18x18x128xf32, #tpu.memory_space<vmem>>, vector<16x16x128xf32>,
    %c0_8 = arith.constant 0 : index
    %c0_9 = arith.constant 0 : index
    %c0_10 = arith.constant 0 : index
    %5 = vector.load %arg9[%c0_8, %c0_9, %c0_10] : memref<18x18x128xf32, #tpu.memory_space<vmem>>, vector<18x18x128xf32>
    %cst_11 = arith.constant 0.000000e+00 : f32
    %6 = vector.broadcast %cst_11 : f32 to vector<256x128xf32>
    %7 = vector.extract_strided_slice %5 {offsets = [0, 0, 0], sizes = [16, 16, 128], strides = [1, 1, 1]} : vector<18x18x128xf32> to vector<16x16x128xf32>
    %8 = vector.shape_cast %7 : vector<16x16x128xf32> to vector<256x128xf32>
    %c0_12 = arith.constant 0 : index
    %c0_13 = arith.constant 0 : index
    %9 = vector.load %arg2[%c0_12, %c0_13] : memref<1152x128xf32, #tpu.memory_space<vmem>>, vector<128x128xf32>
    %cst_14 = arith.constant dense<0.000000e+00> : vector<256x128xf32>
    %10 = tpu.matmul %8, %9, %cst_14 {dimension_numbers = #tpu.dot_dimension_numbers<[1], [0], [0], [1], [0, 0, 1, 1], [], []>} : vector<256x128xf32>, vector<128x128xf32>, vector<256x128xf32> -> vector<256x128xf32>
    %11 = arith.addf %6, %10 : vector<256x128xf32>
    %12 = vector.extract_strided_slice %5 {offsets = [0, 1, 0], sizes = [16, 16, 128], strides = [1, 1, 1]} : vector<18x18x128xf32> to vector<16x16x128xf32>
    %13 = vector.shape_cast %12 : vector<16x16x128xf32> to vector<256x128xf32>
    %c128 = arith.constant 128 : index
    %c0_15 = arith.constant 0 : index
    %14 = vector.load %arg2[%c128, %c0_15] : memref<1152x128xf32, #tpu.memory_space<vmem>>, vector<128x128xf32>
    %cst_16 = arith.constant dense<0.000000e+00> : vector<256x128xf32>
    %15 = tpu.matmul %13, %14, %cst_16 {dimension_numbers = #tpu.dot_dimension_numbers<[1], [0], [0], [1], [0, 0, 1, 1], [], []>} : vector<256x128xf32>, vector<128x128xf32>, vector<256x128xf32> -> vector<256x128xf32>
    %16 = arith.addf %11, %15 : vector<256x128xf32>
    %17 = vector.extract_strided_slice %5 {offsets = [0, 2, 0], sizes = [16, 16, 128], strides = [1, 1, 1]} : vector<18x18x128xf32> to vector<16x16x128xf32>
    %18 = vector.shape_cast %17 : vector<16x16x128xf32> to vector<256x128xf32>
    %c256 = arith.constant 256 : index
    %c0_17 = arith.constant 0 : index
    %19 = vector.load %arg2[%c256, %c0_17] : memref<1152x128xf32, #tpu.memory_space<vmem>>, vector<128x128xf32>
    %cst_18 = arith.constant dense<0.000000e+00> : vector<256x128xf32>
    %20 = tpu.matmul %18, %19, %cst_18 {dimension_numbers = #tpu.dot_dimension_numbers<[1], [0], [0], [1], [0, 0, 1, 1], [], []>} : vector<256x128xf32>, vector<128x128xf32>, vector<256x128xf32> -> vector<256x128xf32>
    %21 = arith.addf %16, %20 : vector<256x128xf32>
    %22 = vector.extract_strided_slice %5 {offsets = [1, 0, 0], sizes = [16, 16, 128], strides = [1, 1, 1]} : vector<18x18x128xf32> to vector<16x16x128xf32>
    %23 = vector.shape_cast %22 : vector<16x16x128xf32> to vector<256x128xf32>
    %c384 = arith.constant 384 : index
    %c0_19 = arith.constant 0 : index
    %24 = vector.load %arg2[%c384, %c0_19] : memref<1152x128xf32, #tpu.memory_space<vmem>>, vector<128x128xf32>
    %cst_20 = arith.constant dense<0.000000e+00> : vector<256x128xf32>
    %25 = tpu.matmul %23, %24, %cst_20 {dimension_numbers = #tpu.dot_dimension_numbers<[1], [0], [0], [1], [0, 0, 1, 1], [], []>} : vector<256x128xf32>, vector<128x128xf32>, vector<256x128xf32> -> vector<256x128xf32>
    %26 = arith.addf %21, %25 : vector<256x128xf32>
    %27 = vector.extract_strided_slice %5 {offsets = [1, 1, 0], sizes = [16, 16, 128], strides = [1, 1, 1]} : vector<18x18x128xf32> to vector<16x16x128xf32>
    %28 = vector.shape_cast %27 : vector<16x16x128xf32> to vector<256x128xf32>
    %c512 = arith.constant 512 : index
    %c0_21 = arith.constant 0 : index
    %29 = vector.load %arg2[%c512, %c0_21] : memref<1152x128xf32, #tpu.memory_space<vmem>>, vector<128x128xf32>
    %cst_22 = arith.constant dense<0.000000e+00> : vector<256x128xf32>
    %30 = tpu.matmul %28, %29, %cst_22 {dimension_numbers = #tpu.dot_dimension_numbers<[1], [0], [0], [1], [0, 0, 1, 1], [], []>} : vector<256x128xf32>, vector<128x128xf32>, vector<256x128xf32> -> vector<256x128xf32>
    %31 = arith.addf %26, %30 : vector<256x128xf32>
    %32 = vector.extract_strided_slice %5 {offsets = [1, 2, 0], sizes = [16, 16, 128], strides = [1, 1, 1]} : vector<18x18x128xf32> to vector<16x16x128xf32>
    %33 = vector.shape_cast %32 : vector<16x16x128xf32> to vector<256x128xf32>
    %c640 = arith.constant 640 : index
    %c0_23 = arith.constant 0 : index
    %34 = vector.load %arg2[%c640, %c0_23] : memref<1152x128xf32, #tpu.memory_space<vmem>>, vector<128x128xf32>
    %cst_24 = arith.constant dense<0.000000e+00> : vector<256x128xf32>
    %35 = tpu.matmul %33, %34, %cst_24 {dimension_numbers = #tpu.dot_dimension_numbers<[1], [0], [0], [1], [0, 0, 1, 1], [], []>} : vector<256x128xf32>, vector<128x128xf32>, vector<256x128xf32> -> vector<256x128xf32>
    %36 = arith.addf %31, %35 : vector<256x128xf32>
    %37 = vector.extract_strided_slice %5 {offsets = [2, 0, 0], sizes = [16, 16, 128], strides = [1, 1, 1]} : vector<18x18x128xf32> to vector<16x16x128xf32>
    %38 = vector.shape_cast %37 : vector<16x16x128xf32> to vector<256x128xf32>
    %c768 = arith.constant 768 : index
    %c0_25 = arith.constant 0 : index
    %39 = vector.load %arg2[%c768, %c0_25] : memref<1152x128xf32, #tpu.memory_space<vmem>>, vector<128x128xf32>
    %cst_26 = arith.constant dense<0.000000e+00> : vector<256x128xf32>
    %40 = tpu.matmul %38, %39, %cst_26 {dimension_numbers = #tpu.dot_dimension_numbers<[1], [0], [0], [1], [0, 0, 1, 1], [], []>} : vector<256x128xf32>, vector<128x128xf32>, vector<256x128xf32> -> vector<256x128xf32>
    %41 = arith.addf %36, %40 : vector<256x128xf32>
    %42 = vector.extract_strided_slice %5 {offsets = [2, 1, 0], sizes = [16, 16, 128], strides = [1, 1, 1]} : vector<18x18x128xf32> to vector<16x16x128xf32>
    %43 = vector.shape_cast %42 : vector<16x16x128xf32> to vector<256x128xf32>
    %c896 = arith.constant 896 : index
    %c0_27 = arith.constant 0 : index
    %44 = vector.load %arg2[%c896, %c0_27] : memref<1152x128xf32, #tpu.memory_space<vmem>>, vector<128x128xf32>
    %cst_28 = arith.constant dense<0.000000e+00> : vector<256x128xf32>
    %45 = tpu.matmul %43, %44, %cst_28 {dimension_numbers = #tpu.dot_dimension_numbers<[1], [0], [0], [1], [0, 0, 1, 1], [], []>} : vector<256x128xf32>, vector<128x128xf32>, vector<256x128xf32> -> vector<256x128xf32>
    %46 = arith.addf %41, %45 : vector<256x128xf32>
    %47 = vector.extract_strided_slice %5 {offsets = [2, 2, 0], sizes = [16, 16, 128], strides = [1, 1, 1]} : vector<18x18x128xf32> to vector<16x16x128xf32>
    %48 = vector.shape_cast %47 : vector<16x16x128xf32> to vector<256x128xf32>
    %c1024 = arith.constant 1024 : index
    %c0_29 = arith.constant 0 : index
    %49 = vector.load %arg2[%c1024, %c0_29] : memref<1152x128xf32, #tpu.memory_space<vmem>>, vector<128x128xf32>
    %cst_30 = arith.constant dense<0.000000e+00> : vector<256x128xf32>
    %50 = tpu.matmul %48, %49, %cst_30 {dimension_numbers = #tpu.dot_dimension_numbers<[1], [0], [0], [1], [0, 0, 1, 1], [], []>} : vector<256x128xf32>, vector<128x128xf32>, vector<256x128xf32> -> vector<256x128xf32>
    %51 = arith.addf %46, %50 : vector<256x128xf32>
    %c0_31 = arith.constant 0 : index
    %c0_32 = arith.constant 0 : index
    %52 = vector.load %arg3[%c0_31, %c0_32] : memref<1x128xf32, #tpu.memory_space<vmem>>, vector<1x128xf32>
    %53 = vector.broadcast %52 : vector<1x128xf32> to vector<256x128xf32>
    %54 = arith.mulf %51, %53 : vector<256x128xf32>
    %c0_33 = arith.constant 0 : index
    %c0_34 = arith.constant 0 : index
    %55 = vector.load %arg4[%c0_33, %c0_34] : memref<1x128xf32, #tpu.memory_space<vmem>>, vector<1x128xf32>
    %56 = vector.broadcast %55 : vector<1x128xf32> to vector<256x128xf32>
    %57 = arith.addf %54, %56 : vector<256x128xf32>
    %58 = arith.negf %57 : vector<256x128xf32>
    %59 = math.exp %58 : vector<256x128xf32>
    %cst_35 = arith.constant 1.000000e+00 : f32
    %60 = vector.broadcast %cst_35 : f32 to vector<256x128xf32>
    %61 = arith.addf %60, %59 : vector<256x128xf32>
    %62 = arith.divf %60, %61 : vector<256x128xf32>
    %63 = arith.mulf %57, %62 : vector<256x128xf32>
    %cst_36 = arith.constant 0.000000e+00 : f32
    %64 = vector.broadcast %cst_36 : f32 to vector<18x18x128xf32>
    %c0_37 = arith.constant 0 : index
    %c0_38 = arith.constant 0 : index
    %c0_39 = arith.constant 0 : index
    %65 = vector.load %arg10[%c0_37, %c0_38, %c0_39] : memref<18x18x128xf32, #tpu.memory_space<vmem>>, vector<18x18x128xf32>
    tpu.vector_store %arg10[%c0_37, %c0_38, %c0_39], %64 {strides = array<i32>} : memref<18x18x128xf32, #tpu.memory_space<vmem>>, vector<18x18x128xf32>,
    %66 = vector.shape_cast %63 : vector<256x128xf32> to vector<16x16x128xf32>
    %c1_40 = arith.constant 1 : index
    %c1_41 = arith.constant 1 : index
    %c0_42 = arith.constant 0 : index
    %67 = vector.load %arg10[%c1_40, %c1_41, %c0_42] : memref<18x18x128xf32, #tpu.memory_space<vmem>>, vector<16x16x128xf32>
    tpu.vector_store %arg10[%c1_40, %c1_41, %c0_42], %66 {strides = array<i32>} : memref<18x18x128xf32, #tpu.memory_space<vmem>>, vector<16x16x128xf32>,
    %c0_43 = arith.constant 0 : index
    %c0_44 = arith.constant 0 : index
    %c0_45 = arith.constant 0 : index
    %68 = vector.load %arg10[%c0_43, %c0_44, %c0_45] : memref<18x18x128xf32, #tpu.memory_space<vmem>>, vector<18x18x128xf32>
    %cst_46 = arith.constant 0.000000e+00 : f32
    %69 = vector.broadcast %cst_46 : f32 to vector<256x128xf32>
    %70 = vector.extract_strided_slice %68 {offsets = [0, 0, 0], sizes = [16, 16, 128], strides = [1, 1, 1]} : vector<18x18x128xf32> to vector<16x16x128xf32>
    %71 = vector.shape_cast %70 : vector<16x16x128xf32> to vector<256x128xf32>
    %c0_47 = arith.constant 0 : index
    %c0_48 = arith.constant 0 : index
    %72 = vector.load %arg5[%c0_47, %c0_48] : memref<1152x128xf32, #tpu.memory_space<vmem>>, vector<128x128xf32>
    %cst_49 = arith.constant dense<0.000000e+00> : vector<256x128xf32>
    %73 = tpu.matmul %71, %72, %cst_49 {dimension_numbers = #tpu.dot_dimension_numbers<[1], [0], [0], [1], [0, 0, 1, 1], [], []>} : vector<256x128xf32>, vector<128x128xf32>, vector<256x128xf32> -> vector<256x128xf32>
    %74 = arith.addf %69, %73 : vector<256x128xf32>
    %75 = vector.extract_strided_slice %68 {offsets = [0, 1, 0], sizes = [16, 16, 128], strides = [1, 1, 1]} : vector<18x18x128xf32> to vector<16x16x128xf32>
    %76 = vector.shape_cast %75 : vector<16x16x128xf32> to vector<256x128xf32>
    %c128_50 = arith.constant 128 : index
    %c0_51 = arith.constant 0 : index
    %77 = vector.load %arg5[%c128_50, %c0_51] : memref<1152x128xf32, #tpu.memory_space<vmem>>, vector<128x128xf32>
    %cst_52 = arith.constant dense<0.000000e+00> : vector<256x128xf32>
    %78 = tpu.matmul %76, %77, %cst_52 {dimension_numbers = #tpu.dot_dimension_numbers<[1], [0], [0], [1], [0, 0, 1, 1], [], []>} : vector<256x128xf32>, vector<128x128xf32>, vector<256x128xf32> -> vector<256x128xf32>
    %79 = arith.addf %74, %78 : vector<256x128xf32>
    %80 = vector.extract_strided_slice %68 {offsets = [0, 2, 0], sizes = [16, 16, 128], strides = [1, 1, 1]} : vector<18x18x128xf32> to vector<16x16x128xf32>
    %81 = vector.shape_cast %80 : vector<16x16x128xf32> to vector<256x128xf32>
    %c256_53 = arith.constant 256 : index
    %c0_54 = arith.constant 0 : index
    %82 = vector.load %arg5[%c256_53, %c0_54] : memref<1152x128xf32, #tpu.memory_space<vmem>>, vector<128x128xf32>
    %cst_55 = arith.constant dense<0.000000e+00> : vector<256x128xf32>
    %83 = tpu.matmul %81, %82, %cst_55 {dimension_numbers = #tpu.dot_dimension_numbers<[1], [0], [0], [1], [0, 0, 1, 1], [], []>} : vector<256x128xf32>, vector<128x128xf32>, vector<256x128xf32> -> vector<256x128xf32>
    %84 = arith.addf %79, %83 : vector<256x128xf32>
    %85 = vector.extract_strided_slice %68 {offsets = [1, 0, 0], sizes = [16, 16, 128], strides = [1, 1, 1]} : vector<18x18x128xf32> to vector<16x16x128xf32>
    %86 = vector.shape_cast %85 : vector<16x16x128xf32> to vector<256x128xf32>
    %c384_56 = arith.constant 384 : index
    %c0_57 = arith.constant 0 : index
    %87 = vector.load %arg5[%c384_56, %c0_57] : memref<1152x128xf32, #tpu.memory_space<vmem>>, vector<128x128xf32>
    %cst_58 = arith.constant dense<0.000000e+00> : vector<256x128xf32>
    %88 = tpu.matmul %86, %87, %cst_58 {dimension_numbers = #tpu.dot_dimension_numbers<[1], [0], [0], [1], [0, 0, 1, 1], [], []>} : vector<256x128xf32>, vector<128x128xf32>, vector<256x128xf32> -> vector<256x128xf32>
    %89 = arith.addf %84, %88 : vector<256x128xf32>
    %90 = vector.extract_strided_slice %68 {offsets = [1, 1, 0], sizes = [16, 16, 128], strides = [1, 1, 1]} : vector<18x18x128xf32> to vector<16x16x128xf32>
    %91 = vector.shape_cast %90 : vector<16x16x128xf32> to vector<256x128xf32>
    %c512_59 = arith.constant 512 : index
    %c0_60 = arith.constant 0 : index
    %92 = vector.load %arg5[%c512_59, %c0_60] : memref<1152x128xf32, #tpu.memory_space<vmem>>, vector<128x128xf32>
    %cst_61 = arith.constant dense<0.000000e+00> : vector<256x128xf32>
    %93 = tpu.matmul %91, %92, %cst_61 {dimension_numbers = #tpu.dot_dimension_numbers<[1], [0], [0], [1], [0, 0, 1, 1], [], []>} : vector<256x128xf32>, vector<128x128xf32>, vector<256x128xf32> -> vector<256x128xf32>
    %94 = arith.addf %89, %93 : vector<256x128xf32>
    %95 = vector.extract_strided_slice %68 {offsets = [1, 2, 0], sizes = [16, 16, 128], strides = [1, 1, 1]} : vector<18x18x128xf32> to vector<16x16x128xf32>
    %96 = vector.shape_cast %95 : vector<16x16x128xf32> to vector<256x128xf32>
    %c640_62 = arith.constant 640 : index
    %c0_63 = arith.constant 0 : index
    %97 = vector.load %arg5[%c640_62, %c0_63] : memref<1152x128xf32, #tpu.memory_space<vmem>>, vector<128x128xf32>
    %cst_64 = arith.constant dense<0.000000e+00> : vector<256x128xf32>
    %98 = tpu.matmul %96, %97, %cst_64 {dimension_numbers = #tpu.dot_dimension_numbers<[1], [0], [0], [1], [0, 0, 1, 1], [], []>} : vector<256x128xf32>, vector<128x128xf32>, vector<256x128xf32> -> vector<256x128xf32>
    %99 = arith.addf %94, %98 : vector<256x128xf32>
    %100 = vector.extract_strided_slice %68 {offsets = [2, 0, 0], sizes = [16, 16, 128], strides = [1, 1, 1]} : vector<18x18x128xf32> to vector<16x16x128xf32>
    %101 = vector.shape_cast %100 : vector<16x16x128xf32> to vector<256x128xf32>
    %c768_65 = arith.constant 768 : index
    %c0_66 = arith.constant 0 : index
    %102 = vector.load %arg5[%c768_65, %c0_66] : memref<1152x128xf32, #tpu.memory_space<vmem>>, vector<128x128xf32>
    %cst_67 = arith.constant dense<0.000000e+00> : vector<256x128xf32>
    %103 = tpu.matmul %101, %102, %cst_67 {dimension_numbers = #tpu.dot_dimension_numbers<[1], [0], [0], [1], [0, 0, 1, 1], [], []>} : vector<256x128xf32>, vector<128x128xf32>, vector<256x128xf32> -> vector<256x128xf32>
    %104 = arith.addf %99, %103 : vector<256x128xf32>
    %105 = vector.extract_strided_slice %68 {offsets = [2, 1, 0], sizes = [16, 16, 128], strides = [1, 1, 1]} : vector<18x18x128xf32> to vector<16x16x128xf32>
    %106 = vector.shape_cast %105 : vector<16x16x128xf32> to vector<256x128xf32>
    %c896_68 = arith.constant 896 : index
    %c0_69 = arith.constant 0 : index
    %107 = vector.load %arg5[%c896_68, %c0_69] : memref<1152x128xf32, #tpu.memory_space<vmem>>, vector<128x128xf32>
    %cst_70 = arith.constant dense<0.000000e+00> : vector<256x128xf32>
    %108 = tpu.matmul %106, %107, %cst_70 {dimension_numbers = #tpu.dot_dimension_numbers<[1], [0], [0], [1], [0, 0, 1, 1], [], []>} : vector<256x128xf32>, vector<128x128xf32>, vector<256x128xf32> -> vector<256x128xf32>
    %109 = arith.addf %104, %108 : vector<256x128xf32>
    %110 = vector.extract_strided_slice %68 {offsets = [2, 2, 0], sizes = [16, 16, 128], strides = [1, 1, 1]} : vector<18x18x128xf32> to vector<16x16x128xf32>
    %111 = vector.shape_cast %110 : vector<16x16x128xf32> to vector<256x128xf32>
    %c1024_71 = arith.constant 1024 : index
    %c0_72 = arith.constant 0 : index
    %112 = vector.load %arg5[%c1024_71, %c0_72] : memref<1152x128xf32, #tpu.memory_space<vmem>>, vector<128x128xf32>
    %cst_73 = arith.constant dense<0.000000e+00> : vector<256x128xf32>
    %113 = tpu.matmul %111, %112, %cst_73 {dimension_numbers = #tpu.dot_dimension_numbers<[1], [0], [0], [1], [0, 0, 1, 1], [], []>} : vector<256x128xf32>, vector<128x128xf32>, vector<256x128xf32> -> vector<256x128xf32>
    %114 = arith.addf %109, %113 : vector<256x128xf32>
    %c0_74 = arith.constant 0 : index
    %c0_75 = arith.constant 0 : index
    %115 = vector.load %arg6[%c0_74, %c0_75] : memref<1x128xf32, #tpu.memory_space<vmem>>, vector<1x128xf32>
    %116 = vector.broadcast %115 : vector<1x128xf32> to vector<256x128xf32>
    %117 = arith.mulf %114, %116 : vector<256x128xf32>
    %c0_76 = arith.constant 0 : index
    %c0_77 = arith.constant 0 : index
    %118 = vector.load %arg7[%c0_76, %c0_77] : memref<1x128xf32, #tpu.memory_space<vmem>>, vector<1x128xf32>
    %119 = vector.broadcast %118 : vector<1x128xf32> to vector<256x128xf32>
    %120 = arith.addf %117, %119 : vector<256x128xf32>
    %121 = arith.negf %120 : vector<256x128xf32>
    %122 = math.exp %121 : vector<256x128xf32>
    %cst_78 = arith.constant 1.000000e+00 : f32
    %123 = vector.broadcast %cst_78 : f32 to vector<256x128xf32>
    %124 = arith.addf %123, %122 : vector<256x128xf32>
    %125 = arith.divf %123, %124 : vector<256x128xf32>
    %126 = arith.mulf %120, %125 : vector<256x128xf32>
    %c0_79 = arith.constant 0 : index
    %c0_80 = arith.constant 0 : index
    %c0_81 = arith.constant 0 : index
    %c0_82 = arith.constant 0 : index
    %127 = vector.load %arg1[%c0_79, %c0_80, %c0_81, %c0_82] : memref<1x16x16x128xf32, #tpu.memory_space<vmem>>, vector<1x16x16x128xf32>
    %128 = vector.shape_cast %127 : vector<1x16x16x128xf32> to vector<16x16x128xf32>
    %129 = vector.shape_cast %128 : vector<16x16x128xf32> to vector<256x128xf32>
    %130 = arith.addf %126, %129 : vector<256x128xf32>
    %131 = vector.shape_cast %130 : vector<256x128xf32> to vector<16x16x128xf32>
    %c0_83 = arith.constant 0 : index
    %c0_84 = arith.constant 0 : index
    %c0_85 = arith.constant 0 : index
    %c0_86 = arith.constant 0 : index
    %132 = vector.load %arg8[%c0_83, %c0_84, %c0_85, %c0_86] : memref<1x16x16x128xf32, #tpu.memory_space<vmem>>, vector<1x16x16x128xf32>
    %133 = vector.shape_cast %132 : vector<1x16x16x128xf32> to vector<16x16x128xf32>
    %134 = vector.shape_cast %131 : vector<16x16x128xf32> to vector<1x16x16x128xf32>
    tpu.vector_store %arg8[%c0_83, %c0_84, %c0_85, %c0_86], %134 {strides = array<i32>} : memref<1x16x16x128xf32, #tpu.memory_space<vmem>>, vector<1x16x16x128xf32>,
    return
  }
  func.func @transform_0(%arg0: i32) -> (i32, i32, i32, i32) {
    %c0_i32 = arith.constant 0 : i32
    %c0_i32_0 = arith.constant 0 : i32
    %c0_i32_1 = arith.constant 0 : i32
    %c0_i32_2 = arith.constant 0 : i32
    return %arg0, %c0_i32, %c0_i32_0, %c0_i32_1 : i32, i32, i32, i32
  }
  func.func @transform_1(%arg0: i32) -> (i32, i32) {
    %c0_i32 = arith.constant 0 : i32
    %c0_i32_0 = arith.constant 0 : i32
    %c0_i32_1 = arith.constant 0 : i32
    return %c0_i32, %c0_i32_0 : i32, i32
  }
  func.func @transform_2(%arg0: i32) -> (i32, i32) {
    %c0_i32 = arith.constant 0 : i32
    %c0_i32_0 = arith.constant 0 : i32
    %c0_i32_1 = arith.constant 0 : i32
    return %c0_i32, %c0_i32_0 : i32, i32
  }
  func.func @transform_3(%arg0: i32) -> (i32, i32) {
    %c0_i32 = arith.constant 0 : i32
    %c0_i32_0 = arith.constant 0 : i32
    %c0_i32_1 = arith.constant 0 : i32
    return %c0_i32, %c0_i32_0 : i32, i32
  }
  func.func @transform_4(%arg0: i32) -> (i32, i32) {
    %c0_i32 = arith.constant 0 : i32
    %c0_i32_0 = arith.constant 0 : i32
    %c0_i32_1 = arith.constant 0 : i32
    return %c0_i32, %c0_i32_0 : i32, i32
  }
  func.func @transform_5(%arg0: i32) -> (i32, i32) {
    %c0_i32 = arith.constant 0 : i32
    %c0_i32_0 = arith.constant 0 : i32
    %c0_i32_1 = arith.constant 0 : i32
    return %c0_i32, %c0_i32_0 : i32, i32
  }
  func.func @transform_6(%arg0: i32) -> (i32, i32) {
    %c0_i32 = arith.constant 0 : i32
    %c0_i32_0 = arith.constant 0 : i32
    %c0_i32_1 = arith.constant 0 : i32
    return %c0_i32, %c0_i32_0 : i32, i32
  }
  func.func @transform_7(%arg0: i32) -> (i32, i32, i32, i32) {
    %c0_i32 = arith.constant 0 : i32
    %c0_i32_0 = arith.constant 0 : i32
    %c0_i32_1 = arith.constant 0 : i32
    %c0_i32_2 = arith.constant 0 : i32
    return %arg0, %c0_i32, %c0_i32_0, %c0_i32_1 : i32, i32, i32, i32
  }
}

</mosaic_0001>

<llo_original>
// kernel: bottleneck_forward.1
$region0: #{bottleneck_forward.1}
  #allocation0 [shape = 'u32[]', space=smem, size = 0x4, offset = 0x4, fixed_abs, tag = 'smem constant byte address 0x4 - core index']
  #allocation1 [shape = 'u32[144,128]{1,0:T(1,128)}', space=vmem, size = 0x12000, scoped, tag = 'internal scratch']
  #allocation2 [shape = 'f32[18,18,128]{2,1,0:T(8,128)}', space=vmem, size = 0x36000, scoped, tag = 'scratch operand']
  #allocation3 [shape = 'f32[18,18,128]{2,1,0:T(8,128)}', space=vmem, size = 0x36000, scoped, tag = 'scratch operand']
  %s0 = inlined_call_operand.vmem [shape: f32[2,16,16,128], index: 0, kind: input, shape index: {}]
  %s1 = inlined_call_operand.vmem [shape: f32[1152,128], index: 1, kind: input, shape index: {}]
  %s2 = inlined_call_operand.vmem [shape: f32[1,128], index: 2, kind: input, shape index: {}]
  %s3 = inlined_call_operand.vmem [shape: f32[1,128], index: 3, kind: input, shape index: {}]
  %s4 = inlined_call_operand.hbm [shape: f32[1152,128], index: 4, kind: input, shape index: {}]
  %s5 = inlined_call_operand.vmem [shape: f32[1,128], index: 5, kind: input, shape index: {}]
  %s6 = inlined_call_operand.vmem [shape: f32[1,128], index: 6, kind: input, shape index: {}]
  %s7 = inlined_call_operand.vmem [shape: f32[2,16,16,128], index: 7, kind: output, shape index: {}]
  %s8 = sld [smem:[#allocation0]]
  $region65: #{bottleneck_forward.1} parent=0
    _
  %s10 = ssub.s32 1, %s8
  %s11 = scalar_select 0, %s10, %s8
  $region1: #{bottleneck_forward.1} parent=0
    #allocation4 [shape = 'u8[589824]{0}', space=vmem, size = 0x90000, scoped, tag = 'input window, operand 4, single buffered']
    #allocation5 [shape = 's32[2]{0}', space=sflag, size = 0x8, scoped, tag = 'scoped memory for bottleneck_forward.1']
    %12 = vsyncpa [#allocation5], 0
    loop: start=0, step=1, limit=4
    $region2: #{bottleneck_forward.1} parent=1 // loop_pre_header
      _
    $region3: #{bottleneck_forward.1} parent=1 // loop_header
      %s14 = sphi 0, %s18
      %p15 = scmp.ge.s32.totalorder %s14, 4
      %s24 = sphi 0, %s26
      %s27 = sphi 0, %s24
      %s28 = sphi 0, %s27
      %s44 = sphi 0, %s28
      %s48 = sphi 0, %s48
      %s50 = sphi 0, %s48
      %s51 = sphi 0, %s50
      %s65 = sphi 0, %s51
      %s69 = sphi 0, %s69
      %s71 = sphi 0, %s69
      %s72 = sphi 0, %s71
      %s86 = sphi 0, %s72
      %s90 = sphi 0, %s90
      %s92 = sphi 0, %s90
      %s93 = sphi 0, %s92
      %s107 = sphi 0, %s93
      %s111 = sphi 0, %s111
      %s113 = sphi 0, %s111
      %s114 = sphi 0, %s113
      %s128 = sphi 0, %s114
      %s132 = sphi 0, %s132
      %s134 = sphi 0, %s132
      %s135 = sphi 0, %s134
      %s149 = sphi 0, %s135
      %s153 = sphi 0, %s153
      %s155 = sphi 0, %s153
      %s156 = sphi 0, %s155
      %s170 = sphi 0, %s156
      %s176 = sphi 0, %s178
      %s179 = sphi 0, %s176
      %s180 = sphi 0, %s179
      %s196 = sphi 0, %s180
    $region4: #{bottleneck_forward.1} parent=1 // loop_header_branch
      %17 = sbr.rel (%p15) target = $region8
    $region5: #{bottleneck_forward.1} parent=1 // loop_body
      %s19 = ssub.s32 %s14, 1
      %s20 = ssub.s32 %s14, 2
      %s21 = sadd.s32 %s14, 1
      %s22 = ssub.s32 %s14, %s21
      %p23 = scmp.eq.s32.totalorder %s22, 0
      %s25 = sadd.s32 %s24, 1
      %s26 = scalar_select %p23, %s24, %s25
      %p29 = pneg %p23
      %p30 = scmp.eq.s32.totalorder %s14, 1
      %p31 = por %p29, %p30
      %p32 = scmp.ne.s32.totalorder %s24, %s27
      %p33 = scmp.eq.s32.totalorder %s14, 0
      %p34 = por %p32, %p33
      %p35 = scmp.ne.s32.totalorder %s24, %s27
      %p36 = scmp.eq.s32.totalorder %s19, 1
      %p37 = por %p35, %p36
      %p38 = scmp.ne.s32.totalorder %s27, %s28
      %p39 = scmp.eq.s32.totalorder %s19, 0
      %p40 = por %p38, %p39
      %p41 = scmp.ne.s32.totalorder %s27, %s28
      %p42 = scmp.eq.s32.totalorder %s20, 1
      %p43 = por %p41, %p42
      %p45 = scmp.ne.s32.totalorder %s28, %s44
      %p46 = scmp.eq.s32.totalorder %s20, 0
      %p47 = por %p45, %p46
      %s49 = sadd.s32 %s48, 1
      %p52 = scmp.eq.s32.totalorder %s14, 1
      %p53 = scmp.ne.s32.totalorder %s48, %s50
      %p54 = scmp.eq.s32.totalorder %s14, 0
      %p55 = por %p53, %p54
      %p56 = scmp.ne.s32.totalorder %s48, %s50
      %p57 = scmp.eq.s32.totalorder %s19, 1
      %p58 = por %p56, %p57
      %p59 = scmp.ne.s32.totalorder %s50, %s51
      %p60 = scmp.eq.s32.totalorder %s19, 0
      %p61 = por %p59, %p60
      %p62 = scmp.ne.s32.totalorder %s50, %s51
      %p63 = scmp.eq.s32.totalorder %s20, 1
      %p64 = por %p62, %p63
      %p66 = scmp.ne.s32.totalorder %s51, %s65
      %p67 = scmp.eq.s32.totalorder %s20, 0
      %p68 = por %p66, %p67
      %s70 = sadd.s32 %s69, 1
      %p73 = scmp.eq.s32.totalorder %s14, 1
      %p74 = scmp.ne.s32.totalorder %s69, %s71
      %p75 = scmp.eq.s32.totalorder %s14, 0
      %p76 = por %p74, %p75
      %p77 = scmp.ne.s32.totalorder %s69, %s71
      %p78 = scmp.eq.s32.totalorder %s19, 1
      %p79 = por %p77, %p78
      %p80 = scmp.ne.s32.totalorder %s71, %s72
      %p81 = scmp.eq.s32.totalorder %s19, 0
      %p82 = por %p80, %p81
      %p83 = scmp.ne.s32.totalorder %s71, %s72
      %p84 = scmp.eq.s32.totalorder %s20, 1
      %p85 = por %p83, %p84
      %p87 = scmp.ne.s32.totalorder %s72, %s86
      %p88 = scmp.eq.s32.totalorder %s20, 0
      %p89 = por %p87, %p88
      %s91 = sadd.s32 %s90, 1
      %p94 = scmp.eq.s32.totalorder %s14, 1
      %p95 = scmp.ne.s32.totalorder %s90, %s92
      %p96 = scmp.eq.s32.totalorder %s14, 0
      %p97 = por %p95, %p96
      %p98 = scmp.ne.s32.totalorder %s90, %s92
      %p99 = scmp.eq.s32.totalorder %s19, 1
      %p100 = por %p98, %p99
      %p101 = scmp.ne.s32.totalorder %s92, %s93
      %p102 = scmp.eq.s32.totalorder %s19, 0
      %p103 = por %p101, %p102
      %p104 = scmp.ne.s32.totalorder %s92, %s93
      %p105 = scmp.eq.s32.totalorder %s20, 1
      %p106 = por %p104, %p105
      %p108 = scmp.ne.s32.totalorder %s93, %s107
      %p109 = scmp.eq.s32.totalorder %s20, 0
      %p110 = por %p108, %p109
      %s112 = sadd.s32 %s111, 1
      %p115 = scmp.eq.s32.totalorder %s14, 1
      %p116 = scmp.ne.s32.totalorder %s111, %s113
      %p117 = scmp.eq.s32.totalorder %s14, 0
      %p118 = por %p116, %p117
      %p119 = scmp.ne.s32.totalorder %s111, %s113
      %p120 = scmp.eq.s32.totalorder %s19, 1
      %p121 = por %p119, %p120
      %p122 = scmp.ne.s32.totalorder %s113, %s114
      %p123 = scmp.eq.s32.totalorder %s19, 0
      %p124 = por %p122, %p123
      %p125 = scmp.ne.s32.totalorder %s113, %s114
      %p126 = scmp.eq.s32.totalorder %s20, 1
      %p127 = por %p125, %p126
      %p129 = scmp.ne.s32.totalorder %s114, %s128
      %p130 = scmp.eq.s32.totalorder %s20, 0
      %p131 = por %p129, %p130
      %s133 = sadd.s32 %s132, 1
      %p136 = scmp.eq.s32.totalorder %s14, 1
      %p137 = scmp.ne.s32.totalorder %s132, %s134
      %p138 = scmp.eq.s32.totalorder %s14, 0
      %p139 = por %p137, %p138
      %p140 = scmp.ne.s32.totalorder %s132, %s134
      %p141 = scmp.eq.s32.totalorder %s19, 1
      %p142 = por %p140, %p141
      %p143 = scmp.ne.s32.totalorder %s134, %s135
      %p144 = scmp.eq.s32.totalorder %s19, 0
      %p145 = por %p143, %p144
      %p146 = scmp.ne.s32.totalorder %s134, %s135
      %p147 = scmp.eq.s32.totalorder %s20, 1
      %p148 = por %p146, %p147
      %p150 = scmp.ne.s32.totalorder %s135, %s149
      %p151 = scmp.eq.s32.totalorder %s20, 0
      %p152 = por %p150, %p151
      %s154 = sadd.s32 %s153, 1
      %p157 = scmp.eq.s32.totalorder %s14, 1
      %p158 = scmp.ne.s32.totalorder %s153, %s155
      %p159 = scmp.eq.s32.totalorder %s14, 0
      %p160 = por %p158, %p159
      %p161 = scmp.ne.s32.totalorder %s153, %s155
      %p162 = scmp.eq.s32.totalorder %s19, 1
      %p163 = por %p161, %p162
      %p164 = scmp.ne.s32.totalorder %s155, %s156
      %p165 = scmp.eq.s32.totalorder %s19, 0
      %p166 = por %p164, %p165
      %p167 = scmp.ne.s32.totalorder %s155, %s156
      %p168 = scmp.eq.s32.totalorder %s20, 1
      %p169 = por %p167, %p168
      %p171 = scmp.ne.s32.totalorder %s156, %s170
      %p172 = scmp.eq.s32.totalorder %s20, 0
      %p173 = por %p171, %p172
      %s174 = ssub.s32 %s14, %s21
      %p175 = scmp.eq.s32.totalorder %s174, 0
      %s177 = sadd.s32 %s176, 1
      %s178 = scalar_select %p175, %s176, %s177
      %p181 = pneg %p175
      %p182 = scmp.eq.s32.totalorder %s14, 1
      %p183 = por %p181, %p182
      %p184 = scmp.ne.s32.totalorder %s176, %s179
      %p185 = scmp.eq.s32.totalorder %s14, 0
      %p186 = por %p184, %p185
      %p187 = scmp.ne.s32.totalorder %s176, %s179
      %p188 = scmp.eq.s32.totalorder %s19, 1
      %p189 = por %p187, %p188
      %p190 = scmp.ne.s32.totalorder %s179, %s180
      %p191 = scmp.eq.s32.totalorder %s19, 0
      %p192 = por %p190, %p191
      %p193 = scmp.ne.s32.totalorder %s179, %s180
      %p194 = scmp.eq.s32.totalorder %s20, 1
      %p195 = por %p193, %p194
      %p197 = scmp.ne.s32.totalorder %s180, %s196
      %p198 = scmp.eq.s32.totalorder %s20, 0
      %p199 = por %p197, %p198
      %p200 = scmp.le.s32.totalorder 1, %s14
      %p201 = scmp.lt.s32.totalorder %s14, 3
      %p202 = pnand %p200, %p201
      %p203 = pneg %p202
      // Predicated region
      $region9: #{bottleneck_forward.1} parent=5 // pred_check
        _
      $region10: #{bottleneck_forward.1} parent=5 // pred_check_branch
        %205 = sbr.rel (%p202) target = $region12
      $region11: #{bottleneck_forward.1} parent=5 // pred_region
        %s206 = ssub.s32 %s14, 1
        // Predicated region
        $region13: #{bottleneck_forward.1} parent=11 // pred_check
          %p207 = pneg %p61
        $region14: #{bottleneck_forward.1} parent=11 // pred_check_branch
          %209 = sbr.rel (%p207) target = $region16
        $region15: #{bottleneck_forward.1} parent=11 // pred_region
          _
        $region16: #{bottleneck_forward.1} parent=11 // pred_fallthru
          _
        // Predicated region
        $region17: #{bottleneck_forward.1} parent=11 // pred_check
          %p210 = pneg %p82
        $region18: #{bottleneck_forward.1} parent=11 // pred_check_branch
          %212 = sbr.rel (%p210) target = $region20
        $region19: #{bottleneck_forward.1} parent=11 // pred_region
          _
        $region20: #{bottleneck_forward.1} parent=11 // pred_fallthru
          _
        // Predicated region
        $region21: #{bottleneck_forward.1} parent=11 // pred_check
          %p213 = pneg %p103
        $region22: #{bottleneck_forward.1} parent=11 // pred_check_branch
          %215 = sbr.rel (%p213) target = $region24
        $region23: #{bottleneck_forward.1} parent=11 // pred_region
          _
        $region24: #{bottleneck_forward.1} parent=11 // pred_fallthru
          _
        // Predicated region
        $region25: #{bottleneck_forward.1} parent=11 // pred_check
          %p216 = pneg %p124
        $region26: #{bottleneck_forward.1} parent=11 // pred_check_branch
          %218 = sbr.rel (%p216) target = $region28
        $region27: #{bottleneck_forward.1} parent=11 // pred_region
          %s220 = ssub.s32 18432, 18432
          %221 = vsyncadd [#allocation5], %s220
          %s222 = sshll.u32 [#allocation4], 4
          %s223 = int_to_ptr.vmem [resolvable:$true] %s222
          %228 = dma.hbm_to_vmem [thread:$0]  %s4, 18432, %s223, [#allocation5], 128, 128, 8
        $region28: #{bottleneck_forward.1} parent=11 // pred_fallthru
          _
        // Predicated region
        $region29: #{bottleneck_forward.1} parent=11 // pred_check
          %p229 = pneg %p145
        $region30: #{bottleneck_forward.1} parent=11 // pred_check_branch
          %231 = sbr.rel (%p229) target = $region32
        $region31: #{bottleneck_forward.1} parent=11 // pred_region
          _
        $region32: #{bottleneck_forward.1} parent=11 // pred_fallthru
          _
        // Predicated region
        $region33: #{bottleneck_forward.1} parent=11 // pred_check
          %p232 = pneg %p166
        $region34: #{bottleneck_forward.1} parent=11 // pred_check_branch
          %234 = sbr.rel (%p232) target = $region36
        $region35: #{bottleneck_forward.1} parent=11 // pred_region
          _
        $region36: #{bottleneck_forward.1} parent=11 // pred_fallthru
          _
      $region12: #{bottleneck_forward.1} parent=5 // pred_fallthru
        _
      %p235 = scmp.lt.s32.totalorder %s14, 2
      // Predicated region
      $region37: #{bottleneck_forward.1} parent=5 // pred_check
        %p236 = pneg %p235
      $region38: #{bottleneck_forward.1} parent=5 // pred_check_branch
        %238 = sbr.rel (%p236) target = $region40
      $region39: #{bottleneck_forward.1} parent=5 // pred_region
        // Predicated region
        $region41: #{bottleneck_forward.1} parent=39 // pred_check
          %p239 = pneg %p34
        $region42: #{bottleneck_forward.1} parent=39 // pred_check_branch
          %241 = sbr.rel (%p239) target = $region44
        $region43: #{bottleneck_forward.1} parent=39 // pred_region
          %p242 = scmp.lt.s32.totalorder %s14, 1
          %s243 = scalar_select %p242, %s14, 1
          %s244 = smul.addr %s243, 32
          %s245 = smul.addr %s244, 8
          %s246 = scalar_lea.vmem %s0, %s245
        $region44: #{bottleneck_forward.1} parent=39 // pred_fallthru
          _
      $region40: #{bottleneck_forward.1} parent=5 // pred_fallthru
        _
      %p247 = scmp.le.s32.totalorder 1, %s14
      %p248 = scmp.lt.s32.totalorder %s14, 3
      %p249 = pnand %p247, %p248
      %p250 = pneg %p249
      // Predicated region
      $region45: #{bottleneck_forward.1} parent=5 // pred_check
        _
      $region46: #{bottleneck_forward.1} parent=5 // pred_check_branch
        %252 = sbr.rel (%p249) target = $region48
      $region47: #{bottleneck_forward.1} parent=5 // pred_region
        %s253 = ssub.s32 %s14, 1
        // Predicated region
        $region49: #{bottleneck_forward.1} parent=47 // pred_check
          %p254 = pneg %p124
        $region50: #{bottleneck_forward.1} parent=47 // pred_check_branch
          %256 = sbr.rel (%p254) target = $region52
        $region51: #{bottleneck_forward.1} parent=47 // pred_region
          %257 = dma.done [#allocation5], 18432
        $region52: #{bottleneck_forward.1} parent=47 // pred_fallthru
          _
        %p258 = scmp.lt.s32.totalorder %s19, 1
        %s259 = scalar_select %p258, %s19, 1
        %s260 = smul.addr %s259, 32
        %s261 = smul.addr %s260, 8
        %s262 = scalar_lea.vmem %s0, %s261
        %p263 = pneg %p40
        %p264 = pneg %p37
        %p265 = pneg %p61
        %p266 = pneg %p58
        %p267 = pneg %p82
        %p268 = pneg %p79
        %p269 = pneg %p103
        %p270 = pneg %p100
        %p271 = pneg %p124
        %p272 = pneg %p121
        %p273 = pneg %p145
        %p274 = pneg %p142
        %p275 = pneg %p166
        %p276 = pneg %p163
        %p277 = pneg %p192
        %p278 = pneg %p189
        %p279 = scmp.lt.s32.totalorder %s19, 1
        %s280 = scalar_select %p279, %s19, 1
        %s281 = smul.addr %s280, 32
        %s282 = smul.addr %s281, 8
        %s283 = scalar_lea.vmem %s7, %s282
        %p284 = scmp.lt.s32.totalorder %s19, 1
        %s285 = scalar_select %p284, %s19, 1
        %s286 = smul.addr %s285, 32
        %s287 = smul.addr %s286, 8
        %s288 = scalar_lea.vmem %s0, %s287
        %p289 = scmp.lt.s32.totalorder %s19, 1
        %s290 = scalar_select %p289, %s19, 1
        %s291 = smul.addr %s290, 32
        %s292 = smul.addr %s291, 8
        %s293 = scalar_lea.vmem %s7, %s292
        %294 = vst [vmem:[#allocation2] sm:$0xff] 0.0
        %295 = vst [vmem:[#allocation2 + $0x8] sm:$0xff] 0.0
        %296 = vst [vmem:[#allocation2 + $0x10] sm:$0x3] 0.0
        %297 = vst [vmem:[#allocation2 + $0x18] sm:$0xff] 0.0
        %298 = vst [vmem:[#allocation2 + $0x20] sm:$0xff] 0.0
        %299 = vst [vmem:[#allocation2 + $0x28] sm:$0x3] 0.0
        %300 = vst [vmem:[#allocation2 + $0x30] sm:$0xff] 0.0
        %301 = vst [vmem:[#allocation2 + $0x38] sm:$0xff] 0.0
        %302 = vst [vmem:[#allocation2 + $0x40] sm:$0x3] 0.0
        %303 = vst [vmem:[#allocation2 + $0x48] sm:$0xff] 0.0
        %304 = vst [vmem:[#allocation2 + $0x50] sm:$0xff] 0.0
        %305 = vst [vmem:[#allocation2 + $0x58] sm:$0x3] 0.0
        %306 = vst [vmem:[#allocation2 + $0x60] sm:$0xff] 0.0
        %307 = vst [vmem:[#allocation2 + $0x68] sm:$0xff] 0.0
        %308 = vst [vmem:[#allocation2 + $0x70] sm:$0x3] 0.0
        %309 = vst [vmem:[#allocation2 + $0x78] sm:$0xff] 0.0
        %310 = vst [vmem:[#allocation2 + $0x80] sm:$0xff] 0.0
        %311 = vst [vmem:[#allocation2 + $0x88] sm:$0x3] 0.0
        %312 = vst [vmem:[#allocation2 + $0x90] sm:$0xff] 0.0
        %313 = vst [vmem:[#allocation2 + $0x98] sm:$0xff] 0.0
        %314 = vst [vmem:[#allocation2 + $0xa0] sm:$0x3] 0.0
        %315 = vst [vmem:[#allocation2 + $0xa8] sm:$0xff] 0.0
        %316 = vst [vmem:[#allocation2 + $0xb0] sm:$0xff] 0.0
        %317 = vst [vmem:[#allocation2 + $0xb8] sm:$0x3] 0.0
        %318 = vst [vmem:[#allocation2 + $0xc0] sm:$0xff] 0.0
        %319 = vst [vmem:[#allocation2 + $0xc8] sm:$0xff] 0.0
        %320 = vst [vmem:[#allocation2 + $0xd0] sm:$0x3] 0.0
        %321 = vst [vmem:[#allocation2 + $0xd8] sm:$0xff] 0.0
        %322 = vst [vmem:[#allocation2 + $0xe0] sm:$0xff] 0.0
        %323 = vst [vmem:[#allocation2 + $0xe8] sm:$0x3] 0.0
        %324 = vst [vmem:[#allocation2 + $0xf0] sm:$0xff] 0.0
        %325 = vst [vmem:[#allocation2 + $0xf8] sm:$0xff] 0.0
        %326 = vst [vmem:[#allocation2 + $0x100] sm:$0x3] 0.0
        %327 = vst [vmem:[#allocation2 + $0x108] sm:$0xff] 0.0
        %328 = vst [vmem:[#allocation2 + $0x110] sm:$0xff] 0.0
        %329 = vst [vmem:[#allocation2 + $0x118] sm:$0x3] 0.0
        %330 = vst [vmem:[#allocation2 + $0x120] sm:$0xff] 0.0
        %331 = vst [vmem:[#allocation2 + $0x128] sm:$0xff] 0.0
        %332 = vst [vmem:[#allocation2 + $0x130] sm:$0x3] 0.0
        %333 = vst [vmem:[#allocation2 + $0x138] sm:$0xff] 0.0
        %334 = vst [vmem:[#allocation2 + $0x140] sm:$0xff] 0.0
        %335 = vst [vmem:[#allocation2 + $0x148] sm:$0x3] 0.0
        %336 = vst [vmem:[#allocation2 + $0x150] sm:$0xff] 0.0
        %337 = vst [vmem:[#allocation2 + $0x158] sm:$0xff] 0.0
        %338 = vst [vmem:[#allocation2 + $0x160] sm:$0x3] 0.0
        %339 = vst [vmem:[#allocation2 + $0x168] sm:$0xff] 0.0
        %340 = vst [vmem:[#allocation2 + $0x170] sm:$0xff] 0.0
        %341 = vst [vmem:[#allocation2 + $0x178] sm:$0x3] 0.0
        %342 = vst [vmem:[#allocation2 + $0x180] sm:$0xff] 0.0
        %343 = vst [vmem:[#allocation2 + $0x188] sm:$0xff] 0.0
        %344 = vst [vmem:[#allocation2 + $0x190] sm:$0x3] 0.0
        %345 = vst [vmem:[#allocation2 + $0x198] sm:$0xff] 0.0
        %346 = vst [vmem:[#allocation2 + $0x1a0] sm:$0xff] 0.0
        %347 = vst [vmem:[#allocation2 + $0x1a8] sm:$0x3] 0.0
        %v348 = vld [vmem:[%s288] sm:$0xff]
        %v349 = vld [vmem:[%s288 + $0x8] sm:$0xff]
        %v350 = vld [vmem:[%s288 + $0x10] sm:$0xff]
        %v351 = vld [vmem:[%s288 + $0x18] sm:$0xff]
        %v352 = vld [vmem:[%s288 + $0x20] sm:$0xff]
        %v353 = vld [vmem:[%s288 + $0x28] sm:$0xff]
        %v354 = vld [vmem:[%s288 + $0x30] sm:$0xff]
        %v355 = vld [vmem:[%s288 + $0x38] sm:$0xff]
        %v356 = vld [vmem:[%s288 + $0x40] sm:$0xff]
        %v357 = vld [vmem:[%s288 + $0x48] sm:$0xff]
        %v358 = vld [vmem:[%s288 + $0x50] sm:$0xff]
        %v359 = vld [vmem:[%s288 + $0x58] sm:$0xff]
        %v360 = vld [vmem:[%s288 + $0x60] sm:$0xff]
        %v361 = vld [vmem:[%s288 + $0x68] sm:$0xff]
        %v362 = vld [vmem:[%s288 + $0x70] sm:$0xff]
        %v363 = vld [vmem:[%s288 + $0x78] sm:$0xff]
        %v364 = vld [vmem:[%s288 + $0x80] sm:$0xff]
        %v365 = vld [vmem:[%s288 + $0x88] sm:$0xff]
        %v366 = vld [vmem:[%s288 + $0x90] sm:$0xff]
        %v367 = vld [vmem:[%s288 + $0x98] sm:$0xff]
        %v368 = vld [vmem:[%s288 + $0xa0] sm:$0xff]
        %v369 = vld [vmem:[%s288 + $0xa8] sm:$0xff]
        %v370 = vld [vmem:[%s288 + $0xb0] sm:$0xff]
        %v371 = vld [vmem:[%s288 + $0xb8] sm:$0xff]
        %v372 = vld [vmem:[%s288 + $0xc0] sm:$0xff]
        %v373 = vld [vmem:[%s288 + $0xc8] sm:$0xff]
        %v374 = vld [vmem:[%s288 + $0xd0] sm:$0xff]
        %v375 = vld [vmem:[%s288 + $0xd8] sm:$0xff]
        %v376 = vld [vmem:[%s288 + $0xe0] sm:$0xff]
        %v377 = vld [vmem:[%s288 + $0xe8] sm:$0xff]
        %v378 = vld [vmem:[%s288 + $0xf0] sm:$0xff]
        %v379 = vld [vmem:[%s288 + $0xf8] sm:$0xff]
        %s380 = scalar_lea.vmem [#allocation2], 24
        %381 = vst [vmem:[%s380 + $0x1] sm:$0xff] %v348
        %382 = vst [vmem:[%s380 + $0x9] sm:$0xff] %v349
        %383 = vst [vmem:[%s380 + $0x19] sm:$0xff] %v350
        %384 = vst [vmem:[%s380 + $0x21] sm:$0xff] %v351
        %385 = vst [vmem:[%s380 + $0x31] sm:$0xff] %v352
        %386 = vst [vmem:[%s380 + $0x39] sm:$0xff] %v353
        %387 = vst [vmem:[%s380 + $0x49] sm:$0xff] %v354
        %388 = vst [vmem:[%s380 + $0x51] sm:$0xff] %v355
        %389 = vst [vmem:[%s380 + $0x61] sm:$0xff] %v356
        %390 = vst [vmem:[%s380 + $0x69] sm:$0xff] %v357
        %391 = vst [vmem:[%s380 + $0x79] sm:$0xff] %v358
        %392 = vst [vmem:[%s380 + $0x81] sm:$0xff] %v359
        %393 = vst [vmem:[%s380 + $0x91] sm:$0xff] %v360
        %394 = vst [vmem:[%s380 + $0x99] sm:$0xff] %v361
        %395 = vst [vmem:[%s380 + $0xa9] sm:$0xff] %v362
        %396 = vst [vmem:[%s380 + $0xb1] sm:$0xff] %v363
        %397 = vst [vmem:[%s380 + $0xc1] sm:$0xff] %v364
        %398 = vst [vmem:[%s380 + $0xc9] sm:$0xff] %v365
        %399 = vst [vmem:[%s380 + $0xd9] sm:$0xff] %v366
        %400 = vst [vmem:[%s380 + $0xe1] sm:$0xff] %v367
        %401 = vst [vmem:[%s380 + $0xf1] sm:$0xff] %v368
        %402 = vst [vmem:[%s380 + $0xf9] sm:$0xff] %v369
        %403 = vst [vmem:[%s380 + $0x109] sm:$0xff] %v370
        %404 = vst [vmem:[%s380 + $0x111] sm:$0xff] %v371
        %405 = vst [vmem:[%s380 + $0x121] sm:$0xff] %v372
        %406 = vst [vmem:[%s380 + $0x129] sm:$0xff] %v373
        %407 = vst [vmem:[%s380 + $0x139] sm:$0xff] %v374
        %408 = vst [vmem:[%s380 + $0x141] sm:$0xff] %v375
        %409 = vst [vmem:[%s380 + $0x151] sm:$0xff] %v376
        %410 = vst [vmem:[%s380 + $0x159] sm:$0xff] %v377
        %411 = vst [vmem:[%s380 + $0x169] sm:$0xff] %v378
        %412 = vst [vmem:[%s380 + $0x171] sm:$0xff] %v379
        %v413 = vld [vmem:[#allocation2] sm:$0xff]
        %v414 = vld [vmem:[#allocation2 + $0x8] sm:$0xff]
        %v415 = vld [vmem:[#allocation2 + $0x10] sm:$0x3]
        %v416 = vld [vmem:[#allocation2 + $0x18] sm:$0xff]
        %v417 = vld [vmem:[#allocation2 + $0x20] sm:$0xff]
        %v418 = vld [vmem:[#allocation2 + $0x28] sm:$0x3]
        %v419 = vld [vmem:[#allocation2 + $0x30] sm:$0xff]
        %v420 = vld [vmem:[#allocation2 + $0x38] sm:$0xff]
        %v421 = vld [vmem:[#allocation2 + $0x40] sm:$0x3]
        %v422 = vld [vmem:[#allocation2 + $0x48] sm:$0xff]
        %v423 = vld [vmem:[#allocation2 + $0x50] sm:$0xff]
        %v424 = vld [vmem:[#allocation2 + $0x58] sm:$0x3]
        %v425 = vld [vmem:[#allocation2 + $0x60] sm:$0xff]
        %v426 = vld [vmem:[#allocation2 + $0x68] sm:$0xff]
        %v427 = vld [vmem:[#allocation2 + $0x70] sm:$0x3]
        %v428 = vld [vmem:[#allocation2 + $0x78] sm:$0xff]
        %v429 = vld [vmem:[#allocation2 + $0x80] sm:$0xff]
        %v430 = vld [vmem:[#allocation2 + $0x88] sm:$0x3]
        %v431 = vld [vmem:[#allocation2 + $0x90] sm:$0xff]
        %v432 = vld [vmem:[#allocation2 + $0x98] sm:$0xff]
        %v433 = vld [vmem:[#allocation2 + $0xa0] sm:$0x3]
        %v434 = vld [vmem:[#allocation2 + $0xa8] sm:$0xff]
        %v435 = vld [vmem:[#allocation2 + $0xb0] sm:$0xff]
        %v436 = vld [vmem:[#allocation2 + $0xb8] sm:$0x3]
        %v437 = vld [vmem:[#allocation2 + $0xc0] sm:$0xff]
        %v438 = vld [vmem:[#allocation2 + $0xc8] sm:$0xff]
        %v439 = vld [vmem:[#allocation2 + $0xd0] sm:$0x3]
        %v440 = vld [vmem:[#allocation2 + $0xd8] sm:$0xff]
        %v441 = vld [vmem:[#allocation2 + $0xe0] sm:$0xff]
        %v442 = vld [vmem:[#allocation2 + $0xe8] sm:$0x3]
        %v443 = vld [vmem:[#allocation2 + $0xf0] sm:$0xff]
        %v444 = vld [vmem:[#allocation2 + $0xf8] sm:$0xff]
        %v445 = vld [vmem:[#allocation2 + $0x100] sm:$0x3]
        %v446 = vld [vmem:[#allocation2 + $0x108] sm:$0xff]
        %v447 = vld [vmem:[#allocation2 + $0x110] sm:$0xff]
        %v448 = vld [vmem:[#allocation2 + $0x118] sm:$0x3]
        %v449 = vld [vmem:[#allocation2 + $0x120] sm:$0xff]
        %v450 = vld [vmem:[#allocation2 + $0x128] sm:$0xff]
        %v451 = vld [vmem:[#allocation2 + $0x130] sm:$0x3]
        %v452 = vld [vmem:[#allocation2 + $0x138] sm:$0xff]
        %v453 = vld [vmem:[#allocation2 + $0x140] sm:$0xff]
        %v454 = vld [vmem:[#allocation2 + $0x148] sm:$0x3]
        %v455 = vld [vmem:[#allocation2 + $0x150] sm:$0xff]
        %v456 = vld [vmem:[#allocation2 + $0x158] sm:$0xff]
        %v457 = vld [vmem:[#allocation2 + $0x160] sm:$0x3]
        %v458 = vld [vmem:[#allocation2 + $0x168] sm:$0xff]
        %v459 = vld [vmem:[#allocation2 + $0x170] sm:$0xff]
        %v460 = vld [vmem:[#allocation2 + $0x178] sm:$0x3]
        %v461 = vld [vmem:[#allocation2 + $0x180] sm:$0xff]
        %v462 = vld [vmem:[#allocation2 + $0x188] sm:$0xff]
        %v463 = vld [vmem:[#allocation2 + $0x190] sm:$0x3]
        %v464 = vld [vmem:[#allocation2 + $0x198] sm:$0xff]
        %v465 = vld [vmem:[#allocation2 + $0x1a0] sm:$0xff]
        %v466 = vld [vmem:[#allocation2 + $0x1a8] sm:$0x3]
        %v467 = vld [vmem:[%s1] sm:$0xff]
        %v468 = vld [vmem:[%s1 + $0x8] sm:$0xff]
        %v469 = vld [vmem:[%s1 + $0x10] sm:$0xff]
        %v470 = vld [vmem:[%s1 + $0x18] sm:$0xff]
        %v471 = vld [vmem:[%s1 + $0x20] sm:$0xff]
        %v472 = vld [vmem:[%s1 + $0x28] sm:$0xff]
        %v473 = vld [vmem:[%s1 + $0x30] sm:$0xff]
        %v474 = vld [vmem:[%s1 + $0x38] sm:$0xff]
        %v475 = vld [vmem:[%s1 + $0x40] sm:$0xff]
        %v476 = vld [vmem:[%s1 + $0x48] sm:$0xff]
        %v477 = vld [vmem:[%s1 + $0x50] sm:$0xff]
        %v478 = vld [vmem:[%s1 + $0x58] sm:$0xff]
        %v479 = vld [vmem:[%s1 + $0x60] sm:$0xff]
        %v480 = vld [vmem:[%s1 + $0x68] sm:$0xff]
        %v481 = vld [vmem:[%s1 + $0x70] sm:$0xff]
        %v482 = vld [vmem:[%s1 + $0x78] sm:$0xff]
        %vm531 = vcmask 1046528
        %v532 = vrot.slane %v413, 1
        %v533 = vrot.slane %v414, 1
        %v534 = vsel %vm531, %v532, %v533
        %v535 = vrot.slane %v415, 1
        %v536 = vsel %vm531, %v533, %v535
        %v537 = vrot.slane %v416, 1
        %v538 = vrot.slane %v417, 1
        %v539 = vsel %vm531, %v537, %v538
        %v540 = vrot.slane %v418, 1
        %v541 = vsel %vm531, %v538, %v540
        %v542 = vrot.slane %v419, 1
        %v543 = vrot.slane %v420, 1
        %v544 = vsel %vm531, %v542, %v543
        %v545 = vrot.slane %v421, 1
        %v546 = vsel %vm531, %v543, %v545
        %v547 = vrot.slane %v422, 1
        %v548 = vrot.slane %v423, 1
        %v549 = vsel %vm531, %v547, %v548
        %v550 = vrot.slane %v424, 1
        %v551 = vsel %vm531, %v548, %v550
        %v552 = vrot.slane %v425, 1
        %v553 = vrot.slane %v426, 1
        %v554 = vsel %vm531, %v552, %v553
        %v555 = vrot.slane %v427, 1
        %v556 = vsel %vm531, %v553, %v555
        %v557 = vrot.slane %v428, 1
        %v558 = vrot.slane %v429, 1
        %v559 = vsel %vm531, %v557, %v558
        %v560 = vrot.slane %v430, 1
        %v561 = vsel %vm531, %v558, %v560
        %v562 = vrot.slane %v431, 1
        %v563 = vrot.slane %v432, 1
        %v564 = vsel %vm531, %v562, %v563
        %v565 = vrot.slane %v433, 1
        %v566 = vsel %vm531, %v563, %v565
        %v567 = vrot.slane %v434, 1
        %v568 = vrot.slane %v435, 1
        %v569 = vsel %vm531, %v567, %v568
        %v570 = vrot.slane %v436, 1
        %v571 = vsel %vm531, %v568, %v570
        %v572 = vrot.slane %v437, 1
        %v573 = vrot.slane %v438, 1
        %v574 = vsel %vm531, %v572, %v573
        %v575 = vrot.slane %v439, 1
        %v576 = vsel %vm531, %v573, %v575
        %v577 = vrot.slane %v440, 1
        %v578 = vrot.slane %v441, 1
        %v579 = vsel %vm531, %v577, %v578
        %v580 = vrot.slane %v442, 1
        %v581 = vsel %vm531, %v578, %v580
        %v582 = vrot.slane %v443, 1
        %v583 = vrot.slane %v444, 1
        %v584 = vsel %vm531, %v582, %v583
        %v585 = vrot.slane %v445, 1
        %v586 = vsel %vm531, %v583, %v585
        %v587 = vrot.slane %v446, 1
        %v588 = vrot.slane %v447, 1
        %v589 = vsel %vm531, %v587, %v588
        %v590 = vrot.slane %v448, 1
        %v591 = vsel %vm531, %v588, %v590
        %v592 = vrot.slane %v449, 1
        %v593 = vrot.slane %v450, 1
        %v594 = vsel %vm531, %v592, %v593
        %v595 = vrot.slane %v451, 1
        %v596 = vsel %vm531, %v593, %v595
        %v597 = vrot.slane %v452, 1
        %v598 = vrot.slane %v453, 1
        %v599 = vsel %vm531, %v597, %v598
        %v600 = vrot.slane %v454, 1
        %v601 = vsel %vm531, %v598, %v600
        %v602 = vrot.slane %v455, 1
        %v603 = vrot.slane %v456, 1
        %v604 = vsel %vm531, %v602, %v603
        %v605 = vrot.slane %v457, 1
        %v606 = vsel %vm531, %v603, %v605
        %v607 = vrot.slane %v458, 1
        %v608 = vrot.slane %v459, 1
        %v609 = vsel %vm531, %v607, %v608
        %v610 = vrot.slane %v460, 1
        %v611 = vsel %vm531, %v608, %v610
        %v644 = vld [vmem:[%s1 + $0x80] sm:$0xff]
        %v645 = vld [vmem:[%s1 + $0x88] sm:$0xff]
        %v646 = vld [vmem:[%s1 + $0x90] sm:$0xff]
        %v647 = vld [vmem:[%s1 + $0x98] sm:$0xff]
        %v648 = vld [vmem:[%s1 + $0xa0] sm:$0xff]
        %v649 = vld [vmem:[%s1 + $0xa8] sm:$0xff]
        %v650 = vld [vmem:[%s1 + $0xb0] sm:$0xff]
        %v651 = vld [vmem:[%s1 + $0xb8] sm:$0xff]
        %v652 = vld [vmem:[%s1 + $0xc0] sm:$0xff]
        %v653 = vld [vmem:[%s1 + $0xc8] sm:$0xff]
        %v654 = vld [vmem:[%s1 + $0xd0] sm:$0xff]
        %v655 = vld [vmem:[%s1 + $0xd8] sm:$0xff]
        %v656 = vld [vmem:[%s1 + $0xe0] sm:$0xff]
        %v657 = vld [vmem:[%s1 + $0xe8] sm:$0xff]
        %v658 = vld [vmem:[%s1 + $0xf0] sm:$0xff]
        %v659 = vld [vmem:[%s1 + $0xf8] sm:$0xff]
        %660 = vmatprep.subr.mxu0 0.0
        %661 = vmatpush1.msra.mxu0 %v659
        %662 = vmatprep.subr.mxu0 0.0
        %663 = vmatpush1.msra.mxu0 %v658
        %664 = vmatprep.subr.mxu0 0.0
        %665 = vmatpush1.msra.mxu0 %v657
        %666 = vmatprep.subr.mxu0 0.0
        %667 = vmatpush1.msra.mxu0 %v656
        %668 = vmatprep.subr.mxu0 0.0
        %669 = vmatpush1.msra.mxu0 %v655
        %670 = vmatprep.subr.mxu0 0.0
        %671 = vmatpush1.msra.mxu0 %v654
        %672 = vmatprep.subr.mxu0 0.0
        %673 = vmatpush1.msra.mxu0 %v653
        %674 = vmatprep.subr.mxu0 0.0
        %675 = vmatpush1.msra.mxu0 %v652
        %676 = vmatprep.subr.mxu0 0.0
        %677 = vmatpush1.msra.mxu0 %v651
        %678 = vmatprep.subr.mxu0 0.0
        %679 = vmatpush1.msra.mxu0 %v650
        %680 = vmatprep.subr.mxu0 0.0
        %681 = vmatpush1.msra.mxu0 %v649
        %682 = vmatprep.subr.mxu0 0.0
        %683 = vmatpush1.msra.mxu0 %v648
        %684 = vmatprep.subr.mxu0 0.0
        %685 = vmatpush1.msra.mxu0 %v647
        %686 = vmatprep.subr.mxu0 0.0
        %687 = vmatpush1.msra.mxu0 %v646
        %688 = vmatprep.subr.mxu0 0.0
        %689 = vmatpush1.msra.mxu0 %v645
        %690 = vmatprep.subr.mxu0 0.0
        %691 = vmatpush1.msra.mxu0 %v644
        %692 = vmatprep.subr.mxu0 0.0
        %693 = vmatpush2.msra.mxu0 0.0
        %694 = vmatprep.subr.mxu0 0.0
        %695 = vmatpush2.msra.mxu0 0.0
        %696 = vmatprep.subr.mxu0 0.0
        %697 = vmatpush2.msra.mxu0 0.0
        %698 = vmatprep.subr.mxu0 0.0
        %699 = vmatpush2.msra.mxu0 0.0
        %700 = vmatprep.subr.mxu0 0.0
        %701 = vmatpush2.msra.mxu0 0.0
        %702 = vmatprep.subr.mxu0 0.0
        %703 = vmatpush2.msra.mxu0 0.0
        %704 = vmatprep.subr.mxu0 0.0
        %705 = vmatpush2.msra.mxu0 0.0
        %706 = vmatprep.subr.mxu0 0.0
        %707 = vmatpush2.msra.mxu0 0.0
        %708 = vmatprep.subr.mxu0 0.0
        %709 = vmatpush2.msra.mxu0 0.0
        %710 = vmatprep.subr.mxu0 0.0
        %711 = vmatpush2.msra.mxu0 0.0
        %712 = vmatprep.subr.mxu0 0.0
        %713 = vmatpush2.msra.mxu0 0.0
        %714 = vmatprep.subr.mxu0 0.0
        %715 = vmatpush2.msra.mxu0 0.0
        %716 = vmatprep.subr.mxu0 0.0
        %717 = vmatpush2.msra.mxu0 0.0
        %718 = vmatprep.subr.mxu0 0.0
        %719 = vmatpush2.msra.mxu0 0.0
        %720 = vmatprep.subr.mxu0 0.0
        %721 = vmatpush2.msra.mxu0 0.0
        %722 = vmatprep.subr.mxu0 0.0
        %723 = vmatpush2.msra.mxu0 0.0
        %724 = vmatprep.mubr.f32.mxu0 0.0
        %725 = vmatmul.mubr.f32.gmra.mxu0 %v534
        %v726 = vpop.f32.mrf.mxu0
        %v727 = vadd.f32 0.0, %v726
        %v728 = vpop.f32.mrf.mxu0
        %729 = vmatprep.mubr.f32.mxu0 0.0
        %730 = vmatmul.mubr.f32.gmra.mxu0 %v536
        %v731 = vpop.f32.mrf.mxu0
        %v732 = vadd.f32 0.0, %v731
        %v733 = vpop.f32.mrf.mxu0
        %734 = vmatprep.mubr.f32.mxu0 0.0
        %735 = vmatmul.mubr.f32.gmra.mxu0 %v539
        %v736 = vpop.f32.mrf.mxu0
        %v737 = vadd.f32 0.0, %v736
        %v738 = vpop.f32.mrf.mxu0
        %739 = vmatprep.mubr.f32.mxu0 0.0
        %740 = vmatmul.mubr.f32.gmra.mxu0 %v541
        %v741 = vpop.f32.mrf.mxu0
        %v742 = vadd.f32 0.0, %v741
        %v743 = vpop.f32.mrf.mxu0
        %744 = vmatprep.mubr.f32.mxu0 0.0
        %745 = vmatmul.mubr.f32.gmra.mxu0 %v544
        %v746 = vpop.f32.mrf.mxu0
        %v747 = vadd.f32 0.0, %v746
        %v748 = vpop.f32.mrf.mxu0
        %749 = vmatprep.mubr.f32.mxu0 0.0
        %750 = vmatmul.mubr.f32.gmra.mxu0 %v546
        %v751 = vpop.f32.mrf.mxu0
        %v752 = vadd.f32 0.0, %v751
        %v753 = vpop.f32.mrf.mxu0
        %754 = vmatprep.mubr.f32.mxu0 0.0
        %755 = vmatmul.mubr.f32.gmra.mxu0 %v549
        %v756 = vpop.f32.mrf.mxu0
        %v757 = vadd.f32 0.0, %v756
        %v758 = vpop.f32.mrf.mxu0
        %759 = vmatprep.mubr.f32.mxu0 0.0
        %760 = vmatmul.mubr.f32.gmra.mxu0 %v551
        %v761 = vpop.f32.mrf.mxu0
        %v762 = vadd.f32 0.0, %v761
        %v763 = vpop.f32.mrf.mxu0
        %764 = vmatprep.mubr.f32.mxu0 0.0
        %765 = vmatmul.mubr.f32.gmra.mxu0 %v554
        %v766 = vpop.f32.mrf.mxu0
        %v767 = vadd.f32 0.0, %v766
        %v768 = vpop.f32.mrf.mxu0
        %769 = vmatprep.mubr.f32.mxu0 0.0
        %770 = vmatmul.mubr.f32.gmra.mxu0 %v556
        %v771 = vpop.f32.mrf.mxu0
        %v772 = vadd.f32 0.0, %v771
        %v773 = vpop.f32.mrf.mxu0
        %774 = vmatprep.mubr.f32.mxu0 0.0
        %775 = vmatmul.mubr.f32.gmra.mxu0 %v559
        %v776 = vpop.f32.mrf.mxu0
        %v777 = vadd.f32 0.0, %v776
        %v778 = vpop.f32.mrf.mxu0
        %779 = vmatprep.mubr.f32.mxu0 0.0
        %780 = vmatmul.mubr.f32.gmra.mxu0 %v561
        %v781 = vpop.f32.mrf.mxu0
        %v782 = vadd.f32 0.0, %v781
        %v783 = vpop.f32.mrf.mxu0
        %784 = vmatprep.mubr.f32.mxu0 0.0
        %785 = vmatmul.mubr.f32.gmra.mxu0 %v564
        %v786 = vpop.f32.mrf.mxu0
        %v787 = vadd.f32 0.0, %v786
        %v788 = vpop.f32.mrf.mxu0
        %789 = vmatprep.mubr.f32.mxu0 0.0
        %790 = vmatmul.mubr.f32.gmra.mxu0 %v566
        %v791 = vpop.f32.mrf.mxu0
        %v792 = vadd.f32 0.0, %v791
        %v793 = vpop.f32.mrf.mxu0
        %794 = vmatprep.mubr.f32.mxu0 0.0
        %795 = vmatmul.mubr.f32.gmra.mxu0 %v569
        %v796 = vpop.f32.mrf.mxu0
        %v797 = vadd.f32 0.0, %v796
        %v798 = vpop.f32.mrf.mxu0
        %799 = vmatprep.mubr.f32.mxu0 0.0
        %800 = vmatmul.mubr.f32.gmra.mxu0 %v571
        %v801 = vpop.f32.mrf.mxu0
        %v802 = vadd.f32 0.0, %v801
        %v803 = vpop.f32.mrf.mxu0
        %804 = vmatprep.mubr.f32.mxu0 0.0
        %805 = vmatmul.mubr.f32.gmra.mxu0 %v574
        %v806 = vpop.f32.mrf.mxu0
        %v807 = vadd.f32 0.0, %v806
        %v808 = vpop.f32.mrf.mxu0
        %809 = vmatprep.mubr.f32.mxu0 0.0
        %810 = vmatmul.mubr.f32.gmra.mxu0 %v576
        %v811 = vpop.f32.mrf.mxu0
        %v812 = vadd.f32 0.0, %v811
        %v813 = vpop.f32.mrf.mxu0
        %814 = vmatprep.mubr.f32.mxu0 0.0
        %815 = vmatmul.mubr.f32.gmra.mxu0 %v579
        %v816 = vpop.f32.mrf.mxu0
        %v817 = vadd.f32 0.0, %v816
        %v818 = vpop.f32.mrf.mxu0
        %819 = vmatprep.mubr.f32.mxu0 0.0
        %820 = vmatmul.mubr.f32.gmra.mxu0 %v581
        %v821 = vpop.f32.mrf.mxu0
        %v822 = vadd.f32 0.0, %v821
        %v823 = vpop.f32.mrf.mxu0
        %824 = vmatprep.mubr.f32.mxu0 0.0
        %825 = vmatmul.mubr.f32.gmra.mxu0 %v584
        %v826 = vpop.f32.mrf.mxu0
        %v827 = vadd.f32 0.0, %v826
        %v828 = vpop.f32.mrf.mxu0
        %829 = vmatprep.mubr.f32.mxu0 0.0
        %830 = vmatmul.mubr.f32.gmra.mxu0 %v586
        %v831 = vpop.f32.mrf.mxu0
        %v832 = vadd.f32 0.0, %v831
        %v833 = vpop.f32.mrf.mxu0
        %834 = vmatprep.mubr.f32.mxu0 0.0
        %835 = vmatmul.mubr.f32.gmra.mxu0 %v589
        %v836 = vpop.f32.mrf.mxu0
        %v837 = vadd.f32 0.0, %v836
        %v838 = vpop.f32.mrf.mxu0
        %839 = vmatprep.mubr.f32.mxu0 0.0
        %840 = vmatmul.mubr.f32.gmra.mxu0 %v591
        %v841 = vpop.f32.mrf.mxu0
        %v842 = vadd.f32 0.0, %v841
        %v843 = vpop.f32.mrf.mxu0
        %844 = vmatprep.mubr.f32.mxu0 0.0
        %845 = vmatmul.mubr.f32.gmra.mxu0 %v594
        %v846 = vpop.f32.mrf.mxu0
        %v847 = vadd.f32 0.0, %v846
        %v848 = vpop.f32.mrf.mxu0
        %849 = vmatprep.mubr.f32.mxu0 0.0
        %850 = vmatmul.mubr.f32.gmra.mxu0 %v596
        %v851 = vpop.f32.mrf.mxu0
        %v852 = vadd.f32 0.0, %v851
        %v853 = vpop.f32.mrf.mxu0
        %854 = vmatprep.mubr.f32.mxu0 0.0
        %855 = vmatmul.mubr.f32.gmra.mxu0 %v599
        %v856 = vpop.f32.mrf.mxu0
        %v857 = vadd.f32 0.0, %v856
        %v858 = vpop.f32.mrf.mxu0
        %859 = vmatprep.mubr.f32.mxu0 0.0
        %860 = vmatmul.mubr.f32.gmra.mxu0 %v601
        %v861 = vpop.f32.mrf.mxu0
        %v862 = vadd.f32 0.0, %v861
        %v863 = vpop.f32.mrf.mxu0
        %864 = vmatprep.mubr.f32.mxu0 0.0
        %865 = vmatmul.mubr.f32.gmra.mxu0 %v604
        %v866 = vpop.f32.mrf.mxu0
        %v867 = vadd.f32 0.0, %v866
        %v868 = vpop.f32.mrf.mxu0
        %869 = vmatprep.mubr.f32.mxu0 0.0
        %870 = vmatmul.mubr.f32.gmra.mxu0 %v606
        %v871 = vpop.f32.mrf.mxu0
        %v872 = vadd.f32 0.0, %v871
        %v873 = vpop.f32.mrf.mxu0
        %874 = vmatprep.mubr.f32.mxu0 0.0
        %875 = vmatmul.mubr.f32.gmra.mxu0 %v609
        %v876 = vpop.f32.mrf.mxu0
        %v877 = vadd.f32 0.0, %v876
        %v878 = vpop.f32.mrf.mxu0
        %879 = vmatprep.mubr.f32.mxu0 0.0
        %880 = vmatmul.mubr.f32.gmra.mxu0 %v611
        %v881 = vpop.f32.mrf.mxu0
        %v882 = vadd.f32 0.0, %v881
        %v883 = vpop.f32.mrf.mxu0
        %884 = vdwg.mxu0
        %885 = vmatprep.subr.mxu0 0.0
        %886 = vmatpush1.msra.mxu0 %v482
        %887 = vmatprep.subr.mxu0 0.0
        %888 = vmatpush1.msra.mxu0 %v481
        %889 = vmatprep.subr.mxu0 0.0
        %890 = vmatpush1.msra.mxu0 %v480
        %891 = vmatprep.subr.mxu0 0.0
        %892 = vmatpush1.msra.mxu0 %v479
        %893 = vmatprep.subr.mxu0 0.0
        %894 = vmatpush1.msra.mxu0 %v478
        %895 = vmatprep.subr.mxu0 0.0
        %896 = vmatpush1.msra.mxu0 %v477
        %897 = vmatprep.subr.mxu0 0.0
        %898 = vmatpush1.msra.mxu0 %v476
        %899 = vmatprep.subr.mxu0 0.0
        %900 = vmatpush1.msra.mxu0 %v475
        %901 = vmatprep.subr.mxu0 0.0
        %902 = vmatpush1.msra.mxu0 %v474
        %903 = vmatprep.subr.mxu0 0.0
        %904 = vmatpush1.msra.mxu0 %v473
        %905 = vmatprep.subr.mxu0 0.0
        %906 = vmatpush1.msra.mxu0 %v472
        %907 = vmatprep.subr.mxu0 0.0
        %908 = vmatpush1.msra.mxu0 %v471
        %909 = vmatprep.subr.mxu0 0.0
        %910 = vmatpush1.msra.mxu0 %v470
        %911 = vmatprep.subr.mxu0 0.0
        %912 = vmatpush1.msra.mxu0 %v469
        %913 = vmatprep.subr.mxu0 0.0
        %914 = vmatpush1.msra.mxu0 %v468
        %915 = vmatprep.subr.mxu0 0.0
        %916 = vmatpush1.msra.mxu0 %v467
        %917 = vmatprep.subr.mxu0 0.0
        %918 = vmatpush2.msra.mxu0 0.0
        %919 = vmatprep.subr.mxu0 0.0
        %920 = vmatpush2.msra.mxu0 0.0
        %921 = vmatprep.subr.mxu0 0.0
        %922 = vmatpush2.msra.mxu0 0.0
        %923 = vmatprep.subr.mxu0 0.0
        %924 = vmatpush2.msra.mxu0 0.0
        %925 = vmatprep.subr.mxu0 0.0
        %926 = vmatpush2.msra.mxu0 0.0
        %927 = vmatprep.subr.mxu0 0.0
        %928 = vmatpush2.msra.mxu0 0.0
        %929 = vmatprep.subr.mxu0 0.0
        %930 = vmatpush2.msra.mxu0 0.0
        %931 = vmatprep.subr.mxu0 0.0
        %932 = vmatpush2.msra.mxu0 0.0
        %933 = vmatprep.subr.mxu0 0.0
        %934 = vmatpush2.msra.mxu0 0.0
        %935 = vmatprep.subr.mxu0 0.0
        %936 = vmatpush2.msra.mxu0 0.0
        %937 = vmatprep.subr.mxu0 0.0
        %938 = vmatpush2.msra.mxu0 0.0
        %939 = vmatprep.subr.mxu0 0.0
        %940 = vmatpush2.msra.mxu0 0.0
        %941 = vmatprep.subr.mxu0 0.0
        %942 = vmatpush2.msra.mxu0 0.0
        %943 = vmatprep.subr.mxu0 0.0
        %944 = vmatpush2.msra.mxu0 0.0
        %945 = vmatprep.subr.mxu0 0.0
        %946 = vmatpush2.msra.mxu0 0.0
        %947 = vmatprep.subr.mxu0 0.0
        %948 = vmatpush2.msra.mxu0 0.0
        %949 = vmatprep.mubr.f32.mxu0 0.0
        %950 = vmatmul.mubr.f32.gmra.mxu0 %v413
        %v951 = vpop.f32.mrf.mxu0
        %v952 = vadd.f32 %v727, %v951
        %v953 = vpop.f32.mrf.mxu0
        %954 = vmatprep.mubr.f32.mxu0 0.0
        %955 = vmatmul.mubr.f32.gmra.mxu0 %v414
        %v956 = vpop.f32.mrf.mxu0
        %v957 = vadd.f32 %v732, %v956
        %v958 = vpop.f32.mrf.mxu0
        %959 = vmatprep.mubr.f32.mxu0 0.0
        %960 = vmatmul.mubr.f32.gmra.mxu0 %v416
        %v961 = vpop.f32.mrf.mxu0
        %v962 = vadd.f32 %v737, %v961
        %v963 = vpop.f32.mrf.mxu0
        %964 = vmatprep.mubr.f32.mxu0 0.0
        %965 = vmatmul.mubr.f32.gmra.mxu0 %v417
        %v966 = vpop.f32.mrf.mxu0
        %v967 = vadd.f32 %v742, %v966
        %v968 = vpop.f32.mrf.mxu0
        %969 = vmatprep.mubr.f32.mxu0 0.0
        %970 = vmatmul.mubr.f32.gmra.mxu0 %v419
        %v971 = vpop.f32.mrf.mxu0
        %v972 = vadd.f32 %v747, %v971
        %v973 = vpop.f32.mrf.mxu0
        %974 = vmatprep.mubr.f32.mxu0 0.0
        %975 = vmatmul.mubr.f32.gmra.mxu0 %v420
        %v976 = vpop.f32.mrf.mxu0
        %v977 = vadd.f32 %v752, %v976
        %v978 = vpop.f32.mrf.mxu0
        %979 = vmatprep.mubr.f32.mxu0 0.0
        %980 = vmatmul.mubr.f32.gmra.mxu0 %v422
        %v981 = vpop.f32.mrf.mxu0
        %v982 = vadd.f32 %v757, %v981
        %v983 = vpop.f32.mrf.mxu0
        %984 = vmatprep.mubr.f32.mxu0 0.0
        %985 = vmatmul.mubr.f32.gmra.mxu0 %v423
        %v986 = vpop.f32.mrf.mxu0
        %v987 = vadd.f32 %v762, %v986
        %v988 = vpop.f32.mrf.mxu0
        %989 = vmatprep.mubr.f32.mxu0 0.0
        %990 = vmatmul.mubr.f32.gmra.mxu0 %v425
        %v991 = vpop.f32.mrf.mxu0
        %v992 = vadd.f32 %v767, %v991
        %v993 = vpop.f32.mrf.mxu0
        %994 = vmatprep.mubr.f32.mxu0 0.0
        %995 = vmatmul.mubr.f32.gmra.mxu0 %v426
        %v996 = vpop.f32.mrf.mxu0
        %v997 = vadd.f32 %v772, %v996
        %v998 = vpop.f32.mrf.mxu0
        %999 = vmatprep.mubr.f32.mxu0 0.0
        %1000 = vmatmul.mubr.f32.gmra.mxu0 %v428
        %v1001 = vpop.f32.mrf.mxu0
        %v1002 = vadd.f32 %v777, %v1001
        %v1003 = vpop.f32.mrf.mxu0
        %1004 = vmatprep.mubr.f32.mxu0 0.0
        %1005 = vmatmul.mubr.f32.gmra.mxu0 %v429
        %v1006 = vpop.f32.mrf.mxu0
        %v1007 = vadd.f32 %v782, %v1006
        %v1008 = vpop.f32.mrf.mxu0
        %1009 = vmatprep.mubr.f32.mxu0 0.0
        %1010 = vmatmul.mubr.f32.gmra.mxu0 %v431
        %v1011 = vpop.f32.mrf.mxu0
        %v1012 = vadd.f32 %v787, %v1011
        %v1013 = vpop.f32.mrf.mxu0
        %1014 = vmatprep.mubr.f32.mxu0 0.0
        %1015 = vmatmul.mubr.f32.gmra.mxu0 %v432
        %v1016 = vpop.f32.mrf.mxu0
        %v1017 = vadd.f32 %v792, %v1016
        %v1018 = vpop.f32.mrf.mxu0
        %1019 = vmatprep.mubr.f32.mxu0 0.0
        %1020 = vmatmul.mubr.f32.gmra.mxu0 %v434
        %v1021 = vpop.f32.mrf.mxu0
        %v1022 = vadd.f32 %v797, %v1021
        %v1023 = vpop.f32.mrf.mxu0
        %1024 = vmatprep.mubr.f32.mxu0 0.0
        %1025 = vmatmul.mubr.f32.gmra.mxu0 %v435
        %v1026 = vpop.f32.mrf.mxu0
        %v1027 = vadd.f32 %v802, %v1026
        %v1028 = vpop.f32.mrf.mxu0
        %1029 = vmatprep.mubr.f32.mxu0 0.0
        %1030 = vmatmul.mubr.f32.gmra.mxu0 %v437
        %v1031 = vpop.f32.mrf.mxu0
        %v1032 = vadd.f32 %v807, %v1031
        %v1033 = vpop.f32.mrf.mxu0
        %1034 = vmatprep.mubr.f32.mxu0 0.0
        %1035 = vmatmul.mubr.f32.gmra.mxu0 %v438
        %v1036 = vpop.f32.mrf.mxu0
        %v1037 = vadd.f32 %v812, %v1036
        %v1038 = vpop.f32.mrf.mxu0
        %1039 = vmatprep.mubr.f32.mxu0 0.0
        %1040 = vmatmul.mubr.f32.gmra.mxu0 %v440
        %v1041 = vpop.f32.mrf.mxu0
        %v1042 = vadd.f32 %v817, %v1041
        %v1043 = vpop.f32.mrf.mxu0
        %1044 = vmatprep.mubr.f32.mxu0 0.0
        %1045 = vmatmul.mubr.f32.gmra.mxu0 %v441
        %v1046 = vpop.f32.mrf.mxu0
        %v1047 = vadd.f32 %v822, %v1046
        %v1048 = vpop.f32.mrf.mxu0
        %1049 = vmatprep.mubr.f32.mxu0 0.0
        %1050 = vmatmul.mubr.f32.gmra.mxu0 %v443
        %v1051 = vpop.f32.mrf.mxu0
        %v1052 = vadd.f32 %v827, %v1051
        %v1053 = vpop.f32.mrf.mxu0
        %1054 = vmatprep.mubr.f32.mxu0 0.0
        %1055 = vmatmul.mubr.f32.gmra.mxu0 %v444
        %v1056 = vpop.f32.mrf.mxu0
        %v1057 = vadd.f32 %v832, %v1056
        %v1058 = vpop.f32.mrf.mxu0
        %1059 = vmatprep.mubr.f32.mxu0 0.0
        %1060 = vmatmul.mubr.f32.gmra.mxu0 %v446
        %v1061 = vpop.f32.mrf.mxu0
        %v1062 = vadd.f32 %v837, %v1061
        %v1063 = vpop.f32.mrf.mxu0
        %1064 = vmatprep.mubr.f32.mxu0 0.0
        %1065 = vmatmul.mubr.f32.gmra.mxu0 %v447
        %v1066 = vpop.f32.mrf.mxu0
        %v1067 = vadd.f32 %v842, %v1066
        %v1068 = vpop.f32.mrf.mxu0
        %1069 = vmatprep.mubr.f32.mxu0 0.0
        %1070 = vmatmul.mubr.f32.gmra.mxu0 %v449
        %v1071 = vpop.f32.mrf.mxu0
        %v1072 = vadd.f32 %v847, %v1071
        %v1073 = vpop.f32.mrf.mxu0
        %1074 = vmatprep.mubr.f32.mxu0 0.0
        %1075 = vmatmul.mubr.f32.gmra.mxu0 %v450
        %v1076 = vpop.f32.mrf.mxu0
        %v1077 = vadd.f32 %v852, %v1076
        %v1078 = vpop.f32.mrf.mxu0
        %1079 = vmatprep.mubr.f32.mxu0 0.0
        %1080 = vmatmul.mubr.f32.gmra.mxu0 %v452
        %v1081 = vpop.f32.mrf.mxu0
        %v1082 = vadd.f32 %v857, %v1081
        %v1083 = vpop.f32.mrf.mxu0
        %1084 = vmatprep.mubr.f32.mxu0 0.0
        %1085 = vmatmul.mubr.f32.gmra.mxu0 %v453
        %v1086 = vpop.f32.mrf.mxu0
        %v1087 = vadd.f32 %v862, %v1086
        %v1088 = vpop.f32.mrf.mxu0
        %1089 = vmatprep.mubr.f32.mxu0 0.0
        %1090 = vmatmul.mubr.f32.gmra.mxu0 %v455
        %v1091 = vpop.f32.mrf.mxu0
        %v1092 = vadd.f32 %v867, %v1091
        %v1093 = vpop.f32.mrf.mxu0
        %1094 = vmatprep.mubr.f32.mxu0 0.0
        %1095 = vmatmul.mubr.f32.gmra.mxu0 %v456
        %v1096 = vpop.f32.mrf.mxu0
        %v1097 = vadd.f32 %v872, %v1096
        %v1098 = vpop.f32.mrf.mxu0
        %1099 = vmatprep.mubr.f32.mxu0 0.0
        %1100 = vmatmul.mubr.f32.gmra.mxu0 %v458
        %v1101 = vpop.f32.mrf.mxu0
        %v1102 = vadd.f32 %v877, %v1101
        %v1103 = vpop.f32.mrf.mxu0
        %1104 = vmatprep.mubr.f32.mxu0 0.0
        %1105 = vmatmul.mubr.f32.gmra.mxu0 %v459
        %v1106 = vpop.f32.mrf.mxu0
        %v1107 = vadd.f32 %v882, %v1106
        %v1108 = vpop.f32.mrf.mxu0
        %1109 = vdwg.mxu0
        %vm1110 = vcmask 1045504
        %v1111 = vrot.slane %v413, 2
        %v1112 = vrot.slane %v414, 2
        %v1113 = vsel %vm1110, %v1111, %v1112
        %v1114 = vrot.slane %v415, 2
        %v1115 = vsel %vm1110, %v1112, %v1114
        %v1116 = vrot.slane %v416, 2
        %v1117 = vrot.slane %v417, 2
        %v1118 = vsel %vm1110, %v1116, %v1117
        %v1119 = vrot.slane %v418, 2
        %v1120 = vsel %vm1110, %v1117, %v1119
        %v1121 = vrot.slane %v419, 2
        %v1122 = vrot.slane %v420, 2
        %v1123 = vsel %vm1110, %v1121, %v1122
        %v1124 = vrot.slane %v421, 2
        %v1125 = vsel %vm1110, %v1122, %v1124
        %v1126 = vrot.slane %v422, 2
        %v1127 = vrot.slane %v423, 2
        %v1128 = vsel %vm1110, %v1126, %v1127
        %v1129 = vrot.slane %v424, 2
        %v1130 = vsel %vm1110, %v1127, %v1129
        %v1131 = vrot.slane %v425, 2
        %v1132 = vrot.slane %v426, 2
        %v1133 = vsel %vm1110, %v1131, %v1132
        %v1134 = vrot.slane %v427, 2
        %v1135 = vsel %vm1110, %v1132, %v1134
        %v1136 = vrot.slane %v428, 2
        %v1137 = vrot.slane %v429, 2
        %v1138 = vsel %vm1110, %v1136, %v1137
        %v1139 = vrot.slane %v430, 2
        %v1140 = vsel %vm1110, %v1137, %v1139
        %v1141 = vrot.slane %v431, 2
        %v1142 = vrot.slane %v432, 2
        %v1143 = vsel %vm1110, %v1141, %v1142
        %v1144 = vrot.slane %v433, 2
        %v1145 = vsel %vm1110, %v1142, %v1144
        %v1146 = vrot.slane %v434, 2
        %v1147 = vrot.slane %v435, 2
        %v1148 = vsel %vm1110, %v1146, %v1147
        %v1149 = vrot.slane %v436, 2
        %v1150 = vsel %vm1110, %v1147, %v1149
        %v1151 = vrot.slane %v437, 2
        %v1152 = vrot.slane %v438, 2
        %v1153 = vsel %vm1110, %v1151, %v1152
        %v1154 = vrot.slane %v439, 2
        %v1155 = vsel %vm1110, %v1152, %v1154
        %v1156 = vrot.slane %v440, 2
        %v1157 = vrot.slane %v441, 2
        %v1158 = vsel %vm1110, %v1156, %v1157
        %v1159 = vrot.slane %v442, 2
        %v1160 = vsel %vm1110, %v1157, %v1159
        %v1161 = vrot.slane %v443, 2
        %v1162 = vrot.slane %v444, 2
        %v1163 = vsel %vm1110, %v1161, %v1162
        %v1164 = vrot.slane %v445, 2
        %v1165 = vsel %vm1110, %v1162, %v1164
        %v1166 = vrot.slane %v446, 2
        %v1167 = vrot.slane %v447, 2
        %v1168 = vsel %vm1110, %v1166, %v1167
        %v1169 = vrot.slane %v448, 2
        %v1170 = vsel %vm1110, %v1167, %v1169
        %v1171 = vrot.slane %v449, 2
        %v1172 = vrot.slane %v450, 2
        %v1173 = vsel %vm1110, %v1171, %v1172
        %v1174 = vrot.slane %v451, 2
        %v1175 = vsel %vm1110, %v1172, %v1174
        %v1176 = vrot.slane %v452, 2
        %v1177 = vrot.slane %v453, 2
        %v1178 = vsel %vm1110, %v1176, %v1177
        %v1179 = vrot.slane %v454, 2
        %v1180 = vsel %vm1110, %v1177, %v1179
        %v1181 = vrot.slane %v455, 2
        %v1182 = vrot.slane %v456, 2
        %v1183 = vsel %vm1110, %v1181, %v1182
        %v1184 = vrot.slane %v457, 2
        %v1185 = vsel %vm1110, %v1182, %v1184
        %v1186 = vrot.slane %v458, 2
        %v1187 = vrot.slane %v459, 2
        %v1188 = vsel %vm1110, %v1186, %v1187
        %v1189 = vrot.slane %v460, 2
        %v1190 = vsel %vm1110, %v1187, %v1189
        %v1223 = vld [vmem:[%s1 + $0x100] sm:$0xff]
        %v1224 = vld [vmem:[%s1 + $0x108] sm:$0xff]
        %v1225 = vld [vmem:[%s1 + $0x110] sm:$0xff]
        %v1226 = vld [vmem:[%s1 + $0x118] sm:$0xff]
        %v1227 = vld [vmem:[%s1 + $0x120] sm:$0xff]
        %v1228 = vld [vmem:[%s1 + $0x128] sm:$0xff]
        %v1229 = vld [vmem:[%s1 + $0x130] sm:$0xff]
        %v1230 = vld [vmem:[%s1 + $0x138] sm:$0xff]
        %v1231 = vld [vmem:[%s1 + $0x140] sm:$0xff]
        %v1232 = vld [vmem:[%s1 + $0x148] sm:$0xff]
        %v1233 = vld [vmem:[%s1 + $0x150] sm:$0xff]
        %v1234 = vld [vmem:[%s1 + $0x158] sm:$0xff]
        %v1235 = vld [vmem:[%s1 + $0x160] sm:$0xff]
        %v1236 = vld [vmem:[%s1 + $0x168] sm:$0xff]
        %v1237 = vld [vmem:[%s1 + $0x170] sm:$0xff]
        %v1238 = vld [vmem:[%s1 + $0x178] sm:$0xff]
        %1239 = vmatprep.subr.mxu0 0.0
        %1240 = vmatpush1.msra.mxu0 %v1238
        %1241 = vmatprep.subr.mxu0 0.0
        %1242 = vmatpush1.msra.mxu0 %v1237
        %1243 = vmatprep.subr.mxu0 0.0
        %1244 = vmatpush1.msra.mxu0 %v1236
        %1245 = vmatprep.subr.mxu0 0.0
        %1246 = vmatpush1.msra.mxu0 %v1235
        %1247 = vmatprep.subr.mxu0 0.0
        %1248 = vmatpush1.msra.mxu0 %v1234
        %1249 = vmatprep.subr.mxu0 0.0
        %1250 = vmatpush1.msra.mxu0 %v1233
        %1251 = vmatprep.subr.mxu0 0.0
        %1252 = vmatpush1.msra.mxu0 %v1232
        %1253 = vmatprep.subr.mxu0 0.0
        %1254 = vmatpush1.msra.mxu0 %v1231
        %1255 = vmatprep.subr.mxu0 0.0
        %1256 = vmatpush1.msra.mxu0 %v1230
        %1257 = vmatprep.subr.mxu0 0.0
        %1258 = vmatpush1.msra.mxu0 %v1229
        %1259 = vmatprep.subr.mxu0 0.0
        %1260 = vmatpush1.msra.mxu0 %v1228
        %1261 = vmatprep.subr.mxu0 0.0
        %1262 = vmatpush1.msra.mxu0 %v1227
        %1263 = vmatprep.subr.mxu0 0.0
        %1264 = vmatpush1.msra.mxu0 %v1226
        %1265 = vmatprep.subr.mxu0 0.0
        %1266 = vmatpush1.msra.mxu0 %v1225
        %1267 = vmatprep.subr.mxu0 0.0
        %1268 = vmatpush1.msra.mxu0 %v1224
        %1269 = vmatprep.subr.mxu0 0.0
        %1270 = vmatpush1.msra.mxu0 %v1223
        %1271 = vmatprep.subr.mxu0 0.0
        %1272 = vmatpush2.msra.mxu0 0.0
        %1273 = vmatprep.subr.mxu0 0.0
        %1274 = vmatpush2.msra.mxu0 0.0
        %1275 = vmatprep.subr.mxu0 0.0
        %1276 = vmatpush2.msra.mxu0 0.0
        %1277 = vmatprep.subr.mxu0 0.0
        %1278 = vmatpush2.msra.mxu0 0.0
        %1279 = vmatprep.subr.mxu0 0.0
        %1280 = vmatpush2.msra.mxu0 0.0
        %1281 = vmatprep.subr.mxu0 0.0
        %1282 = vmatpush2.msra.mxu0 0.0
        %1283 = vmatprep.subr.mxu0 0.0
        %1284 = vmatpush2.msra.mxu0 0.0
        %1285 = vmatprep.subr.mxu0 0.0
        %1286 = vmatpush2.msra.mxu0 0.0
        %1287 = vmatprep.subr.mxu0 0.0
        %1288 = vmatpush2.msra.mxu0 0.0
        %1289 = vmatprep.subr.mxu0 0.0
        %1290 = vmatpush2.msra.mxu0 0.0
        %1291 = vmatprep.subr.mxu0 0.0
        %1292 = vmatpush2.msra.mxu0 0.0
        %1293 = vmatprep.subr.mxu0 0.0
        %1294 = vmatpush2.msra.mxu0 0.0
        %1295 = vmatprep.subr.mxu0 0.0
        %1296 = vmatpush2.msra.mxu0 0.0
        %1297 = vmatprep.subr.mxu0 0.0
        %1298 = vmatpush2.msra.mxu0 0.0
        %1299 = vmatprep.subr.mxu0 0.0
        %1300 = vmatpush2.msra.mxu0 0.0
        %1301 = vmatprep.subr.mxu0 0.0
        %1302 = vmatpush2.msra.mxu0 0.0
        %1303 = vmatprep.mubr.f32.mxu0 0.0
        %1304 = vmatmul.mubr.f32.gmra.mxu0 %v1113
        %v1305 = vpop.f32.mrf.mxu0
        %v1306 = vadd.f32 0.0, %v1305
        %v1307 = vpop.f32.mrf.mxu0
        %1308 = vmatprep.mubr.f32.mxu0 0.0
        %1309 = vmatmul.mubr.f32.gmra.mxu0 %v1115
        %v1310 = vpop.f32.mrf.mxu0
        %v1311 = vadd.f32 0.0, %v1310
        %v1312 = vpop.f32.mrf.mxu0
        %1313 = vmatprep.mubr.f32.mxu0 0.0
        %1314 = vmatmul.mubr.f32.gmra.mxu0 %v1118
        %v1315 = vpop.f32.mrf.mxu0
        %v1316 = vadd.f32 0.0, %v1315
        %v1317 = vpop.f32.mrf.mxu0
        %1318 = vmatprep.mubr.f32.mxu0 0.0
        %1319 = vmatmul.mubr.f32.gmra.mxu0 %v1120
        %v1320 = vpop.f32.mrf.mxu0
        %v1321 = vadd.f32 0.0, %v1320
        %v1322 = vpop.f32.mrf.mxu0
        %1323 = vmatprep.mubr.f32.mxu0 0.0
        %1324 = vmatmul.mubr.f32.gmra.mxu0 %v1123
        %v1325 = vpop.f32.mrf.mxu0
        %v1326 = vadd.f32 0.0, %v1325
        %v1327 = vpop.f32.mrf.mxu0
        %1328 = vmatprep.mubr.f32.mxu0 0.0
        %1329 = vmatmul.mubr.f32.gmra.mxu0 %v1125
        %v1330 = vpop.f32.mrf.mxu0
        %v1331 = vadd.f32 0.0, %v1330
        %v1332 = vpop.f32.mrf.mxu0
        %1333 = vmatprep.mubr.f32.mxu0 0.0
        %1334 = vmatmul.mubr.f32.gmra.mxu0 %v1128
        %v1335 = vpop.f32.mrf.mxu0
        %v1336 = vadd.f32 0.0, %v1335
        %v1337 = vpop.f32.mrf.mxu0
        %1338 = vmatprep.mubr.f32.mxu0 0.0
        %1339 = vmatmul.mubr.f32.gmra.mxu0 %v1130
        %v1340 = vpop.f32.mrf.mxu0
        %v1341 = vadd.f32 0.0, %v1340
        %v1342 = vpop.f32.mrf.mxu0
        %1343 = vmatprep.mubr.f32.mxu0 0.0
        %1344 = vmatmul.mubr.f32.gmra.mxu0 %v1133
        %v1345 = vpop.f32.mrf.mxu0
        %v1346 = vadd.f32 0.0, %v1345
        %v1347 = vpop.f32.mrf.mxu0
        %1348 = vmatprep.mubr.f32.mxu0 0.0
        %1349 = vmatmul.mubr.f32.gmra.mxu0 %v1135
        %v1350 = vpop.f32.mrf.mxu0
        %v1351 = vadd.f32 0.0, %v1350
        %v1352 = vpop.f32.mrf.mxu0
        %1353 = vmatprep.mubr.f32.mxu0 0.0
        %1354 = vmatmul.mubr.f32.gmra.mxu0 %v1138
        %v1355 = vpop.f32.mrf.mxu0
        %v1356 = vadd.f32 0.0, %v1355
        %v1357 = vpop.f32.mrf.mxu0
        %1358 = vmatprep.mubr.f32.mxu0 0.0
        %1359 = vmatmul.mubr.f32.gmra.mxu0 %v1140
        %v1360 = vpop.f32.mrf.mxu0
        %v1361 = vadd.f32 0.0, %v1360
        %v1362 = vpop.f32.mrf.mxu0
        %1363 = vmatprep.mubr.f32.mxu0 0.0
        %1364 = vmatmul.mubr.f32.gmra.mxu0 %v1143
        %v1365 = vpop.f32.mrf.mxu0
        %v1366 = vadd.f32 0.0, %v1365
        %v1367 = vpop.f32.mrf.mxu0
        %1368 = vmatprep.mubr.f32.mxu0 0.0
        %1369 = vmatmul.mubr.f32.gmra.mxu0 %v1145
        %v1370 = vpop.f32.mrf.mxu0
        %v1371 = vadd.f32 0.0, %v1370
        %v1372 = vpop.f32.mrf.mxu0
        %1373 = vmatprep.mubr.f32.mxu0 0.0
        %1374 = vmatmul.mubr.f32.gmra.mxu0 %v1148
        %v1375 = vpop.f32.mrf.mxu0
        %v1376 = vadd.f32 0.0, %v1375
        %v1377 = vpop.f32.mrf.mxu0
        %1378 = vmatprep.mubr.f32.mxu0 0.0
        %1379 = vmatmul.mubr.f32.gmra.mxu0 %v1150
        %v1380 = vpop.f32.mrf.mxu0
        %v1381 = vadd.f32 0.0, %v1380
        %v1382 = vpop.f32.mrf.mxu0
        %1383 = vmatprep.mubr.f32.mxu0 0.0
        %1384 = vmatmul.mubr.f32.gmra.mxu0 %v1153
        %v1385 = vpop.f32.mrf.mxu0
        %v1386 = vadd.f32 0.0, %v1385
        %v1387 = vpop.f32.mrf.mxu0
        %1388 = vmatprep.mubr.f32.mxu0 0.0
        %1389 = vmatmul.mubr.f32.gmra.mxu0 %v1155
        %v1390 = vpop.f32.mrf.mxu0
        %v1391 = vadd.f32 0.0, %v1390
        %v1392 = vpop.f32.mrf.mxu0
        %1393 = vmatprep.mubr.f32.mxu0 0.0
        %1394 = vmatmul.mubr.f32.gmra.mxu0 %v1158
        %v1395 = vpop.f32.mrf.mxu0
        %v1396 = vadd.f32 0.0, %v1395
        %v1397 = vpop.f32.mrf.mxu0
        %1398 = vmatprep.mubr.f32.mxu0 0.0
        %1399 = vmatmul.mubr.f32.gmra.mxu0 %v1160
        %v1400 = vpop.f32.mrf.mxu0
        %v1401 = vadd.f32 0.0, %v1400
        %v1402 = vpop.f32.mrf.mxu0
        %1403 = vmatprep.mubr.f32.mxu0 0.0
        %1404 = vmatmul.mubr.f32.gmra.mxu0 %v1163
        %v1405 = vpop.f32.mrf.mxu0
        %v1406 = vadd.f32 0.0, %v1405
        %v1407 = vpop.f32.mrf.mxu0
        %1408 = vmatprep.mubr.f32.mxu0 0.0
        %1409 = vmatmul.mubr.f32.gmra.mxu0 %v1165
        %v1410 = vpop.f32.mrf.mxu0
        %v1411 = vadd.f32 0.0, %v1410
        %v1412 = vpop.f32.mrf.mxu0
        %1413 = vmatprep.mubr.f32.mxu0 0.0
        %1414 = vmatmul.mubr.f32.gmra.mxu0 %v1168
        %v1415 = vpop.f32.mrf.mxu0
        %v1416 = vadd.f32 0.0, %v1415
        %v1417 = vpop.f32.mrf.mxu0
        %1418 = vmatprep.mubr.f32.mxu0 0.0
        %1419 = vmatmul.mubr.f32.gmra.mxu0 %v1170
        %v1420 = vpop.f32.mrf.mxu0
        %v1421 = vadd.f32 0.0, %v1420
        %v1422 = vpop.f32.mrf.mxu0
        %1423 = vmatprep.mubr.f32.mxu0 0.0
        %1424 = vmatmul.mubr.f32.gmra.mxu0 %v1173
        %v1425 = vpop.f32.mrf.mxu0
        %v1426 = vadd.f32 0.0, %v1425
        %v1427 = vpop.f32.mrf.mxu0
        %1428 = vmatprep.mubr.f32.mxu0 0.0
        %1429 = vmatmul.mubr.f32.gmra.mxu0 %v1175
        %v1430 = vpop.f32.mrf.mxu0
        %v1431 = vadd.f32 0.0, %v1430
        %v1432 = vpop.f32.mrf.mxu0
        %1433 = vmatprep.mubr.f32.mxu0 0.0
        %1434 = vmatmul.mubr.f32.gmra.mxu0 %v1178
        %v1435 = vpop.f32.mrf.mxu0
        %v1436 = vadd.f32 0.0, %v1435
        %v1437 = vpop.f32.mrf.mxu0
        %1438 = vmatprep.mubr.f32.mxu0 0.0
        %1439 = vmatmul.mubr.f32.gmra.mxu0 %v1180
        %v1440 = vpop.f32.mrf.mxu0
        %v1441 = vadd.f32 0.0, %v1440
        %v1442 = vpop.f32.mrf.mxu0
        %1443 = vmatprep.mubr.f32.mxu0 0.0
        %1444 = vmatmul.mubr.f32.gmra.mxu0 %v1183
        %v1445 = vpop.f32.mrf.mxu0
        %v1446 = vadd.f32 0.0, %v1445
        %v1447 = vpop.f32.mrf.mxu0
        %1448 = vmatprep.mubr.f32.mxu0 0.0
        %1449 = vmatmul.mubr.f32.gmra.mxu0 %v1185
        %v1450 = vpop.f32.mrf.mxu0
        %v1451 = vadd.f32 0.0, %v1450
        %v1452 = vpop.f32.mrf.mxu0
        %1453 = vmatprep.mubr.f32.mxu0 0.0
        %1454 = vmatmul.mubr.f32.gmra.mxu0 %v1188
        %v1455 = vpop.f32.mrf.mxu0
        %v1456 = vadd.f32 0.0, %v1455
        %v1457 = vpop.f32.mrf.mxu0
        %1458 = vmatprep.mubr.f32.mxu0 0.0
        %1459 = vmatmul.mubr.f32.gmra.mxu0 %v1190
        %v1460 = vpop.f32.mrf.mxu0
        %v1461 = vadd.f32 0.0, %v1460
        %v1462 = vpop.f32.mrf.mxu0
        %1463 = vdwg.mxu0
        %v1464 = vadd.f32 %v952, %v1306
        %v1465 = vadd.f32 %v957, %v1311
        %v1466 = vadd.f32 %v962, %v1316
        %v1467 = vadd.f32 %v967, %v1321
        %v1468 = vadd.f32 %v972, %v1326
        %v1469 = vadd.f32 %v977, %v1331
        %v1470 = vadd.f32 %v982, %v1336
        %v1471 = vadd.f32 %v987, %v1341
        %v1472 = vadd.f32 %v992, %v1346
        %v1473 = vadd.f32 %v997, %v1351
        %v1474 = vadd.f32 %v1002, %v1356
        %v1475 = vadd.f32 %v1007, %v1361
        %v1476 = vadd.f32 %v1012, %v1366
        %v1477 = vadd.f32 %v1017, %v1371
        %v1478 = vadd.f32 %v1022, %v1376
        %v1479 = vadd.f32 %v1027, %v1381
        %v1480 = vadd.f32 %v1032, %v1386
        %v1481 = vadd.f32 %v1037, %v1391
        %v1482 = vadd.f32 %v1042, %v1396
        %v1483 = vadd.f32 %v1047, %v1401
        %v1484 = vadd.f32 %v1052, %v1406
        %v1485 = vadd.f32 %v1057, %v1411
        %v1486 = vadd.f32 %v1062, %v1416
        %v1487 = vadd.f32 %v1067, %v1421
        %v1488 = vadd.f32 %v1072, %v1426
        %v1489 = vadd.f32 %v1077, %v1431
        %v1490 = vadd.f32 %v1082, %v1436
        %v1491 = vadd.f32 %v1087, %v1441
        %v1492 = vadd.f32 %v1092, %v1446
        %v1493 = vadd.f32 %v1097, %v1451
        %v1494 = vadd.f32 %v1102, %v1456
        %v1495 = vadd.f32 %v1107, %v1461
        %v1496 = vld [vmem:[%s1 + $0x180] sm:$0xff]
        %v1497 = vld [vmem:[%s1 + $0x188] sm:$0xff]
        %v1498 = vld [vmem:[%s1 + $0x190] sm:$0xff]
        %v1499 = vld [vmem:[%s1 + $0x198] sm:$0xff]
        %v1500 = vld [vmem:[%s1 + $0x1a0] sm:$0xff]
        %v1501 = vld [vmem:[%s1 + $0x1a8] sm:$0xff]
        %v1502 = vld [vmem:[%s1 + $0x1b0] sm:$0xff]
        %v1503 = vld [vmem:[%s1 + $0x1b8] sm:$0xff]
        %v1504 = vld [vmem:[%s1 + $0x1c0] sm:$0xff]
        %v1505 = vld [vmem:[%s1 + $0x1c8] sm:$0xff]
        %v1506 = vld [vmem:[%s1 + $0x1d0] sm:$0xff]
        %v1507 = vld [vmem:[%s1 + $0x1d8] sm:$0xff]
        %v1508 = vld [vmem:[%s1 + $0x1e0] sm:$0xff]
        %v1509 = vld [vmem:[%s1 + $0x1e8] sm:$0xff]
        %v1510 = vld [vmem:[%s1 + $0x1f0] sm:$0xff]
        %v1511 = vld [vmem:[%s1 + $0x1f8] sm:$0xff]
        %1512 = vmatprep.subr.mxu0 0.0
        %1513 = vmatpush1.msra.mxu0 %v1511
        %1514 = vmatprep.subr.mxu0 0.0
        %1515 = vmatpush1.msra.mxu0 %v1510
        %1516 = vmatprep.subr.mxu0 0.0
        %1517 = vmatpush1.msra.mxu0 %v1509
        %1518 = vmatprep.subr.mxu0 0.0
        %1519 = vmatpush1.msra.mxu0 %v1508
        %1520 = vmatprep.subr.mxu0 0.0
        %1521 = vmatpush1.msra.mxu0 %v1507
        %1522 = vmatprep.subr.mxu0 0.0
        %1523 = vmatpush1.msra.mxu0 %v1506
        %1524 = vmatprep.subr.mxu0 0.0
        %1525 = vmatpush1.msra.mxu0 %v1505
        %1526 = vmatprep.subr.mxu0 0.0
        %1527 = vmatpush1.msra.mxu0 %v1504
        %1528 = vmatprep.subr.mxu0 0.0
        %1529 = vmatpush1.msra.mxu0 %v1503
        %1530 = vmatprep.subr.mxu0 0.0
        %1531 = vmatpush1.msra.mxu0 %v1502
        %1532 = vmatprep.subr.mxu0 0.0
        %1533 = vmatpush1.msra.mxu0 %v1501
        %1534 = vmatprep.subr.mxu0 0.0
        %1535 = vmatpush1.msra.mxu0 %v1500
        %1536 = vmatprep.subr.mxu0 0.0
        %1537 = vmatpush1.msra.mxu0 %v1499
        %1538 = vmatprep.subr.mxu0 0.0
        %1539 = vmatpush1.msra.mxu0 %v1498
        %1540 = vmatprep.subr.mxu0 0.0
        %1541 = vmatpush1.msra.mxu0 %v1497
        %1542 = vmatprep.subr.mxu0 0.0
        %1543 = vmatpush1.msra.mxu0 %v1496
        %1544 = vmatprep.subr.mxu0 0.0
        %1545 = vmatpush2.msra.mxu0 0.0
        %1546 = vmatprep.subr.mxu0 0.0
        %1547 = vmatpush2.msra.mxu0 0.0
        %1548 = vmatprep.subr.mxu0 0.0
        %1549 = vmatpush2.msra.mxu0 0.0
        %1550 = vmatprep.subr.mxu0 0.0
        %1551 = vmatpush2.msra.mxu0 0.0
        %1552 = vmatprep.subr.mxu0 0.0
        %1553 = vmatpush2.msra.mxu0 0.0
        %1554 = vmatprep.subr.mxu0 0.0
        %1555 = vmatpush2.msra.mxu0 0.0
        %1556 = vmatprep.subr.mxu0 0.0
        %1557 = vmatpush2.msra.mxu0 0.0
        %1558 = vmatprep.subr.mxu0 0.0
        %1559 = vmatpush2.msra.mxu0 0.0
        %1560 = vmatprep.subr.mxu0 0.0
        %1561 = vmatpush2.msra.mxu0 0.0
        %1562 = vmatprep.subr.mxu0 0.0
        %1563 = vmatpush2.msra.mxu0 0.0
        %1564 = vmatprep.subr.mxu0 0.0
        %1565 = vmatpush2.msra.mxu0 0.0
        %1566 = vmatprep.subr.mxu0 0.0
        %1567 = vmatpush2.msra.mxu0 0.0
        %1568 = vmatprep.subr.mxu0 0.0
        %1569 = vmatpush2.msra.mxu0 0.0
        %1570 = vmatprep.subr.mxu0 0.0
        %1571 = vmatpush2.msra.mxu0 0.0
        %1572 = vmatprep.subr.mxu0 0.0
        %1573 = vmatpush2.msra.mxu0 0.0
        %1574 = vmatprep.subr.mxu0 0.0
        %1575 = vmatpush2.msra.mxu0 0.0
        %1576 = vmatprep.mubr.f32.mxu0 0.0
        %1577 = vmatmul.mubr.f32.gmra.mxu0 %v416
        %v1578 = vpop.f32.mrf.mxu0
        %v1579 = vadd.f32 0.0, %v1578
        %v1580 = vpop.f32.mrf.mxu0
        %1581 = vmatprep.mubr.f32.mxu0 0.0
        %1582 = vmatmul.mubr.f32.gmra.mxu0 %v417
        %v1583 = vpop.f32.mrf.mxu0
        %v1584 = vadd.f32 0.0, %v1583
        %v1585 = vpop.f32.mrf.mxu0
        %1586 = vmatprep.mubr.f32.mxu0 0.0
        %1587 = vmatmul.mubr.f32.gmra.mxu0 %v419
        %v1588 = vpop.f32.mrf.mxu0
        %v1589 = vadd.f32 0.0, %v1588
        %v1590 = vpop.f32.mrf.mxu0
        %1591 = vmatprep.mubr.f32.mxu0 0.0
        %1592 = vmatmul.mubr.f32.gmra.mxu0 %v420
        %v1593 = vpop.f32.mrf.mxu0
        %v1594 = vadd.f32 0.0, %v1593
        %v1595 = vpop.f32.mrf.mxu0
        %1596 = vmatprep.mubr.f32.mxu0 0.0
        %1597 = vmatmul.mubr.f32.gmra.mxu0 %v422
        %v1598 = vpop.f32.mrf.mxu0
        %v1599 = vadd.f32 0.0, %v1598
        %v1600 = vpop.f32.mrf.mxu0
        %1601 = vmatprep.mubr.f32.mxu0 0.0
        %1602 = vmatmul.mubr.f32.gmra.mxu0 %v423
        %v1603 = vpop.f32.mrf.mxu0
        %v1604 = vadd.f32 0.0, %v1603
        %v1605 = vpop.f32.mrf.mxu0
        %1606 = vmatprep.mubr.f32.mxu0 0.0
        %1607 = vmatmul.mubr.f32.gmra.mxu0 %v425
        %v1608 = vpop.f32.mrf.mxu0
        %v1609 = vadd.f32 0.0, %v1608
        %v1610 = vpop.f32.mrf.mxu0
        %1611 = vmatprep.mubr.f32.mxu0 0.0
        %1612 = vmatmul.mubr.f32.gmra.mxu0 %v426
        %v1613 = vpop.f32.mrf.mxu0
        %v1614 = vadd.f32 0.0, %v1613
        %v1615 = vpop.f32.mrf.mxu0
        %1616 = vmatprep.mubr.f32.mxu0 0.0
        %1617 = vmatmul.mubr.f32.gmra.mxu0 %v428
        %v1618 = vpop.f32.mrf.mxu0
        %v1619 = vadd.f32 0.0, %v1618
        %v1620 = vpop.f32.mrf.mxu0
        %1621 = vmatprep.mubr.f32.mxu0 0.0
        %1622 = vmatmul.mubr.f32.gmra.mxu0 %v429
        %v1623 = vpop.f32.mrf.mxu0
        %v1624 = vadd.f32 0.0, %v1623
        %v1625 = vpop.f32.mrf.mxu0
        %1626 = vmatprep.mubr.f32.mxu0 0.0
        %1627 = vmatmul.mubr.f32.gmra.mxu0 %v431
        %v1628 = vpop.f32.mrf.mxu0
        %v1629 = vadd.f32 0.0, %v1628
        %v1630 = vpop.f32.mrf.mxu0
        %1631 = vmatprep.mubr.f32.mxu0 0.0
        %1632 = vmatmul.mubr.f32.gmra.mxu0 %v432
        %v1633 = vpop.f32.mrf.mxu0
        %v1634 = vadd.f32 0.0, %v1633
        %v1635 = vpop.f32.mrf.mxu0
        %1636 = vmatprep.mubr.f32.mxu0 0.0
        %1637 = vmatmul.mubr.f32.gmra.mxu0 %v434
        %v1638 = vpop.f32.mrf.mxu0
        %v1639 = vadd.f32 0.0, %v1638
        %v1640 = vpop.f32.mrf.mxu0
        %1641 = vmatprep.mubr.f32.mxu0 0.0
        %1642 = vmatmul.mubr.f32.gmra.mxu0 %v435
        %v1643 = vpop.f32.mrf.mxu0
        %v1644 = vadd.f32 0.0, %v1643
        %v1645 = vpop.f32.mrf.mxu0
        %1646 = vmatprep.mubr.f32.mxu0 0.0
        %1647 = vmatmul.mubr.f32.gmra.mxu0 %v437
        %v1648 = vpop.f32.mrf.mxu0
        %v1649 = vadd.f32 0.0, %v1648
        %v1650 = vpop.f32.mrf.mxu0
        %1651 = vmatprep.mubr.f32.mxu0 0.0
        %1652 = vmatmul.mubr.f32.gmra.mxu0 %v438
        %v1653 = vpop.f32.mrf.mxu0
        %v1654 = vadd.f32 0.0, %v1653
        %v1655 = vpop.f32.mrf.mxu0
        %1656 = vmatprep.mubr.f32.mxu0 0.0
        %1657 = vmatmul.mubr.f32.gmra.mxu0 %v440
        %v1658 = vpop.f32.mrf.mxu0
        %v1659 = vadd.f32 0.0, %v1658
        %v1660 = vpop.f32.mrf.mxu0
        %1661 = vmatprep.mubr.f32.mxu0 0.0
        %1662 = vmatmul.mubr.f32.gmra.mxu0 %v441
        %v1663 = vpop.f32.mrf.mxu0
        %v1664 = vadd.f32 0.0, %v1663
        %v1665 = vpop.f32.mrf.mxu0
        %1666 = vmatprep.mubr.f32.mxu0 0.0
        %1667 = vmatmul.mubr.f32.gmra.mxu0 %v443
        %v1668 = vpop.f32.mrf.mxu0
        %v1669 = vadd.f32 0.0, %v1668
        %v1670 = vpop.f32.mrf.mxu0
        %1671 = vmatprep.mubr.f32.mxu0 0.0
        %1672 = vmatmul.mubr.f32.gmra.mxu0 %v444
        %v1673 = vpop.f32.mrf.mxu0
        %v1674 = vadd.f32 0.0, %v1673
        %v1675 = vpop.f32.mrf.mxu0
        %1676 = vmatprep.mubr.f32.mxu0 0.0
        %1677 = vmatmul.mubr.f32.gmra.mxu0 %v446
        %v1678 = vpop.f32.mrf.mxu0
        %v1679 = vadd.f32 0.0, %v1678
        %v1680 = vpop.f32.mrf.mxu0
        %1681 = vmatprep.mubr.f32.mxu0 0.0
        %1682 = vmatmul.mubr.f32.gmra.mxu0 %v447
        %v1683 = vpop.f32.mrf.mxu0
        %v1684 = vadd.f32 0.0, %v1683
        %v1685 = vpop.f32.mrf.mxu0
        %1686 = vmatprep.mubr.f32.mxu0 0.0
        %1687 = vmatmul.mubr.f32.gmra.mxu0 %v449
        %v1688 = vpop.f32.mrf.mxu0
        %v1689 = vadd.f32 0.0, %v1688
        %v1690 = vpop.f32.mrf.mxu0
        %1691 = vmatprep.mubr.f32.mxu0 0.0
        %1692 = vmatmul.mubr.f32.gmra.mxu0 %v450
        %v1693 = vpop.f32.mrf.mxu0
        %v1694 = vadd.f32 0.0, %v1693
        %v1695 = vpop.f32.mrf.mxu0
        %1696 = vmatprep.mubr.f32.mxu0 0.0
        %1697 = vmatmul.mubr.f32.gmra.mxu0 %v452
        %v1698 = vpop.f32.mrf.mxu0
        %v1699 = vadd.f32 0.0, %v1698
        %v1700 = vpop.f32.mrf.mxu0
        %1701 = vmatprep.mubr.f32.mxu0 0.0
        %1702 = vmatmul.mubr.f32.gmra.mxu0 %v453
        %v1703 = vpop.f32.mrf.mxu0
        %v1704 = vadd.f32 0.0, %v1703
        %v1705 = vpop.f32.mrf.mxu0
        %1706 = vmatprep.mubr.f32.mxu0 0.0
        %1707 = vmatmul.mubr.f32.gmra.mxu0 %v455
        %v1708 = vpop.f32.mrf.mxu0
        %v1709 = vadd.f32 0.0, %v1708
        %v1710 = vpop.f32.mrf.mxu0
        %1711 = vmatprep.mubr.f32.mxu0 0.0
        %1712 = vmatmul.mubr.f32.gmra.mxu0 %v456
        %v1713 = vpop.f32.mrf.mxu0
        %v1714 = vadd.f32 0.0, %v1713
        %v1715 = vpop.f32.mrf.mxu0
        %1716 = vmatprep.mubr.f32.mxu0 0.0
        %1717 = vmatmul.mubr.f32.gmra.mxu0 %v458
        %v1718 = vpop.f32.mrf.mxu0
        %v1719 = vadd.f32 0.0, %v1718
        %v1720 = vpop.f32.mrf.mxu0
        %1721 = vmatprep.mubr.f32.mxu0 0.0
        %1722 = vmatmul.mubr.f32.gmra.mxu0 %v459
        %v1723 = vpop.f32.mrf.mxu0
        %v1724 = vadd.f32 0.0, %v1723
        %v1725 = vpop.f32.mrf.mxu0
        %1726 = vmatprep.mubr.f32.mxu0 0.0
        %1727 = vmatmul.mubr.f32.gmra.mxu0 %v461
        %v1728 = vpop.f32.mrf.mxu0
        %v1729 = vadd.f32 0.0, %v1728
        %v1730 = vpop.f32.mrf.mxu0
        %1731 = vmatprep.mubr.f32.mxu0 0.0
        %1732 = vmatmul.mubr.f32.gmra.mxu0 %v462
        %v1733 = vpop.f32.mrf.mxu0
        %v1734 = vadd.f32 0.0, %v1733
        %v1735 = vpop.f32.mrf.mxu0
        %1736 = vdwg.mxu0
        %v1737 = vadd.f32 %v1464, %v1579
        %v1738 = vadd.f32 %v1465, %v1584
        %v1739 = vadd.f32 %v1466, %v1589
        %v1740 = vadd.f32 %v1467, %v1594
        %v1741 = vadd.f32 %v1468, %v1599
        %v1742 = vadd.f32 %v1469, %v1604
        %v1743 = vadd.f32 %v1470, %v1609
        %v1744 = vadd.f32 %v1471, %v1614
        %v1745 = vadd.f32 %v1472, %v1619
        %v1746 = vadd.f32 %v1473, %v1624
        %v1747 = vadd.f32 %v1474, %v1629
        %v1748 = vadd.f32 %v1475, %v1634
        %v1749 = vadd.f32 %v1476, %v1639
        %v1750 = vadd.f32 %v1477, %v1644
        %v1751 = vadd.f32 %v1478, %v1649
        %v1752 = vadd.f32 %v1479, %v1654
        %v1753 = vadd.f32 %v1480, %v1659
        %v1754 = vadd.f32 %v1481, %v1664
        %v1755 = vadd.f32 %v1482, %v1669
        %v1756 = vadd.f32 %v1483, %v1674
        %v1757 = vadd.f32 %v1484, %v1679
        %v1758 = vadd.f32 %v1485, %v1684
        %v1759 = vadd.f32 %v1486, %v1689
        %v1760 = vadd.f32 %v1487, %v1694
        %v1761 = vadd.f32 %v1488, %v1699
        %v1762 = vadd.f32 %v1489, %v1704
        %v1763 = vadd.f32 %v1490, %v1709
        %v1764 = vadd.f32 %v1491, %v1714
        %v1765 = vadd.f32 %v1492, %v1719
        %v1766 = vadd.f32 %v1493, %v1724
        %v1767 = vadd.f32 %v1494, %v1729
        %v1768 = vadd.f32 %v1495, %v1734
        %v1772 = vrot.slane %v461, 1
        %v1773 = vrot.slane %v462, 1
        %v1774 = vsel %vm531, %v1772, %v1773
        %v1775 = vrot.slane %v463, 1
        %v1776 = vsel %vm531, %v1773, %v1775
        %v1779 = vld [vmem:[%s1 + $0x200] sm:$0xff]
        %v1780 = vld [vmem:[%s1 + $0x208] sm:$0xff]
        %v1781 = vld [vmem:[%s1 + $0x210] sm:$0xff]
        %v1782 = vld [vmem:[%s1 + $0x218] sm:$0xff]
        %v1783 = vld [vmem:[%s1 + $0x220] sm:$0xff]
        %v1784 = vld [vmem:[%s1 + $0x228] sm:$0xff]
        %v1785 = vld [vmem:[%s1 + $0x230] sm:$0xff]
        %v1786 = vld [vmem:[%s1 + $0x238] sm:$0xff]
        %v1787 = vld [vmem:[%s1 + $0x240] sm:$0xff]
        %v1788 = vld [vmem:[%s1 + $0x248] sm:$0xff]
        %v1789 = vld [vmem:[%s1 + $0x250] sm:$0xff]
        %v1790 = vld [vmem:[%s1 + $0x258] sm:$0xff]
        %v1791 = vld [vmem:[%s1 + $0x260] sm:$0xff]
        %v1792 = vld [vmem:[%s1 + $0x268] sm:$0xff]
        %v1793 = vld [vmem:[%s1 + $0x270] sm:$0xff]
        %v1794 = vld [vmem:[%s1 + $0x278] sm:$0xff]
        %1795 = vmatprep.subr.mxu0 0.0
        %1796 = vmatpush1.msra.mxu0 %v1794
        %1797 = vmatprep.subr.mxu0 0.0
        %1798 = vmatpush1.msra.mxu0 %v1793
        %1799 = vmatprep.subr.mxu0 0.0
        %1800 = vmatpush1.msra.mxu0 %v1792
        %1801 = vmatprep.subr.mxu0 0.0
        %1802 = vmatpush1.msra.mxu0 %v1791
        %1803 = vmatprep.subr.mxu0 0.0
        %1804 = vmatpush1.msra.mxu0 %v1790
        %1805 = vmatprep.subr.mxu0 0.0
        %1806 = vmatpush1.msra.mxu0 %v1789
        %1807 = vmatprep.subr.mxu0 0.0
        %1808 = vmatpush1.msra.mxu0 %v1788
        %1809 = vmatprep.subr.mxu0 0.0
        %1810 = vmatpush1.msra.mxu0 %v1787
        %1811 = vmatprep.subr.mxu0 0.0
        %1812 = vmatpush1.msra.mxu0 %v1786
        %1813 = vmatprep.subr.mxu0 0.0
        %1814 = vmatpush1.msra.mxu0 %v1785
        %1815 = vmatprep.subr.mxu0 0.0
        %1816 = vmatpush1.msra.mxu0 %v1784
        %1817 = vmatprep.subr.mxu0 0.0
        %1818 = vmatpush1.msra.mxu0 %v1783
        %1819 = vmatprep.subr.mxu0 0.0
        %1820 = vmatpush1.msra.mxu0 %v1782
        %1821 = vmatprep.subr.mxu0 0.0
        %1822 = vmatpush1.msra.mxu0 %v1781
        %1823 = vmatprep.subr.mxu0 0.0
        %1824 = vmatpush1.msra.mxu0 %v1780
        %1825 = vmatprep.subr.mxu0 0.0
        %1826 = vmatpush1.msra.mxu0 %v1779
        %1827 = vmatprep.subr.mxu0 0.0
        %1828 = vmatpush2.msra.mxu0 0.0
        %1829 = vmatprep.subr.mxu0 0.0
        %1830 = vmatpush2.msra.mxu0 0.0
        %1831 = vmatprep.subr.mxu0 0.0
        %1832 = vmatpush2.msra.mxu0 0.0
        %1833 = vmatprep.subr.mxu0 0.0
        %1834 = vmatpush2.msra.mxu0 0.0
        %1835 = vmatprep.subr.mxu0 0.0
        %1836 = vmatpush2.msra.mxu0 0.0
        %1837 = vmatprep.subr.mxu0 0.0
        %1838 = vmatpush2.msra.mxu0 0.0
        %1839 = vmatprep.subr.mxu0 0.0
        %1840 = vmatpush2.msra.mxu0 0.0
        %1841 = vmatprep.subr.mxu0 0.0
        %1842 = vmatpush2.msra.mxu0 0.0
        %1843 = vmatprep.subr.mxu0 0.0
        %1844 = vmatpush2.msra.mxu0 0.0
        %1845 = vmatprep.subr.mxu0 0.0
        %1846 = vmatpush2.msra.mxu0 0.0
        %1847 = vmatprep.subr.mxu0 0.0
        %1848 = vmatpush2.msra.mxu0 0.0
        %1849 = vmatprep.subr.mxu0 0.0
        %1850 = vmatpush2.msra.mxu0 0.0
        %1851 = vmatprep.subr.mxu0 0.0
        %1852 = vmatpush2.msra.mxu0 0.0
        %1853 = vmatprep.subr.mxu0 0.0
        %1854 = vmatpush2.msra.mxu0 0.0
        %1855 = vmatprep.subr.mxu0 0.0
        %1856 = vmatpush2.msra.mxu0 0.0
        %1857 = vmatprep.subr.mxu0 0.0
        %1858 = vmatpush2.msra.mxu0 0.0
        %1859 = vmatprep.mubr.f32.mxu0 0.0
        %1860 = vmatmul.mubr.f32.gmra.mxu0 %v539
        %v1861 = vpop.f32.mrf.mxu0
        %v1862 = vadd.f32 0.0, %v1861
        %v1863 = vpop.f32.mrf.mxu0
        %1864 = vmatprep.mubr.f32.mxu0 0.0
        %1865 = vmatmul.mubr.f32.gmra.mxu0 %v541
        %v1866 = vpop.f32.mrf.mxu0
        %v1867 = vadd.f32 0.0, %v1866
        %v1868 = vpop.f32.mrf.mxu0
        %1869 = vmatprep.mubr.f32.mxu0 0.0
        %1870 = vmatmul.mubr.f32.gmra.mxu0 %v544
        %v1871 = vpop.f32.mrf.mxu0
        %v1872 = vadd.f32 0.0, %v1871
        %v1873 = vpop.f32.mrf.mxu0
        %1874 = vmatprep.mubr.f32.mxu0 0.0
        %1875 = vmatmul.mubr.f32.gmra.mxu0 %v546
        %v1876 = vpop.f32.mrf.mxu0
        %v1877 = vadd.f32 0.0, %v1876
        %v1878 = vpop.f32.mrf.mxu0
        %1879 = vmatprep.mubr.f32.mxu0 0.0
        %1880 = vmatmul.mubr.f32.gmra.mxu0 %v549
        %v1881 = vpop.f32.mrf.mxu0
        %v1882 = vadd.f32 0.0, %v1881
        %v1883 = vpop.f32.mrf.mxu0
        %1884 = vmatprep.mubr.f32.mxu0 0.0
        %1885 = vmatmul.mubr.f32.gmra.mxu0 %v551
        %v1886 = vpop.f32.mrf.mxu0
        %v1887 = vadd.f32 0.0, %v1886
        %v1888 = vpop.f32.mrf.mxu0
        %1889 = vmatprep.mubr.f32.mxu0 0.0
        %1890 = vmatmul.mubr.f32.gmra.mxu0 %v554
        %v1891 = vpop.f32.mrf.mxu0
        %v1892 = vadd.f32 0.0, %v1891
        %v1893 = vpop.f32.mrf.mxu0
        %1894 = vmatprep.mubr.f32.mxu0 0.0
        %1895 = vmatmul.mubr.f32.gmra.mxu0 %v556
        %v1896 = vpop.f32.mrf.mxu0
        %v1897 = vadd.f32 0.0, %v1896
        %v1898 = vpop.f32.mrf.mxu0
        %1899 = vmatprep.mubr.f32.mxu0 0.0
        %1900 = vmatmul.mubr.f32.gmra.mxu0 %v559
        %v1901 = vpop.f32.mrf.mxu0
        %v1902 = vadd.f32 0.0, %v1901
        %v1903 = vpop.f32.mrf.mxu0
        %1904 = vmatprep.mubr.f32.mxu0 0.0
        %1905 = vmatmul.mubr.f32.gmra.mxu0 %v561
        %v1906 = vpop.f32.mrf.mxu0
        %v1907 = vadd.f32 0.0, %v1906
        %v1908 = vpop.f32.mrf.mxu0
        %1909 = vmatprep.mubr.f32.mxu0 0.0
        %1910 = vmatmul.mubr.f32.gmra.mxu0 %v564
        %v1911 = vpop.f32.mrf.mxu0
        %v1912 = vadd.f32 0.0, %v1911
        %v1913 = vpop.f32.mrf.mxu0
        %1914 = vmatprep.mubr.f32.mxu0 0.0
        %1915 = vmatmul.mubr.f32.gmra.mxu0 %v566
        %v1916 = vpop.f32.mrf.mxu0
        %v1917 = vadd.f32 0.0, %v1916
        %v1918 = vpop.f32.mrf.mxu0
        %1919 = vmatprep.mubr.f32.mxu0 0.0
        %1920 = vmatmul.mubr.f32.gmra.mxu0 %v569
        %v1921 = vpop.f32.mrf.mxu0
        %v1922 = vadd.f32 0.0, %v1921
        %v1923 = vpop.f32.mrf.mxu0
        %1924 = vmatprep.mubr.f32.mxu0 0.0
        %1925 = vmatmul.mubr.f32.gmra.mxu0 %v571
        %v1926 = vpop.f32.mrf.mxu0
        %v1927 = vadd.f32 0.0, %v1926
        %v1928 = vpop.f32.mrf.mxu0
        %1929 = vmatprep.mubr.f32.mxu0 0.0
        %1930 = vmatmul.mubr.f32.gmra.mxu0 %v574
        %v1931 = vpop.f32.mrf.mxu0
        %v1932 = vadd.f32 0.0, %v1931
        %v1933 = vpop.f32.mrf.mxu0
        %1934 = vmatprep.mubr.f32.mxu0 0.0
        %1935 = vmatmul.mubr.f32.gmra.mxu0 %v576
        %v1936 = vpop.f32.mrf.mxu0
        %v1937 = vadd.f32 0.0, %v1936
        %v1938 = vpop.f32.mrf.mxu0
        %1939 = vmatprep.mubr.f32.mxu0 0.0
        %1940 = vmatmul.mubr.f32.gmra.mxu0 %v579
        %v1941 = vpop.f32.mrf.mxu0
        %v1942 = vadd.f32 0.0, %v1941
        %v1943 = vpop.f32.mrf.mxu0
        %1944 = vmatprep.mubr.f32.mxu0 0.0
        %1945 = vmatmul.mubr.f32.gmra.mxu0 %v581
        %v1946 = vpop.f32.mrf.mxu0
        %v1947 = vadd.f32 0.0, %v1946
        %v1948 = vpop.f32.mrf.mxu0
        %1949 = vmatprep.mubr.f32.mxu0 0.0
        %1950 = vmatmul.mubr.f32.gmra.mxu0 %v584
        %v1951 = vpop.f32.mrf.mxu0
        %v1952 = vadd.f32 0.0, %v1951
        %v1953 = vpop.f32.mrf.mxu0
        %1954 = vmatprep.mubr.f32.mxu0 0.0
        %1955 = vmatmul.mubr.f32.gmra.mxu0 %v586
        %v1956 = vpop.f32.mrf.mxu0
        %v1957 = vadd.f32 0.0, %v1956
        %v1958 = vpop.f32.mrf.mxu0
        %1959 = vmatprep.mubr.f32.mxu0 0.0
        %1960 = vmatmul.mubr.f32.gmra.mxu0 %v589
        %v1961 = vpop.f32.mrf.mxu0
        %v1962 = vadd.f32 0.0, %v1961
        %v1963 = vpop.f32.mrf.mxu0
        %1964 = vmatprep.mubr.f32.mxu0 0.0
        %1965 = vmatmul.mubr.f32.gmra.mxu0 %v591
        %v1966 = vpop.f32.mrf.mxu0
        %v1967 = vadd.f32 0.0, %v1966
        %v1968 = vpop.f32.mrf.mxu0
        %1969 = vmatprep.mubr.f32.mxu0 0.0
        %1970 = vmatmul.mubr.f32.gmra.mxu0 %v594
        %v1971 = vpop.f32.mrf.mxu0
        %v1972 = vadd.f32 0.0, %v1971
        %v1973 = vpop.f32.mrf.mxu0
        %1974 = vmatprep.mubr.f32.mxu0 0.0
        %1975 = vmatmul.mubr.f32.gmra.mxu0 %v596
        %v1976 = vpop.f32.mrf.mxu0
        %v1977 = vadd.f32 0.0, %v1976
        %v1978 = vpop.f32.mrf.mxu0
        %1979 = vmatprep.mubr.f32.mxu0 0.0
        %1980 = vmatmul.mubr.f32.gmra.mxu0 %v599
        %v1981 = vpop.f32.mrf.mxu0
        %v1982 = vadd.f32 0.0, %v1981
        %v1983 = vpop.f32.mrf.mxu0
        %1984 = vmatprep.mubr.f32.mxu0 0.0
        %1985 = vmatmul.mubr.f32.gmra.mxu0 %v601
        %v1986 = vpop.f32.mrf.mxu0
        %v1987 = vadd.f32 0.0, %v1986
        %v1988 = vpop.f32.mrf.mxu0
        %1989 = vmatprep.mubr.f32.mxu0 0.0
        %1990 = vmatmul.mubr.f32.gmra.mxu0 %v604
        %v1991 = vpop.f32.mrf.mxu0
        %v1992 = vadd.f32 0.0, %v1991
        %v1993 = vpop.f32.mrf.mxu0
        %1994 = vmatprep.mubr.f32.mxu0 0.0
        %1995 = vmatmul.mubr.f32.gmra.mxu0 %v606
        %v1996 = vpop.f32.mrf.mxu0
        %v1997 = vadd.f32 0.0, %v1996
        %v1998 = vpop.f32.mrf.mxu0
        %1999 = vmatprep.mubr.f32.mxu0 0.0
        %2000 = vmatmul.mubr.f32.gmra.mxu0 %v609
        %v2001 = vpop.f32.mrf.mxu0
        %v2002 = vadd.f32 0.0, %v2001
        %v2003 = vpop.f32.mrf.mxu0
        %2004 = vmatprep.mubr.f32.mxu0 0.0
        %2005 = vmatmul.mubr.f32.gmra.mxu0 %v611
        %v2006 = vpop.f32.mrf.mxu0
        %v2007 = vadd.f32 0.0, %v2006
        %v2008 = vpop.f32.mrf.mxu0
        %2009 = vmatprep.mubr.f32.mxu0 0.0
        %2010 = vmatmul.mubr.f32.gmra.mxu0 %v1774
        %v2011 = vpop.f32.mrf.mxu0
        %v2012 = vadd.f32 0.0, %v2011
        %v2013 = vpop.f32.mrf.mxu0
        %2014 = vmatprep.mubr.f32.mxu0 0.0
        %2015 = vmatmul.mubr.f32.gmra.mxu0 %v1776
        %v2016 = vpop.f32.mrf.mxu0
        %v2017 = vadd.f32 0.0, %v2016
        %v2018 = vpop.f32.mrf.mxu0
        %2019 = vdwg.mxu0
        %v2020 = vadd.f32 %v1737, %v1862
        %v2021 = vadd.f32 %v1738, %v1867
        %v2022 = vadd.f32 %v1739, %v1872
        %v2023 = vadd.f32 %v1740, %v1877
        %v2024 = vadd.f32 %v1741, %v1882
        %v2025 = vadd.f32 %v1742, %v1887
        %v2026 = vadd.f32 %v1743, %v1892
        %v2027 = vadd.f32 %v1744, %v1897
        %v2028 = vadd.f32 %v1745, %v1902
        %v2029 = vadd.f32 %v1746, %v1907
        %v2030 = vadd.f32 %v1747, %v1912
        %v2031 = vadd.f32 %v1748, %v1917
        %v2032 = vadd.f32 %v1749, %v1922
        %v2033 = vadd.f32 %v1750, %v1927
        %v2034 = vadd.f32 %v1751, %v1932
        %v2035 = vadd.f32 %v1752, %v1937
        %v2036 = vadd.f32 %v1753, %v1942
        %v2037 = vadd.f32 %v1754, %v1947
        %v2038 = vadd.f32 %v1755, %v1952
        %v2039 = vadd.f32 %v1756, %v1957
        %v2040 = vadd.f32 %v1757, %v1962
        %v2041 = vadd.f32 %v1758, %v1967
        %v2042 = vadd.f32 %v1759, %v1972
        %v2043 = vadd.f32 %v1760, %v1977
        %v2044 = vadd.f32 %v1761, %v1982
        %v2045 = vadd.f32 %v1762, %v1987
        %v2046 = vadd.f32 %v1763, %v1992
        %v2047 = vadd.f32 %v1764, %v1997
        %v2048 = vadd.f32 %v1765, %v2002
        %v2049 = vadd.f32 %v1766, %v2007
        %v2050 = vadd.f32 %v1767, %v2012
        %v2051 = vadd.f32 %v1768, %v2017
        %v2052 = vrot.slane %v461, 2
        %v2053 = vrot.slane %v462, 2
        %v2054 = vsel %vm1110, %v2052, %v2053
        %v2055 = vrot.slane %v463, 2
        %v2056 = vsel %vm1110, %v2053, %v2055
        %v2059 = vld [vmem:[%s1 + $0x280] sm:$0xff]
        %v2060 = vld [vmem:[%s1 + $0x288] sm:$0xff]
        %v2061 = vld [vmem:[%s1 + $0x290] sm:$0xff]
        %v2062 = vld [vmem:[%s1 + $0x298] sm:$0xff]
        %v2063 = vld [vmem:[%s1 + $0x2a0] sm:$0xff]
        %v2064 = vld [vmem:[%s1 + $0x2a8] sm:$0xff]
        %v2065 = vld [vmem:[%s1 + $0x2b0] sm:$0xff]
        %v2066 = vld [vmem:[%s1 + $0x2b8] sm:$0xff]
        %v2067 = vld [vmem:[%s1 + $0x2c0] sm:$0xff]
        %v2068 = vld [vmem:[%s1 + $0x2c8] sm:$0xff]
        %v2069 = vld [vmem:[%s1 + $0x2d0] sm:$0xff]
        %v2070 = vld [vmem:[%s1 + $0x2d8] sm:$0xff]
        %v2071 = vld [vmem:[%s1 + $0x2e0] sm:$0xff]
        %v2072 = vld [vmem:[%s1 + $0x2e8] sm:$0xff]
        %v2073 = vld [vmem:[%s1 + $0x2f0] sm:$0xff]
        %v2074 = vld [vmem:[%s1 + $0x2f8] sm:$0xff]
        %2075 = vmatprep.subr.mxu0 0.0
        %2076 = vmatpush1.msra.mxu0 %v2074
        %2077 = vmatprep.subr.mxu0 0.0
        %2078 = vmatpush1.msra.mxu0 %v2073
        %2079 = vmatprep.subr.mxu0 0.0
        %2080 = vmatpush1.msra.mxu0 %v2072
        %2081 = vmatprep.subr.mxu0 0.0
        %2082 = vmatpush1.msra.mxu0 %v2071
        %2083 = vmatprep.subr.mxu0 0.0
        %2084 = vmatpush1.msra.mxu0 %v2070
        %2085 = vmatprep.subr.mxu0 0.0
        %2086 = vmatpush1.msra.mxu0 %v2069
        %2087 = vmatprep.subr.mxu0 0.0
        %2088 = vmatpush1.msra.mxu0 %v2068
        %2089 = vmatprep.subr.mxu0 0.0
        %2090 = vmatpush1.msra.mxu0 %v2067
        %2091 = vmatprep.subr.mxu0 0.0
        %2092 = vmatpush1.msra.mxu0 %v2066
        %2093 = vmatprep.subr.mxu0 0.0
        %2094 = vmatpush1.msra.mxu0 %v2065
        %2095 = vmatprep.subr.mxu0 0.0
        %2096 = vmatpush1.msra.mxu0 %v2064
        %2097 = vmatprep.subr.mxu0 0.0
        %2098 = vmatpush1.msra.mxu0 %v2063
        %2099 = vmatprep.subr.mxu0 0.0
        %2100 = vmatpush1.msra.mxu0 %v2062
        %2101 = vmatprep.subr.mxu0 0.0
        %2102 = vmatpush1.msra.mxu0 %v2061
        %2103 = vmatprep.subr.mxu0 0.0
        %2104 = vmatpush1.msra.mxu0 %v2060
        %2105 = vmatprep.subr.mxu0 0.0
        %2106 = vmatpush1.msra.mxu0 %v2059
        %2107 = vmatprep.subr.mxu0 0.0
        %2108 = vmatpush2.msra.mxu0 0.0
        %2109 = vmatprep.subr.mxu0 0.0
        %2110 = vmatpush2.msra.mxu0 0.0
        %2111 = vmatprep.subr.mxu0 0.0
        %2112 = vmatpush2.msra.mxu0 0.0
        %2113 = vmatprep.subr.mxu0 0.0
        %2114 = vmatpush2.msra.mxu0 0.0
        %2115 = vmatprep.subr.mxu0 0.0
        %2116 = vmatpush2.msra.mxu0 0.0
        %2117 = vmatprep.subr.mxu0 0.0
        %2118 = vmatpush2.msra.mxu0 0.0
        %2119 = vmatprep.subr.mxu0 0.0
        %2120 = vmatpush2.msra.mxu0 0.0
        %2121 = vmatprep.subr.mxu0 0.0
        %2122 = vmatpush2.msra.mxu0 0.0
        %2123 = vmatprep.subr.mxu0 0.0
        %2124 = vmatpush2.msra.mxu0 0.0
        %2125 = vmatprep.subr.mxu0 0.0
        %2126 = vmatpush2.msra.mxu0 0.0
        %2127 = vmatprep.subr.mxu0 0.0
        %2128 = vmatpush2.msra.mxu0 0.0
        %2129 = vmatprep.subr.mxu0 0.0
        %2130 = vmatpush2.msra.mxu0 0.0
        %2131 = vmatprep.subr.mxu0 0.0
        %2132 = vmatpush2.msra.mxu0 0.0
        %2133 = vmatprep.subr.mxu0 0.0
        %2134 = vmatpush2.msra.mxu0 0.0
        %2135 = vmatprep.subr.mxu0 0.0
        %2136 = vmatpush2.msra.mxu0 0.0
        %2137 = vmatprep.subr.mxu0 0.0
        %2138 = vmatpush2.msra.mxu0 0.0
        %2139 = vmatprep.mubr.f32.mxu0 0.0
        %2140 = vmatmul.mubr.f32.gmra.mxu0 %v1118
        %v2141 = vpop.f32.mrf.mxu0
        %v2142 = vadd.f32 0.0, %v2141
        %v2143 = vpop.f32.mrf.mxu0
        %2144 = vmatprep.mubr.f32.mxu0 0.0
        %2145 = vmatmul.mubr.f32.gmra.mxu0 %v1120
        %v2146 = vpop.f32.mrf.mxu0
        %v2147 = vadd.f32 0.0, %v2146
        %v2148 = vpop.f32.mrf.mxu0
        %2149 = vmatprep.mubr.f32.mxu0 0.0
        %2150 = vmatmul.mubr.f32.gmra.mxu0 %v1123
        %v2151 = vpop.f32.mrf.mxu0
        %v2152 = vadd.f32 0.0, %v2151
        %v2153 = vpop.f32.mrf.mxu0
        %2154 = vmatprep.mubr.f32.mxu0 0.0
        %2155 = vmatmul.mubr.f32.gmra.mxu0 %v1125
        %v2156 = vpop.f32.mrf.mxu0
        %v2157 = vadd.f32 0.0, %v2156
        %v2158 = vpop.f32.mrf.mxu0
        %2159 = vmatprep.mubr.f32.mxu0 0.0
        %2160 = vmatmul.mubr.f32.gmra.mxu0 %v1128
        %v2161 = vpop.f32.mrf.mxu0
        %v2162 = vadd.f32 0.0, %v2161
        %v2163 = vpop.f32.mrf.mxu0
        %2164 = vmatprep.mubr.f32.mxu0 0.0
        %2165 = vmatmul.mubr.f32.gmra.mxu0 %v1130
        %v2166 = vpop.f32.mrf.mxu0
        %v2167 = vadd.f32 0.0, %v2166
        %v2168 = vpop.f32.mrf.mxu0
        %2169 = vmatprep.mubr.f32.mxu0 0.0
        %2170 = vmatmul.mubr.f32.gmra.mxu0 %v1133
        %v2171 = vpop.f32.mrf.mxu0
        %v2172 = vadd.f32 0.0, %v2171
        %v2173 = vpop.f32.mrf.mxu0
        %2174 = vmatprep.mubr.f32.mxu0 0.0
        %2175 = vmatmul.mubr.f32.gmra.mxu0 %v1135
        %v2176 = vpop.f32.mrf.mxu0
        %v2177 = vadd.f32 0.0, %v2176
        %v2178 = vpop.f32.mrf.mxu0
        %2179 = vmatprep.mubr.f32.mxu0 0.0
        %2180 = vmatmul.mubr.f32.gmra.mxu0 %v1138
        %v2181 = vpop.f32.mrf.mxu0
        %v2182 = vadd.f32 0.0, %v2181
        %v2183 = vpop.f32.mrf.mxu0
        %2184 = vmatprep.mubr.f32.mxu0 0.0
        %2185 = vmatmul.mubr.f32.gmra.mxu0 %v1140
        %v2186 = vpop.f32.mrf.mxu0
        %v2187 = vadd.f32 0.0, %v2186
        %v2188 = vpop.f32.mrf.mxu0
        %2189 = vmatprep.mubr.f32.mxu0 0.0
        %2190 = vmatmul.mubr.f32.gmra.mxu0 %v1143
        %v2191 = vpop.f32.mrf.mxu0
        %v2192 = vadd.f32 0.0, %v2191
        %v2193 = vpop.f32.mrf.mxu0
        %2194 = vmatprep.mubr.f32.mxu0 0.0
        %2195 = vmatmul.mubr.f32.gmra.mxu0 %v1145
        %v2196 = vpop.f32.mrf.mxu0
        %v2197 = vadd.f32 0.0, %v2196
        %v2198 = vpop.f32.mrf.mxu0
        %2199 = vmatprep.mubr.f32.mxu0 0.0
        %2200 = vmatmul.mubr.f32.gmra.mxu0 %v1148
        %v2201 = vpop.f32.mrf.mxu0
        %v2202 = vadd.f32 0.0, %v2201
        %v2203 = vpop.f32.mrf.mxu0
        %2204 = vmatprep.mubr.f32.mxu0 0.0
        %2205 = vmatmul.mubr.f32.gmra.mxu0 %v1150
        %v2206 = vpop.f32.mrf.mxu0
        %v2207 = vadd.f32 0.0, %v2206
        %v2208 = vpop.f32.mrf.mxu0
        %2209 = vmatprep.mubr.f32.mxu0 0.0
        %2210 = vmatmul.mubr.f32.gmra.mxu0 %v1153
        %v2211 = vpop.f32.mrf.mxu0
        %v2212 = vadd.f32 0.0, %v2211
        %v2213 = vpop.f32.mrf.mxu0
        %2214 = vmatprep.mubr.f32.mxu0 0.0
        %2215 = vmatmul.mubr.f32.gmra.mxu0 %v1155
        %v2216 = vpop.f32.mrf.mxu0
        %v2217 = vadd.f32 0.0, %v2216
        %v2218 = vpop.f32.mrf.mxu0
        %2219 = vmatprep.mubr.f32.mxu0 0.0
        %2220 = vmatmul.mubr.f32.gmra.mxu0 %v1158
        %v2221 = vpop.f32.mrf.mxu0
        %v2222 = vadd.f32 0.0, %v2221
        %v2223 = vpop.f32.mrf.mxu0
        %2224 = vmatprep.mubr.f32.mxu0 0.0
        %2225 = vmatmul.mubr.f32.gmra.mxu0 %v1160
        %v2226 = vpop.f32.mrf.mxu0
        %v2227 = vadd.f32 0.0, %v2226
        %v2228 = vpop.f32.mrf.mxu0
        %2229 = vmatprep.mubr.f32.mxu0 0.0
        %2230 = vmatmul.mubr.f32.gmra.mxu0 %v1163
        %v2231 = vpop.f32.mrf.mxu0
        %v2232 = vadd.f32 0.0, %v2231
        %v2233 = vpop.f32.mrf.mxu0
        %2234 = vmatprep.mubr.f32.mxu0 0.0
        %2235 = vmatmul.mubr.f32.gmra.mxu0 %v1165
        %v2236 = vpop.f32.mrf.mxu0
        %v2237 = vadd.f32 0.0, %v2236
        %v2238 = vpop.f32.mrf.mxu0
        %2239 = vmatprep.mubr.f32.mxu0 0.0
        %2240 = vmatmul.mubr.f32.gmra.mxu0 %v1168
        %v2241 = vpop.f32.mrf.mxu0
        %v2242 = vadd.f32 0.0, %v2241
        %v2243 = vpop.f32.mrf.mxu0
        %2244 = vmatprep.mubr.f32.mxu0 0.0
        %2245 = vmatmul.mubr.f32.gmra.mxu0 %v1170
        %v2246 = vpop.f32.mrf.mxu0
        %v2247 = vadd.f32 0.0, %v2246
        %v2248 = vpop.f32.mrf.mxu0
        %2249 = vmatprep.mubr.f32.mxu0 0.0
        %2250 = vmatmul.mubr.f32.gmra.mxu0 %v1173
        %v2251 = vpop.f32.mrf.mxu0
        %v2252 = vadd.f32 0.0, %v2251
        %v2253 = vpop.f32.mrf.mxu0
        %2254 = vmatprep.mubr.f32.mxu0 0.0
        %2255 = vmatmul.mubr.f32.gmra.mxu0 %v1175
        %v2256 = vpop.f32.mrf.mxu0
        %v2257 = vadd.f32 0.0, %v2256
        %v2258 = vpop.f32.mrf.mxu0
        %2259 = vmatprep.mubr.f32.mxu0 0.0
        %2260 = vmatmul.mubr.f32.gmra.mxu0 %v1178
        %v2261 = vpop.f32.mrf.mxu0
        %v2262 = vadd.f32 0.0, %v2261
        %v2263 = vpop.f32.mrf.mxu0
        %2264 = vmatprep.mubr.f32.mxu0 0.0
        %2265 = vmatmul.mubr.f32.gmra.mxu0 %v1180
        %v2266 = vpop.f32.mrf.mxu0
        %v2267 = vadd.f32 0.0, %v2266
        %v2268 = vpop.f32.mrf.mxu0
        %2269 = vmatprep.mubr.f32.mxu0 0.0
        %2270 = vmatmul.mubr.f32.gmra.mxu0 %v1183
        %v2271 = vpop.f32.mrf.mxu0
        %v2272 = vadd.f32 0.0, %v2271
        %v2273 = vpop.f32.mrf.mxu0
        %2274 = vmatprep.mubr.f32.mxu0 0.0
        %2275 = vmatmul.mubr.f32.gmra.mxu0 %v1185
        %v2276 = vpop.f32.mrf.mxu0
        %v2277 = vadd.f32 0.0, %v2276
        %v2278 = vpop.f32.mrf.mxu0
        %2279 = vmatprep.mubr.f32.mxu0 0.0
        %2280 = vmatmul.mubr.f32.gmra.mxu0 %v1188
        %v2281 = vpop.f32.mrf.mxu0
        %v2282 = vadd.f32 0.0, %v2281
        %v2283 = vpop.f32.mrf.mxu0
        %2284 = vmatprep.mubr.f32.mxu0 0.0
        %2285 = vmatmul.mubr.f32.gmra.mxu0 %v1190
        %v2286 = vpop.f32.mrf.mxu0
        %v2287 = vadd.f32 0.0, %v2286
        %v2288 = vpop.f32.mrf.mxu0
        %2289 = vmatprep.mubr.f32.mxu0 0.0
        %2290 = vmatmul.mubr.f32.gmra.mxu0 %v2054
        %v2291 = vpop.f32.mrf.mxu0
        %v2292 = vadd.f32 0.0, %v2291
        %v2293 = vpop.f32.mrf.mxu0
        %2294 = vmatprep.mubr.f32.mxu0 0.0
        %2295 = vmatmul.mubr.f32.gmra.mxu0 %v2056
        %v2296 = vpop.f32.mrf.mxu0
        %v2297 = vadd.f32 0.0, %v2296
        %v2298 = vpop.f32.mrf.mxu0
        %2299 = vdwg.mxu0
        %v2300 = vadd.f32 %v2020, %v2142
        %v2301 = vadd.f32 %v2021, %v2147
        %v2302 = vadd.f32 %v2022, %v2152
        %v2303 = vadd.f32 %v2023, %v2157
        %v2304 = vadd.f32 %v2024, %v2162
        %v2305 = vadd.f32 %v2025, %v2167
        %v2306 = vadd.f32 %v2026, %v2172
        %v2307 = vadd.f32 %v2027, %v2177
        %v2308 = vadd.f32 %v2028, %v2182
        %v2309 = vadd.f32 %v2029, %v2187
        %v2310 = vadd.f32 %v2030, %v2192
        %v2311 = vadd.f32 %v2031, %v2197
        %v2312 = vadd.f32 %v2032, %v2202
        %v2313 = vadd.f32 %v2033, %v2207
        %v2314 = vadd.f32 %v2034, %v2212
        %v2315 = vadd.f32 %v2035, %v2217
        %v2316 = vadd.f32 %v2036, %v2222
        %v2317 = vadd.f32 %v2037, %v2227
        %v2318 = vadd.f32 %v2038, %v2232
        %v2319 = vadd.f32 %v2039, %v2237
        %v2320 = vadd.f32 %v2040, %v2242
        %v2321 = vadd.f32 %v2041, %v2247
        %v2322 = vadd.f32 %v2042, %v2252
        %v2323 = vadd.f32 %v2043, %v2257
        %v2324 = vadd.f32 %v2044, %v2262
        %v2325 = vadd.f32 %v2045, %v2267
        %v2326 = vadd.f32 %v2046, %v2272
        %v2327 = vadd.f32 %v2047, %v2277
        %v2328 = vadd.f32 %v2048, %v2282
        %v2329 = vadd.f32 %v2049, %v2287
        %v2330 = vadd.f32 %v2050, %v2292
        %v2331 = vadd.f32 %v2051, %v2297
        %v2332 = vld [vmem:[%s1 + $0x300] sm:$0xff]
        %v2333 = vld [vmem:[%s1 + $0x308] sm:$0xff]
        %v2334 = vld [vmem:[%s1 + $0x310] sm:$0xff]
        %v2335 = vld [vmem:[%s1 + $0x318] sm:$0xff]
        %v2336 = vld [vmem:[%s1 + $0x320] sm:$0xff]
        %v2337 = vld [vmem:[%s1 + $0x328] sm:$0xff]
        %v2338 = vld [vmem:[%s1 + $0x330] sm:$0xff]
        %v2339 = vld [vmem:[%s1 + $0x338] sm:$0xff]
        %v2340 = vld [vmem:[%s1 + $0x340] sm:$0xff]
        %v2341 = vld [vmem:[%s1 + $0x348] sm:$0xff]
        %v2342 = vld [vmem:[%s1 + $0x350] sm:$0xff]
        %v2343 = vld [vmem:[%s1 + $0x358] sm:$0xff]
        %v2344 = vld [vmem:[%s1 + $0x360] sm:$0xff]
        %v2345 = vld [vmem:[%s1 + $0x368] sm:$0xff]
        %v2346 = vld [vmem:[%s1 + $0x370] sm:$0xff]
        %v2347 = vld [vmem:[%s1 + $0x378] sm:$0xff]
        %2348 = vmatprep.subr.mxu0 0.0
        %2349 = vmatpush1.msra.mxu0 %v2347
        %2350 = vmatprep.subr.mxu0 0.0
        %2351 = vmatpush1.msra.mxu0 %v2346
        %2352 = vmatprep.subr.mxu0 0.0
        %2353 = vmatpush1.msra.mxu0 %v2345
        %2354 = vmatprep.subr.mxu0 0.0
        %2355 = vmatpush1.msra.mxu0 %v2344
        %2356 = vmatprep.subr.mxu0 0.0
        %2357 = vmatpush1.msra.mxu0 %v2343
        %2358 = vmatprep.subr.mxu0 0.0
        %2359 = vmatpush1.msra.mxu0 %v2342
        %2360 = vmatprep.subr.mxu0 0.0
        %2361 = vmatpush1.msra.mxu0 %v2341
        %2362 = vmatprep.subr.mxu0 0.0
        %2363 = vmatpush1.msra.mxu0 %v2340
        %2364 = vmatprep.subr.mxu0 0.0
        %2365 = vmatpush1.msra.mxu0 %v2339
        %2366 = vmatprep.subr.mxu0 0.0
        %2367 = vmatpush1.msra.mxu0 %v2338
        %2368 = vmatprep.subr.mxu0 0.0
        %2369 = vmatpush1.msra.mxu0 %v2337
        %2370 = vmatprep.subr.mxu0 0.0
        %2371 = vmatpush1.msra.mxu0 %v2336
        %2372 = vmatprep.subr.mxu0 0.0
        %2373 = vmatpush1.msra.mxu0 %v2335
        %2374 = vmatprep.subr.mxu0 0.0
        %2375 = vmatpush1.msra.mxu0 %v2334
        %2376 = vmatprep.subr.mxu0 0.0
        %2377 = vmatpush1.msra.mxu0 %v2333
        %2378 = vmatprep.subr.mxu0 0.0
        %2379 = vmatpush1.msra.mxu0 %v2332
        %2380 = vmatprep.subr.mxu0 0.0
        %2381 = vmatpush2.msra.mxu0 0.0
        %2382 = vmatprep.subr.mxu0 0.0
        %2383 = vmatpush2.msra.mxu0 0.0
        %2384 = vmatprep.subr.mxu0 0.0
        %2385 = vmatpush2.msra.mxu0 0.0
        %2386 = vmatprep.subr.mxu0 0.0
        %2387 = vmatpush2.msra.mxu0 0.0
        %2388 = vmatprep.subr.mxu0 0.0
        %2389 = vmatpush2.msra.mxu0 0.0
        %2390 = vmatprep.subr.mxu0 0.0
        %2391 = vmatpush2.msra.mxu0 0.0
        %2392 = vmatprep.subr.mxu0 0.0
        %2393 = vmatpush2.msra.mxu0 0.0
        %2394 = vmatprep.subr.mxu0 0.0
        %2395 = vmatpush2.msra.mxu0 0.0
        %2396 = vmatprep.subr.mxu0 0.0
        %2397 = vmatpush2.msra.mxu0 0.0
        %2398 = vmatprep.subr.mxu0 0.0
        %2399 = vmatpush2.msra.mxu0 0.0
        %2400 = vmatprep.subr.mxu0 0.0
        %2401 = vmatpush2.msra.mxu0 0.0
        %2402 = vmatprep.subr.mxu0 0.0
        %2403 = vmatpush2.msra.mxu0 0.0
        %2404 = vmatprep.subr.mxu0 0.0
        %2405 = vmatpush2.msra.mxu0 0.0
        %2406 = vmatprep.subr.mxu0 0.0
        %2407 = vmatpush2.msra.mxu0 0.0
        %2408 = vmatprep.subr.mxu0 0.0
        %2409 = vmatpush2.msra.mxu0 0.0
        %2410 = vmatprep.subr.mxu0 0.0
        %2411 = vmatpush2.msra.mxu0 0.0
        %2412 = vmatprep.mubr.f32.mxu0 0.0
        %2413 = vmatmul.mubr.f32.gmra.mxu0 %v419
        %v2414 = vpop.f32.mrf.mxu0
        %v2415 = vadd.f32 0.0, %v2414
        %v2416 = vpop.f32.mrf.mxu0
        %2417 = vmatprep.mubr.f32.mxu0 0.0
        %2418 = vmatmul.mubr.f32.gmra.mxu0 %v420
        %v2419 = vpop.f32.mrf.mxu0
        %v2420 = vadd.f32 0.0, %v2419
        %v2421 = vpop.f32.mrf.mxu0
        %2422 = vmatprep.mubr.f32.mxu0 0.0
        %2423 = vmatmul.mubr.f32.gmra.mxu0 %v422
        %v2424 = vpop.f32.mrf.mxu0
        %v2425 = vadd.f32 0.0, %v2424
        %v2426 = vpop.f32.mrf.mxu0
        %2427 = vmatprep.mubr.f32.mxu0 0.0
        %2428 = vmatmul.mubr.f32.gmra.mxu0 %v423
        %v2429 = vpop.f32.mrf.mxu0
        %v2430 = vadd.f32 0.0, %v2429
        %v2431 = vpop.f32.mrf.mxu0
        %2432 = vmatprep.mubr.f32.mxu0 0.0
        %2433 = vmatmul.mubr.f32.gmra.mxu0 %v425
        %v2434 = vpop.f32.mrf.mxu0
        %v2435 = vadd.f32 0.0, %v2434
        %v2436 = vpop.f32.mrf.mxu0
        %2437 = vmatprep.mubr.f32.mxu0 0.0
        %2438 = vmatmul.mubr.f32.gmra.mxu0 %v426
        %v2439 = vpop.f32.mrf.mxu0
        %v2440 = vadd.f32 0.0, %v2439
        %v2441 = vpop.f32.mrf.mxu0
        %2442 = vmatprep.mubr.f32.mxu0 0.0
        %2443 = vmatmul.mubr.f32.gmra.mxu0 %v428
        %v2444 = vpop.f32.mrf.mxu0
        %v2445 = vadd.f32 0.0, %v2444
        %v2446 = vpop.f32.mrf.mxu0
        %2447 = vmatprep.mubr.f32.mxu0 0.0
        %2448 = vmatmul.mubr.f32.gmra.mxu0 %v429
        %v2449 = vpop.f32.mrf.mxu0
        %v2450 = vadd.f32 0.0, %v2449
        %v2451 = vpop.f32.mrf.mxu0
        %2452 = vmatprep.mubr.f32.mxu0 0.0
        %2453 = vmatmul.mubr.f32.gmra.mxu0 %v431
        %v2454 = vpop.f32.mrf.mxu0
        %v2455 = vadd.f32 0.0, %v2454
        %v2456 = vpop.f32.mrf.mxu0
        %2457 = vmatprep.mubr.f32.mxu0 0.0
        %2458 = vmatmul.mubr.f32.gmra.mxu0 %v432
        %v2459 = vpop.f32.mrf.mxu0
        %v2460 = vadd.f32 0.0, %v2459
        %v2461 = vpop.f32.mrf.mxu0
        %2462 = vmatprep.mubr.f32.mxu0 0.0
        %2463 = vmatmul.mubr.f32.gmra.mxu0 %v434
        %v2464 = vpop.f32.mrf.mxu0
        %v2465 = vadd.f32 0.0, %v2464
        %v2466 = vpop.f32.mrf.mxu0
        %2467 = vmatprep.mubr.f32.mxu0 0.0
        %2468 = vmatmul.mubr.f32.gmra.mxu0 %v435
        %v2469 = vpop.f32.mrf.mxu0
        %v2470 = vadd.f32 0.0, %v2469
        %v2471 = vpop.f32.mrf.mxu0
        %2472 = vmatprep.mubr.f32.mxu0 0.0
        %2473 = vmatmul.mubr.f32.gmra.mxu0 %v437
        %v2474 = vpop.f32.mrf.mxu0
        %v2475 = vadd.f32 0.0, %v2474
        %v2476 = vpop.f32.mrf.mxu0
        %2477 = vmatprep.mubr.f32.mxu0 0.0
        %2478 = vmatmul.mubr.f32.gmra.mxu0 %v438
        %v2479 = vpop.f32.mrf.mxu0
        %v2480 = vadd.f32 0.0, %v2479
        %v2481 = vpop.f32.mrf.mxu0
        %2482 = vmatprep.mubr.f32.mxu0 0.0
        %2483 = vmatmul.mubr.f32.gmra.mxu0 %v440
        %v2484 = vpop.f32.mrf.mxu0
        %v2485 = vadd.f32 0.0, %v2484
        %v2486 = vpop.f32.mrf.mxu0
        %2487 = vmatprep.mubr.f32.mxu0 0.0
        %2488 = vmatmul.mubr.f32.gmra.mxu0 %v441
        %v2489 = vpop.f32.mrf.mxu0
        %v2490 = vadd.f32 0.0, %v2489
        %v2491 = vpop.f32.mrf.mxu0
        %2492 = vmatprep.mubr.f32.mxu0 0.0
        %2493 = vmatmul.mubr.f32.gmra.mxu0 %v443
        %v2494 = vpop.f32.mrf.mxu0
        %v2495 = vadd.f32 0.0, %v2494
        %v2496 = vpop.f32.mrf.mxu0
        %2497 = vmatprep.mubr.f32.mxu0 0.0
        %2498 = vmatmul.mubr.f32.gmra.mxu0 %v444
        %v2499 = vpop.f32.mrf.mxu0
        %v2500 = vadd.f32 0.0, %v2499
        %v2501 = vpop.f32.mrf.mxu0
        %2502 = vmatprep.mubr.f32.mxu0 0.0
        %2503 = vmatmul.mubr.f32.gmra.mxu0 %v446
        %v2504 = vpop.f32.mrf.mxu0
        %v2505 = vadd.f32 0.0, %v2504
        %v2506 = vpop.f32.mrf.mxu0
        %2507 = vmatprep.mubr.f32.mxu0 0.0
        %2508 = vmatmul.mubr.f32.gmra.mxu0 %v447
        %v2509 = vpop.f32.mrf.mxu0
        %v2510 = vadd.f32 0.0, %v2509
        %v2511 = vpop.f32.mrf.mxu0
        %2512 = vmatprep.mubr.f32.mxu0 0.0
        %2513 = vmatmul.mubr.f32.gmra.mxu0 %v449
        %v2514 = vpop.f32.mrf.mxu0
        %v2515 = vadd.f32 0.0, %v2514
        %v2516 = vpop.f32.mrf.mxu0
        %2517 = vmatprep.mubr.f32.mxu0 0.0
        %2518 = vmatmul.mubr.f32.gmra.mxu0 %v450
        %v2519 = vpop.f32.mrf.mxu0
        %v2520 = vadd.f32 0.0, %v2519
        %v2521 = vpop.f32.mrf.mxu0
        %2522 = vmatprep.mubr.f32.mxu0 0.0
        %2523 = vmatmul.mubr.f32.gmra.mxu0 %v452
        %v2524 = vpop.f32.mrf.mxu0
        %v2525 = vadd.f32 0.0, %v2524
        %v2526 = vpop.f32.mrf.mxu0
        %2527 = vmatprep.mubr.f32.mxu0 0.0
        %2528 = vmatmul.mubr.f32.gmra.mxu0 %v453
        %v2529 = vpop.f32.mrf.mxu0
        %v2530 = vadd.f32 0.0, %v2529
        %v2531 = vpop.f32.mrf.mxu0
        %2532 = vmatprep.mubr.f32.mxu0 0.0
        %2533 = vmatmul.mubr.f32.gmra.mxu0 %v455
        %v2534 = vpop.f32.mrf.mxu0
        %v2535 = vadd.f32 0.0, %v2534
        %v2536 = vpop.f32.mrf.mxu0
        %2537 = vmatprep.mubr.f32.mxu0 0.0
        %2538 = vmatmul.mubr.f32.gmra.mxu0 %v456
        %v2539 = vpop.f32.mrf.mxu0
        %v2540 = vadd.f32 0.0, %v2539
        %v2541 = vpop.f32.mrf.mxu0
        %2542 = vmatprep.mubr.f32.mxu0 0.0
        %2543 = vmatmul.mubr.f32.gmra.mxu0 %v458
        %v2544 = vpop.f32.mrf.mxu0
        %v2545 = vadd.f32 0.0, %v2544
        %v2546 = vpop.f32.mrf.mxu0
        %2547 = vmatprep.mubr.f32.mxu0 0.0
        %2548 = vmatmul.mubr.f32.gmra.mxu0 %v459
        %v2549 = vpop.f32.mrf.mxu0
        %v2550 = vadd.f32 0.0, %v2549
        %v2551 = vpop.f32.mrf.mxu0
        %2552 = vmatprep.mubr.f32.mxu0 0.0
        %2553 = vmatmul.mubr.f32.gmra.mxu0 %v461
        %v2554 = vpop.f32.mrf.mxu0
        %v2555 = vadd.f32 0.0, %v2554
        %v2556 = vpop.f32.mrf.mxu0
        %2557 = vmatprep.mubr.f32.mxu0 0.0
        %2558 = vmatmul.mubr.f32.gmra.mxu0 %v462
        %v2559 = vpop.f32.mrf.mxu0
        %v2560 = vadd.f32 0.0, %v2559
        %v2561 = vpop.f32.mrf.mxu0
        %2562 = vmatprep.mubr.f32.mxu0 0.0
        %2563 = vmatmul.mubr.f32.gmra.mxu0 %v464
        %v2564 = vpop.f32.mrf.mxu0
        %v2565 = vadd.f32 0.0, %v2564
        %v2566 = vpop.f32.mrf.mxu0
        %2567 = vmatprep.mubr.f32.mxu0 0.0
        %2568 = vmatmul.mubr.f32.gmra.mxu0 %v465
        %v2569 = vpop.f32.mrf.mxu0
        %v2570 = vadd.f32 0.0, %v2569
        %v2571 = vpop.f32.mrf.mxu0
        %2572 = vdwg.mxu0
        %v2573 = vadd.f32 %v2300, %v2415
        %v2574 = vadd.f32 %v2301, %v2420
        %v2575 = vadd.f32 %v2302, %v2425
        %v2576 = vadd.f32 %v2303, %v2430
        %v2577 = vadd.f32 %v2304, %v2435
        %v2578 = vadd.f32 %v2305, %v2440
        %v2579 = vadd.f32 %v2306, %v2445
        %v2580 = vadd.f32 %v2307, %v2450
        %v2581 = vadd.f32 %v2308, %v2455
        %v2582 = vadd.f32 %v2309, %v2460
        %v2583 = vadd.f32 %v2310, %v2465
        %v2584 = vadd.f32 %v2311, %v2470
        %v2585 = vadd.f32 %v2312, %v2475
        %v2586 = vadd.f32 %v2313, %v2480
        %v2587 = vadd.f32 %v2314, %v2485
        %v2588 = vadd.f32 %v2315, %v2490
        %v2589 = vadd.f32 %v2316, %v2495
        %v2590 = vadd.f32 %v2317, %v2500
        %v2591 = vadd.f32 %v2318, %v2505
        %v2592 = vadd.f32 %v2319, %v2510
        %v2593 = vadd.f32 %v2320, %v2515
        %v2594 = vadd.f32 %v2321, %v2520
        %v2595 = vadd.f32 %v2322, %v2525
        %v2596 = vadd.f32 %v2323, %v2530
        %v2597 = vadd.f32 %v2324, %v2535
        %v2598 = vadd.f32 %v2325, %v2540
        %v2599 = vadd.f32 %v2326, %v2545
        %v2600 = vadd.f32 %v2327, %v2550
        %v2601 = vadd.f32 %v2328, %v2555
        %v2602 = vadd.f32 %v2329, %v2560
        %v2603 = vadd.f32 %v2330, %v2565
        %v2604 = vadd.f32 %v2331, %v2570
        %v2608 = vrot.slane %v464, 1
        %v2609 = vrot.slane %v465, 1
        %v2610 = vsel %vm531, %v2608, %v2609
        %v2611 = vrot.slane %v466, 1
        %v2612 = vsel %vm531, %v2609, %v2611
        %v2615 = vld [vmem:[%s1 + $0x380] sm:$0xff]
        %v2616 = vld [vmem:[%s1 + $0x388] sm:$0xff]
        %v2617 = vld [vmem:[%s1 + $0x390] sm:$0xff]
        %v2618 = vld [vmem:[%s1 + $0x398] sm:$0xff]
        %v2619 = vld [vmem:[%s1 + $0x3a0] sm:$0xff]
        %v2620 = vld [vmem:[%s1 + $0x3a8] sm:$0xff]
        %v2621 = vld [vmem:[%s1 + $0x3b0] sm:$0xff]
        %v2622 = vld [vmem:[%s1 + $0x3b8] sm:$0xff]
        %v2623 = vld [vmem:[%s1 + $0x3c0] sm:$0xff]
        %v2624 = vld [vmem:[%s1 + $0x3c8] sm:$0xff]
        %v2625 = vld [vmem:[%s1 + $0x3d0] sm:$0xff]
        %v2626 = vld [vmem:[%s1 + $0x3d8] sm:$0xff]
        %v2627 = vld [vmem:[%s1 + $0x3e0] sm:$0xff]
        %v2628 = vld [vmem:[%s1 + $0x3e8] sm:$0xff]
        %v2629 = vld [vmem:[%s1 + $0x3f0] sm:$0xff]
        %v2630 = vld [vmem:[%s1 + $0x3f8] sm:$0xff]
        %2631 = vmatprep.subr.mxu0 0.0
        %2632 = vmatpush1.msra.mxu0 %v2630
        %2633 = vmatprep.subr.mxu0 0.0
        %2634 = vmatpush1.msra.mxu0 %v2629
        %2635 = vmatprep.subr.mxu0 0.0
        %2636 = vmatpush1.msra.mxu0 %v2628
        %2637 = vmatprep.subr.mxu0 0.0
        %2638 = vmatpush1.msra.mxu0 %v2627
        %2639 = vmatprep.subr.mxu0 0.0
        %2640 = vmatpush1.msra.mxu0 %v2626
        %2641 = vmatprep.subr.mxu0 0.0
        %2642 = vmatpush1.msra.mxu0 %v2625
        %2643 = vmatprep.subr.mxu0 0.0
        %2644 = vmatpush1.msra.mxu0 %v2624
        %2645 = vmatprep.subr.mxu0 0.0
        %2646 = vmatpush1.msra.mxu0 %v2623
        %2647 = vmatprep.subr.mxu0 0.0
        %2648 = vmatpush1.msra.mxu0 %v2622
        %2649 = vmatprep.subr.mxu0 0.0
        %2650 = vmatpush1.msra.mxu0 %v2621
        %2651 = vmatprep.subr.mxu0 0.0
        %2652 = vmatpush1.msra.mxu0 %v2620
        %2653 = vmatprep.subr.mxu0 0.0
        %2654 = vmatpush1.msra.mxu0 %v2619
        %2655 = vmatprep.subr.mxu0 0.0
        %2656 = vmatpush1.msra.mxu0 %v2618
        %2657 = vmatprep.subr.mxu0 0.0
        %2658 = vmatpush1.msra.mxu0 %v2617
        %2659 = vmatprep.subr.mxu0 0.0
        %2660 = vmatpush1.msra.mxu0 %v2616
        %2661 = vmatprep.subr.mxu0 0.0
        %2662 = vmatpush1.msra.mxu0 %v2615
        %2663 = vmatprep.subr.mxu0 0.0
        %2664 = vmatpush2.msra.mxu0 0.0
        %2665 = vmatprep.subr.mxu0 0.0
        %2666 = vmatpush2.msra.mxu0 0.0
        %2667 = vmatprep.subr.mxu0 0.0
        %2668 = vmatpush2.msra.mxu0 0.0
        %2669 = vmatprep.subr.mxu0 0.0
        %2670 = vmatpush2.msra.mxu0 0.0
        %2671 = vmatprep.subr.mxu0 0.0
        %2672 = vmatpush2.msra.mxu0 0.0
        %2673 = vmatprep.subr.mxu0 0.0
        %2674 = vmatpush2.msra.mxu0 0.0
        %2675 = vmatprep.subr.mxu0 0.0
        %2676 = vmatpush2.msra.mxu0 0.0
        %2677 = vmatprep.subr.mxu0 0.0
        %2678 = vmatpush2.msra.mxu0 0.0
        %2679 = vmatprep.subr.mxu0 0.0
        %2680 = vmatpush2.msra.mxu0 0.0
        %2681 = vmatprep.subr.mxu0 0.0
        %2682 = vmatpush2.msra.mxu0 0.0
        %2683 = vmatprep.subr.mxu0 0.0
        %2684 = vmatpush2.msra.mxu0 0.0
        %2685 = vmatprep.subr.mxu0 0.0
        %2686 = vmatpush2.msra.mxu0 0.0
        %2687 = vmatprep.subr.mxu0 0.0
        %2688 = vmatpush2.msra.mxu0 0.0
        %2689 = vmatprep.subr.mxu0 0.0
        %2690 = vmatpush2.msra.mxu0 0.0
        %2691 = vmatprep.subr.mxu0 0.0
        %2692 = vmatpush2.msra.mxu0 0.0
        %2693 = vmatprep.subr.mxu0 0.0
        %2694 = vmatpush2.msra.mxu0 0.0
        %2695 = vmatprep.mubr.f32.mxu0 0.0
        %2696 = vmatmul.mubr.f32.gmra.mxu0 %v544
        %v2697 = vpop.f32.mrf.mxu0
        %v2698 = vadd.f32 0.0, %v2697
        %v2699 = vpop.f32.mrf.mxu0
        %2700 = vmatprep.mubr.f32.mxu0 0.0
        %2701 = vmatmul.mubr.f32.gmra.mxu0 %v546
        %v2702 = vpop.f32.mrf.mxu0
        %v2703 = vadd.f32 0.0, %v2702
        %v2704 = vpop.f32.mrf.mxu0
        %2705 = vmatprep.mubr.f32.mxu0 0.0
        %2706 = vmatmul.mubr.f32.gmra.mxu0 %v549
        %v2707 = vpop.f32.mrf.mxu0
        %v2708 = vadd.f32 0.0, %v2707
        %v2709 = vpop.f32.mrf.mxu0
        %2710 = vmatprep.mubr.f32.mxu0 0.0
        %2711 = vmatmul.mubr.f32.gmra.mxu0 %v551
        %v2712 = vpop.f32.mrf.mxu0
        %v2713 = vadd.f32 0.0, %v2712
        %v2714 = vpop.f32.mrf.mxu0
        %2715 = vmatprep.mubr.f32.mxu0 0.0
        %2716 = vmatmul.mubr.f32.gmra.mxu0 %v554
        %v2717 = vpop.f32.mrf.mxu0
        %v2718 = vadd.f32 0.0, %v2717
        %v2719 = vpop.f32.mrf.mxu0
        %2720 = vmatprep.mubr.f32.mxu0 0.0
        %2721 = vmatmul.mubr.f32.gmra.mxu0 %v556
        %v2722 = vpop.f32.mrf.mxu0
        %v2723 = vadd.f32 0.0, %v2722
        %v2724 = vpop.f32.mrf.mxu0
        %2725 = vmatprep.mubr.f32.mxu0 0.0
        %2726 = vmatmul.mubr.f32.gmra.mxu0 %v559
        %v2727 = vpop.f32.mrf.mxu0
        %v2728 = vadd.f32 0.0, %v2727
        %v2729 = vpop.f32.mrf.mxu0
        %2730 = vmatprep.mubr.f32.mxu0 0.0
        %2731 = vmatmul.mubr.f32.gmra.mxu0 %v561
        %v2732 = vpop.f32.mrf.mxu0
        %v2733 = vadd.f32 0.0, %v2732
        %v2734 = vpop.f32.mrf.mxu0
        %2735 = vmatprep.mubr.f32.mxu0 0.0
        %2736 = vmatmul.mubr.f32.gmra.mxu0 %v564
        %v2737 = vpop.f32.mrf.mxu0
        %v2738 = vadd.f32 0.0, %v2737
        %v2739 = vpop.f32.mrf.mxu0
        %2740 = vmatprep.mubr.f32.mxu0 0.0
        %2741 = vmatmul.mubr.f32.gmra.mxu0 %v566
        %v2742 = vpop.f32.mrf.mxu0
        %v2743 = vadd.f32 0.0, %v2742
        %v2744 = vpop.f32.mrf.mxu0
        %2745 = vmatprep.mubr.f32.mxu0 0.0
        %2746 = vmatmul.mubr.f32.gmra.mxu0 %v569
        %v2747 = vpop.f32.mrf.mxu0
        %v2748 = vadd.f32 0.0, %v2747
        %v2749 = vpop.f32.mrf.mxu0
        %2750 = vmatprep.mubr.f32.mxu0 0.0
        %2751 = vmatmul.mubr.f32.gmra.mxu0 %v571
        %v2752 = vpop.f32.mrf.mxu0
        %v2753 = vadd.f32 0.0, %v2752
        %v2754 = vpop.f32.mrf.mxu0
        %2755 = vmatprep.mubr.f32.mxu0 0.0
        %2756 = vmatmul.mubr.f32.gmra.mxu0 %v574
        %v2757 = vpop.f32.mrf.mxu0
        %v2758 = vadd.f32 0.0, %v2757
        %v2759 = vpop.f32.mrf.mxu0
        %2760 = vmatprep.mubr.f32.mxu0 0.0
        %2761 = vmatmul.mubr.f32.gmra.mxu0 %v576
        %v2762 = vpop.f32.mrf.mxu0
        %v2763 = vadd.f32 0.0, %v2762
        %v2764 = vpop.f32.mrf.mxu0
        %2765 = vmatprep.mubr.f32.mxu0 0.0
        %2766 = vmatmul.mubr.f32.gmra.mxu0 %v579
        %v2767 = vpop.f32.mrf.mxu0
        %v2768 = vadd.f32 0.0, %v2767
        %v2769 = vpop.f32.mrf.mxu0
        %2770 = vmatprep.mubr.f32.mxu0 0.0
        %2771 = vmatmul.mubr.f32.gmra.mxu0 %v581
        %v2772 = vpop.f32.mrf.mxu0
        %v2773 = vadd.f32 0.0, %v2772
        %v2774 = vpop.f32.mrf.mxu0
        %2775 = vmatprep.mubr.f32.mxu0 0.0
        %2776 = vmatmul.mubr.f32.gmra.mxu0 %v584
        %v2777 = vpop.f32.mrf.mxu0
        %v2778 = vadd.f32 0.0, %v2777
        %v2779 = vpop.f32.mrf.mxu0
        %2780 = vmatprep.mubr.f32.mxu0 0.0
        %2781 = vmatmul.mubr.f32.gmra.mxu0 %v586
        %v2782 = vpop.f32.mrf.mxu0
        %v2783 = vadd.f32 0.0, %v2782
        %v2784 = vpop.f32.mrf.mxu0
        %2785 = vmatprep.mubr.f32.mxu0 0.0
        %2786 = vmatmul.mubr.f32.gmra.mxu0 %v589
        %v2787 = vpop.f32.mrf.mxu0
        %v2788 = vadd.f32 0.0, %v2787
        %v2789 = vpop.f32.mrf.mxu0
        %2790 = vmatprep.mubr.f32.mxu0 0.0
        %2791 = vmatmul.mubr.f32.gmra.mxu0 %v591
        %v2792 = vpop.f32.mrf.mxu0
        %v2793 = vadd.f32 0.0, %v2792
        %v2794 = vpop.f32.mrf.mxu0
        %2795 = vmatprep.mubr.f32.mxu0 0.0
        %2796 = vmatmul.mubr.f32.gmra.mxu0 %v594
        %v2797 = vpop.f32.mrf.mxu0
        %v2798 = vadd.f32 0.0, %v2797
        %v2799 = vpop.f32.mrf.mxu0
        %2800 = vmatprep.mubr.f32.mxu0 0.0
        %2801 = vmatmul.mubr.f32.gmra.mxu0 %v596
        %v2802 = vpop.f32.mrf.mxu0
        %v2803 = vadd.f32 0.0, %v2802
        %v2804 = vpop.f32.mrf.mxu0
        %2805 = vmatprep.mubr.f32.mxu0 0.0
        %2806 = vmatmul.mubr.f32.gmra.mxu0 %v599
        %v2807 = vpop.f32.mrf.mxu0
        %v2808 = vadd.f32 0.0, %v2807
        %v2809 = vpop.f32.mrf.mxu0
        %2810 = vmatprep.mubr.f32.mxu0 0.0
        %2811 = vmatmul.mubr.f32.gmra.mxu0 %v601
        %v2812 = vpop.f32.mrf.mxu0
        %v2813 = vadd.f32 0.0, %v2812
        %v2814 = vpop.f32.mrf.mxu0
        %2815 = vmatprep.mubr.f32.mxu0 0.0
        %2816 = vmatmul.mubr.f32.gmra.mxu0 %v604
        %v2817 = vpop.f32.mrf.mxu0
        %v2818 = vadd.f32 0.0, %v2817
        %v2819 = vpop.f32.mrf.mxu0
        %2820 = vmatprep.mubr.f32.mxu0 0.0
        %2821 = vmatmul.mubr.f32.gmra.mxu0 %v606
        %v2822 = vpop.f32.mrf.mxu0
        %v2823 = vadd.f32 0.0, %v2822
        %v2824 = vpop.f32.mrf.mxu0
        %2825 = vmatprep.mubr.f32.mxu0 0.0
        %2826 = vmatmul.mubr.f32.gmra.mxu0 %v609
        %v2827 = vpop.f32.mrf.mxu0
        %v2828 = vadd.f32 0.0, %v2827
        %v2829 = vpop.f32.mrf.mxu0
        %2830 = vmatprep.mubr.f32.mxu0 0.0
        %2831 = vmatmul.mubr.f32.gmra.mxu0 %v611
        %v2832 = vpop.f32.mrf.mxu0
        %v2833 = vadd.f32 0.0, %v2832
        %v2834 = vpop.f32.mrf.mxu0
        %2835 = vmatprep.mubr.f32.mxu0 0.0
        %2836 = vmatmul.mubr.f32.gmra.mxu0 %v1774
        %v2837 = vpop.f32.mrf.mxu0
        %v2838 = vadd.f32 0.0, %v2837
        %v2839 = vpop.f32.mrf.mxu0
        %2840 = vmatprep.mubr.f32.mxu0 0.0
        %2841 = vmatmul.mubr.f32.gmra.mxu0 %v1776
        %v2842 = vpop.f32.mrf.mxu0
        %v2843 = vadd.f32 0.0, %v2842
        %v2844 = vpop.f32.mrf.mxu0
        %2845 = vmatprep.mubr.f32.mxu0 0.0
        %2846 = vmatmul.mubr.f32.gmra.mxu0 %v2610
        %v2847 = vpop.f32.mrf.mxu0
        %v2848 = vadd.f32 0.0, %v2847
        %v2849 = vpop.f32.mrf.mxu0
        %2850 = vmatprep.mubr.f32.mxu0 0.0
        %2851 = vmatmul.mubr.f32.gmra.mxu0 %v2612
        %v2852 = vpop.f32.mrf.mxu0
        %v2853 = vadd.f32 0.0, %v2852
        %v2854 = vpop.f32.mrf.mxu0
        %2855 = vdwg.mxu0
        %v2856 = vadd.f32 %v2573, %v2698
        %v2857 = vadd.f32 %v2574, %v2703
        %v2858 = vadd.f32 %v2575, %v2708
        %v2859 = vadd.f32 %v2576, %v2713
        %v2860 = vadd.f32 %v2577, %v2718
        %v2861 = vadd.f32 %v2578, %v2723
        %v2862 = vadd.f32 %v2579, %v2728
        %v2863 = vadd.f32 %v2580, %v2733
        %v2864 = vadd.f32 %v2581, %v2738
        %v2865 = vadd.f32 %v2582, %v2743
        %v2866 = vadd.f32 %v2583, %v2748
        %v2867 = vadd.f32 %v2584, %v2753
        %v2868 = vadd.f32 %v2585, %v2758
        %v2869 = vadd.f32 %v2586, %v2763
        %v2870 = vadd.f32 %v2587, %v2768
        %v2871 = vadd.f32 %v2588, %v2773
        %v2872 = vadd.f32 %v2589, %v2778
        %v2873 = vadd.f32 %v2590, %v2783
        %v2874 = vadd.f32 %v2591, %v2788
        %v2875 = vadd.f32 %v2592, %v2793
        %v2876 = vadd.f32 %v2593, %v2798
        %v2877 = vadd.f32 %v2594, %v2803
        %v2878 = vadd.f32 %v2595, %v2808
        %v2879 = vadd.f32 %v2596, %v2813
        %v2880 = vadd.f32 %v2597, %v2818
        %v2881 = vadd.f32 %v2598, %v2823
        %v2882 = vadd.f32 %v2599, %v2828
        %v2883 = vadd.f32 %v2600, %v2833
        %v2884 = vadd.f32 %v2601, %v2838
        %v2885 = vadd.f32 %v2602, %v2843
        %v2886 = vadd.f32 %v2603, %v2848
        %v2887 = vadd.f32 %v2604, %v2853
        %v2888 = vrot.slane %v464, 2
        %v2889 = vrot.slane %v465, 2
        %v2890 = vsel %vm1110, %v2888, %v2889
        %v2891 = vrot.slane %v466, 2
        %v2892 = vsel %vm1110, %v2889, %v2891
        %v2895 = vld [vmem:[%s1 + $0x400] sm:$0xff]
        %v2896 = vld [vmem:[%s1 + $0x408] sm:$0xff]
        %v2897 = vld [vmem:[%s1 + $0x410] sm:$0xff]
        %v2898 = vld [vmem:[%s1 + $0x418] sm:$0xff]
        %v2899 = vld [vmem:[%s1 + $0x420] sm:$0xff]
        %v2900 = vld [vmem:[%s1 + $0x428] sm:$0xff]
        %v2901 = vld [vmem:[%s1 + $0x430] sm:$0xff]
        %v2902 = vld [vmem:[%s1 + $0x438] sm:$0xff]
        %v2903 = vld [vmem:[%s1 + $0x440] sm:$0xff]
        %v2904 = vld [vmem:[%s1 + $0x448] sm:$0xff]
        %v2905 = vld [vmem:[%s1 + $0x450] sm:$0xff]
        %v2906 = vld [vmem:[%s1 + $0x458] sm:$0xff]
        %v2907 = vld [vmem:[%s1 + $0x460] sm:$0xff]
        %v2908 = vld [vmem:[%s1 + $0x468] sm:$0xff]
        %v2909 = vld [vmem:[%s1 + $0x470] sm:$0xff]
        %v2910 = vld [vmem:[%s1 + $0x478] sm:$0xff]
        %2911 = vmatprep.subr.mxu0 0.0
        %2912 = vmatpush1.msra.mxu0 %v2910
        %2913 = vmatprep.subr.mxu0 0.0
        %2914 = vmatpush1.msra.mxu0 %v2909
        %2915 = vmatprep.subr.mxu0 0.0
        %2916 = vmatpush1.msra.mxu0 %v2908
        %2917 = vmatprep.subr.mxu0 0.0
        %2918 = vmatpush1.msra.mxu0 %v2907
        %2919 = vmatprep.subr.mxu0 0.0
        %2920 = vmatpush1.msra.mxu0 %v2906
        %2921 = vmatprep.subr.mxu0 0.0
        %2922 = vmatpush1.msra.mxu0 %v2905
        %2923 = vmatprep.subr.mxu0 0.0
        %2924 = vmatpush1.msra.mxu0 %v2904
        %2925 = vmatprep.subr.mxu0 0.0
        %2926 = vmatpush1.msra.mxu0 %v2903
        %2927 = vmatprep.subr.mxu0 0.0
        %2928 = vmatpush1.msra.mxu0 %v2902
        %2929 = vmatprep.subr.mxu0 0.0
        %2930 = vmatpush1.msra.mxu0 %v2901
        %2931 = vmatprep.subr.mxu0 0.0
        %2932 = vmatpush1.msra.mxu0 %v2900
        %2933 = vmatprep.subr.mxu0 0.0
        %2934 = vmatpush1.msra.mxu0 %v2899
        %2935 = vmatprep.subr.mxu0 0.0
        %2936 = vmatpush1.msra.mxu0 %v2898
        %2937 = vmatprep.subr.mxu0 0.0
        %2938 = vmatpush1.msra.mxu0 %v2897
        %2939 = vmatprep.subr.mxu0 0.0
        %2940 = vmatpush1.msra.mxu0 %v2896
        %2941 = vmatprep.subr.mxu0 0.0
        %2942 = vmatpush1.msra.mxu0 %v2895
        %2943 = vmatprep.subr.mxu0 0.0
        %2944 = vmatpush2.msra.mxu0 0.0
        %2945 = vmatprep.subr.mxu0 0.0
        %2946 = vmatpush2.msra.mxu0 0.0
        %2947 = vmatprep.subr.mxu0 0.0
        %2948 = vmatpush2.msra.mxu0 0.0
        %2949 = vmatprep.subr.mxu0 0.0
        %2950 = vmatpush2.msra.mxu0 0.0
        %2951 = vmatprep.subr.mxu0 0.0
        %2952 = vmatpush2.msra.mxu0 0.0
        %2953 = vmatprep.subr.mxu0 0.0
        %2954 = vmatpush2.msra.mxu0 0.0
        %2955 = vmatprep.subr.mxu0 0.0
        %2956 = vmatpush2.msra.mxu0 0.0
        %2957 = vmatprep.subr.mxu0 0.0
        %2958 = vmatpush2.msra.mxu0 0.0
        %2959 = vmatprep.subr.mxu0 0.0
        %2960 = vmatpush2.msra.mxu0 0.0
        %2961 = vmatprep.subr.mxu0 0.0
        %2962 = vmatpush2.msra.mxu0 0.0
        %2963 = vmatprep.subr.mxu0 0.0
        %2964 = vmatpush2.msra.mxu0 0.0
        %2965 = vmatprep.subr.mxu0 0.0
        %2966 = vmatpush2.msra.mxu0 0.0
        %2967 = vmatprep.subr.mxu0 0.0
        %2968 = vmatpush2.msra.mxu0 0.0
        %2969 = vmatprep.subr.mxu0 0.0
        %2970 = vmatpush2.msra.mxu0 0.0
        %2971 = vmatprep.subr.mxu0 0.0
        %2972 = vmatpush2.msra.mxu0 0.0
        %2973 = vmatprep.subr.mxu0 0.0
        %2974 = vmatpush2.msra.mxu0 0.0
        %2975 = vmatprep.mubr.f32.mxu0 0.0
        %2976 = vmatmul.mubr.f32.gmra.mxu0 %v1123
        %v2977 = vpop.f32.mrf.mxu0
        %v2978 = vadd.f32 0.0, %v2977
        %v2979 = vpop.f32.mrf.mxu0
        %2980 = vmatprep.mubr.f32.mxu0 0.0
        %2981 = vmatmul.mubr.f32.gmra.mxu0 %v1125
        %v2982 = vpop.f32.mrf.mxu0
        %v2983 = vadd.f32 0.0, %v2982
        %v2984 = vpop.f32.mrf.mxu0
        %2985 = vmatprep.mubr.f32.mxu0 0.0
        %2986 = vmatmul.mubr.f32.gmra.mxu0 %v1128
        %v2987 = vpop.f32.mrf.mxu0
        %v2988 = vadd.f32 0.0, %v2987
        %v2989 = vpop.f32.mrf.mxu0
        %2990 = vmatprep.mubr.f32.mxu0 0.0
        %2991 = vmatmul.mubr.f32.gmra.mxu0 %v1130
        %v2992 = vpop.f32.mrf.mxu0
        %v2993 = vadd.f32 0.0, %v2992
        %v2994 = vpop.f32.mrf.mxu0
        %2995 = vmatprep.mubr.f32.mxu0 0.0
        %2996 = vmatmul.mubr.f32.gmra.mxu0 %v1133
        %v2997 = vpop.f32.mrf.mxu0
        %v2998 = vadd.f32 0.0, %v2997
        %v2999 = vpop.f32.mrf.mxu0
        %3000 = vmatprep.mubr.f32.mxu0 0.0
        %3001 = vmatmul.mubr.f32.gmra.mxu0 %v1135
        %v3002 = vpop.f32.mrf.mxu0
        %v3003 = vadd.f32 0.0, %v3002
        %v3004 = vpop.f32.mrf.mxu0
        %3005 = vmatprep.mubr.f32.mxu0 0.0
        %3006 = vmatmul.mubr.f32.gmra.mxu0 %v1138
        %v3007 = vpop.f32.mrf.mxu0
        %v3008 = vadd.f32 0.0, %v3007
        %v3009 = vpop.f32.mrf.mxu0
        %3010 = vmatprep.mubr.f32.mxu0 0.0
        %3011 = vmatmul.mubr.f32.gmra.mxu0 %v1140
        %v3012 = vpop.f32.mrf.mxu0
        %v3013 = vadd.f32 0.0, %v3012
        %v3014 = vpop.f32.mrf.mxu0
        %3015 = vmatprep.mubr.f32.mxu0 0.0
        %3016 = vmatmul.mubr.f32.gmra.mxu0 %v1143
        %v3017 = vpop.f32.mrf.mxu0
        %v3018 = vadd.f32 0.0, %v3017
        %v3019 = vpop.f32.mrf.mxu0
        %3020 = vmatprep.mubr.f32.mxu0 0.0
        %3021 = vmatmul.mubr.f32.gmra.mxu0 %v1145
        %v3022 = vpop.f32.mrf.mxu0
        %v3023 = vadd.f32 0.0, %v3022
        %v3024 = vpop.f32.mrf.mxu0
        %3025 = vmatprep.mubr.f32.mxu0 0.0
        %3026 = vmatmul.mubr.f32.gmra.mxu0 %v1148
        %v3027 = vpop.f32.mrf.mxu0
        %v3028 = vadd.f32 0.0, %v3027
        %v3029 = vpop.f32.mrf.mxu0
        %3030 = vmatprep.mubr.f32.mxu0 0.0
        %3031 = vmatmul.mubr.f32.gmra.mxu0 %v1150
        %v3032 = vpop.f32.mrf.mxu0
        %v3033 = vadd.f32 0.0, %v3032
        %v3034 = vpop.f32.mrf.mxu0
        %3035 = vmatprep.mubr.f32.mxu0 0.0
        %3036 = vmatmul.mubr.f32.gmra.mxu0 %v1153
        %v3037 = vpop.f32.mrf.mxu0
        %v3038 = vadd.f32 0.0, %v3037
        %v3039 = vpop.f32.mrf.mxu0
        %3040 = vmatprep.mubr.f32.mxu0 0.0
        %3041 = vmatmul.mubr.f32.gmra.mxu0 %v1155
        %v3042 = vpop.f32.mrf.mxu0
        %v3043 = vadd.f32 0.0, %v3042
        %v3044 = vpop.f32.mrf.mxu0
        %3045 = vmatprep.mubr.f32.mxu0 0.0
        %3046 = vmatmul.mubr.f32.gmra.mxu0 %v1158
        %v3047 = vpop.f32.mrf.mxu0
        %v3048 = vadd.f32 0.0, %v3047
        %v3049 = vpop.f32.mrf.mxu0
        %3050 = vmatprep.mubr.f32.mxu0 0.0
        %3051 = vmatmul.mubr.f32.gmra.mxu0 %v1160
        %v3052 = vpop.f32.mrf.mxu0
        %v3053 = vadd.f32 0.0, %v3052
        %v3054 = vpop.f32.mrf.mxu0
        %3055 = vmatprep.mubr.f32.mxu0 0.0
        %3056 = vmatmul.mubr.f32.gmra.mxu0 %v1163
        %v3057 = vpop.f32.mrf.mxu0
        %v3058 = vadd.f32 0.0, %v3057
        %v3059 = vpop.f32.mrf.mxu0
        %3060 = vmatprep.mubr.f32.mxu0 0.0
        %3061 = vmatmul.mubr.f32.gmra.mxu0 %v1165
        %v3062 = vpop.f32.mrf.mxu0
        %v3063 = vadd.f32 0.0, %v3062
        %v3064 = vpop.f32.mrf.mxu0
        %3065 = vmatprep.mubr.f32.mxu0 0.0
        %3066 = vmatmul.mubr.f32.gmra.mxu0 %v1168
        %v3067 = vpop.f32.mrf.mxu0
        %v3068 = vadd.f32 0.0, %v3067
        %v3069 = vpop.f32.mrf.mxu0
        %3070 = vmatprep.mubr.f32.mxu0 0.0
        %3071 = vmatmul.mubr.f32.gmra.mxu0 %v1170
        %v3072 = vpop.f32.mrf.mxu0
        %v3073 = vadd.f32 0.0, %v3072
        %v3074 = vpop.f32.mrf.mxu0
        %3075 = vmatprep.mubr.f32.mxu0 0.0
        %3076 = vmatmul.mubr.f32.gmra.mxu0 %v1173
        %v3077 = vpop.f32.mrf.mxu0
        %v3078 = vadd.f32 0.0, %v3077
        %v3079 = vpop.f32.mrf.mxu0
        %3080 = vmatprep.mubr.f32.mxu0 0.0
        %3081 = vmatmul.mubr.f32.gmra.mxu0 %v1175
        %v3082 = vpop.f32.mrf.mxu0
        %v3083 = vadd.f32 0.0, %v3082
        %v3084 = vpop.f32.mrf.mxu0
        %3085 = vmatprep.mubr.f32.mxu0 0.0
        %3086 = vmatmul.mubr.f32.gmra.mxu0 %v1178
        %v3087 = vpop.f32.mrf.mxu0
        %v3088 = vadd.f32 0.0, %v3087
        %v3089 = vpop.f32.mrf.mxu0
        %3090 = vmatprep.mubr.f32.mxu0 0.0
        %3091 = vmatmul.mubr.f32.gmra.mxu0 %v1180
        %v3092 = vpop.f32.mrf.mxu0
        %v3093 = vadd.f32 0.0, %v3092
        %v3094 = vpop.f32.mrf.mxu0
        %3095 = vmatprep.mubr.f32.mxu0 0.0
        %3096 = vmatmul.mubr.f32.gmra.mxu0 %v1183
        %v3097 = vpop.f32.mrf.mxu0
        %v3098 = vadd.f32 0.0, %v3097
        %v3099 = vpop.f32.mrf.mxu0
        %3100 = vmatprep.mubr.f32.mxu0 0.0
        %3101 = vmatmul.mubr.f32.gmra.mxu0 %v1185
        %v3102 = vpop.f32.mrf.mxu0
        %v3103 = vadd.f32 0.0, %v3102
        %v3104 = vpop.f32.mrf.mxu0
        %3105 = vmatprep.mubr.f32.mxu0 0.0
        %3106 = vmatmul.mubr.f32.gmra.mxu0 %v1188
        %v3107 = vpop.f32.mrf.mxu0
        %v3108 = vadd.f32 0.0, %v3107
        %v3109 = vpop.f32.mrf.mxu0
        %3110 = vmatprep.mubr.f32.mxu0 0.0
        %3111 = vmatmul.mubr.f32.gmra.mxu0 %v1190
        %v3112 = vpop.f32.mrf.mxu0
        %v3113 = vadd.f32 0.0, %v3112
        %v3114 = vpop.f32.mrf.mxu0
        %3115 = vmatprep.mubr.f32.mxu0 0.0
        %3116 = vmatmul.mubr.f32.gmra.mxu0 %v2054
        %v3117 = vpop.f32.mrf.mxu0
        %v3118 = vadd.f32 0.0, %v3117
        %v3119 = vpop.f32.mrf.mxu0
        %3120 = vmatprep.mubr.f32.mxu0 0.0
        %3121 = vmatmul.mubr.f32.gmra.mxu0 %v2056
        %v3122 = vpop.f32.mrf.mxu0
        %v3123 = vadd.f32 0.0, %v3122
        %v3124 = vpop.f32.mrf.mxu0
        %3125 = vmatprep.mubr.f32.mxu0 0.0
        %3126 = vmatmul.mubr.f32.gmra.mxu0 %v2890
        %v3127 = vpop.f32.mrf.mxu0
        %v3128 = vadd.f32 0.0, %v3127
        %v3129 = vpop.f32.mrf.mxu0
        %3130 = vmatprep.mubr.f32.mxu0 0.0
        %3131 = vmatmul.mubr.f32.gmra.mxu0 %v2892
        %v3132 = vpop.f32.mrf.mxu0
        %v3133 = vadd.f32 0.0, %v3132
        %v3134 = vpop.f32.mrf.mxu0
        %3135 = vdwg.mxu0
        %v3136 = vadd.f32 %v2856, %v2978
        %v3137 = vadd.f32 %v2857, %v2983
        %v3138 = vadd.f32 %v2858, %v2988
        %v3139 = vadd.f32 %v2859, %v2993
        %v3140 = vadd.f32 %v2860, %v2998
        %v3141 = vadd.f32 %v2861, %v3003
        %v3142 = vadd.f32 %v2862, %v3008
        %v3143 = vadd.f32 %v2863, %v3013
        %v3144 = vadd.f32 %v2864, %v3018
        %v3145 = vadd.f32 %v2865, %v3023
        %v3146 = vadd.f32 %v2866, %v3028
        %v3147 = vadd.f32 %v2867, %v3033
        %v3148 = vadd.f32 %v2868, %v3038
        %v3149 = vadd.f32 %v2869, %v3043
        %v3150 = vadd.f32 %v2870, %v3048
        %v3151 = vadd.f32 %v2871, %v3053
        %v3152 = vadd.f32 %v2872, %v3058
        %v3153 = vadd.f32 %v2873, %v3063
        %v3154 = vadd.f32 %v2874, %v3068
        %v3155 = vadd.f32 %v2875, %v3073
        %v3156 = vadd.f32 %v2876, %v3078
        %v3157 = vadd.f32 %v2877, %v3083
        %v3158 = vadd.f32 %v2878, %v3088
        %v3159 = vadd.f32 %v2879, %v3093
        %v3160 = vadd.f32 %v2880, %v3098
        %v3161 = vadd.f32 %v2881, %v3103
        %v3162 = vadd.f32 %v2882, %v3108
        %v3163 = vadd.f32 %v2883, %v3113
        %v3164 = vadd.f32 %v2884, %v3118
        %v3165 = vadd.f32 %v2885, %v3123
        %v3166 = vadd.f32 %v2886, %v3128
        %v3167 = vadd.f32 %v2887, %v3133
        %v3168 = vld [vmem:[%s2] sm:$0x1]
        %v3170 = vlaneseq
        %v3171 = vshrl.u32 %v3170, 7
        %v3172 = vsub.s32 0, %v3171
        %v3173 = vrot.slane %v3168, %v3172
        %v3175 = vmul.f32 %v3136, %v3173
        %v3176 = vmul.f32 %v3137, %v3173
        %v3177 = vmul.f32 %v3138, %v3173
        %v3178 = vmul.f32 %v3139, %v3173
        %v3179 = vmul.f32 %v3140, %v3173
        %v3180 = vmul.f32 %v3141, %v3173
        %v3181 = vmul.f32 %v3142, %v3173
        %v3182 = vmul.f32 %v3143, %v3173
        %v3183 = vmul.f32 %v3144, %v3173
        %v3184 = vmul.f32 %v3145, %v3173
        %v3185 = vmul.f32 %v3146, %v3173
        %v3186 = vmul.f32 %v3147, %v3173
        %v3187 = vmul.f32 %v3148, %v3173
        %v3188 = vmul.f32 %v3149, %v3173
        %v3189 = vmul.f32 %v3150, %v3173
        %v3190 = vmul.f32 %v3151, %v3173
        %v3191 = vmul.f32 %v3152, %v3173
        %v3192 = vmul.f32 %v3153, %v3173
        %v3193 = vmul.f32 %v3154, %v3173
        %v3194 = vmul.f32 %v3155, %v3173
        %v3195 = vmul.f32 %v3156, %v3173
        %v3196 = vmul.f32 %v3157, %v3173
        %v3197 = vmul.f32 %v3158, %v3173
        %v3198 = vmul.f32 %v3159, %v3173
        %v3199 = vmul.f32 %v3160, %v3173
        %v3200 = vmul.f32 %v3161, %v3173
        %v3201 = vmul.f32 %v3162, %v3173
        %v3202 = vmul.f32 %v3163, %v3173
        %v3203 = vmul.f32 %v3164, %v3173
        %v3204 = vmul.f32 %v3165, %v3173
        %v3205 = vmul.f32 %v3166, %v3173
        %v3206 = vmul.f32 %v3167, %v3173
        %v3207 = vld [vmem:[%s3] sm:$0x1]
        %v3209 = vlaneseq
        %v3210 = vshrl.u32 %v3209, 7
        %v3211 = vsub.s32 0, %v3210
        %v3212 = vrot.slane %v3207, %v3211
        %v3214 = vadd.f32 %v3175, %v3212
        %v3215 = vadd.f32 %v3176, %v3212
        %v3216 = vadd.f32 %v3177, %v3212
        %v3217 = vadd.f32 %v3178, %v3212
        %v3218 = vadd.f32 %v3179, %v3212
        %v3219 = vadd.f32 %v3180, %v3212
        %v3220 = vadd.f32 %v3181, %v3212
        %v3221 = vadd.f32 %v3182, %v3212
        %v3222 = vadd.f32 %v3183, %v3212
        %v3223 = vadd.f32 %v3184, %v3212
        %v3224 = vadd.f32 %v3185, %v3212
        %v3225 = vadd.f32 %v3186, %v3212
        %v3226 = vadd.f32 %v3187, %v3212
        %v3227 = vadd.f32 %v3188, %v3212
        %v3228 = vadd.f32 %v3189, %v3212
        %v3229 = vadd.f32 %v3190, %v3212
        %v3230 = vadd.f32 %v3191, %v3212
        %v3231 = vadd.f32 %v3192, %v3212
        %v3232 = vadd.f32 %v3193, %v3212
        %v3233 = vadd.f32 %v3194, %v3212
        %v3234 = vadd.f32 %v3195, %v3212
        %v3235 = vadd.f32 %v3196, %v3212
        %v3236 = vadd.f32 %v3197, %v3212
        %v3237 = vadd.f32 %v3198, %v3212
        %v3238 = vadd.f32 %v3199, %v3212
        %v3239 = vadd.f32 %v3200, %v3212
        %v3240 = vadd.f32 %v3201, %v3212
        %v3241 = vadd.f32 %v3202, %v3212
        %v3242 = vadd.f32 %v3203, %v3212
        %v3243 = vadd.f32 %v3204, %v3212
        %v3244 = vadd.f32 %v3205, %v3212
        %v3245 = vadd.f32 %v3206, %v3212
        %v3246 = vxor.u32 %v3214, 2147483648
        %v3247 = vxor.u32 %v3215, 2147483648
        %v3248 = vxor.u32 %v3216, 2147483648
        %v3249 = vxor.u32 %v3217, 2147483648
        %v3250 = vxor.u32 %v3218, 2147483648
        %v3251 = vxor.u32 %v3219, 2147483648
        %v3252 = vxor.u32 %v3220, 2147483648
        %v3253 = vxor.u32 %v3221, 2147483648
        %v3254 = vxor.u32 %v3222, 2147483648
        %v3255 = vxor.u32 %v3223, 2147483648
        %v3256 = vxor.u32 %v3224, 2147483648
        %v3257 = vxor.u32 %v3225, 2147483648
        %v3258 = vxor.u32 %v3226, 2147483648
        %v3259 = vxor.u32 %v3227, 2147483648
        %v3260 = vxor.u32 %v3228, 2147483648
        %v3261 = vxor.u32 %v3229, 2147483648
        %v3262 = vxor.u32 %v3230, 2147483648
        %v3263 = vxor.u32 %v3231, 2147483648
        %v3264 = vxor.u32 %v3232, 2147483648
        %v3265 = vxor.u32 %v3233, 2147483648
        %v3266 = vxor.u32 %v3234, 2147483648
        %v3267 = vxor.u32 %v3235, 2147483648
        %v3268 = vxor.u32 %v3236, 2147483648
        %v3269 = vxor.u32 %v3237, 2147483648
        %v3270 = vxor.u32 %v3238, 2147483648
        %v3271 = vxor.u32 %v3239, 2147483648
        %v3272 = vxor.u32 %v3240, 2147483648
        %v3273 = vxor.u32 %v3241, 2147483648
        %v3274 = vxor.u32 %v3242, 2147483648
        %v3275 = vxor.u32 %v3243, 2147483648
        %v3276 = vxor.u32 %v3244, 2147483648
        %v3277 = vxor.u32 %v3245, 2147483648
        %v3278 = vmul.f32 %v3246, 1.442695
        %v3279 = vpow.pop %v3278
        %v3280 = vmul.f32 %v3247, 1.442695
        %v3281 = vpow.pop %v3280
        %v3282 = vmul.f32 %v3248, 1.442695
        %v3283 = vpow.pop %v3282
        %v3284 = vmul.f32 %v3249, 1.442695
        %v3285 = vpow.pop %v3284
        %v3286 = vmul.f32 %v3250, 1.442695
        %v3287 = vpow.pop %v3286
        %v3288 = vmul.f32 %v3251, 1.442695
        %v3289 = vpow.pop %v3288
        %v3290 = vmul.f32 %v3252, 1.442695
        %v3291 = vpow.pop %v3290
        %v3292 = vmul.f32 %v3253, 1.442695
        %v3293 = vpow.pop %v3292
        %v3294 = vmul.f32 %v3254, 1.442695
        %v3295 = vpow.pop %v3294
        %v3296 = vmul.f32 %v3255, 1.442695
        %v3297 = vpow.pop %v3296
        %v3298 = vmul.f32 %v3256, 1.442695
        %v3299 = vpow.pop %v3298
        %v3300 = vmul.f32 %v3257, 1.442695
        %v3301 = vpow.pop %v3300
        %v3302 = vmul.f32 %v3258, 1.442695
        %v3303 = vpow.pop %v3302
        %v3304 = vmul.f32 %v3259, 1.442695
        %v3305 = vpow.pop %v3304
        %v3306 = vmul.f32 %v3260, 1.442695
        %v3307 = vpow.pop %v3306
        %v3308 = vmul.f32 %v3261, 1.442695
        %v3309 = vpow.pop %v3308
        %v3310 = vmul.f32 %v3262, 1.442695
        %v3311 = vpow.pop %v3310
        %v3312 = vmul.f32 %v3263, 1.442695
        %v3313 = vpow.pop %v3312
        %v3314 = vmul.f32 %v3264, 1.442695
        %v3315 = vpow.pop %v3314
        %v3316 = vmul.f32 %v3265, 1.442695
        %v3317 = vpow.pop %v3316
        %v3318 = vmul.f32 %v3266, 1.442695
        %v3319 = vpow.pop %v3318
        %v3320 = vmul.f32 %v3267, 1.442695
        %v3321 = vpow.pop %v3320
        %v3322 = vmul.f32 %v3268, 1.442695
        %v3323 = vpow.pop %v3322
        %v3324 = vmul.f32 %v3269, 1.442695
        %v3325 = vpow.pop %v3324
        %v3326 = vmul.f32 %v3270, 1.442695
        %v3327 = vpow.pop %v3326
        %v3328 = vmul.f32 %v3271, 1.442695
        %v3329 = vpow.pop %v3328
        %v3330 = vmul.f32 %v3272, 1.442695
        %v3331 = vpow.pop %v3330
        %v3332 = vmul.f32 %v3273, 1.442695
        %v3333 = vpow.pop %v3332
        %v3334 = vmul.f32 %v3274, 1.442695
        %v3335 = vpow.pop %v3334
        %v3336 = vmul.f32 %v3275, 1.442695
        %v3337 = vpow.pop %v3336
        %v3338 = vmul.f32 %v3276, 1.442695
        %v3339 = vpow.pop %v3338
        %v3340 = vmul.f32 %v3277, 1.442695
        %v3341 = vpow.pop %v3340
        %v3342 = vadd.f32 %v3279, 1.0
        %v3343 = vadd.f32 %v3281, 1.0
        %v3344 = vadd.f32 %v3283, 1.0
        %v3345 = vadd.f32 %v3285, 1.0
        %v3346 = vadd.f32 %v3287, 1.0
        %v3347 = vadd.f32 %v3289, 1.0
        %v3348 = vadd.f32 %v3291, 1.0
        %v3349 = vadd.f32 %v3293, 1.0
        %v3350 = vadd.f32 %v3295, 1.0
        %v3351 = vadd.f32 %v3297, 1.0
        %v3352 = vadd.f32 %v3299, 1.0
        %v3353 = vadd.f32 %v3301, 1.0
        %v3354 = vadd.f32 %v3303, 1.0
        %v3355 = vadd.f32 %v3305, 1.0
        %v3356 = vadd.f32 %v3307, 1.0
        %v3357 = vadd.f32 %v3309, 1.0
        %v3358 = vadd.f32 %v3311, 1.0
        %v3359 = vadd.f32 %v3313, 1.0
        %v3360 = vadd.f32 %v3315, 1.0
        %v3361 = vadd.f32 %v3317, 1.0
        %v3362 = vadd.f32 %v3319, 1.0
        %v3363 = vadd.f32 %v3321, 1.0
        %v3364 = vadd.f32 %v3323, 1.0
        %v3365 = vadd.f32 %v3325, 1.0
        %v3366 = vadd.f32 %v3327, 1.0
        %v3367 = vadd.f32 %v3329, 1.0
        %v3368 = vadd.f32 %v3331, 1.0
        %v3369 = vadd.f32 %v3333, 1.0
        %v3370 = vadd.f32 %v3335, 1.0
        %v3371 = vadd.f32 %v3337, 1.0
        %v3372 = vadd.f32 %v3339, 1.0
        %v3373 = vadd.f32 %v3341, 1.0
        %v3374 = vrcp.pop %v3342
        %v3375 = vmul.f32 1.0, %v3374
        %v3376 = vrcp.pop %v3343
        %v3377 = vmul.f32 1.0, %v3376
        %v3378 = vrcp.pop %v3344
        %v3379 = vmul.f32 1.0, %v3378
        %v3380 = vrcp.pop %v3345
        %v3381 = vmul.f32 1.0, %v3380
        %v3382 = vrcp.pop %v3346
        %v3383 = vmul.f32 1.0, %v3382
        %v3384 = vrcp.pop %v3347
        %v3385 = vmul.f32 1.0, %v3384
        %v3386 = vrcp.pop %v3348
        %v3387 = vmul.f32 1.0, %v3386
        %v3388 = vrcp.pop %v3349
        %v3389 = vmul.f32 1.0, %v3388
        %v3390 = vrcp.pop %v3350
        %v3391 = vmul.f32 1.0, %v3390
        %v3392 = vrcp.pop %v3351
        %v3393 = vmul.f32 1.0, %v3392
        %v3394 = vrcp.pop %v3352
        %v3395 = vmul.f32 1.0, %v3394
        %v3396 = vrcp.pop %v3353
        %v3397 = vmul.f32 1.0, %v3396
        %v3398 = vrcp.pop %v3354
        %v3399 = vmul.f32 1.0, %v3398
        %v3400 = vrcp.pop %v3355
        %v3401 = vmul.f32 1.0, %v3400
        %v3402 = vrcp.pop %v3356
        %v3403 = vmul.f32 1.0, %v3402
        %v3404 = vrcp.pop %v3357
        %v3405 = vmul.f32 1.0, %v3404
        %v3406 = vrcp.pop %v3358
        %v3407 = vmul.f32 1.0, %v3406
        %v3408 = vrcp.pop %v3359
        %v3409 = vmul.f32 1.0, %v3408
        %v3410 = vrcp.pop %v3360
        %v3411 = vmul.f32 1.0, %v3410
        %v3412 = vrcp.pop %v3361
        %v3413 = vmul.f32 1.0, %v3412
        %v3414 = vrcp.pop %v3362
        %v3415 = vmul.f32 1.0, %v3414
        %v3416 = vrcp.pop %v3363
        %v3417 = vmul.f32 1.0, %v3416
        %v3418 = vrcp.pop %v3364
        %v3419 = vmul.f32 1.0, %v3418
        %v3420 = vrcp.pop %v3365
        %v3421 = vmul.f32 1.0, %v3420
        %v3422 = vrcp.pop %v3366
        %v3423 = vmul.f32 1.0, %v3422
        %v3424 = vrcp.pop %v3367
        %v3425 = vmul.f32 1.0, %v3424
        %v3426 = vrcp.pop %v3368
        %v3427 = vmul.f32 1.0, %v3426
        %v3428 = vrcp.pop %v3369
        %v3429 = vmul.f32 1.0, %v3428
        %v3430 = vrcp.pop %v3370
        %v3431 = vmul.f32 1.0, %v3430
        %v3432 = vrcp.pop %v3371
        %v3433 = vmul.f32 1.0, %v3432
        %v3434 = vrcp.pop %v3372
        %v3435 = vmul.f32 1.0, %v3434
        %v3436 = vrcp.pop %v3373
        %v3437 = vmul.f32 1.0, %v3436
        %v3438 = vmul.f32 %v3214, %v3375
        %v3439 = vmul.f32 %v3215, %v3377
        %v3440 = vmul.f32 %v3216, %v3379
        %v3441 = vmul.f32 %v3217, %v3381
        %v3442 = vmul.f32 %v3218, %v3383
        %v3443 = vmul.f32 %v3219, %v3385
        %v3444 = vmul.f32 %v3220, %v3387
        %v3445 = vmul.f32 %v3221, %v3389
        %v3446 = vmul.f32 %v3222, %v3391
        %v3447 = vmul.f32 %v3223, %v3393
        %v3448 = vmul.f32 %v3224, %v3395
        %v3449 = vmul.f32 %v3225, %v3397
        %v3450 = vmul.f32 %v3226, %v3399
        %v3451 = vmul.f32 %v3227, %v3401
        %v3452 = vmul.f32 %v3228, %v3403
        %v3453 = vmul.f32 %v3229, %v3405
        %v3454 = vmul.f32 %v3230, %v3407
        %v3455 = vmul.f32 %v3231, %v3409
        %v3456 = vmul.f32 %v3232, %v3411
        %v3457 = vmul.f32 %v3233, %v3413
        %v3458 = vmul.f32 %v3234, %v3415
        %v3459 = vmul.f32 %v3235, %v3417
        %v3460 = vmul.f32 %v3236, %v3419
        %v3461 = vmul.f32 %v3237, %v3421
        %v3462 = vmul.f32 %v3238, %v3423
        %v3463 = vmul.f32 %v3239, %v3425
        %v3464 = vmul.f32 %v3240, %v3427
        %v3465 = vmul.f32 %v3241, %v3429
        %v3466 = vmul.f32 %v3242, %v3431
        %v3467 = vmul.f32 %v3243, %v3433
        %v3468 = vmul.f32 %v3244, %v3435
        %v3469 = vmul.f32 %v3245, %v3437
        %3470 = vst [vmem:[#allocation3] sm:$0xff] 0.0
        %3471 = vst [vmem:[#allocation3 + $0x8] sm:$0xff] 0.0
        %3472 = vst [vmem:[#allocation3 + $0x10] sm:$0x3] 0.0
        %3473 = vst [vmem:[#allocation3 + $0x18] sm:$0xff] 0.0
        %3474 = vst [vmem:[#allocation3 + $0x20] sm:$0xff] 0.0
        %3475 = vst [vmem:[#allocation3 + $0x28] sm:$0x3] 0.0
        %3476 = vst [vmem:[#allocation3 + $0x30] sm:$0xff] 0.0
        %3477 = vst [vmem:[#allocation3 + $0x38] sm:$0xff] 0.0
        %3478 = vst [vmem:[#allocation3 + $0x40] sm:$0x3] 0.0
        %3479 = vst [vmem:[#allocation3 + $0x48] sm:$0xff] 0.0
        %3480 = vst [vmem:[#allocation3 + $0x50] sm:$0xff] 0.0
        %3481 = vst [vmem:[#allocation3 + $0x58] sm:$0x3] 0.0
        %3482 = vst [vmem:[#allocation3 + $0x60] sm:$0xff] 0.0
        %3483 = vst [vmem:[#allocation3 + $0x68] sm:$0xff] 0.0
        %3484 = vst [vmem:[#allocation3 + $0x70] sm:$0x3] 0.0
        %3485 = vst [vmem:[#allocation3 + $0x78] sm:$0xff] 0.0
        %3486 = vst [vmem:[#allocation3 + $0x80] sm:$0xff] 0.0
        %3487 = vst [vmem:[#allocation3 + $0x88] sm:$0x3] 0.0
        %3488 = vst [vmem:[#allocation3 + $0x90] sm:$0xff] 0.0
        %3489 = vst [vmem:[#allocation3 + $0x98] sm:$0xff] 0.0
        %3490 = vst [vmem:[#allocation3 + $0xa0] sm:$0x3] 0.0
        %3491 = vst [vmem:[#allocation3 + $0xa8] sm:$0xff] 0.0
        %3492 = vst [vmem:[#allocation3 + $0xb0] sm:$0xff] 0.0
        %3493 = vst [vmem:[#allocation3 + $0xb8] sm:$0x3] 0.0
        %3494 = vst [vmem:[#allocation3 + $0xc0] sm:$0xff] 0.0
        %3495 = vst [vmem:[#allocation3 + $0xc8] sm:$0xff] 0.0
        %3496 = vst [vmem:[#allocation3 + $0xd0] sm:$0x3] 0.0
        %3497 = vst [vmem:[#allocation3 + $0xd8] sm:$0xff] 0.0
        %3498 = vst [vmem:[#allocation3 + $0xe0] sm:$0xff] 0.0
        %3499 = vst [vmem:[#allocation3 + $0xe8] sm:$0x3] 0.0
        %3500 = vst [vmem:[#allocation3 + $0xf0] sm:$0xff] 0.0
        %3501 = vst [vmem:[#allocation3 + $0xf8] sm:$0xff] 0.0
        %3502 = vst [vmem:[#allocation3 + $0x100] sm:$0x3] 0.0
        %3503 = vst [vmem:[#allocation3 + $0x108] sm:$0xff] 0.0
        %3504 = vst [vmem:[#allocation3 + $0x110] sm:$0xff] 0.0
        %3505 = vst [vmem:[#allocation3 + $0x118] sm:$0x3] 0.0
        %3506 = vst [vmem:[#allocation3 + $0x120] sm:$0xff] 0.0
        %3507 = vst [vmem:[#allocation3 + $0x128] sm:$0xff] 0.0
        %3508 = vst [vmem:[#allocation3 + $0x130] sm:$0x3] 0.0
        %3509 = vst [vmem:[#allocation3 + $0x138] sm:$0xff] 0.0
        %3510 = vst [vmem:[#allocation3 + $0x140] sm:$0xff] 0.0
        %3511 = vst [vmem:[#allocation3 + $0x148] sm:$0x3] 0.0
        %3512 = vst [vmem:[#allocation3 + $0x150] sm:$0xff] 0.0
        %3513 = vst [vmem:[#allocation3 + $0x158] sm:$0xff] 0.0
        %3514 = vst [vmem:[#allocation3 + $0x160] sm:$0x3] 0.0
        %3515 = vst [vmem:[#allocation3 + $0x168] sm:$0xff] 0.0
        %3516 = vst [vmem:[#allocation3 + $0x170] sm:$0xff] 0.0
        %3517 = vst [vmem:[#allocation3 + $0x178] sm:$0x3] 0.0
        %3518 = vst [vmem:[#allocation3 + $0x180] sm:$0xff] 0.0
        %3519 = vst [vmem:[#allocation3 + $0x188] sm:$0xff] 0.0
        %3520 = vst [vmem:[#allocation3 + $0x190] sm:$0x3] 0.0
        %3521 = vst [vmem:[#allocation3 + $0x198] sm:$0xff] 0.0
        %3522 = vst [vmem:[#allocation3 + $0x1a0] sm:$0xff] 0.0
        %3523 = vst [vmem:[#allocation3 + $0x1a8] sm:$0x3] 0.0
        %s3524 = scalar_lea.vmem [#allocation3], 24
        %3525 = vst [vmem:[%s3524 + $0x1] sm:$0xff] %v3438
        %3526 = vst [vmem:[%s3524 + $0x9] sm:$0xff] %v3439
        %3527 = vst [vmem:[%s3524 + $0x19] sm:$0xff] %v3440
        %3528 = vst [vmem:[%s3524 + $0x21] sm:$0xff] %v3441
        %3529 = vst [vmem:[%s3524 + $0x31] sm:$0xff] %v3442
        %3530 = vst [vmem:[%s3524 + $0x39] sm:$0xff] %v3443
        %3531 = vst [vmem:[%s3524 + $0x49] sm:$0xff] %v3444
        %3532 = vst [vmem:[%s3524 + $0x51] sm:$0xff] %v3445
        %3533 = vst [vmem:[%s3524 + $0x61] sm:$0xff] %v3446
        %3534 = vst [vmem:[%s3524 + $0x69] sm:$0xff] %v3447
        %3535 = vst [vmem:[%s3524 + $0x79] sm:$0xff] %v3448
        %3536 = vst [vmem:[%s3524 + $0x81] sm:$0xff] %v3449
        %3537 = vst [vmem:[%s3524 + $0x91] sm:$0xff] %v3450
        %3538 = vst [vmem:[%s3524 + $0x99] sm:$0xff] %v3451
        %3539 = vst [vmem:[%s3524 + $0xa9] sm:$0xff] %v3452
        %3540 = vst [vmem:[%s3524 + $0xb1] sm:$0xff] %v3453
        %3541 = vst [vmem:[%s3524 + $0xc1] sm:$0xff] %v3454
        %3542 = vst [vmem:[%s3524 + $0xc9] sm:$0xff] %v3455
        %3543 = vst [vmem:[%s3524 + $0xd9] sm:$0xff] %v3456
        %3544 = vst [vmem:[%s3524 + $0xe1] sm:$0xff] %v3457
        %3545 = vst [vmem:[%s3524 + $0xf1] sm:$0xff] %v3458
        %3546 = vst [vmem:[%s3524 + $0xf9] sm:$0xff] %v3459
        %3547 = vst [vmem:[%s3524 + $0x109] sm:$0xff] %v3460
        %3548 = vst [vmem:[%s3524 + $0x111] sm:$0xff] %v3461
        %3549 = vst [vmem:[%s3524 + $0x121] sm:$0xff] %v3462
        %3550 = vst [vmem:[%s3524 + $0x129] sm:$0xff] %v3463
        %3551 = vst [vmem:[%s3524 + $0x139] sm:$0xff] %v3464
        %3552 = vst [vmem:[%s3524 + $0x141] sm:$0xff] %v3465
        %3553 = vst [vmem:[%s3524 + $0x151] sm:$0xff] %v3466
        %3554 = vst [vmem:[%s3524 + $0x159] sm:$0xff] %v3467
        %3555 = vst [vmem:[%s3524 + $0x169] sm:$0xff] %v3468
        %3556 = vst [vmem:[%s3524 + $0x171] sm:$0xff] %v3469
        %v3557 = vld [vmem:[#allocation3] sm:$0xff]
        %v3558 = vld [vmem:[#allocation3 + $0x8] sm:$0xff]
        %v3559 = vld [vmem:[#allocation3 + $0x10] sm:$0x3]
        %v3560 = vld [vmem:[#allocation3 + $0x18] sm:$0xff]
        %v3561 = vld [vmem:[#allocation3 + $0x20] sm:$0xff]
        %v3562 = vld [vmem:[#allocation3 + $0x28] sm:$0x3]
        %v3563 = vld [vmem:[#allocation3 + $0x30] sm:$0xff]
        %v3564 = vld [vmem:[#allocation3 + $0x38] sm:$0xff]
        %v3565 = vld [vmem:[#allocation3 + $0x40] sm:$0x3]
        %v3566 = vld [vmem:[#allocation3 + $0x48] sm:$0xff]
        %v3567 = vld [vmem:[#allocation3 + $0x50] sm:$0xff]
        %v3568 = vld [vmem:[#allocation3 + $0x58] sm:$0x3]
        %v3569 = vld [vmem:[#allocation3 + $0x60] sm:$0xff]
        %v3570 = vld [vmem:[#allocation3 + $0x68] sm:$0xff]
        %v3571 = vld [vmem:[#allocation3 + $0x70] sm:$0x3]
        %v3572 = vld [vmem:[#allocation3 + $0x78] sm:$0xff]
        %v3573 = vld [vmem:[#allocation3 + $0x80] sm:$0xff]
        %v3574 = vld [vmem:[#allocation3 + $0x88] sm:$0x3]
        %v3575 = vld [vmem:[#allocation3 + $0x90] sm:$0xff]
        %v3576 = vld [vmem:[#allocation3 + $0x98] sm:$0xff]
        %v3577 = vld [vmem:[#allocation3 + $0xa0] sm:$0x3]
        %v3578 = vld [vmem:[#allocation3 + $0xa8] sm:$0xff]
        %v3579 = vld [vmem:[#allocation3 + $0xb0] sm:$0xff]
        %v3580 = vld [vmem:[#allocation3 + $0xb8] sm:$0x3]
        %v3581 = vld [vmem:[#allocation3 + $0xc0] sm:$0xff]
        %v3582 = vld [vmem:[#allocation3 + $0xc8] sm:$0xff]
        %v3583 = vld [vmem:[#allocation3 + $0xd0] sm:$0x3]
        %v3584 = vld [vmem:[#allocation3 + $0xd8] sm:$0xff]
        %v3585 = vld [vmem:[#allocation3 + $0xe0] sm:$0xff]
        %v3586 = vld [vmem:[#allocation3 + $0xe8] sm:$0x3]
        %v3587 = vld [vmem:[#allocation3 + $0xf0] sm:$0xff]
        %v3588 = vld [vmem:[#allocation3 + $0xf8] sm:$0xff]
        %v3589 = vld [vmem:[#allocation3 + $0x100] sm:$0x3]
        %v3590 = vld [vmem:[#allocation3 + $0x108] sm:$0xff]
        %v3591 = vld [vmem:[#allocation3 + $0x110] sm:$0xff]
        %v3592 = vld [vmem:[#allocation3 + $0x118] sm:$0x3]
        %v3593 = vld [vmem:[#allocation3 + $0x120] sm:$0xff]
        %v3594 = vld [vmem:[#allocation3 + $0x128] sm:$0xff]
        %v3595 = vld [vmem:[#allocation3 + $0x130] sm:$0x3]
        %v3596 = vld [vmem:[#allocation3 + $0x138] sm:$0xff]
        %v3597 = vld [vmem:[#allocation3 + $0x140] sm:$0xff]
        %v3598 = vld [vmem:[#allocation3 + $0x148] sm:$0x3]
        %v3599 = vld [vmem:[#allocation3 + $0x150] sm:$0xff]
        %v3600 = vld [vmem:[#allocation3 + $0x158] sm:$0xff]
        %v3601 = vld [vmem:[#allocation3 + $0x160] sm:$0x3]
        %v3602 = vld [vmem:[#allocation3 + $0x168] sm:$0xff]
        %v3603 = vld [vmem:[#allocation3 + $0x170] sm:$0xff]
        %v3604 = vld [vmem:[#allocation3 + $0x178] sm:$0x3]
        %v3605 = vld [vmem:[#allocation3 + $0x180] sm:$0xff]
        %v3606 = vld [vmem:[#allocation3 + $0x188] sm:$0xff]
        %v3607 = vld [vmem:[#allocation3 + $0x190] sm:$0x3]
        %v3608 = vld [vmem:[#allocation3 + $0x198] sm:$0xff]
        %v3609 = vld [vmem:[#allocation3 + $0x1a0] sm:$0xff]
        %v3610 = vld [vmem:[#allocation3 + $0x1a8] sm:$0x3]
        %v3611 = vld [vmem:[#allocation4] sm:$0xff]
        %v3612 = vld [vmem:[#allocation4 + $0x8] sm:$0xff]
        %v3613 = vld [vmem:[#allocation4 + $0x10] sm:$0xff]
        %v3614 = vld [vmem:[#allocation4 + $0x18] sm:$0xff]
        %v3615 = vld [vmem:[#allocation4 + $0x20] sm:$0xff]
        %v3616 = vld [vmem:[#allocation4 + $0x28] sm:$0xff]
        %v3617 = vld [vmem:[#allocation4 + $0x30] sm:$0xff]
        %v3618 = vld [vmem:[#allocation4 + $0x38] sm:$0xff]
        %v3619 = vld [vmem:[#allocation4 + $0x40] sm:$0xff]
        %v3620 = vld [vmem:[#allocation4 + $0x48] sm:$0xff]
        %v3621 = vld [vmem:[#allocation4 + $0x50] sm:$0xff]
        %v3622 = vld [vmem:[#allocation4 + $0x58] sm:$0xff]
        %v3623 = vld [vmem:[#allocation4 + $0x60] sm:$0xff]
        %v3624 = vld [vmem:[#allocation4 + $0x68] sm:$0xff]
        %v3625 = vld [vmem:[#allocation4 + $0x70] sm:$0xff]
        %v3626 = vld [vmem:[#allocation4 + $0x78] sm:$0xff]
        %v3675 = vrot.slane %v3557, 1
        %v3676 = vrot.slane %v3558, 1
        %v3677 = vsel %vm531, %v3675, %v3676
        %v3678 = vrot.slane %v3559, 1
        %v3679 = vsel %vm531, %v3676, %v3678
        %v3680 = vrot.slane %v3560, 1
        %v3681 = vrot.slane %v3561, 1
        %v3682 = vsel %vm531, %v3680, %v3681
        %v3683 = vrot.slane %v3562, 1
        %v3684 = vsel %vm531, %v3681, %v3683
        %v3685 = vrot.slane %v3563, 1
        %v3686 = vrot.slane %v3564, 1
        %v3687 = vsel %vm531, %v3685, %v3686
        %v3688 = vrot.slane %v3565, 1
        %v3689 = vsel %vm531, %v3686, %v3688
        %v3690 = vrot.slane %v3566, 1
        %v3691 = vrot.slane %v3567, 1
        %v3692 = vsel %vm531, %v3690, %v3691
        %v3693 = vrot.slane %v3568, 1
        %v3694 = vsel %vm531, %v3691, %v3693
        %v3695 = vrot.slane %v3569, 1
        %v3696 = vrot.slane %v3570, 1
        %v3697 = vsel %vm531, %v3695, %v3696
        %v3698 = vrot.slane %v3571, 1
        %v3699 = vsel %vm531, %v3696, %v3698
        %v3700 = vrot.slane %v3572, 1
        %v3701 = vrot.slane %v3573, 1
        %v3702 = vsel %vm531, %v3700, %v3701
        %v3703 = vrot.slane %v3574, 1
        %v3704 = vsel %vm531, %v3701, %v3703
        %v3705 = vrot.slane %v3575, 1
        %v3706 = vrot.slane %v3576, 1
        %v3707 = vsel %vm531, %v3705, %v3706
        %v3708 = vrot.slane %v3577, 1
        %v3709 = vsel %vm531, %v3706, %v3708
        %v3710 = vrot.slane %v3578, 1
        %v3711 = vrot.slane %v3579, 1
        %v3712 = vsel %vm531, %v3710, %v3711
        %v3713 = vrot.slane %v3580, 1
        %v3714 = vsel %vm531, %v3711, %v3713
        %v3715 = vrot.slane %v3581, 1
        %v3716 = vrot.slane %v3582, 1
        %v3717 = vsel %vm531, %v3715, %v3716
        %v3718 = vrot.slane %v3583, 1
        %v3719 = vsel %vm531, %v3716, %v3718
        %v3720 = vrot.slane %v3584, 1
        %v3721 = vrot.slane %v3585, 1
        %v3722 = vsel %vm531, %v3720, %v3721
        %v3723 = vrot.slane %v3586, 1
        %v3724 = vsel %vm531, %v3721, %v3723
        %v3725 = vrot.slane %v3587, 1
        %v3726 = vrot.slane %v3588, 1
        %v3727 = vsel %vm531, %v3725, %v3726
        %v3728 = vrot.slane %v3589, 1
        %v3729 = vsel %vm531, %v3726, %v3728
        %v3730 = vrot.slane %v3590, 1
        %v3731 = vrot.slane %v3591, 1
        %v3732 = vsel %vm531, %v3730, %v3731
        %v3733 = vrot.slane %v3592, 1
        %v3734 = vsel %vm531, %v3731, %v3733
        %v3735 = vrot.slane %v3593, 1
        %v3736 = vrot.slane %v3594, 1
        %v3737 = vsel %vm531, %v3735, %v3736
        %v3738 = vrot.slane %v3595, 1
        %v3739 = vsel %vm531, %v3736, %v3738
        %v3740 = vrot.slane %v3596, 1
        %v3741 = vrot.slane %v3597, 1
        %v3742 = vsel %vm531, %v3740, %v3741
        %v3743 = vrot.slane %v3598, 1
        %v3744 = vsel %vm531, %v3741, %v3743
        %v3745 = vrot.slane %v3599, 1
        %v3746 = vrot.slane %v3600, 1
        %v3747 = vsel %vm531, %v3745, %v3746
        %v3748 = vrot.slane %v3601, 1
        %v3749 = vsel %vm531, %v3746, %v3748
        %v3750 = vrot.slane %v3602, 1
        %v3751 = vrot.slane %v3603, 1
        %v3752 = vsel %vm531, %v3750, %v3751
        %v3753 = vrot.slane %v3604, 1
        %v3754 = vsel %vm531, %v3751, %v3753
        %v3787 = vld [vmem:[#allocation4 + $0x80] sm:$0xff]
        %v3788 = vld [vmem:[#allocation4 + $0x88] sm:$0xff]
        %v3789 = vld [vmem:[#allocation4 + $0x90] sm:$0xff]
        %v3790 = vld [vmem:[#allocation4 + $0x98] sm:$0xff]
        %v3791 = vld [vmem:[#allocation4 + $0xa0] sm:$0xff]
        %v3792 = vld [vmem:[#allocation4 + $0xa8] sm:$0xff]
        %v3793 = vld [vmem:[#allocation4 + $0xb0] sm:$0xff]
        %v3794 = vld [vmem:[#allocation4 + $0xb8] sm:$0xff]
        %v3795 = vld [vmem:[#allocation4 + $0xc0] sm:$0xff]
        %v3796 = vld [vmem:[#allocation4 + $0xc8] sm:$0xff]
        %v3797 = vld [vmem:[#allocation4 + $0xd0] sm:$0xff]
        %v3798 = vld [vmem:[#allocation4 + $0xd8] sm:$0xff]
        %v3799 = vld [vmem:[#allocation4 + $0xe0] sm:$0xff]
        %v3800 = vld [vmem:[#allocation4 + $0xe8] sm:$0xff]
        %v3801 = vld [vmem:[#allocation4 + $0xf0] sm:$0xff]
        %v3802 = vld [vmem:[#allocation4 + $0xf8] sm:$0xff]
        %3803 = vmatprep.subr.mxu0 0.0
        %3804 = vmatpush1.msra.mxu0 %v3802
        %3805 = vmatprep.subr.mxu0 0.0
        %3806 = vmatpush1.msra.mxu0 %v3801
        %3807 = vmatprep.subr.mxu0 0.0
        %3808 = vmatpush1.msra.mxu0 %v3800
        %3809 = vmatprep.subr.mxu0 0.0
        %3810 = vmatpush1.msra.mxu0 %v3799
        %3811 = vmatprep.subr.mxu0 0.0
        %3812 = vmatpush1.msra.mxu0 %v3798
        %3813 = vmatprep.subr.mxu0 0.0
        %3814 = vmatpush1.msra.mxu0 %v3797
        %3815 = vmatprep.subr.mxu0 0.0
        %3816 = vmatpush1.msra.mxu0 %v3796
        %3817 = vmatprep.subr.mxu0 0.0
        %3818 = vmatpush1.msra.mxu0 %v3795
        %3819 = vmatprep.subr.mxu0 0.0
        %3820 = vmatpush1.msra.mxu0 %v3794
        %3821 = vmatprep.subr.mxu0 0.0
        %3822 = vmatpush1.msra.mxu0 %v3793
        %3823 = vmatprep.subr.mxu0 0.0
        %3824 = vmatpush1.msra.mxu0 %v3792
        %3825 = vmatprep.subr.mxu0 0.0
        %3826 = vmatpush1.msra.mxu0 %v3791
        %3827 = vmatprep.subr.mxu0 0.0
        %3828 = vmatpush1.msra.mxu0 %v3790
        %3829 = vmatprep.subr.mxu0 0.0
        %3830 = vmatpush1.msra.mxu0 %v3789
        %3831 = vmatprep.subr.mxu0 0.0
        %3832 = vmatpush1.msra.mxu0 %v3788
        %3833 = vmatprep.subr.mxu0 0.0
        %3834 = vmatpush1.msra.mxu0 %v3787
        %3835 = vmatprep.subr.mxu0 0.0
        %3836 = vmatpush2.msra.mxu0 0.0
        %3837 = vmatprep.subr.mxu0 0.0
        %3838 = vmatpush2.msra.mxu0 0.0
        %3839 = vmatprep.subr.mxu0 0.0
        %3840 = vmatpush2.msra.mxu0 0.0
        %3841 = vmatprep.subr.mxu0 0.0
        %3842 = vmatpush2.msra.mxu0 0.0
        %3843 = vmatprep.subr.mxu0 0.0
        %3844 = vmatpush2.msra.mxu0 0.0
        %3845 = vmatprep.subr.mxu0 0.0
        %3846 = vmatpush2.msra.mxu0 0.0
        %3847 = vmatprep.subr.mxu0 0.0
        %3848 = vmatpush2.msra.mxu0 0.0
        %3849 = vmatprep.subr.mxu0 0.0
        %3850 = vmatpush2.msra.mxu0 0.0
        %3851 = vmatprep.subr.mxu0 0.0
        %3852 = vmatpush2.msra.mxu0 0.0
        %3853 = vmatprep.subr.mxu0 0.0
        %3854 = vmatpush2.msra.mxu0 0.0
        %3855 = vmatprep.subr.mxu0 0.0
        %3856 = vmatpush2.msra.mxu0 0.0
        %3857 = vmatprep.subr.mxu0 0.0
        %3858 = vmatpush2.msra.mxu0 0.0
        %3859 = vmatprep.subr.mxu0 0.0
        %3860 = vmatpush2.msra.mxu0 0.0
        %3861 = vmatprep.subr.mxu0 0.0
        %3862 = vmatpush2.msra.mxu0 0.0
        %3863 = vmatprep.subr.mxu0 0.0
        %3864 = vmatpush2.msra.mxu0 0.0
        %3865 = vmatprep.subr.mxu0 0.0
        %3866 = vmatpush2.msra.mxu0 0.0
        %3867 = vmatprep.mubr.f32.mxu0 0.0
        %3868 = vmatmul.mubr.f32.gmra.mxu0 %v3677
        %v3869 = vpop.f32.mrf.mxu0
        %v3870 = vadd.f32 0.0, %v3869
        %v3871 = vpop.f32.mrf.mxu0
        %3872 = vmatprep.mubr.f32.mxu0 0.0
        %3873 = vmatmul.mubr.f32.gmra.mxu0 %v3679
        %v3874 = vpop.f32.mrf.mxu0
        %v3875 = vadd.f32 0.0, %v3874
        %v3876 = vpop.f32.mrf.mxu0
        %3877 = vmatprep.mubr.f32.mxu0 0.0
        %3878 = vmatmul.mubr.f32.gmra.mxu0 %v3682
        %v3879 = vpop.f32.mrf.mxu0
        %v3880 = vadd.f32 0.0, %v3879
        %v3881 = vpop.f32.mrf.mxu0
        %3882 = vmatprep.mubr.f32.mxu0 0.0
        %3883 = vmatmul.mubr.f32.gmra.mxu0 %v3684
        %v3884 = vpop.f32.mrf.mxu0
        %v3885 = vadd.f32 0.0, %v3884
        %v3886 = vpop.f32.mrf.mxu0
        %3887 = vmatprep.mubr.f32.mxu0 0.0
        %3888 = vmatmul.mubr.f32.gmra.mxu0 %v3687
        %v3889 = vpop.f32.mrf.mxu0
        %v3890 = vadd.f32 0.0, %v3889
        %v3891 = vpop.f32.mrf.mxu0
        %3892 = vmatprep.mubr.f32.mxu0 0.0
        %3893 = vmatmul.mubr.f32.gmra.mxu0 %v3689
        %v3894 = vpop.f32.mrf.mxu0
        %v3895 = vadd.f32 0.0, %v3894
        %v3896 = vpop.f32.mrf.mxu0
        %3897 = vmatprep.mubr.f32.mxu0 0.0
        %3898 = vmatmul.mubr.f32.gmra.mxu0 %v3692
        %v3899 = vpop.f32.mrf.mxu0
        %v3900 = vadd.f32 0.0, %v3899
        %v3901 = vpop.f32.mrf.mxu0
        %3902 = vmatprep.mubr.f32.mxu0 0.0
        %3903 = vmatmul.mubr.f32.gmra.mxu0 %v3694
        %v3904 = vpop.f32.mrf.mxu0
        %v3905 = vadd.f32 0.0, %v3904
        %v3906 = vpop.f32.mrf.mxu0
        %3907 = vmatprep.mubr.f32.mxu0 0.0
        %3908 = vmatmul.mubr.f32.gmra.mxu0 %v3697
        %v3909 = vpop.f32.mrf.mxu0
        %v3910 = vadd.f32 0.0, %v3909
        %v3911 = vpop.f32.mrf.mxu0
        %3912 = vmatprep.mubr.f32.mxu0 0.0
        %3913 = vmatmul.mubr.f32.gmra.mxu0 %v3699
        %v3914 = vpop.f32.mrf.mxu0
        %v3915 = vadd.f32 0.0, %v3914
        %v3916 = vpop.f32.mrf.mxu0
        %3917 = vmatprep.mubr.f32.mxu0 0.0
        %3918 = vmatmul.mubr.f32.gmra.mxu0 %v3702
        %v3919 = vpop.f32.mrf.mxu0
        %v3920 = vadd.f32 0.0, %v3919
        %v3921 = vpop.f32.mrf.mxu0
        %3922 = vmatprep.mubr.f32.mxu0 0.0
        %3923 = vmatmul.mubr.f32.gmra.mxu0 %v3704
        %v3924 = vpop.f32.mrf.mxu0
        %v3925 = vadd.f32 0.0, %v3924
        %v3926 = vpop.f32.mrf.mxu0
        %3927 = vmatprep.mubr.f32.mxu0 0.0
        %3928 = vmatmul.mubr.f32.gmra.mxu0 %v3707
        %v3929 = vpop.f32.mrf.mxu0
        %v3930 = vadd.f32 0.0, %v3929
        %v3931 = vpop.f32.mrf.mxu0
        %3932 = vmatprep.mubr.f32.mxu0 0.0
        %3933 = vmatmul.mubr.f32.gmra.mxu0 %v3709
        %v3934 = vpop.f32.mrf.mxu0
        %v3935 = vadd.f32 0.0, %v3934
        %v3936 = vpop.f32.mrf.mxu0
        %3937 = vmatprep.mubr.f32.mxu0 0.0
        %3938 = vmatmul.mubr.f32.gmra.mxu0 %v3712
        %v3939 = vpop.f32.mrf.mxu0
        %v3940 = vadd.f32 0.0, %v3939
        %v3941 = vpop.f32.mrf.mxu0
        %3942 = vmatprep.mubr.f32.mxu0 0.0
        %3943 = vmatmul.mubr.f32.gmra.mxu0 %v3714
        %v3944 = vpop.f32.mrf.mxu0
        %v3945 = vadd.f32 0.0, %v3944
        %v3946 = vpop.f32.mrf.mxu0
        %3947 = vmatprep.mubr.f32.mxu0 0.0
        %3948 = vmatmul.mubr.f32.gmra.mxu0 %v3717
        %v3949 = vpop.f32.mrf.mxu0
        %v3950 = vadd.f32 0.0, %v3949
        %v3951 = vpop.f32.mrf.mxu0
        %3952 = vmatprep.mubr.f32.mxu0 0.0
        %3953 = vmatmul.mubr.f32.gmra.mxu0 %v3719
        %v3954 = vpop.f32.mrf.mxu0
        %v3955 = vadd.f32 0.0, %v3954
        %v3956 = vpop.f32.mrf.mxu0
        %3957 = vmatprep.mubr.f32.mxu0 0.0
        %3958 = vmatmul.mubr.f32.gmra.mxu0 %v3722
        %v3959 = vpop.f32.mrf.mxu0
        %v3960 = vadd.f32 0.0, %v3959
        %v3961 = vpop.f32.mrf.mxu0
        %3962 = vmatprep.mubr.f32.mxu0 0.0
        %3963 = vmatmul.mubr.f32.gmra.mxu0 %v3724
        %v3964 = vpop.f32.mrf.mxu0
        %v3965 = vadd.f32 0.0, %v3964
        %v3966 = vpop.f32.mrf.mxu0
        %3967 = vmatprep.mubr.f32.mxu0 0.0
        %3968 = vmatmul.mubr.f32.gmra.mxu0 %v3727
        %v3969 = vpop.f32.mrf.mxu0
        %v3970 = vadd.f32 0.0, %v3969
        %v3971 = vpop.f32.mrf.mxu0
        %3972 = vmatprep.mubr.f32.mxu0 0.0
        %3973 = vmatmul.mubr.f32.gmra.mxu0 %v3729
        %v3974 = vpop.f32.mrf.mxu0
        %v3975 = vadd.f32 0.0, %v3974
        %v3976 = vpop.f32.mrf.mxu0
        %3977 = vmatprep.mubr.f32.mxu0 0.0
        %3978 = vmatmul.mubr.f32.gmra.mxu0 %v3732
        %v3979 = vpop.f32.mrf.mxu0
        %v3980 = vadd.f32 0.0, %v3979
        %v3981 = vpop.f32.mrf.mxu0
        %3982 = vmatprep.mubr.f32.mxu0 0.0
        %3983 = vmatmul.mubr.f32.gmra.mxu0 %v3734
        %v3984 = vpop.f32.mrf.mxu0
        %v3985 = vadd.f32 0.0, %v3984
        %v3986 = vpop.f32.mrf.mxu0
        %3987 = vmatprep.mubr.f32.mxu0 0.0
        %3988 = vmatmul.mubr.f32.gmra.mxu0 %v3737
        %v3989 = vpop.f32.mrf.mxu0
        %v3990 = vadd.f32 0.0, %v3989
        %v3991 = vpop.f32.mrf.mxu0
        %3992 = vmatprep.mubr.f32.mxu0 0.0
        %3993 = vmatmul.mubr.f32.gmra.mxu0 %v3739
        %v3994 = vpop.f32.mrf.mxu0
        %v3995 = vadd.f32 0.0, %v3994
        %v3996 = vpop.f32.mrf.mxu0
        %3997 = vmatprep.mubr.f32.mxu0 0.0
        %3998 = vmatmul.mubr.f32.gmra.mxu0 %v3742
        %v3999 = vpop.f32.mrf.mxu0
        %v4000 = vadd.f32 0.0, %v3999
        %v4001 = vpop.f32.mrf.mxu0
        %4002 = vmatprep.mubr.f32.mxu0 0.0
        %4003 = vmatmul.mubr.f32.gmra.mxu0 %v3744
        %v4004 = vpop.f32.mrf.mxu0
        %v4005 = vadd.f32 0.0, %v4004
        %v4006 = vpop.f32.mrf.mxu0
        %4007 = vmatprep.mubr.f32.mxu0 0.0
        %4008 = vmatmul.mubr.f32.gmra.mxu0 %v3747
        %v4009 = vpop.f32.mrf.mxu0
        %v4010 = vadd.f32 0.0, %v4009
        %v4011 = vpop.f32.mrf.mxu0
        %4012 = vmatprep.mubr.f32.mxu0 0.0
        %4013 = vmatmul.mubr.f32.gmra.mxu0 %v3749
        %v4014 = vpop.f32.mrf.mxu0
        %v4015 = vadd.f32 0.0, %v4014
        %v4016 = vpop.f32.mrf.mxu0
        %4017 = vmatprep.mubr.f32.mxu0 0.0
        %4018 = vmatmul.mubr.f32.gmra.mxu0 %v3752
        %v4019 = vpop.f32.mrf.mxu0
        %v4020 = vadd.f32 0.0, %v4019
        %v4021 = vpop.f32.mrf.mxu0
        %4022 = vmatprep.mubr.f32.mxu0 0.0
        %4023 = vmatmul.mubr.f32.gmra.mxu0 %v3754
        %v4024 = vpop.f32.mrf.mxu0
        %v4025 = vadd.f32 0.0, %v4024
        %v4026 = vpop.f32.mrf.mxu0
        %4027 = vdwg.mxu0
        %4028 = vmatprep.subr.mxu0 0.0
        %4029 = vmatpush1.msra.mxu0 %v3626
        %4030 = vmatprep.subr.mxu0 0.0
        %4031 = vmatpush1.msra.mxu0 %v3625
        %4032 = vmatprep.subr.mxu0 0.0
        %4033 = vmatpush1.msra.mxu0 %v3624
        %4034 = vmatprep.subr.mxu0 0.0
        %4035 = vmatpush1.msra.mxu0 %v3623
        %4036 = vmatprep.subr.mxu0 0.0
        %4037 = vmatpush1.msra.mxu0 %v3622
        %4038 = vmatprep.subr.mxu0 0.0
        %4039 = vmatpush1.msra.mxu0 %v3621
        %4040 = vmatprep.subr.mxu0 0.0
        %4041 = vmatpush1.msra.mxu0 %v3620
        %4042 = vmatprep.subr.mxu0 0.0
        %4043 = vmatpush1.msra.mxu0 %v3619
        %4044 = vmatprep.subr.mxu0 0.0
        %4045 = vmatpush1.msra.mxu0 %v3618
        %4046 = vmatprep.subr.mxu0 0.0
        %4047 = vmatpush1.msra.mxu0 %v3617
        %4048 = vmatprep.subr.mxu0 0.0
        %4049 = vmatpush1.msra.mxu0 %v3616
        %4050 = vmatprep.subr.mxu0 0.0
        %4051 = vmatpush1.msra.mxu0 %v3615
        %4052 = vmatprep.subr.mxu0 0.0
        %4053 = vmatpush1.msra.mxu0 %v3614
        %4054 = vmatprep.subr.mxu0 0.0
        %4055 = vmatpush1.msra.mxu0 %v3613
        %4056 = vmatprep.subr.mxu0 0.0
        %4057 = vmatpush1.msra.mxu0 %v3612
        %4058 = vmatprep.subr.mxu0 0.0
        %4059 = vmatpush1.msra.mxu0 %v3611
        %4060 = vmatprep.subr.mxu0 0.0
        %4061 = vmatpush2.msra.mxu0 0.0
        %4062 = vmatprep.subr.mxu0 0.0
        %4063 = vmatpush2.msra.mxu0 0.0
        %4064 = vmatprep.subr.mxu0 0.0
        %4065 = vmatpush2.msra.mxu0 0.0
        %4066 = vmatprep.subr.mxu0 0.0
        %4067 = vmatpush2.msra.mxu0 0.0
        %4068 = vmatprep.subr.mxu0 0.0
        %4069 = vmatpush2.msra.mxu0 0.0
        %4070 = vmatprep.subr.mxu0 0.0
        %4071 = vmatpush2.msra.mxu0 0.0
        %4072 = vmatprep.subr.mxu0 0.0
        %4073 = vmatpush2.msra.mxu0 0.0
        %4074 = vmatprep.subr.mxu0 0.0
        %4075 = vmatpush2.msra.mxu0 0.0
        %4076 = vmatprep.subr.mxu0 0.0
        %4077 = vmatpush2.msra.mxu0 0.0
        %4078 = vmatprep.subr.mxu0 0.0
        %4079 = vmatpush2.msra.mxu0 0.0
        %4080 = vmatprep.subr.mxu0 0.0
        %4081 = vmatpush2.msra.mxu0 0.0
        %4082 = vmatprep.subr.mxu0 0.0
        %4083 = vmatpush2.msra.mxu0 0.0
        %4084 = vmatprep.subr.mxu0 0.0
        %4085 = vmatpush2.msra.mxu0 0.0
        %4086 = vmatprep.subr.mxu0 0.0
        %4087 = vmatpush2.msra.mxu0 0.0
        %4088 = vmatprep.subr.mxu0 0.0
        %4089 = vmatpush2.msra.mxu0 0.0
        %4090 = vmatprep.subr.mxu0 0.0
        %4091 = vmatpush2.msra.mxu0 0.0
        %4092 = vmatprep.mubr.f32.mxu0 0.0
        %4093 = vmatmul.mubr.f32.gmra.mxu0 %v3557
        %v4094 = vpop.f32.mrf.mxu0
        %v4095 = vadd.f32 %v3870, %v4094
        %v4096 = vpop.f32.mrf.mxu0
        %4097 = vmatprep.mubr.f32.mxu0 0.0
        %4098 = vmatmul.mubr.f32.gmra.mxu0 %v3558
        %v4099 = vpop.f32.mrf.mxu0
        %v4100 = vadd.f32 %v3875, %v4099
        %v4101 = vpop.f32.mrf.mxu0
        %4102 = vmatprep.mubr.f32.mxu0 0.0
        %4103 = vmatmul.mubr.f32.gmra.mxu0 %v3560
        %v4104 = vpop.f32.mrf.mxu0
        %v4105 = vadd.f32 %v3880, %v4104
        %v4106 = vpop.f32.mrf.mxu0
        %4107 = vmatprep.mubr.f32.mxu0 0.0
        %4108 = vmatmul.mubr.f32.gmra.mxu0 %v3561
        %v4109 = vpop.f32.mrf.mxu0
        %v4110 = vadd.f32 %v3885, %v4109
        %v4111 = vpop.f32.mrf.mxu0
        %4112 = vmatprep.mubr.f32.mxu0 0.0
        %4113 = vmatmul.mubr.f32.gmra.mxu0 %v3563
        %v4114 = vpop.f32.mrf.mxu0
        %v4115 = vadd.f32 %v3890, %v4114
        %v4116 = vpop.f32.mrf.mxu0
        %4117 = vmatprep.mubr.f32.mxu0 0.0
        %4118 = vmatmul.mubr.f32.gmra.mxu0 %v3564
        %v4119 = vpop.f32.mrf.mxu0
        %v4120 = vadd.f32 %v3895, %v4119
        %v4121 = vpop.f32.mrf.mxu0
        %4122 = vmatprep.mubr.f32.mxu0 0.0
        %4123 = vmatmul.mubr.f32.gmra.mxu0 %v3566
        %v4124 = vpop.f32.mrf.mxu0
        %v4125 = vadd.f32 %v3900, %v4124
        %v4126 = vpop.f32.mrf.mxu0
        %4127 = vmatprep.mubr.f32.mxu0 0.0
        %4128 = vmatmul.mubr.f32.gmra.mxu0 %v3567
        %v4129 = vpop.f32.mrf.mxu0
        %v4130 = vadd.f32 %v3905, %v4129
        %v4131 = vpop.f32.mrf.mxu0
        %4132 = vmatprep.mubr.f32.mxu0 0.0
        %4133 = vmatmul.mubr.f32.gmra.mxu0 %v3569
        %v4134 = vpop.f32.mrf.mxu0
        %v4135 = vadd.f32 %v3910, %v4134
        %v4136 = vpop.f32.mrf.mxu0
        %4137 = vmatprep.mubr.f32.mxu0 0.0
        %4138 = vmatmul.mubr.f32.gmra.mxu0 %v3570
        %v4139 = vpop.f32.mrf.mxu0
        %v4140 = vadd.f32 %v3915, %v4139
        %v4141 = vpop.f32.mrf.mxu0
        %4142 = vmatprep.mubr.f32.mxu0 0.0
        %4143 = vmatmul.mubr.f32.gmra.mxu0 %v3572
        %v4144 = vpop.f32.mrf.mxu0
        %v4145 = vadd.f32 %v3920, %v4144
        %v4146 = vpop.f32.mrf.mxu0
        %4147 = vmatprep.mubr.f32.mxu0 0.0
        %4148 = vmatmul.mubr.f32.gmra.mxu0 %v3573
        %v4149 = vpop.f32.mrf.mxu0
        %v4150 = vadd.f32 %v3925, %v4149
        %v4151 = vpop.f32.mrf.mxu0
        %4152 = vmatprep.mubr.f32.mxu0 0.0
        %4153 = vmatmul.mubr.f32.gmra.mxu0 %v3575
        %v4154 = vpop.f32.mrf.mxu0
        %v4155 = vadd.f32 %v3930, %v4154
        %v4156 = vpop.f32.mrf.mxu0
        %4157 = vmatprep.mubr.f32.mxu0 0.0
        %4158 = vmatmul.mubr.f32.gmra.mxu0 %v3576
        %v4159 = vpop.f32.mrf.mxu0
        %v4160 = vadd.f32 %v3935, %v4159
        %v4161 = vpop.f32.mrf.mxu0
        %4162 = vmatprep.mubr.f32.mxu0 0.0
        %4163 = vmatmul.mubr.f32.gmra.mxu0 %v3578
        %v4164 = vpop.f32.mrf.mxu0
        %v4165 = vadd.f32 %v3940, %v4164
        %v4166 = vpop.f32.mrf.mxu0
        %4167 = vmatprep.mubr.f32.mxu0 0.0
        %4168 = vmatmul.mubr.f32.gmra.mxu0 %v3579
        %v4169 = vpop.f32.mrf.mxu0
        %v4170 = vadd.f32 %v3945, %v4169
        %v4171 = vpop.f32.mrf.mxu0
        %4172 = vmatprep.mubr.f32.mxu0 0.0
        %4173 = vmatmul.mubr.f32.gmra.mxu0 %v3581
        %v4174 = vpop.f32.mrf.mxu0
        %v4175 = vadd.f32 %v3950, %v4174
        %v4176 = vpop.f32.mrf.mxu0
        %4177 = vmatprep.mubr.f32.mxu0 0.0
        %4178 = vmatmul.mubr.f32.gmra.mxu0 %v3582
        %v4179 = vpop.f32.mrf.mxu0
        %v4180 = vadd.f32 %v3955, %v4179
        %v4181 = vpop.f32.mrf.mxu0
        %4182 = vmatprep.mubr.f32.mxu0 0.0
        %4183 = vmatmul.mubr.f32.gmra.mxu0 %v3584
        %v4184 = vpop.f32.mrf.mxu0
        %v4185 = vadd.f32 %v3960, %v4184
        %v4186 = vpop.f32.mrf.mxu0
        %4187 = vmatprep.mubr.f32.mxu0 0.0
        %4188 = vmatmul.mubr.f32.gmra.mxu0 %v3585
        %v4189 = vpop.f32.mrf.mxu0
        %v4190 = vadd.f32 %v3965, %v4189
        %v4191 = vpop.f32.mrf.mxu0
        %4192 = vmatprep.mubr.f32.mxu0 0.0
        %4193 = vmatmul.mubr.f32.gmra.mxu0 %v3587
        %v4194 = vpop.f32.mrf.mxu0
        %v4195 = vadd.f32 %v3970, %v4194
        %v4196 = vpop.f32.mrf.mxu0
        %4197 = vmatprep.mubr.f32.mxu0 0.0
        %4198 = vmatmul.mubr.f32.gmra.mxu0 %v3588
        %v4199 = vpop.f32.mrf.mxu0
        %v4200 = vadd.f32 %v3975, %v4199
        %v4201 = vpop.f32.mrf.mxu0
        %4202 = vmatprep.mubr.f32.mxu0 0.0
        %4203 = vmatmul.mubr.f32.gmra.mxu0 %v3590
        %v4204 = vpop.f32.mrf.mxu0
        %v4205 = vadd.f32 %v3980, %v4204
        %v4206 = vpop.f32.mrf.mxu0
        %4207 = vmatprep.mubr.f32.mxu0 0.0
        %4208 = vmatmul.mubr.f32.gmra.mxu0 %v3591
        %v4209 = vpop.f32.mrf.mxu0
        %v4210 = vadd.f32 %v3985, %v4209
        %v4211 = vpop.f32.mrf.mxu0
        %4212 = vmatprep.mubr.f32.mxu0 0.0
        %4213 = vmatmul.mubr.f32.gmra.mxu0 %v3593
        %v4214 = vpop.f32.mrf.mxu0
        %v4215 = vadd.f32 %v3990, %v4214
        %v4216 = vpop.f32.mrf.mxu0
        %4217 = vmatprep.mubr.f32.mxu0 0.0
        %4218 = vmatmul.mubr.f32.gmra.mxu0 %v3594
        %v4219 = vpop.f32.mrf.mxu0
        %v4220 = vadd.f32 %v3995, %v4219
        %v4221 = vpop.f32.mrf.mxu0
        %4222 = vmatprep.mubr.f32.mxu0 0.0
        %4223 = vmatmul.mubr.f32.gmra.mxu0 %v3596
        %v4224 = vpop.f32.mrf.mxu0
        %v4225 = vadd.f32 %v4000, %v4224
        %v4226 = vpop.f32.mrf.mxu0
        %4227 = vmatprep.mubr.f32.mxu0 0.0
        %4228 = vmatmul.mubr.f32.gmra.mxu0 %v3597
        %v4229 = vpop.f32.mrf.mxu0
        %v4230 = vadd.f32 %v4005, %v4229
        %v4231 = vpop.f32.mrf.mxu0
        %4232 = vmatprep.mubr.f32.mxu0 0.0
        %4233 = vmatmul.mubr.f32.gmra.mxu0 %v3599
        %v4234 = vpop.f32.mrf.mxu0
        %v4235 = vadd.f32 %v4010, %v4234
        %v4236 = vpop.f32.mrf.mxu0
        %4237 = vmatprep.mubr.f32.mxu0 0.0
        %4238 = vmatmul.mubr.f32.gmra.mxu0 %v3600
        %v4239 = vpop.f32.mrf.mxu0
        %v4240 = vadd.f32 %v4015, %v4239
        %v4241 = vpop.f32.mrf.mxu0
        %4242 = vmatprep.mubr.f32.mxu0 0.0
        %4243 = vmatmul.mubr.f32.gmra.mxu0 %v3602
        %v4244 = vpop.f32.mrf.mxu0
        %v4245 = vadd.f32 %v4020, %v4244
        %v4246 = vpop.f32.mrf.mxu0
        %4247 = vmatprep.mubr.f32.mxu0 0.0
        %4248 = vmatmul.mubr.f32.gmra.mxu0 %v3603
        %v4249 = vpop.f32.mrf.mxu0
        %v4250 = vadd.f32 %v4025, %v4249
        %v4251 = vpop.f32.mrf.mxu0
        %4252 = vdwg.mxu0
        %v4253 = vrot.slane %v3557, 2
        %v4254 = vrot.slane %v3558, 2
        %v4255 = vsel %vm1110, %v4253, %v4254
        %v4256 = vrot.slane %v3559, 2
        %v4257 = vsel %vm1110, %v4254, %v4256
        %v4258 = vrot.slane %v3560, 2
        %v4259 = vrot.slane %v3561, 2
        %v4260 = vsel %vm1110, %v4258, %v4259
        %v4261 = vrot.slane %v3562, 2
        %v4262 = vsel %vm1110, %v4259, %v4261
        %v4263 = vrot.slane %v3563, 2
        %v4264 = vrot.slane %v3564, 2
        %v4265 = vsel %vm1110, %v4263, %v4264
        %v4266 = vrot.slane %v3565, 2
        %v4267 = vsel %vm1110, %v4264, %v4266
        %v4268 = vrot.slane %v3566, 2
        %v4269 = vrot.slane %v3567, 2
        %v4270 = vsel %vm1110, %v4268, %v4269
        %v4271 = vrot.slane %v3568, 2
        %v4272 = vsel %vm1110, %v4269, %v4271
        %v4273 = vrot.slane %v3569, 2
        %v4274 = vrot.slane %v3570, 2
        %v4275 = vsel %vm1110, %v4273, %v4274
        %v4276 = vrot.slane %v3571, 2
        %v4277 = vsel %vm1110, %v4274, %v4276
        %v4278 = vrot.slane %v3572, 2
        %v4279 = vrot.slane %v3573, 2
        %v4280 = vsel %vm1110, %v4278, %v4279
        %v4281 = vrot.slane %v3574, 2
        %v4282 = vsel %vm1110, %v4279, %v4281
        %v4283 = vrot.slane %v3575, 2
        %v4284 = vrot.slane %v3576, 2
        %v4285 = vsel %vm1110, %v4283, %v4284
        %v4286 = vrot.slane %v3577, 2
        %v4287 = vsel %vm1110, %v4284, %v4286
        %v4288 = vrot.slane %v3578, 2
        %v4289 = vrot.slane %v3579, 2
        %v4290 = vsel %vm1110, %v4288, %v4289
        %v4291 = vrot.slane %v3580, 2
        %v4292 = vsel %vm1110, %v4289, %v4291
        %v4293 = vrot.slane %v3581, 2
        %v4294 = vrot.slane %v3582, 2
        %v4295 = vsel %vm1110, %v4293, %v4294
        %v4296 = vrot.slane %v3583, 2
        %v4297 = vsel %vm1110, %v4294, %v4296
        %v4298 = vrot.slane %v3584, 2
        %v4299 = vrot.slane %v3585, 2
        %v4300 = vsel %vm1110, %v4298, %v4299
        %v4301 = vrot.slane %v3586, 2
        %v4302 = vsel %vm1110, %v4299, %v4301
        %v4303 = vrot.slane %v3587, 2
        %v4304 = vrot.slane %v3588, 2
        %v4305 = vsel %vm1110, %v4303, %v4304
        %v4306 = vrot.slane %v3589, 2
        %v4307 = vsel %vm1110, %v4304, %v4306
        %v4308 = vrot.slane %v3590, 2
        %v4309 = vrot.slane %v3591, 2
        %v4310 = vsel %vm1110, %v4308, %v4309
        %v4311 = vrot.slane %v3592, 2
        %v4312 = vsel %vm1110, %v4309, %v4311
        %v4313 = vrot.slane %v3593, 2
        %v4314 = vrot.slane %v3594, 2
        %v4315 = vsel %vm1110, %v4313, %v4314
        %v4316 = vrot.slane %v3595, 2
        %v4317 = vsel %vm1110, %v4314, %v4316
        %v4318 = vrot.slane %v3596, 2
        %v4319 = vrot.slane %v3597, 2
        %v4320 = vsel %vm1110, %v4318, %v4319
        %v4321 = vrot.slane %v3598, 2
        %v4322 = vsel %vm1110, %v4319, %v4321
        %v4323 = vrot.slane %v3599, 2
        %v4324 = vrot.slane %v3600, 2
        %v4325 = vsel %vm1110, %v4323, %v4324
        %v4326 = vrot.slane %v3601, 2
        %v4327 = vsel %vm1110, %v4324, %v4326
        %v4328 = vrot.slane %v3602, 2
        %v4329 = vrot.slane %v3603, 2
        %v4330 = vsel %vm1110, %v4328, %v4329
        %v4331 = vrot.slane %v3604, 2
        %v4332 = vsel %vm1110, %v4329, %v4331
        %v4365 = vld [vmem:[#allocation4 + $0x100] sm:$0xff]
        %v4366 = vld [vmem:[#allocation4 + $0x108] sm:$0xff]
        %v4367 = vld [vmem:[#allocation4 + $0x110] sm:$0xff]
        %v4368 = vld [vmem:[#allocation4 + $0x118] sm:$0xff]
        %v4369 = vld [vmem:[#allocation4 + $0x120] sm:$0xff]
        %v4370 = vld [vmem:[#allocation4 + $0x128] sm:$0xff]
        %v4371 = vld [vmem:[#allocation4 + $0x130] sm:$0xff]
        %v4372 = vld [vmem:[#allocation4 + $0x138] sm:$0xff]
        %v4373 = vld [vmem:[#allocation4 + $0x140] sm:$0xff]
        %v4374 = vld [vmem:[#allocation4 + $0x148] sm:$0xff]
        %v4375 = vld [vmem:[#allocation4 + $0x150] sm:$0xff]
        %v4376 = vld [vmem:[#allocation4 + $0x158] sm:$0xff]
        %v4377 = vld [vmem:[#allocation4 + $0x160] sm:$0xff]
        %v4378 = vld [vmem:[#allocation4 + $0x168] sm:$0xff]
        %v4379 = vld [vmem:[#allocation4 + $0x170] sm:$0xff]
        %v4380 = vld [vmem:[#allocation4 + $0x178] sm:$0xff]
        %4381 = vmatprep.subr.mxu0 0.0
        %4382 = vmatpush1.msra.mxu0 %v4380
        %4383 = vmatprep.subr.mxu0 0.0
        %4384 = vmatpush1.msra.mxu0 %v4379
        %4385 = vmatprep.subr.mxu0 0.0
        %4386 = vmatpush1.msra.mxu0 %v4378
        %4387 = vmatprep.subr.mxu0 0.0
        %4388 = vmatpush1.msra.mxu0 %v4377
        %4389 = vmatprep.subr.mxu0 0.0
        %4390 = vmatpush1.msra.mxu0 %v4376
        %4391 = vmatprep.subr.mxu0 0.0
        %4392 = vmatpush1.msra.mxu0 %v4375
        %4393 = vmatprep.subr.mxu0 0.0
        %4394 = vmatpush1.msra.mxu0 %v4374
        %4395 = vmatprep.subr.mxu0 0.0
        %4396 = vmatpush1.msra.mxu0 %v4373
        %4397 = vmatprep.subr.mxu0 0.0
        %4398 = vmatpush1.msra.mxu0 %v4372
        %4399 = vmatprep.subr.mxu0 0.0
        %4400 = vmatpush1.msra.mxu0 %v4371
        %4401 = vmatprep.subr.mxu0 0.0
        %4402 = vmatpush1.msra.mxu0 %v4370
        %4403 = vmatprep.subr.mxu0 0.0
        %4404 = vmatpush1.msra.mxu0 %v4369
        %4405 = vmatprep.subr.mxu0 0.0
        %4406 = vmatpush1.msra.mxu0 %v4368
        %4407 = vmatprep.subr.mxu0 0.0
        %4408 = vmatpush1.msra.mxu0 %v4367
        %4409 = vmatprep.subr.mxu0 0.0
        %4410 = vmatpush1.msra.mxu0 %v4366
        %4411 = vmatprep.subr.mxu0 0.0
        %4412 = vmatpush1.msra.mxu0 %v4365
        %4413 = vmatprep.subr.mxu0 0.0
        %4414 = vmatpush2.msra.mxu0 0.0
        %4415 = vmatprep.subr.mxu0 0.0
        %4416 = vmatpush2.msra.mxu0 0.0
        %4417 = vmatprep.subr.mxu0 0.0
        %4418 = vmatpush2.msra.mxu0 0.0
        %4419 = vmatprep.subr.mxu0 0.0
        %4420 = vmatpush2.msra.mxu0 0.0
        %4421 = vmatprep.subr.mxu0 0.0
        %4422 = vmatpush2.msra.mxu0 0.0
        %4423 = vmatprep.subr.mxu0 0.0
        %4424 = vmatpush2.msra.mxu0 0.0
        %4425 = vmatprep.subr.mxu0 0.0
        %4426 = vmatpush2.msra.mxu0 0.0
        %4427 = vmatprep.subr.mxu0 0.0
        %4428 = vmatpush2.msra.mxu0 0.0
        %4429 = vmatprep.subr.mxu0 0.0
        %4430 = vmatpush2.msra.mxu0 0.0
        %4431 = vmatprep.subr.mxu0 0.0
        %4432 = vmatpush2.msra.mxu0 0.0
        %4433 = vmatprep.subr.mxu0 0.0
        %4434 = vmatpush2.msra.mxu0 0.0
        %4435 = vmatprep.subr.mxu0 0.0
        %4436 = vmatpush2.msra.mxu0 0.0
        %4437 = vmatprep.subr.mxu0 0.0
        %4438 = vmatpush2.msra.mxu0 0.0
        %4439 = vmatprep.subr.mxu0 0.0
        %4440 = vmatpush2.msra.mxu0 0.0
        %4441 = vmatprep.subr.mxu0 0.0
        %4442 = vmatpush2.msra.mxu0 0.0
        %4443 = vmatprep.subr.mxu0 0.0
        %4444 = vmatpush2.msra.mxu0 0.0
        %4445 = vmatprep.mubr.f32.mxu0 0.0
        %4446 = vmatmul.mubr.f32.gmra.mxu0 %v4255
        %v4447 = vpop.f32.mrf.mxu0
        %v4448 = vadd.f32 0.0, %v4447
        %v4449 = vpop.f32.mrf.mxu0
        %4450 = vmatprep.mubr.f32.mxu0 0.0
        %4451 = vmatmul.mubr.f32.gmra.mxu0 %v4257
        %v4452 = vpop.f32.mrf.mxu0
        %v4453 = vadd.f32 0.0, %v4452
        %v4454 = vpop.f32.mrf.mxu0
        %4455 = vmatprep.mubr.f32.mxu0 0.0
        %4456 = vmatmul.mubr.f32.gmra.mxu0 %v4260
        %v4457 = vpop.f32.mrf.mxu0
        %v4458 = vadd.f32 0.0, %v4457
        %v4459 = vpop.f32.mrf.mxu0
        %4460 = vmatprep.mubr.f32.mxu0 0.0
        %4461 = vmatmul.mubr.f32.gmra.mxu0 %v4262
        %v4462 = vpop.f32.mrf.mxu0
        %v4463 = vadd.f32 0.0, %v4462
        %v4464 = vpop.f32.mrf.mxu0
        %4465 = vmatprep.mubr.f32.mxu0 0.0
        %4466 = vmatmul.mubr.f32.gmra.mxu0 %v4265
        %v4467 = vpop.f32.mrf.mxu0
        %v4468 = vadd.f32 0.0, %v4467
        %v4469 = vpop.f32.mrf.mxu0
        %4470 = vmatprep.mubr.f32.mxu0 0.0
        %4471 = vmatmul.mubr.f32.gmra.mxu0 %v4267
        %v4472 = vpop.f32.mrf.mxu0
        %v4473 = vadd.f32 0.0, %v4472
        %v4474 = vpop.f32.mrf.mxu0
        %4475 = vmatprep.mubr.f32.mxu0 0.0
        %4476 = vmatmul.mubr.f32.gmra.mxu0 %v4270
        %v4477 = vpop.f32.mrf.mxu0
        %v4478 = vadd.f32 0.0, %v4477
        %v4479 = vpop.f32.mrf.mxu0
        %4480 = vmatprep.mubr.f32.mxu0 0.0
        %4481 = vmatmul.mubr.f32.gmra.mxu0 %v4272
        %v4482 = vpop.f32.mrf.mxu0
        %v4483 = vadd.f32 0.0, %v4482
        %v4484 = vpop.f32.mrf.mxu0
        %4485 = vmatprep.mubr.f32.mxu0 0.0
        %4486 = vmatmul.mubr.f32.gmra.mxu0 %v4275
        %v4487 = vpop.f32.mrf.mxu0
        %v4488 = vadd.f32 0.0, %v4487
        %v4489 = vpop.f32.mrf.mxu0
        %4490 = vmatprep.mubr.f32.mxu0 0.0
        %4491 = vmatmul.mubr.f32.gmra.mxu0 %v4277
        %v4492 = vpop.f32.mrf.mxu0
        %v4493 = vadd.f32 0.0, %v4492
        %v4494 = vpop.f32.mrf.mxu0
        %4495 = vmatprep.mubr.f32.mxu0 0.0
        %4496 = vmatmul.mubr.f32.gmra.mxu0 %v4280
        %v4497 = vpop.f32.mrf.mxu0
        %v4498 = vadd.f32 0.0, %v4497
        %v4499 = vpop.f32.mrf.mxu0
        %4500 = vmatprep.mubr.f32.mxu0 0.0
        %4501 = vmatmul.mubr.f32.gmra.mxu0 %v4282
        %v4502 = vpop.f32.mrf.mxu0
        %v4503 = vadd.f32 0.0, %v4502
        %v4504 = vpop.f32.mrf.mxu0
        %4505 = vmatprep.mubr.f32.mxu0 0.0
        %4506 = vmatmul.mubr.f32.gmra.mxu0 %v4285
        %v4507 = vpop.f32.mrf.mxu0
        %v4508 = vadd.f32 0.0, %v4507
        %v4509 = vpop.f32.mrf.mxu0
        %4510 = vmatprep.mubr.f32.mxu0 0.0
        %4511 = vmatmul.mubr.f32.gmra.mxu0 %v4287
        %v4512 = vpop.f32.mrf.mxu0
        %v4513 = vadd.f32 0.0, %v4512
        %v4514 = vpop.f32.mrf.mxu0
        %4515 = vmatprep.mubr.f32.mxu0 0.0
        %4516 = vmatmul.mubr.f32.gmra.mxu0 %v4290
        %v4517 = vpop.f32.mrf.mxu0
        %v4518 = vadd.f32 0.0, %v4517
        %v4519 = vpop.f32.mrf.mxu0
        %4520 = vmatprep.mubr.f32.mxu0 0.0
        %4521 = vmatmul.mubr.f32.gmra.mxu0 %v4292
        %v4522 = vpop.f32.mrf.mxu0
        %v4523 = vadd.f32 0.0, %v4522
        %v4524 = vpop.f32.mrf.mxu0
        %4525 = vmatprep.mubr.f32.mxu0 0.0
        %4526 = vmatmul.mubr.f32.gmra.mxu0 %v4295
        %v4527 = vpop.f32.mrf.mxu0
        %v4528 = vadd.f32 0.0, %v4527
        %v4529 = vpop.f32.mrf.mxu0
        %4530 = vmatprep.mubr.f32.mxu0 0.0
        %4531 = vmatmul.mubr.f32.gmra.mxu0 %v4297
        %v4532 = vpop.f32.mrf.mxu0
        %v4533 = vadd.f32 0.0, %v4532
        %v4534 = vpop.f32.mrf.mxu0
        %4535 = vmatprep.mubr.f32.mxu0 0.0
        %4536 = vmatmul.mubr.f32.gmra.mxu0 %v4300
        %v4537 = vpop.f32.mrf.mxu0
        %v4538 = vadd.f32 0.0, %v4537
        %v4539 = vpop.f32.mrf.mxu0
        %4540 = vmatprep.mubr.f32.mxu0 0.0
        %4541 = vmatmul.mubr.f32.gmra.mxu0 %v4302
        %v4542 = vpop.f32.mrf.mxu0
        %v4543 = vadd.f32 0.0, %v4542
        %v4544 = vpop.f32.mrf.mxu0
        %4545 = vmatprep.mubr.f32.mxu0 0.0
        %4546 = vmatmul.mubr.f32.gmra.mxu0 %v4305
        %v4547 = vpop.f32.mrf.mxu0
        %v4548 = vadd.f32 0.0, %v4547
        %v4549 = vpop.f32.mrf.mxu0
        %4550 = vmatprep.mubr.f32.mxu0 0.0
        %4551 = vmatmul.mubr.f32.gmra.mxu0 %v4307
        %v4552 = vpop.f32.mrf.mxu0
        %v4553 = vadd.f32 0.0, %v4552
        %v4554 = vpop.f32.mrf.mxu0
        %4555 = vmatprep.mubr.f32.mxu0 0.0
        %4556 = vmatmul.mubr.f32.gmra.mxu0 %v4310
        %v4557 = vpop.f32.mrf.mxu0
        %v4558 = vadd.f32 0.0, %v4557
        %v4559 = vpop.f32.mrf.mxu0
        %4560 = vmatprep.mubr.f32.mxu0 0.0
        %4561 = vmatmul.mubr.f32.gmra.mxu0 %v4312
        %v4562 = vpop.f32.mrf.mxu0
        %v4563 = vadd.f32 0.0, %v4562
        %v4564 = vpop.f32.mrf.mxu0
        %4565 = vmatprep.mubr.f32.mxu0 0.0
        %4566 = vmatmul.mubr.f32.gmra.mxu0 %v4315
        %v4567 = vpop.f32.mrf.mxu0
        %v4568 = vadd.f32 0.0, %v4567
        %v4569 = vpop.f32.mrf.mxu0
        %4570 = vmatprep.mubr.f32.mxu0 0.0
        %4571 = vmatmul.mubr.f32.gmra.mxu0 %v4317
        %v4572 = vpop.f32.mrf.mxu0
        %v4573 = vadd.f32 0.0, %v4572
        %v4574 = vpop.f32.mrf.mxu0
        %4575 = vmatprep.mubr.f32.mxu0 0.0
        %4576 = vmatmul.mubr.f32.gmra.mxu0 %v4320
        %v4577 = vpop.f32.mrf.mxu0
        %v4578 = vadd.f32 0.0, %v4577
        %v4579 = vpop.f32.mrf.mxu0
        %4580 = vmatprep.mubr.f32.mxu0 0.0
        %4581 = vmatmul.mubr.f32.gmra.mxu0 %v4322
        %v4582 = vpop.f32.mrf.mxu0
        %v4583 = vadd.f32 0.0, %v4582
        %v4584 = vpop.f32.mrf.mxu0
        %4585 = vmatprep.mubr.f32.mxu0 0.0
        %4586 = vmatmul.mubr.f32.gmra.mxu0 %v4325
        %v4587 = vpop.f32.mrf.mxu0
        %v4588 = vadd.f32 0.0, %v4587
        %v4589 = vpop.f32.mrf.mxu0
        %4590 = vmatprep.mubr.f32.mxu0 0.0
        %4591 = vmatmul.mubr.f32.gmra.mxu0 %v4327
        %v4592 = vpop.f32.mrf.mxu0
        %v4593 = vadd.f32 0.0, %v4592
        %v4594 = vpop.f32.mrf.mxu0
        %4595 = vmatprep.mubr.f32.mxu0 0.0
        %4596 = vmatmul.mubr.f32.gmra.mxu0 %v4330
        %v4597 = vpop.f32.mrf.mxu0
        %v4598 = vadd.f32 0.0, %v4597
        %v4599 = vpop.f32.mrf.mxu0
        %4600 = vmatprep.mubr.f32.mxu0 0.0
        %4601 = vmatmul.mubr.f32.gmra.mxu0 %v4332
        %v4602 = vpop.f32.mrf.mxu0
        %v4603 = vadd.f32 0.0, %v4602
        %v4604 = vpop.f32.mrf.mxu0
        %4605 = vdwg.mxu0
        %v4606 = vadd.f32 %v4095, %v4448
        %v4607 = vadd.f32 %v4100, %v4453
        %v4608 = vadd.f32 %v4105, %v4458
        %v4609 = vadd.f32 %v4110, %v4463
        %v4610 = vadd.f32 %v4115, %v4468
        %v4611 = vadd.f32 %v4120, %v4473
        %v4612 = vadd.f32 %v4125, %v4478
        %v4613 = vadd.f32 %v4130, %v4483
        %v4614 = vadd.f32 %v4135, %v4488
        %v4615 = vadd.f32 %v4140, %v4493
        %v4616 = vadd.f32 %v4145, %v4498
        %v4617 = vadd.f32 %v4150, %v4503
        %v4618 = vadd.f32 %v4155, %v4508
        %v4619 = vadd.f32 %v4160, %v4513
        %v4620 = vadd.f32 %v4165, %v4518
        %v4621 = vadd.f32 %v4170, %v4523
        %v4622 = vadd.f32 %v4175, %v4528
        %v4623 = vadd.f32 %v4180, %v4533
        %v4624 = vadd.f32 %v4185, %v4538
        %v4625 = vadd.f32 %v4190, %v4543
        %v4626 = vadd.f32 %v4195, %v4548
        %v4627 = vadd.f32 %v4200, %v4553
        %v4628 = vadd.f32 %v4205, %v4558
        %v4629 = vadd.f32 %v4210, %v4563
        %v4630 = vadd.f32 %v4215, %v4568
        %v4631 = vadd.f32 %v4220, %v4573
        %v4632 = vadd.f32 %v4225, %v4578
        %v4633 = vadd.f32 %v4230, %v4583
        %v4634 = vadd.f32 %v4235, %v4588
        %v4635 = vadd.f32 %v4240, %v4593
        %v4636 = vadd.f32 %v4245, %v4598
        %v4637 = vadd.f32 %v4250, %v4603
        %v4638 = vld [vmem:[#allocation4 + $0x180] sm:$0xff]
        %v4639 = vld [vmem:[#allocation4 + $0x188] sm:$0xff]
        %v4640 = vld [vmem:[#allocation4 + $0x190] sm:$0xff]
        %v4641 = vld [vmem:[#allocation4 + $0x198] sm:$0xff]
        %v4642 = vld [vmem:[#allocation4 + $0x1a0] sm:$0xff]
        %v4643 = vld [vmem:[#allocation4 + $0x1a8] sm:$0xff]
        %v4644 = vld [vmem:[#allocation4 + $0x1b0] sm:$0xff]
        %v4645 = vld [vmem:[#allocation4 + $0x1b8] sm:$0xff]
        %v4646 = vld [vmem:[#allocation4 + $0x1c0] sm:$0xff]
        %v4647 = vld [vmem:[#allocation4 + $0x1c8] sm:$0xff]
        %v4648 = vld [vmem:[#allocation4 + $0x1d0] sm:$0xff]
        %v4649 = vld [vmem:[#allocation4 + $0x1d8] sm:$0xff]
        %v4650 = vld [vmem:[#allocation4 + $0x1e0] sm:$0xff]
        %v4651 = vld [vmem:[#allocation4 + $0x1e8] sm:$0xff]
        %v4652 = vld [vmem:[#allocation4 + $0x1f0] sm:$0xff]
        %v4653 = vld [vmem:[#allocation4 + $0x1f8] sm:$0xff]
        %4654 = vmatprep.subr.mxu0 0.0
        %4655 = vmatpush1.msra.mxu0 %v4653
        %4656 = vmatprep.subr.mxu0 0.0
        %4657 = vmatpush1.msra.mxu0 %v4652
        %4658 = vmatprep.subr.mxu0 0.0
        %4659 = vmatpush1.msra.mxu0 %v4651
        %4660 = vmatprep.subr.mxu0 0.0
        %4661 = vmatpush1.msra.mxu0 %v4650
        %4662 = vmatprep.subr.mxu0 0.0
        %4663 = vmatpush1.msra.mxu0 %v4649
        %4664 = vmatprep.subr.mxu0 0.0
        %4665 = vmatpush1.msra.mxu0 %v4648
        %4666 = vmatprep.subr.mxu0 0.0
        %4667 = vmatpush1.msra.mxu0 %v4647
        %4668 = vmatprep.subr.mxu0 0.0
        %4669 = vmatpush1.msra.mxu0 %v4646
        %4670 = vmatprep.subr.mxu0 0.0
        %4671 = vmatpush1.msra.mxu0 %v4645
        %4672 = vmatprep.subr.mxu0 0.0
        %4673 = vmatpush1.msra.mxu0 %v4644
        %4674 = vmatprep.subr.mxu0 0.0
        %4675 = vmatpush1.msra.mxu0 %v4643
        %4676 = vmatprep.subr.mxu0 0.0
        %4677 = vmatpush1.msra.mxu0 %v4642
        %4678 = vmatprep.subr.mxu0 0.0
        %4679 = vmatpush1.msra.mxu0 %v4641
        %4680 = vmatprep.subr.mxu0 0.0
        %4681 = vmatpush1.msra.mxu0 %v4640
        %4682 = vmatprep.subr.mxu0 0.0
        %4683 = vmatpush1.msra.mxu0 %v4639
        %4684 = vmatprep.subr.mxu0 0.0
        %4685 = vmatpush1.msra.mxu0 %v4638
        %4686 = vmatprep.subr.mxu0 0.0
        %4687 = vmatpush2.msra.mxu0 0.0
        %4688 = vmatprep.subr.mxu0 0.0
        %4689 = vmatpush2.msra.mxu0 0.0
        %4690 = vmatprep.subr.mxu0 0.0
        %4691 = vmatpush2.msra.mxu0 0.0
        %4692 = vmatprep.subr.mxu0 0.0
        %4693 = vmatpush2.msra.mxu0 0.0
        %4694 = vmatprep.subr.mxu0 0.0
        %4695 = vmatpush2.msra.mxu0 0.0
        %4696 = vmatprep.subr.mxu0 0.0
        %4697 = vmatpush2.msra.mxu0 0.0
        %4698 = vmatprep.subr.mxu0 0.0
        %4699 = vmatpush2.msra.mxu0 0.0
        %4700 = vmatprep.subr.mxu0 0.0
        %4701 = vmatpush2.msra.mxu0 0.0
        %4702 = vmatprep.subr.mxu0 0.0
        %4703 = vmatpush2.msra.mxu0 0.0
        %4704 = vmatprep.subr.mxu0 0.0
        %4705 = vmatpush2.msra.mxu0 0.0
        %4706 = vmatprep.subr.mxu0 0.0
        %4707 = vmatpush2.msra.mxu0 0.0
        %4708 = vmatprep.subr.mxu0 0.0
        %4709 = vmatpush2.msra.mxu0 0.0
        %4710 = vmatprep.subr.mxu0 0.0
        %4711 = vmatpush2.msra.mxu0 0.0
        %4712 = vmatprep.subr.mxu0 0.0
        %4713 = vmatpush2.msra.mxu0 0.0
        %4714 = vmatprep.subr.mxu0 0.0
        %4715 = vmatpush2.msra.mxu0 0.0
        %4716 = vmatprep.subr.mxu0 0.0
        %4717 = vmatpush2.msra.mxu0 0.0
        %4718 = vmatprep.mubr.f32.mxu0 0.0
        %4719 = vmatmul.mubr.f32.gmra.mxu0 %v3560
        %v4720 = vpop.f32.mrf.mxu0
        %v4721 = vadd.f32 0.0, %v4720
        %v4722 = vpop.f32.mrf.mxu0
        %4723 = vmatprep.mubr.f32.mxu0 0.0
        %4724 = vmatmul.mubr.f32.gmra.mxu0 %v3561
        %v4725 = vpop.f32.mrf.mxu0
        %v4726 = vadd.f32 0.0, %v4725
        %v4727 = vpop.f32.mrf.mxu0
        %4728 = vmatprep.mubr.f32.mxu0 0.0
        %4729 = vmatmul.mubr.f32.gmra.mxu0 %v3563
        %v4730 = vpop.f32.mrf.mxu0
        %v4731 = vadd.f32 0.0, %v4730
        %v4732 = vpop.f32.mrf.mxu0
        %4733 = vmatprep.mubr.f32.mxu0 0.0
        %4734 = vmatmul.mubr.f32.gmra.mxu0 %v3564
        %v4735 = vpop.f32.mrf.mxu0
        %v4736 = vadd.f32 0.0, %v4735
        %v4737 = vpop.f32.mrf.mxu0
        %4738 = vmatprep.mubr.f32.mxu0 0.0
        %4739 = vmatmul.mubr.f32.gmra.mxu0 %v3566
        %v4740 = vpop.f32.mrf.mxu0
        %v4741 = vadd.f32 0.0, %v4740
        %v4742 = vpop.f32.mrf.mxu0
        %4743 = vmatprep.mubr.f32.mxu0 0.0
        %4744 = vmatmul.mubr.f32.gmra.mxu0 %v3567
        %v4745 = vpop.f32.mrf.mxu0
        %v4746 = vadd.f32 0.0, %v4745
        %v4747 = vpop.f32.mrf.mxu0
        %4748 = vmatprep.mubr.f32.mxu0 0.0
        %4749 = vmatmul.mubr.f32.gmra.mxu0 %v3569
        %v4750 = vpop.f32.mrf.mxu0
        %v4751 = vadd.f32 0.0, %v4750
        %v4752 = vpop.f32.mrf.mxu0
        %4753 = vmatprep.mubr.f32.mxu0 0.0
        %4754 = vmatmul.mubr.f32.gmra.mxu0 %v3570
        %v4755 = vpop.f32.mrf.mxu0
        %v4756 = vadd.f32 0.0, %v4755
        %v4757 = vpop.f32.mrf.mxu0
        %4758 = vmatprep.mubr.f32.mxu0 0.0
        %4759 = vmatmul.mubr.f32.gmra.mxu0 %v3572
        %v4760 = vpop.f32.mrf.mxu0
        %v4761 = vadd.f32 0.0, %v4760
        %v4762 = vpop.f32.mrf.mxu0
        %4763 = vmatprep.mubr.f32.mxu0 0.0
        %4764 = vmatmul.mubr.f32.gmra.mxu0 %v3573
        %v4765 = vpop.f32.mrf.mxu0
        %v4766 = vadd.f32 0.0, %v4765
        %v4767 = vpop.f32.mrf.mxu0
        %4768 = vmatprep.mubr.f32.mxu0 0.0
        %4769 = vmatmul.mubr.f32.gmra.mxu0 %v3575
        %v4770 = vpop.f32.mrf.mxu0
        %v4771 = vadd.f32 0.0, %v4770
        %v4772 = vpop.f32.mrf.mxu0
        %4773 = vmatprep.mubr.f32.mxu0 0.0
        %4774 = vmatmul.mubr.f32.gmra.mxu0 %v3576
        %v4775 = vpop.f32.mrf.mxu0
        %v4776 = vadd.f32 0.0, %v4775
        %v4777 = vpop.f32.mrf.mxu0
        %4778 = vmatprep.mubr.f32.mxu0 0.0
        %4779 = vmatmul.mubr.f32.gmra.mxu0 %v3578
        %v4780 = vpop.f32.mrf.mxu0
        %v4781 = vadd.f32 0.0, %v4780
        %v4782 = vpop.f32.mrf.mxu0
        %4783 = vmatprep.mubr.f32.mxu0 0.0
        %4784 = vmatmul.mubr.f32.gmra.mxu0 %v3579
        %v4785 = vpop.f32.mrf.mxu0
        %v4786 = vadd.f32 0.0, %v4785
        %v4787 = vpop.f32.mrf.mxu0
        %4788 = vmatprep.mubr.f32.mxu0 0.0
        %4789 = vmatmul.mubr.f32.gmra.mxu0 %v3581
        %v4790 = vpop.f32.mrf.mxu0
        %v4791 = vadd.f32 0.0, %v4790
        %v4792 = vpop.f32.mrf.mxu0
        %4793 = vmatprep.mubr.f32.mxu0 0.0
        %4794 = vmatmul.mubr.f32.gmra.mxu0 %v3582
        %v4795 = vpop.f32.mrf.mxu0
        %v4796 = vadd.f32 0.0, %v4795
        %v4797 = vpop.f32.mrf.mxu0
        %4798 = vmatprep.mubr.f32.mxu0 0.0
        %4799 = vmatmul.mubr.f32.gmra.mxu0 %v3584
        %v4800 = vpop.f32.mrf.mxu0
        %v4801 = vadd.f32 0.0, %v4800
        %v4802 = vpop.f32.mrf.mxu0
        %4803 = vmatprep.mubr.f32.mxu0 0.0
        %4804 = vmatmul.mubr.f32.gmra.mxu0 %v3585
        %v4805 = vpop.f32.mrf.mxu0
        %v4806 = vadd.f32 0.0, %v4805
        %v4807 = vpop.f32.mrf.mxu0
        %4808 = vmatprep.mubr.f32.mxu0 0.0
        %4809 = vmatmul.mubr.f32.gmra.mxu0 %v3587
        %v4810 = vpop.f32.mrf.mxu0
        %v4811 = vadd.f32 0.0, %v4810
        %v4812 = vpop.f32.mrf.mxu0
        %4813 = vmatprep.mubr.f32.mxu0 0.0
        %4814 = vmatmul.mubr.f32.gmra.mxu0 %v3588
        %v4815 = vpop.f32.mrf.mxu0
        %v4816 = vadd.f32 0.0, %v4815
        %v4817 = vpop.f32.mrf.mxu0
        %4818 = vmatprep.mubr.f32.mxu0 0.0
        %4819 = vmatmul.mubr.f32.gmra.mxu0 %v3590
        %v4820 = vpop.f32.mrf.mxu0
        %v4821 = vadd.f32 0.0, %v4820
        %v4822 = vpop.f32.mrf.mxu0
        %4823 = vmatprep.mubr.f32.mxu0 0.0
        %4824 = vmatmul.mubr.f32.gmra.mxu0 %v3591
        %v4825 = vpop.f32.mrf.mxu0
        %v4826 = vadd.f32 0.0, %v4825
        %v4827 = vpop.f32.mrf.mxu0
        %4828 = vmatprep.mubr.f32.mxu0 0.0
        %4829 = vmatmul.mubr.f32.gmra.mxu0 %v3593
        %v4830 = vpop.f32.mrf.mxu0
        %v4831 = vadd.f32 0.0, %v4830
        %v4832 = vpop.f32.mrf.mxu0
        %4833 = vmatprep.mubr.f32.mxu0 0.0
        %4834 = vmatmul.mubr.f32.gmra.mxu0 %v3594
        %v4835 = vpop.f32.mrf.mxu0
        %v4836 = vadd.f32 0.0, %v4835
        %v4837 = vpop.f32.mrf.mxu0
        %4838 = vmatprep.mubr.f32.mxu0 0.0
        %4839 = vmatmul.mubr.f32.gmra.mxu0 %v3596
        %v4840 = vpop.f32.mrf.mxu0
        %v4841 = vadd.f32 0.0, %v4840
        %v4842 = vpop.f32.mrf.mxu0
        %4843 = vmatprep.mubr.f32.mxu0 0.0
        %4844 = vmatmul.mubr.f32.gmra.mxu0 %v3597
        %v4845 = vpop.f32.mrf.mxu0
        %v4846 = vadd.f32 0.0, %v4845
        %v4847 = vpop.f32.mrf.mxu0
        %4848 = vmatprep.mubr.f32.mxu0 0.0
        %4849 = vmatmul.mubr.f32.gmra.mxu0 %v3599
        %v4850 = vpop.f32.mrf.mxu0
        %v4851 = vadd.f32 0.0, %v4850
        %v4852 = vpop.f32.mrf.mxu0
        %4853 = vmatprep.mubr.f32.mxu0 0.0
        %4854 = vmatmul.mubr.f32.gmra.mxu0 %v3600
        %v4855 = vpop.f32.mrf.mxu0
        %v4856 = vadd.f32 0.0, %v4855
        %v4857 = vpop.f32.mrf.mxu0
        %4858 = vmatprep.mubr.f32.mxu0 0.0
        %4859 = vmatmul.mubr.f32.gmra.mxu0 %v3602
        %v4860 = vpop.f32.mrf.mxu0
        %v4861 = vadd.f32 0.0, %v4860
        %v4862 = vpop.f32.mrf.mxu0
        %4863 = vmatprep.mubr.f32.mxu0 0.0
        %4864 = vmatmul.mubr.f32.gmra.mxu0 %v3603
        %v4865 = vpop.f32.mrf.mxu0
        %v4866 = vadd.f32 0.0, %v4865
        %v4867 = vpop.f32.mrf.mxu0
        %4868 = vmatprep.mubr.f32.mxu0 0.0
        %4869 = vmatmul.mubr.f32.gmra.mxu0 %v3605
        %v4870 = vpop.f32.mrf.mxu0
        %v4871 = vadd.f32 0.0, %v4870
        %v4872 = vpop.f32.mrf.mxu0
        %4873 = vmatprep.mubr.f32.mxu0 0.0
        %4874 = vmatmul.mubr.f32.gmra.mxu0 %v3606
        %v4875 = vpop.f32.mrf.mxu0
        %v4876 = vadd.f32 0.0, %v4875
        %v4877 = vpop.f32.mrf.mxu0
        %4878 = vdwg.mxu0
        %v4879 = vadd.f32 %v4606, %v4721
        %v4880 = vadd.f32 %v4607, %v4726
        %v4881 = vadd.f32 %v4608, %v4731
        %v4882 = vadd.f32 %v4609, %v4736
        %v4883 = vadd.f32 %v4610, %v4741
        %v4884 = vadd.f32 %v4611, %v4746
        %v4885 = vadd.f32 %v4612, %v4751
        %v4886 = vadd.f32 %v4613, %v4756
        %v4887 = vadd.f32 %v4614, %v4761
        %v4888 = vadd.f32 %v4615, %v4766
        %v4889 = vadd.f32 %v4616, %v4771
        %v4890 = vadd.f32 %v4617, %v4776
        %v4891 = vadd.f32 %v4618, %v4781
        %v4892 = vadd.f32 %v4619, %v4786
        %v4893 = vadd.f32 %v4620, %v4791
        %v4894 = vadd.f32 %v4621, %v4796
        %v4895 = vadd.f32 %v4622, %v4801
        %v4896 = vadd.f32 %v4623, %v4806
        %v4897 = vadd.f32 %v4624, %v4811
        %v4898 = vadd.f32 %v4625, %v4816
        %v4899 = vadd.f32 %v4626, %v4821
        %v4900 = vadd.f32 %v4627, %v4826
        %v4901 = vadd.f32 %v4628, %v4831
        %v4902 = vadd.f32 %v4629, %v4836
        %v4903 = vadd.f32 %v4630, %v4841
        %v4904 = vadd.f32 %v4631, %v4846
        %v4905 = vadd.f32 %v4632, %v4851
        %v4906 = vadd.f32 %v4633, %v4856
        %v4907 = vadd.f32 %v4634, %v4861
        %v4908 = vadd.f32 %v4635, %v4866
        %v4909 = vadd.f32 %v4636, %v4871
        %v4910 = vadd.f32 %v4637, %v4876
        %v4914 = vrot.slane %v3605, 1
        %v4915 = vrot.slane %v3606, 1
        %v4916 = vsel %vm531, %v4914, %v4915
        %v4917 = vrot.slane %v3607, 1
        %v4918 = vsel %vm531, %v4915, %v4917
        %v4921 = vld [vmem:[#allocation4 + $0x200] sm:$0xff]
        %v4922 = vld [vmem:[#allocation4 + $0x208] sm:$0xff]
        %v4923 = vld [vmem:[#allocation4 + $0x210] sm:$0xff]
        %v4924 = vld [vmem:[#allocation4 + $0x218] sm:$0xff]
        %v4925 = vld [vmem:[#allocation4 + $0x220] sm:$0xff]
        %v4926 = vld [vmem:[#allocation4 + $0x228] sm:$0xff]
        %v4927 = vld [vmem:[#allocation4 + $0x230] sm:$0xff]
        %v4928 = vld [vmem:[#allocation4 + $0x238] sm:$0xff]
        %v4929 = vld [vmem:[#allocation4 + $0x240] sm:$0xff]
        %v4930 = vld [vmem:[#allocation4 + $0x248] sm:$0xff]
        %v4931 = vld [vmem:[#allocation4 + $0x250] sm:$0xff]
        %v4932 = vld [vmem:[#allocation4 + $0x258] sm:$0xff]
        %v4933 = vld [vmem:[#allocation4 + $0x260] sm:$0xff]
        %v4934 = vld [vmem:[#allocation4 + $0x268] sm:$0xff]
        %v4935 = vld [vmem:[#allocation4 + $0x270] sm:$0xff]
        %v4936 = vld [vmem:[#allocation4 + $0x278] sm:$0xff]
        %4937 = vmatprep.subr.mxu0 0.0
        %4938 = vmatpush1.msra.mxu0 %v4936
        %4939 = vmatprep.subr.mxu0 0.0
        %4940 = vmatpush1.msra.mxu0 %v4935
        %4941 = vmatprep.subr.mxu0 0.0
        %4942 = vmatpush1.msra.mxu0 %v4934
        %4943 = vmatprep.subr.mxu0 0.0
        %4944 = vmatpush1.msra.mxu0 %v4933
        %4945 = vmatprep.subr.mxu0 0.0
        %4946 = vmatpush1.msra.mxu0 %v4932
        %4947 = vmatprep.subr.mxu0 0.0
        %4948 = vmatpush1.msra.mxu0 %v4931
        %4949 = vmatprep.subr.mxu0 0.0
        %4950 = vmatpush1.msra.mxu0 %v4930
        %4951 = vmatprep.subr.mxu0 0.0
        %4952 = vmatpush1.msra.mxu0 %v4929
        %4953 = vmatprep.subr.mxu0 0.0
        %4954 = vmatpush1.msra.mxu0 %v4928
        %4955 = vmatprep.subr.mxu0 0.0
        %4956 = vmatpush1.msra.mxu0 %v4927
        %4957 = vmatprep.subr.mxu0 0.0
        %4958 = vmatpush1.msra.mxu0 %v4926
        %4959 = vmatprep.subr.mxu0 0.0
        %4960 = vmatpush1.msra.mxu0 %v4925
        %4961 = vmatprep.subr.mxu0 0.0
        %4962 = vmatpush1.msra.mxu0 %v4924
        %4963 = vmatprep.subr.mxu0 0.0
        %4964 = vmatpush1.msra.mxu0 %v4923
        %4965 = vmatprep.subr.mxu0 0.0
        %4966 = vmatpush1.msra.mxu0 %v4922
        %4967 = vmatprep.subr.mxu0 0.0
        %4968 = vmatpush1.msra.mxu0 %v4921
        %4969 = vmatprep.subr.mxu0 0.0
        %4970 = vmatpush2.msra.mxu0 0.0
        %4971 = vmatprep.subr.mxu0 0.0
        %4972 = vmatpush2.msra.mxu0 0.0
        %4973 = vmatprep.subr.mxu0 0.0
        %4974 = vmatpush2.msra.mxu0 0.0
        %4975 = vmatprep.subr.mxu0 0.0
        %4976 = vmatpush2.msra.mxu0 0.0
        %4977 = vmatprep.subr.mxu0 0.0
        %4978 = vmatpush2.msra.mxu0 0.0
        %4979 = vmatprep.subr.mxu0 0.0
        %4980 = vmatpush2.msra.mxu0 0.0
        %4981 = vmatprep.subr.mxu0 0.0
        %4982 = vmatpush2.msra.mxu0 0.0
        %4983 = vmatprep.subr.mxu0 0.0
        %4984 = vmatpush2.msra.mxu0 0.0
        %4985 = vmatprep.subr.mxu0 0.0
        %4986 = vmatpush2.msra.mxu0 0.0
        %4987 = vmatprep.subr.mxu0 0.0
        %4988 = vmatpush2.msra.mxu0 0.0
        %4989 = vmatprep.subr.mxu0 0.0
        %4990 = vmatpush2.msra.mxu0 0.0
        %4991 = vmatprep.subr.mxu0 0.0
        %4992 = vmatpush2.msra.mxu0 0.0
        %4993 = vmatprep.subr.mxu0 0.0
        %4994 = vmatpush2.msra.mxu0 0.0
        %4995 = vmatprep.subr.mxu0 0.0
        %4996 = vmatpush2.msra.mxu0 0.0
        %4997 = vmatprep.subr.mxu0 0.0
        %4998 = vmatpush2.msra.mxu0 0.0
        %4999 = vmatprep.subr.mxu0 0.0
        %5000 = vmatpush2.msra.mxu0 0.0
        %5001 = vmatprep.mubr.f32.mxu0 0.0
        %5002 = vmatmul.mubr.f32.gmra.mxu0 %v3682
        %v5003 = vpop.f32.mrf.mxu0
        %v5004 = vadd.f32 0.0, %v5003
        %v5005 = vpop.f32.mrf.mxu0
        %5006 = vmatprep.mubr.f32.mxu0 0.0
        %5007 = vmatmul.mubr.f32.gmra.mxu0 %v3684
        %v5008 = vpop.f32.mrf.mxu0
        %v5009 = vadd.f32 0.0, %v5008
        %v5010 = vpop.f32.mrf.mxu0
        %5011 = vmatprep.mubr.f32.mxu0 0.0
        %5012 = vmatmul.mubr.f32.gmra.mxu0 %v3687
        %v5013 = vpop.f32.mrf.mxu0
        %v5014 = vadd.f32 0.0, %v5013
        %v5015 = vpop.f32.mrf.mxu0
        %5016 = vmatprep.mubr.f32.mxu0 0.0
        %5017 = vmatmul.mubr.f32.gmra.mxu0 %v3689
        %v5018 = vpop.f32.mrf.mxu0
        %v5019 = vadd.f32 0.0, %v5018
        %v5020 = vpop.f32.mrf.mxu0
        %5021 = vmatprep.mubr.f32.mxu0 0.0
        %5022 = vmatmul.mubr.f32.gmra.mxu0 %v3692
        %v5023 = vpop.f32.mrf.mxu0
        %v5024 = vadd.f32 0.0, %v5023
        %v5025 = vpop.f32.mrf.mxu0
        %5026 = vmatprep.mubr.f32.mxu0 0.0
        %5027 = vmatmul.mubr.f32.gmra.mxu0 %v3694
        %v5028 = vpop.f32.mrf.mxu0
        %v5029 = vadd.f32 0.0, %v5028
        %v5030 = vpop.f32.mrf.mxu0
        %5031 = vmatprep.mubr.f32.mxu0 0.0
        %5032 = vmatmul.mubr.f32.gmra.mxu0 %v3697
        %v5033 = vpop.f32.mrf.mxu0
        %v5034 = vadd.f32 0.0, %v5033
        %v5035 = vpop.f32.mrf.mxu0
        %5036 = vmatprep.mubr.f32.mxu0 0.0
        %5037 = vmatmul.mubr.f32.gmra.mxu0 %v3699
        %v5038 = vpop.f32.mrf.mxu0
        %v5039 = vadd.f32 0.0, %v5038
        %v5040 = vpop.f32.mrf.mxu0
        %5041 = vmatprep.mubr.f32.mxu0 0.0
        %5042 = vmatmul.mubr.f32.gmra.mxu0 %v3702
        %v5043 = vpop.f32.mrf.mxu0
        %v5044 = vadd.f32 0.0, %v5043
        %v5045 = vpop.f32.mrf.mxu0
        %5046 = vmatprep.mubr.f32.mxu0 0.0
        %5047 = vmatmul.mubr.f32.gmra.mxu0 %v3704
        %v5048 = vpop.f32.mrf.mxu0
        %v5049 = vadd.f32 0.0, %v5048
        %v5050 = vpop.f32.mrf.mxu0
        %5051 = vmatprep.mubr.f32.mxu0 0.0
        %5052 = vmatmul.mubr.f32.gmra.mxu0 %v3707
        %v5053 = vpop.f32.mrf.mxu0
        %v5054 = vadd.f32 0.0, %v5053
        %v5055 = vpop.f32.mrf.mxu0
        %5056 = vmatprep.mubr.f32.mxu0 0.0
        %5057 = vmatmul.mubr.f32.gmra.mxu0 %v3709
        %v5058 = vpop.f32.mrf.mxu0
        %v5059 = vadd.f32 0.0, %v5058
        %v5060 = vpop.f32.mrf.mxu0
        %5061 = vmatprep.mubr.f32.mxu0 0.0
        %5062 = vmatmul.mubr.f32.gmra.mxu0 %v3712
        %v5063 = vpop.f32.mrf.mxu0
        %v5064 = vadd.f32 0.0, %v5063
        %v5065 = vpop.f32.mrf.mxu0
        %5066 = vmatprep.mubr.f32.mxu0 0.0
        %5067 = vmatmul.mubr.f32.gmra.mxu0 %v3714
        %v5068 = vpop.f32.mrf.mxu0
        %v5069 = vadd.f32 0.0, %v5068
        %v5070 = vpop.f32.mrf.mxu0
        %5071 = vmatprep.mubr.f32.mxu0 0.0
        %5072 = vmatmul.mubr.f32.gmra.mxu0 %v3717
        %v5073 = vpop.f32.mrf.mxu0
        %v5074 = vadd.f32 0.0, %v5073
        %v5075 = vpop.f32.mrf.mxu0
        %5076 = vmatprep.mubr.f32.mxu0 0.0
        %5077 = vmatmul.mubr.f32.gmra.mxu0 %v3719
        %v5078 = vpop.f32.mrf.mxu0
        %v5079 = vadd.f32 0.0, %v5078
        %v5080 = vpop.f32.mrf.mxu0
        %5081 = vmatprep.mubr.f32.mxu0 0.0
        %5082 = vmatmul.mubr.f32.gmra.mxu0 %v3722
        %v5083 = vpop.f32.mrf.mxu0
        %v5084 = vadd.f32 0.0, %v5083
        %v5085 = vpop.f32.mrf.mxu0
        %5086 = vmatprep.mubr.f32.mxu0 0.0
        %5087 = vmatmul.mubr.f32.gmra.mxu0 %v3724
        %v5088 = vpop.f32.mrf.mxu0
        %v5089 = vadd.f32 0.0, %v5088
        %v5090 = vpop.f32.mrf.mxu0
        %5091 = vmatprep.mubr.f32.mxu0 0.0
        %5092 = vmatmul.mubr.f32.gmra.mxu0 %v3727
        %v5093 = vpop.f32.mrf.mxu0
        %v5094 = vadd.f32 0.0, %v5093
        %v5095 = vpop.f32.mrf.mxu0
        %5096 = vmatprep.mubr.f32.mxu0 0.0
        %5097 = vmatmul.mubr.f32.gmra.mxu0 %v3729
        %v5098 = vpop.f32.mrf.mxu0
        %v5099 = vadd.f32 0.0, %v5098
        %v5100 = vpop.f32.mrf.mxu0
        %5101 = vmatprep.mubr.f32.mxu0 0.0
        %5102 = vmatmul.mubr.f32.gmra.mxu0 %v3732
        %v5103 = vpop.f32.mrf.mxu0
        %v5104 = vadd.f32 0.0, %v5103
        %v5105 = vpop.f32.mrf.mxu0
        %5106 = vmatprep.mubr.f32.mxu0 0.0
        %5107 = vmatmul.mubr.f32.gmra.mxu0 %v3734
        %v5108 = vpop.f32.mrf.mxu0
        %v5109 = vadd.f32 0.0, %v5108
        %v5110 = vpop.f32.mrf.mxu0
        %5111 = vmatprep.mubr.f32.mxu0 0.0
        %5112 = vmatmul.mubr.f32.gmra.mxu0 %v3737
        %v5113 = vpop.f32.mrf.mxu0
        %v5114 = vadd.f32 0.0, %v5113
        %v5115 = vpop.f32.mrf.mxu0
        %5116 = vmatprep.mubr.f32.mxu0 0.0
        %5117 = vmatmul.mubr.f32.gmra.mxu0 %v3739
        %v5118 = vpop.f32.mrf.mxu0
        %v5119 = vadd.f32 0.0, %v5118
        %v5120 = vpop.f32.mrf.mxu0
        %5121 = vmatprep.mubr.f32.mxu0 0.0
        %5122 = vmatmul.mubr.f32.gmra.mxu0 %v3742
        %v5123 = vpop.f32.mrf.mxu0
        %v5124 = vadd.f32 0.0, %v5123
        %v5125 = vpop.f32.mrf.mxu0
        %5126 = vmatprep.mubr.f32.mxu0 0.0
        %5127 = vmatmul.mubr.f32.gmra.mxu0 %v3744
        %v5128 = vpop.f32.mrf.mxu0
        %v5129 = vadd.f32 0.0, %v5128
        %v5130 = vpop.f32.mrf.mxu0
        %5131 = vmatprep.mubr.f32.mxu0 0.0
        %5132 = vmatmul.mubr.f32.gmra.mxu0 %v3747
        %v5133 = vpop.f32.mrf.mxu0
        %v5134 = vadd.f32 0.0, %v5133
        %v5135 = vpop.f32.mrf.mxu0
        %5136 = vmatprep.mubr.f32.mxu0 0.0
        %5137 = vmatmul.mubr.f32.gmra.mxu0 %v3749
        %v5138 = vpop.f32.mrf.mxu0
        %v5139 = vadd.f32 0.0, %v5138
        %v5140 = vpop.f32.mrf.mxu0
        %5141 = vmatprep.mubr.f32.mxu0 0.0
        %5142 = vmatmul.mubr.f32.gmra.mxu0 %v3752
        %v5143 = vpop.f32.mrf.mxu0
        %v5144 = vadd.f32 0.0, %v5143
        %v5145 = vpop.f32.mrf.mxu0
        %5146 = vmatprep.mubr.f32.mxu0 0.0
        %5147 = vmatmul.mubr.f32.gmra.mxu0 %v3754
        %v5148 = vpop.f32.mrf.mxu0
        %v5149 = vadd.f32 0.0, %v5148
        %v5150 = vpop.f32.mrf.mxu0
        %5151 = vmatprep.mubr.f32.mxu0 0.0
        %5152 = vmatmul.mubr.f32.gmra.mxu0 %v4916
        %v5153 = vpop.f32.mrf.mxu0
        %v5154 = vadd.f32 0.0, %v5153
        %v5155 = vpop.f32.mrf.mxu0
        %5156 = vmatprep.mubr.f32.mxu0 0.0
        %5157 = vmatmul.mubr.f32.gmra.mxu0 %v4918
        %v5158 = vpop.f32.mrf.mxu0
        %v5159 = vadd.f32 0.0, %v5158
        %v5160 = vpop.f32.mrf.mxu0
        %5161 = vdwg.mxu0
        %v5162 = vadd.f32 %v4879, %v5004
        %v5163 = vadd.f32 %v4880, %v5009
        %v5164 = vadd.f32 %v4881, %v5014
        %v5165 = vadd.f32 %v4882, %v5019
        %v5166 = vadd.f32 %v4883, %v5024
        %v5167 = vadd.f32 %v4884, %v5029
        %v5168 = vadd.f32 %v4885, %v5034
        %v5169 = vadd.f32 %v4886, %v5039
        %v5170 = vadd.f32 %v4887, %v5044
        %v5171 = vadd.f32 %v4888, %v5049
        %v5172 = vadd.f32 %v4889, %v5054
        %v5173 = vadd.f32 %v4890, %v5059
        %v5174 = vadd.f32 %v4891, %v5064
        %v5175 = vadd.f32 %v4892, %v5069
        %v5176 = vadd.f32 %v4893, %v5074
        %v5177 = vadd.f32 %v4894, %v5079
        %v5178 = vadd.f32 %v4895, %v5084
        %v5179 = vadd.f32 %v4896, %v5089
        %v5180 = vadd.f32 %v4897, %v5094
        %v5181 = vadd.f32 %v4898, %v5099
        %v5182 = vadd.f32 %v4899, %v5104
        %v5183 = vadd.f32 %v4900, %v5109
        %v5184 = vadd.f32 %v4901, %v5114
        %v5185 = vadd.f32 %v4902, %v5119
        %v5186 = vadd.f32 %v4903, %v5124
        %v5187 = vadd.f32 %v4904, %v5129
        %v5188 = vadd.f32 %v4905, %v5134
        %v5189 = vadd.f32 %v4906, %v5139
        %v5190 = vadd.f32 %v4907, %v5144
        %v5191 = vadd.f32 %v4908, %v5149
        %v5192 = vadd.f32 %v4909, %v5154
        %v5193 = vadd.f32 %v4910, %v5159
        %v5194 = vrot.slane %v3605, 2
        %v5195 = vrot.slane %v3606, 2
        %v5196 = vsel %vm1110, %v5194, %v5195
        %v5197 = vrot.slane %v3607, 2
        %v5198 = vsel %vm1110, %v5195, %v5197
        %v5201 = vld [vmem:[#allocation4 + $0x280] sm:$0xff]
        %v5202 = vld [vmem:[#allocation4 + $0x288] sm:$0xff]
        %v5203 = vld [vmem:[#allocation4 + $0x290] sm:$0xff]
        %v5204 = vld [vmem:[#allocation4 + $0x298] sm:$0xff]
        %v5205 = vld [vmem:[#allocation4 + $0x2a0] sm:$0xff]
        %v5206 = vld [vmem:[#allocation4 + $0x2a8] sm:$0xff]
        %v5207 = vld [vmem:[#allocation4 + $0x2b0] sm:$0xff]
        %v5208 = vld [vmem:[#allocation4 + $0x2b8] sm:$0xff]
        %v5209 = vld [vmem:[#allocation4 + $0x2c0] sm:$0xff]
        %v5210 = vld [vmem:[#allocation4 + $0x2c8] sm:$0xff]
        %v5211 = vld [vmem:[#allocation4 + $0x2d0] sm:$0xff]
        %v5212 = vld [vmem:[#allocation4 + $0x2d8] sm:$0xff]
        %v5213 = vld [vmem:[#allocation4 + $0x2e0] sm:$0xff]
        %v5214 = vld [vmem:[#allocation4 + $0x2e8] sm:$0xff]
        %v5215 = vld [vmem:[#allocation4 + $0x2f0] sm:$0xff]
        %v5216 = vld [vmem:[#allocation4 + $0x2f8] sm:$0xff]
        %5217 = vmatprep.subr.mxu0 0.0
        %5218 = vmatpush1.msra.mxu0 %v5216
        %5219 = vmatprep.subr.mxu0 0.0
        %5220 = vmatpush1.msra.mxu0 %v5215
        %5221 = vmatprep.subr.mxu0 0.0
        %5222 = vmatpush1.msra.mxu0 %v5214
        %5223 = vmatprep.subr.mxu0 0.0
        %5224 = vmatpush1.msra.mxu0 %v5213
        %5225 = vmatprep.subr.mxu0 0.0
        %5226 = vmatpush1.msra.mxu0 %v5212
        %5227 = vmatprep.subr.mxu0 0.0
        %5228 = vmatpush1.msra.mxu0 %v5211
        %5229 = vmatprep.subr.mxu0 0.0
        %5230 = vmatpush1.msra.mxu0 %v5210
        %5231 = vmatprep.subr.mxu0 0.0
        %5232 = vmatpush1.msra.mxu0 %v5209
        %5233 = vmatprep.subr.mxu0 0.0
        %5234 = vmatpush1.msra.mxu0 %v5208
        %5235 = vmatprep.subr.mxu0 0.0
        %5236 = vmatpush1.msra.mxu0 %v5207
        %5237 = vmatprep.subr.mxu0 0.0
        %5238 = vmatpush1.msra.mxu0 %v5206
        %5239 = vmatprep.subr.mxu0 0.0
        %5240 = vmatpush1.msra.mxu0 %v5205
        %5241 = vmatprep.subr.mxu0 0.0
        %5242 = vmatpush1.msra.mxu0 %v5204
        %5243 = vmatprep.subr.mxu0 0.0
        %5244 = vmatpush1.msra.mxu0 %v5203
        %5245 = vmatprep.subr.mxu0 0.0
        %5246 = vmatpush1.msra.mxu0 %v5202
        %5247 = vmatprep.subr.mxu0 0.0
        %5248 = vmatpush1.msra.mxu0 %v5201
        %5249 = vmatprep.subr.mxu0 0.0
        %5250 = vmatpush2.msra.mxu0 0.0
        %5251 = vmatprep.subr.mxu0 0.0
        %5252 = vmatpush2.msra.mxu0 0.0
        %5253 = vmatprep.subr.mxu0 0.0
        %5254 = vmatpush2.msra.mxu0 0.0
        %5255 = vmatprep.subr.mxu0 0.0
        %5256 = vmatpush2.msra.mxu0 0.0
        %5257 = vmatprep.subr.mxu0 0.0
        %5258 = vmatpush2.msra.mxu0 0.0
        %5259 = vmatprep.subr.mxu0 0.0
        %5260 = vmatpush2.msra.mxu0 0.0
        %5261 = vmatprep.subr.mxu0 0.0
        %5262 = vmatpush2.msra.mxu0 0.0
        %5263 = vmatprep.subr.mxu0 0.0
        %5264 = vmatpush2.msra.mxu0 0.0
        %5265 = vmatprep.subr.mxu0 0.0
        %5266 = vmatpush2.msra.mxu0 0.0
        %5267 = vmatprep.subr.mxu0 0.0
        %5268 = vmatpush2.msra.mxu0 0.0
        %5269 = vmatprep.subr.mxu0 0.0
        %5270 = vmatpush2.msra.mxu0 0.0
        %5271 = vmatprep.subr.mxu0 0.0
        %5272 = vmatpush2.msra.mxu0 0.0
        %5273 = vmatprep.subr.mxu0 0.0
        %5274 = vmatpush2.msra.mxu0 0.0
        %5275 = vmatprep.subr.mxu0 0.0
        %5276 = vmatpush2.msra.mxu0 0.0
        %5277 = vmatprep.subr.mxu0 0.0
        %5278 = vmatpush2.msra.mxu0 0.0
        %5279 = vmatprep.subr.mxu0 0.0
        %5280 = vmatpush2.msra.mxu0 0.0
        %5281 = vmatprep.mubr.f32.mxu0 0.0
        %5282 = vmatmul.mubr.f32.gmra.mxu0 %v4260
        %v5283 = vpop.f32.mrf.mxu0
        %v5284 = vadd.f32 0.0, %v5283
        %v5285 = vpop.f32.mrf.mxu0
        %5286 = vmatprep.mubr.f32.mxu0 0.0
        %5287 = vmatmul.mubr.f32.gmra.mxu0 %v4262
        %v5288 = vpop.f32.mrf.mxu0
        %v5289 = vadd.f32 0.0, %v5288
        %v5290 = vpop.f32.mrf.mxu0
        %5291 = vmatprep.mubr.f32.mxu0 0.0
        %5292 = vmatmul.mubr.f32.gmra.mxu0 %v4265
        %v5293 = vpop.f32.mrf.mxu0
        %v5294 = vadd.f32 0.0, %v5293
        %v5295 = vpop.f32.mrf.mxu0
        %5296 = vmatprep.mubr.f32.mxu0 0.0
        %5297 = vmatmul.mubr.f32.gmra.mxu0 %v4267
        %v5298 = vpop.f32.mrf.mxu0
        %v5299 = vadd.f32 0.0, %v5298
        %v5300 = vpop.f32.mrf.mxu0
        %5301 = vmatprep.mubr.f32.mxu0 0.0
        %5302 = vmatmul.mubr.f32.gmra.mxu0 %v4270
        %v5303 = vpop.f32.mrf.mxu0
        %v5304 = vadd.f32 0.0, %v5303
        %v5305 = vpop.f32.mrf.mxu0
        %5306 = vmatprep.mubr.f32.mxu0 0.0
        %5307 = vmatmul.mubr.f32.gmra.mxu0 %v4272
        %v5308 = vpop.f32.mrf.mxu0
        %v5309 = vadd.f32 0.0, %v5308
        %v5310 = vpop.f32.mrf.mxu0
        %5311 = vmatprep.mubr.f32.mxu0 0.0
        %5312 = vmatmul.mubr.f32.gmra.mxu0 %v4275
        %v5313 = vpop.f32.mrf.mxu0
        %v5314 = vadd.f32 0.0, %v5313
        %v5315 = vpop.f32.mrf.mxu0
        %5316 = vmatprep.mubr.f32.mxu0 0.0
        %5317 = vmatmul.mubr.f32.gmra.mxu0 %v4277
        %v5318 = vpop.f32.mrf.mxu0
        %v5319 = vadd.f32 0.0, %v5318
        %v5320 = vpop.f32.mrf.mxu0
        %5321 = vmatprep.mubr.f32.mxu0 0.0
        %5322 = vmatmul.mubr.f32.gmra.mxu0 %v4280
        %v5323 = vpop.f32.mrf.mxu0
        %v5324 = vadd.f32 0.0, %v5323
        %v5325 = vpop.f32.mrf.mxu0
        %5326 = vmatprep.mubr.f32.mxu0 0.0
        %5327 = vmatmul.mubr.f32.gmra.mxu0 %v4282
        %v5328 = vpop.f32.mrf.mxu0
        %v5329 = vadd.f32 0.0, %v5328
        %v5330 = vpop.f32.mrf.mxu0
        %5331 = vmatprep.mubr.f32.mxu0 0.0
        %5332 = vmatmul.mubr.f32.gmra.mxu0 %v4285
        %v5333 = vpop.f32.mrf.mxu0
        %v5334 = vadd.f32 0.0, %v5333
        %v5335 = vpop.f32.mrf.mxu0
        %5336 = vmatprep.mubr.f32.mxu0 0.0
        %5337 = vmatmul.mubr.f32.gmra.mxu0 %v4287
        %v5338 = vpop.f32.mrf.mxu0
        %v5339 = vadd.f32 0.0, %v5338
        %v5340 = vpop.f32.mrf.mxu0
        %5341 = vmatprep.mubr.f32.mxu0 0.0
        %5342 = vmatmul.mubr.f32.gmra.mxu0 %v4290
        %v5343 = vpop.f32.mrf.mxu0
        %v5344 = vadd.f32 0.0, %v5343
        %v5345 = vpop.f32.mrf.mxu0
        %5346 = vmatprep.mubr.f32.mxu0 0.0
        %5347 = vmatmul.mubr.f32.gmra.mxu0 %v4292
        %v5348 = vpop.f32.mrf.mxu0
        %v5349 = vadd.f32 0.0, %v5348
        %v5350 = vpop.f32.mrf.mxu0
        %5351 = vmatprep.mubr.f32.mxu0 0.0
        %5352 = vmatmul.mubr.f32.gmra.mxu0 %v4295
        %v5353 = vpop.f32.mrf.mxu0
        %v5354 = vadd.f32 0.0, %v5353
        %v5355 = vpop.f32.mrf.mxu0
        %5356 = vmatprep.mubr.f32.mxu0 0.0
        %5357 = vmatmul.mubr.f32.gmra.mxu0 %v4297
        %v5358 = vpop.f32.mrf.mxu0
        %v5359 = vadd.f32 0.0, %v5358
        %v5360 = vpop.f32.mrf.mxu0
        %5361 = vmatprep.mubr.f32.mxu0 0.0
        %5362 = vmatmul.mubr.f32.gmra.mxu0 %v4300
        %v5363 = vpop.f32.mrf.mxu0
        %v5364 = vadd.f32 0.0, %v5363
        %v5365 = vpop.f32.mrf.mxu0
        %5366 = vmatprep.mubr.f32.mxu0 0.0
        %5367 = vmatmul.mubr.f32.gmra.mxu0 %v4302
        %v5368 = vpop.f32.mrf.mxu0
        %v5369 = vadd.f32 0.0, %v5368
        %v5370 = vpop.f32.mrf.mxu0
        %5371 = vmatprep.mubr.f32.mxu0 0.0
        %5372 = vmatmul.mubr.f32.gmra.mxu0 %v4305
        %v5373 = vpop.f32.mrf.mxu0
        %v5374 = vadd.f32 0.0, %v5373
        %v5375 = vpop.f32.mrf.mxu0
        %5376 = vmatprep.mubr.f32.mxu0 0.0
        %5377 = vmatmul.mubr.f32.gmra.mxu0 %v4307
        %v5378 = vpop.f32.mrf.mxu0
        %v5379 = vadd.f32 0.0, %v5378
        %v5380 = vpop.f32.mrf.mxu0
        %5381 = vmatprep.mubr.f32.mxu0 0.0
        %5382 = vmatmul.mubr.f32.gmra.mxu0 %v4310
        %v5383 = vpop.f32.mrf.mxu0
        %v5384 = vadd.f32 0.0, %v5383
        %v5385 = vpop.f32.mrf.mxu0
        %5386 = vmatprep.mubr.f32.mxu0 0.0
        %5387 = vmatmul.mubr.f32.gmra.mxu0 %v4312
        %v5388 = vpop.f32.mrf.mxu0
        %v5389 = vadd.f32 0.0, %v5388
        %v5390 = vpop.f32.mrf.mxu0
        %5391 = vmatprep.mubr.f32.mxu0 0.0
        %5392 = vmatmul.mubr.f32.gmra.mxu0 %v4315
        %v5393 = vpop.f32.mrf.mxu0
        %v5394 = vadd.f32 0.0, %v5393
        %v5395 = vpop.f32.mrf.mxu0
        %5396 = vmatprep.mubr.f32.mxu0 0.0
        %5397 = vmatmul.mubr.f32.gmra.mxu0 %v4317
        %v5398 = vpop.f32.mrf.mxu0
        %v5399 = vadd.f32 0.0, %v5398
        %v5400 = vpop.f32.mrf.mxu0
        %5401 = vmatprep.mubr.f32.mxu0 0.0
        %5402 = vmatmul.mubr.f32.gmra.mxu0 %v4320
        %v5403 = vpop.f32.mrf.mxu0
        %v5404 = vadd.f32 0.0, %v5403
        %v5405 = vpop.f32.mrf.mxu0
        %5406 = vmatprep.mubr.f32.mxu0 0.0
        %5407 = vmatmul.mubr.f32.gmra.mxu0 %v4322
        %v5408 = vpop.f32.mrf.mxu0
        %v5409 = vadd.f32 0.0, %v5408
        %v5410 = vpop.f32.mrf.mxu0
        %5411 = vmatprep.mubr.f32.mxu0 0.0
        %5412 = vmatmul.mubr.f32.gmra.mxu0 %v4325
        %v5413 = vpop.f32.mrf.mxu0
        %v5414 = vadd.f32 0.0, %v5413
        %v5415 = vpop.f32.mrf.mxu0
        %5416 = vmatprep.mubr.f32.mxu0 0.0
        %5417 = vmatmul.mubr.f32.gmra.mxu0 %v4327
        %v5418 = vpop.f32.mrf.mxu0
        %v5419 = vadd.f32 0.0, %v5418
        %v5420 = vpop.f32.mrf.mxu0
        %5421 = vmatprep.mubr.f32.mxu0 0.0
        %5422 = vmatmul.mubr.f32.gmra.mxu0 %v4330
        %v5423 = vpop.f32.mrf.mxu0
        %v5424 = vadd.f32 0.0, %v5423
        %v5425 = vpop.f32.mrf.mxu0
        %5426 = vmatprep.mubr.f32.mxu0 0.0
        %5427 = vmatmul.mubr.f32.gmra.mxu0 %v4332
        %v5428 = vpop.f32.mrf.mxu0
        %v5429 = vadd.f32 0.0, %v5428
        %v5430 = vpop.f32.mrf.mxu0
        %5431 = vmatprep.mubr.f32.mxu0 0.0
        %5432 = vmatmul.mubr.f32.gmra.mxu0 %v5196
        %v5433 = vpop.f32.mrf.mxu0
        %v5434 = vadd.f32 0.0, %v5433
        %v5435 = vpop.f32.mrf.mxu0
        %5436 = vmatprep.mubr.f32.mxu0 0.0
        %5437 = vmatmul.mubr.f32.gmra.mxu0 %v5198
        %v5438 = vpop.f32.mrf.mxu0
        %v5439 = vadd.f32 0.0, %v5438
        %v5440 = vpop.f32.mrf.mxu0
        %5441 = vdwg.mxu0
        %v5442 = vadd.f32 %v5162, %v5284
        %v5443 = vadd.f32 %v5163, %v5289
        %v5444 = vadd.f32 %v5164, %v5294
        %v5445 = vadd.f32 %v5165, %v5299
        %v5446 = vadd.f32 %v5166, %v5304
        %v5447 = vadd.f32 %v5167, %v5309
        %v5448 = vadd.f32 %v5168, %v5314
        %v5449 = vadd.f32 %v5169, %v5319
        %v5450 = vadd.f32 %v5170, %v5324
        %v5451 = vadd.f32 %v5171, %v5329
        %v5452 = vadd.f32 %v5172, %v5334
        %v5453 = vadd.f32 %v5173, %v5339
        %v5454 = vadd.f32 %v5174, %v5344
        %v5455 = vadd.f32 %v5175, %v5349
        %v5456 = vadd.f32 %v5176, %v5354
        %v5457 = vadd.f32 %v5177, %v5359
        %v5458 = vadd.f32 %v5178, %v5364
        %v5459 = vadd.f32 %v5179, %v5369
        %v5460 = vadd.f32 %v5180, %v5374
        %v5461 = vadd.f32 %v5181, %v5379
        %v5462 = vadd.f32 %v5182, %v5384
        %v5463 = vadd.f32 %v5183, %v5389
        %v5464 = vadd.f32 %v5184, %v5394
        %v5465 = vadd.f32 %v5185, %v5399
        %v5466 = vadd.f32 %v5186, %v5404
        %v5467 = vadd.f32 %v5187, %v5409
        %v5468 = vadd.f32 %v5188, %v5414
        %v5469 = vadd.f32 %v5189, %v5419
        %v5470 = vadd.f32 %v5190, %v5424
        %v5471 = vadd.f32 %v5191, %v5429
        %v5472 = vadd.f32 %v5192, %v5434
        %v5473 = vadd.f32 %v5193, %v5439
        %v5474 = vld [vmem:[#allocation4 + $0x300] sm:$0xff]
        %v5475 = vld [vmem:[#allocation4 + $0x308] sm:$0xff]
        %v5476 = vld [vmem:[#allocation4 + $0x310] sm:$0xff]
        %v5477 = vld [vmem:[#allocation4 + $0x318] sm:$0xff]
        %v5478 = vld [vmem:[#allocation4 + $0x320] sm:$0xff]
        %v5479 = vld [vmem:[#allocation4 + $0x328] sm:$0xff]
        %v5480 = vld [vmem:[#allocation4 + $0x330] sm:$0xff]
        %v5481 = vld [vmem:[#allocation4 + $0x338] sm:$0xff]
        %v5482 = vld [vmem:[#allocation4 + $0x340] sm:$0xff]
        %v5483 = vld [vmem:[#allocation4 + $0x348] sm:$0xff]
        %v5484 = vld [vmem:[#allocation4 + $0x350] sm:$0xff]
        %v5485 = vld [vmem:[#allocation4 + $0x358] sm:$0xff]
        %v5486 = vld [vmem:[#allocation4 + $0x360] sm:$0xff]
        %v5487 = vld [vmem:[#allocation4 + $0x368] sm:$0xff]
        %v5488 = vld [vmem:[#allocation4 + $0x370] sm:$0xff]
        %v5489 = vld [vmem:[#allocation4 + $0x378] sm:$0xff]
        %5490 = vmatprep.subr.mxu0 0.0
        %5491 = vmatpush1.msra.mxu0 %v5489
        %5492 = vmatprep.subr.mxu0 0.0
        %5493 = vmatpush1.msra.mxu0 %v5488
        %5494 = vmatprep.subr.mxu0 0.0
        %5495 = vmatpush1.msra.mxu0 %v5487
        %5496 = vmatprep.subr.mxu0 0.0
        %5497 = vmatpush1.msra.mxu0 %v5486
        %5498 = vmatprep.subr.mxu0 0.0
        %5499 = vmatpush1.msra.mxu0 %v5485
        %5500 = vmatprep.subr.mxu0 0.0
        %5501 = vmatpush1.msra.mxu0 %v5484
        %5502 = vmatprep.subr.mxu0 0.0
        %5503 = vmatpush1.msra.mxu0 %v5483
        %5504 = vmatprep.subr.mxu0 0.0
        %5505 = vmatpush1.msra.mxu0 %v5482
        %5506 = vmatprep.subr.mxu0 0.0
        %5507 = vmatpush1.msra.mxu0 %v5481
        %5508 = vmatprep.subr.mxu0 0.0
        %5509 = vmatpush1.msra.mxu0 %v5480
        %5510 = vmatprep.subr.mxu0 0.0
        %5511 = vmatpush1.msra.mxu0 %v5479
        %5512 = vmatprep.subr.mxu0 0.0
        %5513 = vmatpush1.msra.mxu0 %v5478
        %5514 = vmatprep.subr.mxu0 0.0
        %5515 = vmatpush1.msra.mxu0 %v5477
        %5516 = vmatprep.subr.mxu0 0.0
        %5517 = vmatpush1.msra.mxu0 %v5476
        %5518 = vmatprep.subr.mxu0 0.0
        %5519 = vmatpush1.msra.mxu0 %v5475
        %5520 = vmatprep.subr.mxu0 0.0
        %5521 = vmatpush1.msra.mxu0 %v5474
        %5522 = vmatprep.subr.mxu0 0.0
        %5523 = vmatpush2.msra.mxu0 0.0
        %5524 = vmatprep.subr.mxu0 0.0
        %5525 = vmatpush2.msra.mxu0 0.0
        %5526 = vmatprep.subr.mxu0 0.0
        %5527 = vmatpush2.msra.mxu0 0.0
        %5528 = vmatprep.subr.mxu0 0.0
        %5529 = vmatpush2.msra.mxu0 0.0
        %5530 = vmatprep.subr.mxu0 0.0
        %5531 = vmatpush2.msra.mxu0 0.0
        %5532 = vmatprep.subr.mxu0 0.0
        %5533 = vmatpush2.msra.mxu0 0.0
        %5534 = vmatprep.subr.mxu0 0.0
        %5535 = vmatpush2.msra.mxu0 0.0
        %5536 = vmatprep.subr.mxu0 0.0
        %5537 = vmatpush2.msra.mxu0 0.0
        %5538 = vmatprep.subr.mxu0 0.0
        %5539 = vmatpush2.msra.mxu0 0.0
        %5540 = vmatprep.subr.mxu0 0.0
        %5541 = vmatpush2.msra.mxu0 0.0
        %5542 = vmatprep.subr.mxu0 0.0
        %5543 = vmatpush2.msra.mxu0 0.0
        %5544 = vmatprep.subr.mxu0 0.0
        %5545 = vmatpush2.msra.mxu0 0.0
        %5546 = vmatprep.subr.mxu0 0.0
        %5547 = vmatpush2.msra.mxu0 0.0
        %5548 = vmatprep.subr.mxu0 0.0
        %5549 = vmatpush2.msra.mxu0 0.0
        %5550 = vmatprep.subr.mxu0 0.0
        %5551 = vmatpush2.msra.mxu0 0.0
        %5552 = vmatprep.subr.mxu0 0.0
        %5553 = vmatpush2.msra.mxu0 0.0
        %5554 = vmatprep.mubr.f32.mxu0 0.0
        %5555 = vmatmul.mubr.f32.gmra.mxu0 %v3563
        %v5556 = vpop.f32.mrf.mxu0
        %v5557 = vadd.f32 0.0, %v5556
        %v5558 = vpop.f32.mrf.mxu0
        %5559 = vmatprep.mubr.f32.mxu0 0.0
        %5560 = vmatmul.mubr.f32.gmra.mxu0 %v3564
        %v5561 = vpop.f32.mrf.mxu0
        %v5562 = vadd.f32 0.0, %v5561
        %v5563 = vpop.f32.mrf.mxu0
        %5564 = vmatprep.mubr.f32.mxu0 0.0
        %5565 = vmatmul.mubr.f32.gmra.mxu0 %v3566
        %v5566 = vpop.f32.mrf.mxu0
        %v5567 = vadd.f32 0.0, %v5566
        %v5568 = vpop.f32.mrf.mxu0
        %5569 = vmatprep.mubr.f32.mxu0 0.0
        %5570 = vmatmul.mubr.f32.gmra.mxu0 %v3567
        %v5571 = vpop.f32.mrf.mxu0
        %v5572 = vadd.f32 0.0, %v5571
        %v5573 = vpop.f32.mrf.mxu0
        %5574 = vmatprep.mubr.f32.mxu0 0.0
        %5575 = vmatmul.mubr.f32.gmra.mxu0 %v3569
        %v5576 = vpop.f32.mrf.mxu0
        %v5577 = vadd.f32 0.0, %v5576
        %v5578 = vpop.f32.mrf.mxu0
        %5579 = vmatprep.mubr.f32.mxu0 0.0
        %5580 = vmatmul.mubr.f32.gmra.mxu0 %v3570
        %v5581 = vpop.f32.mrf.mxu0
        %v5582 = vadd.f32 0.0, %v5581
        %v5583 = vpop.f32.mrf.mxu0
        %5584 = vmatprep.mubr.f32.mxu0 0.0
        %5585 = vmatmul.mubr.f32.gmra.mxu0 %v3572
        %v5586 = vpop.f32.mrf.mxu0
        %v5587 = vadd.f32 0.0, %v5586
        %v5588 = vpop.f32.mrf.mxu0
        %5589 = vmatprep.mubr.f32.mxu0 0.0
        %5590 = vmatmul.mubr.f32.gmra.mxu0 %v3573
        %v5591 = vpop.f32.mrf.mxu0
        %v5592 = vadd.f32 0.0, %v5591
        %v5593 = vpop.f32.mrf.mxu0
        %5594 = vmatprep.mubr.f32.mxu0 0.0
        %5595 = vmatmul.mubr.f32.gmra.mxu0 %v3575
        %v5596 = vpop.f32.mrf.mxu0
        %v5597 = vadd.f32 0.0, %v5596
        %v5598 = vpop.f32.mrf.mxu0
        %5599 = vmatprep.mubr.f32.mxu0 0.0
        %5600 = vmatmul.mubr.f32.gmra.mxu0 %v3576
        %v5601 = vpop.f32.mrf.mxu0
        %v5602 = vadd.f32 0.0, %v5601
        %v5603 = vpop.f32.mrf.mxu0
        %5604 = vmatprep.mubr.f32.mxu0 0.0
        %5605 = vmatmul.mubr.f32.gmra.mxu0 %v3578
        %v5606 = vpop.f32.mrf.mxu0
        %v5607 = vadd.f32 0.0, %v5606
        %v5608 = vpop.f32.mrf.mxu0
        %5609 = vmatprep.mubr.f32.mxu0 0.0
        %5610 = vmatmul.mubr.f32.gmra.mxu0 %v3579
        %v5611 = vpop.f32.mrf.mxu0
        %v5612 = vadd.f32 0.0, %v5611
        %v5613 = vpop.f32.mrf.mxu0
        %5614 = vmatprep.mubr.f32.mxu0 0.0
        %5615 = vmatmul.mubr.f32.gmra.mxu0 %v3581
        %v5616 = vpop.f32.mrf.mxu0
        %v5617 = vadd.f32 0.0, %v5616
        %v5618 = vpop.f32.mrf.mxu0
        %5619 = vmatprep.mubr.f32.mxu0 0.0
        %5620 = vmatmul.mubr.f32.gmra.mxu0 %v3582
        %v5621 = vpop.f32.mrf.mxu0
        %v5622 = vadd.f32 0.0, %v5621
        %v5623 = vpop.f32.mrf.mxu0
        %5624 = vmatprep.mubr.f32.mxu0 0.0
        %5625 = vmatmul.mubr.f32.gmra.mxu0 %v3584
        %v5626 = vpop.f32.mrf.mxu0
        %v5627 = vadd.f32 0.0, %v5626
        %v5628 = vpop.f32.mrf.mxu0
        %5629 = vmatprep.mubr.f32.mxu0 0.0
        %5630 = vmatmul.mubr.f32.gmra.mxu0 %v3585
        %v5631 = vpop.f32.mrf.mxu0
        %v5632 = vadd.f32 0.0, %v5631
        %v5633 = vpop.f32.mrf.mxu0
        %5634 = vmatprep.mubr.f32.mxu0 0.0
        %5635 = vmatmul.mubr.f32.gmra.mxu0 %v3587
        %v5636 = vpop.f32.mrf.mxu0
        %v5637 = vadd.f32 0.0, %v5636
        %v5638 = vpop.f32.mrf.mxu0
        %5639 = vmatprep.mubr.f32.mxu0 0.0
        %5640 = vmatmul.mubr.f32.gmra.mxu0 %v3588
        %v5641 = vpop.f32.mrf.mxu0
        %v5642 = vadd.f32 0.0, %v5641
        %v5643 = vpop.f32.mrf.mxu0
        %5644 = vmatprep.mubr.f32.mxu0 0.0
        %5645 = vmatmul.mubr.f32.gmra.mxu0 %v3590
        %v5646 = vpop.f32.mrf.mxu0
        %v5647 = vadd.f32 0.0, %v5646
        %v5648 = vpop.f32.mrf.mxu0
        %5649 = vmatprep.mubr.f32.mxu0 0.0
        %5650 = vmatmul.mubr.f32.gmra.mxu0 %v3591
        %v5651 = vpop.f32.mrf.mxu0
        %v5652 = vadd.f32 0.0, %v5651
        %v5653 = vpop.f32.mrf.mxu0
        %5654 = vmatprep.mubr.f32.mxu0 0.0
        %5655 = vmatmul.mubr.f32.gmra.mxu0 %v3593
        %v5656 = vpop.f32.mrf.mxu0
        %v5657 = vadd.f32 0.0, %v5656
        %v5658 = vpop.f32.mrf.mxu0
        %5659 = vmatprep.mubr.f32.mxu0 0.0
        %5660 = vmatmul.mubr.f32.gmra.mxu0 %v3594
        %v5661 = vpop.f32.mrf.mxu0
        %v5662 = vadd.f32 0.0, %v5661
        %v5663 = vpop.f32.mrf.mxu0
        %5664 = vmatprep.mubr.f32.mxu0 0.0
        %5665 = vmatmul.mubr.f32.gmra.mxu0 %v3596
        %v5666 = vpop.f32.mrf.mxu0
        %v5667 = vadd.f32 0.0, %v5666
        %v5668 = vpop.f32.mrf.mxu0
        %5669 = vmatprep.mubr.f32.mxu0 0.0
        %5670 = vmatmul.mubr.f32.gmra.mxu0 %v3597
        %v5671 = vpop.f32.mrf.mxu0
        %v5672 = vadd.f32 0.0, %v5671
        %v5673 = vpop.f32.mrf.mxu0
        %5674 = vmatprep.mubr.f32.mxu0 0.0
        %5675 = vmatmul.mubr.f32.gmra.mxu0 %v3599
        %v5676 = vpop.f32.mrf.mxu0
        %v5677 = vadd.f32 0.0, %v5676
        %v5678 = vpop.f32.mrf.mxu0
        %5679 = vmatprep.mubr.f32.mxu0 0.0
        %5680 = vmatmul.mubr.f32.gmra.mxu0 %v3600
        %v5681 = vpop.f32.mrf.mxu0
        %v5682 = vadd.f32 0.0, %v5681
        %v5683 = vpop.f32.mrf.mxu0
        %5684 = vmatprep.mubr.f32.mxu0 0.0
        %5685 = vmatmul.mubr.f32.gmra.mxu0 %v3602
        %v5686 = vpop.f32.mrf.mxu0
        %v5687 = vadd.f32 0.0, %v5686
        %v5688 = vpop.f32.mrf.mxu0
        %5689 = vmatprep.mubr.f32.mxu0 0.0
        %5690 = vmatmul.mubr.f32.gmra.mxu0 %v3603
        %v5691 = vpop.f32.mrf.mxu0
        %v5692 = vadd.f32 0.0, %v5691
        %v5693 = vpop.f32.mrf.mxu0
        %5694 = vmatprep.mubr.f32.mxu0 0.0
        %5695 = vmatmul.mubr.f32.gmra.mxu0 %v3605
        %v5696 = vpop.f32.mrf.mxu0
        %v5697 = vadd.f32 0.0, %v5696
        %v5698 = vpop.f32.mrf.mxu0
        %5699 = vmatprep.mubr.f32.mxu0 0.0
        %5700 = vmatmul.mubr.f32.gmra.mxu0 %v3606
        %v5701 = vpop.f32.mrf.mxu0
        %v5702 = vadd.f32 0.0, %v5701
        %v5703 = vpop.f32.mrf.mxu0
        %5704 = vmatprep.mubr.f32.mxu0 0.0
        %5705 = vmatmul.mubr.f32.gmra.mxu0 %v3608
        %v5706 = vpop.f32.mrf.mxu0
        %v5707 = vadd.f32 0.0, %v5706
        %v5708 = vpop.f32.mrf.mxu0
        %5709 = vmatprep.mubr.f32.mxu0 0.0
        %5710 = vmatmul.mubr.f32.gmra.mxu0 %v3609
        %v5711 = vpop.f32.mrf.mxu0
        %v5712 = vadd.f32 0.0, %v5711
        %v5713 = vpop.f32.mrf.mxu0
        %5714 = vdwg.mxu0
        %v5715 = vadd.f32 %v5442, %v5557
        %v5716 = vadd.f32 %v5443, %v5562
        %v5717 = vadd.f32 %v5444, %v5567
        %v5718 = vadd.f32 %v5445, %v5572
        %v5719 = vadd.f32 %v5446, %v5577
        %v5720 = vadd.f32 %v5447, %v5582
        %v5721 = vadd.f32 %v5448, %v5587
        %v5722 = vadd.f32 %v5449, %v5592
        %v5723 = vadd.f32 %v5450, %v5597
        %v5724 = vadd.f32 %v5451, %v5602
        %v5725 = vadd.f32 %v5452, %v5607
        %v5726 = vadd.f32 %v5453, %v5612
        %v5727 = vadd.f32 %v5454, %v5617
        %v5728 = vadd.f32 %v5455, %v5622
        %v5729 = vadd.f32 %v5456, %v5627
        %v5730 = vadd.f32 %v5457, %v5632
        %v5731 = vadd.f32 %v5458, %v5637
        %v5732 = vadd.f32 %v5459, %v5642
        %v5733 = vadd.f32 %v5460, %v5647
        %v5734 = vadd.f32 %v5461, %v5652
        %v5735 = vadd.f32 %v5462, %v5657
        %v5736 = vadd.f32 %v5463, %v5662
        %v5737 = vadd.f32 %v5464, %v5667
        %v5738 = vadd.f32 %v5465, %v5672
        %v5739 = vadd.f32 %v5466, %v5677
        %v5740 = vadd.f32 %v5467, %v5682
        %v5741 = vadd.f32 %v5468, %v5687
        %v5742 = vadd.f32 %v5469, %v5692
        %v5743 = vadd.f32 %v5470, %v5697
        %v5744 = vadd.f32 %v5471, %v5702
        %v5745 = vadd.f32 %v5472, %v5707
        %v5746 = vadd.f32 %v5473, %v5712
        %v5750 = vrot.slane %v3608, 1
        %v5751 = vrot.slane %v3609, 1
        %v5752 = vsel %vm531, %v5750, %v5751
        %v5753 = vrot.slane %v3610, 1
        %v5754 = vsel %vm531, %v5751, %v5753
        %v5757 = vld [vmem:[#allocation4 + $0x380] sm:$0xff]
        %v5758 = vld [vmem:[#allocation4 + $0x388] sm:$0xff]
        %v5759 = vld [vmem:[#allocation4 + $0x390] sm:$0xff]
        %v5760 = vld [vmem:[#allocation4 + $0x398] sm:$0xff]
        %v5761 = vld [vmem:[#allocation4 + $0x3a0] sm:$0xff]
        %v5762 = vld [vmem:[#allocation4 + $0x3a8] sm:$0xff]
        %v5763 = vld [vmem:[#allocation4 + $0x3b0] sm:$0xff]
        %v5764 = vld [vmem:[#allocation4 + $0x3b8] sm:$0xff]
        %v5765 = vld [vmem:[#allocation4 + $0x3c0] sm:$0xff]
        %v5766 = vld [vmem:[#allocation4 + $0x3c8] sm:$0xff]
        %v5767 = vld [vmem:[#allocation4 + $0x3d0] sm:$0xff]
        %v5768 = vld [vmem:[#allocation4 + $0x3d8] sm:$0xff]
        %v5769 = vld [vmem:[#allocation4 + $0x3e0] sm:$0xff]
        %v5770 = vld [vmem:[#allocation4 + $0x3e8] sm:$0xff]
        %v5771 = vld [vmem:[#allocation4 + $0x3f0] sm:$0xff]
        %v5772 = vld [vmem:[#allocation4 + $0x3f8] sm:$0xff]
        %5773 = vmatprep.subr.mxu0 0.0
        %5774 = vmatpush1.msra.mxu0 %v5772
        %5775 = vmatprep.subr.mxu0 0.0
        %5776 = vmatpush1.msra.mxu0 %v5771
        %5777 = vmatprep.subr.mxu0 0.0
        %5778 = vmatpush1.msra.mxu0 %v5770
        %5779 = vmatprep.subr.mxu0 0.0
        %5780 = vmatpush1.msra.mxu0 %v5769
        %5781 = vmatprep.subr.mxu0 0.0
        %5782 = vmatpush1.msra.mxu0 %v5768
        %5783 = vmatprep.subr.mxu0 0.0
        %5784 = vmatpush1.msra.mxu0 %v5767
        %5785 = vmatprep.subr.mxu0 0.0
        %5786 = vmatpush1.msra.mxu0 %v5766
        %5787 = vmatprep.subr.mxu0 0.0
        %5788 = vmatpush1.msra.mxu0 %v5765
        %5789 = vmatprep.subr.mxu0 0.0
        %5790 = vmatpush1.msra.mxu0 %v5764
        %5791 = vmatprep.subr.mxu0 0.0
        %5792 = vmatpush1.msra.mxu0 %v5763
        %5793 = vmatprep.subr.mxu0 0.0
        %5794 = vmatpush1.msra.mxu0 %v5762
        %5795 = vmatprep.subr.mxu0 0.0
        %5796 = vmatpush1.msra.mxu0 %v5761
        %5797 = vmatprep.subr.mxu0 0.0
        %5798 = vmatpush1.msra.mxu0 %v5760
        %5799 = vmatprep.subr.mxu0 0.0
        %5800 = vmatpush1.msra.mxu0 %v5759
        %5801 = vmatprep.subr.mxu0 0.0
        %5802 = vmatpush1.msra.mxu0 %v5758
        %5803 = vmatprep.subr.mxu0 0.0
        %5804 = vmatpush1.msra.mxu0 %v5757
        %5805 = vmatprep.subr.mxu0 0.0
        %5806 = vmatpush2.msra.mxu0 0.0
        %5807 = vmatprep.subr.mxu0 0.0
        %5808 = vmatpush2.msra.mxu0 0.0
        %5809 = vmatprep.subr.mxu0 0.0
        %5810 = vmatpush2.msra.mxu0 0.0
        %5811 = vmatprep.subr.mxu0 0.0
        %5812 = vmatpush2.msra.mxu0 0.0
        %5813 = vmatprep.subr.mxu0 0.0
        %5814 = vmatpush2.msra.mxu0 0.0
        %5815 = vmatprep.subr.mxu0 0.0
        %5816 = vmatpush2.msra.mxu0 0.0
        %5817 = vmatprep.subr.mxu0 0.0
        %5818 = vmatpush2.msra.mxu0 0.0
        %5819 = vmatprep.subr.mxu0 0.0
        %5820 = vmatpush2.msra.mxu0 0.0
        %5821 = vmatprep.subr.mxu0 0.0
        %5822 = vmatpush2.msra.mxu0 0.0
        %5823 = vmatprep.subr.mxu0 0.0
        %5824 = vmatpush2.msra.mxu0 0.0
        %5825 = vmatprep.subr.mxu0 0.0
        %5826 = vmatpush2.msra.mxu0 0.0
        %5827 = vmatprep.subr.mxu0 0.0
        %5828 = vmatpush2.msra.mxu0 0.0
        %5829 = vmatprep.subr.mxu0 0.0
        %5830 = vmatpush2.msra.mxu0 0.0
        %5831 = vmatprep.subr.mxu0 0.0
        %5832 = vmatpush2.msra.mxu0 0.0
        %5833 = vmatprep.subr.mxu0 0.0
        %5834 = vmatpush2.msra.mxu0 0.0
        %5835 = vmatprep.subr.mxu0 0.0
        %5836 = vmatpush2.msra.mxu0 0.0
        %5837 = vmatprep.mubr.f32.mxu0 0.0
        %5838 = vmatmul.mubr.f32.gmra.mxu0 %v3687
        %v5839 = vpop.f32.mrf.mxu0
        %v5840 = vadd.f32 0.0, %v5839
        %v5841 = vpop.f32.mrf.mxu0
        %5842 = vmatprep.mubr.f32.mxu0 0.0
        %5843 = vmatmul.mubr.f32.gmra.mxu0 %v3689
        %v5844 = vpop.f32.mrf.mxu0
        %v5845 = vadd.f32 0.0, %v5844
        %v5846 = vpop.f32.mrf.mxu0
        %5847 = vmatprep.mubr.f32.mxu0 0.0
        %5848 = vmatmul.mubr.f32.gmra.mxu0 %v3692
        %v5849 = vpop.f32.mrf.mxu0
        %v5850 = vadd.f32 0.0, %v5849
        %v5851 = vpop.f32.mrf.mxu0
        %5852 = vmatprep.mubr.f32.mxu0 0.0
        %5853 = vmatmul.mubr.f32.gmra.mxu0 %v3694
        %v5854 = vpop.f32.mrf.mxu0
        %v5855 = vadd.f32 0.0, %v5854
        %v5856 = vpop.f32.mrf.mxu0
        %5857 = vmatprep.mubr.f32.mxu0 0.0
        %5858 = vmatmul.mubr.f32.gmra.mxu0 %v3697
        %v5859 = vpop.f32.mrf.mxu0
        %v5860 = vadd.f32 0.0, %v5859
        %v5861 = vpop.f32.mrf.mxu0
        %5862 = vmatprep.mubr.f32.mxu0 0.0
        %5863 = vmatmul.mubr.f32.gmra.mxu0 %v3699
        %v5864 = vpop.f32.mrf.mxu0
        %v5865 = vadd.f32 0.0, %v5864
        %v5866 = vpop.f32.mrf.mxu0
        %5867 = vmatprep.mubr.f32.mxu0 0.0
        %5868 = vmatmul.mubr.f32.gmra.mxu0 %v3702
        %v5869 = vpop.f32.mrf.mxu0
        %v5870 = vadd.f32 0.0, %v5869
        %v5871 = vpop.f32.mrf.mxu0
        %5872 = vmatprep.mubr.f32.mxu0 0.0
        %5873 = vmatmul.mubr.f32.gmra.mxu0 %v3704
        %v5874 = vpop.f32.mrf.mxu0
        %v5875 = vadd.f32 0.0, %v5874
        %v5876 = vpop.f32.mrf.mxu0
        %5877 = vmatprep.mubr.f32.mxu0 0.0
        %5878 = vmatmul.mubr.f32.gmra.mxu0 %v3707
        %v5879 = vpop.f32.mrf.mxu0
        %v5880 = vadd.f32 0.0, %v5879
        %v5881 = vpop.f32.mrf.mxu0
        %5882 = vmatprep.mubr.f32.mxu0 0.0
        %5883 = vmatmul.mubr.f32.gmra.mxu0 %v3709
        %v5884 = vpop.f32.mrf.mxu0
        %v5885 = vadd.f32 0.0, %v5884
        %v5886 = vpop.f32.mrf.mxu0
        %5887 = vmatprep.mubr.f32.mxu0 0.0
        %5888 = vmatmul.mubr.f32.gmra.mxu0 %v3712
        %v5889 = vpop.f32.mrf.mxu0
        %v5890 = vadd.f32 0.0, %v5889
        %v5891 = vpop.f32.mrf.mxu0
        %5892 = vmatprep.mubr.f32.mxu0 0.0
        %5893 = vmatmul.mubr.f32.gmra.mxu0 %v3714
        %v5894 = vpop.f32.mrf.mxu0
        %v5895 = vadd.f32 0.0, %v5894
        %v5896 = vpop.f32.mrf.mxu0
        %5897 = vmatprep.mubr.f32.mxu0 0.0
        %5898 = vmatmul.mubr.f32.gmra.mxu0 %v3717
        %v5899 = vpop.f32.mrf.mxu0
        %v5900 = vadd.f32 0.0, %v5899
        %v5901 = vpop.f32.mrf.mxu0
        %5902 = vmatprep.mubr.f32.mxu0 0.0
        %5903 = vmatmul.mubr.f32.gmra.mxu0 %v3719
        %v5904 = vpop.f32.mrf.mxu0
        %v5905 = vadd.f32 0.0, %v5904
        %v5906 = vpop.f32.mrf.mxu0
        %5907 = vmatprep.mubr.f32.mxu0 0.0
        %5908 = vmatmul.mubr.f32.gmra.mxu0 %v3722
        %v5909 = vpop.f32.mrf.mxu0
        %v5910 = vadd.f32 0.0, %v5909
        %v5911 = vpop.f32.mrf.mxu0
        %5912 = vmatprep.mubr.f32.mxu0 0.0
        %5913 = vmatmul.mubr.f32.gmra.mxu0 %v3724
        %v5914 = vpop.f32.mrf.mxu0
        %v5915 = vadd.f32 0.0, %v5914
        %v5916 = vpop.f32.mrf.mxu0
        %5917 = vmatprep.mubr.f32.mxu0 0.0
        %5918 = vmatmul.mubr.f32.gmra.mxu0 %v3727
        %v5919 = vpop.f32.mrf.mxu0
        %v5920 = vadd.f32 0.0, %v5919
        %v5921 = vpop.f32.mrf.mxu0
        %5922 = vmatprep.mubr.f32.mxu0 0.0
        %5923 = vmatmul.mubr.f32.gmra.mxu0 %v3729
        %v5924 = vpop.f32.mrf.mxu0
        %v5925 = vadd.f32 0.0, %v5924
        %v5926 = vpop.f32.mrf.mxu0
        %5927 = vmatprep.mubr.f32.mxu0 0.0
        %5928 = vmatmul.mubr.f32.gmra.mxu0 %v3732
        %v5929 = vpop.f32.mrf.mxu0
        %v5930 = vadd.f32 0.0, %v5929
        %v5931 = vpop.f32.mrf.mxu0
        %5932 = vmatprep.mubr.f32.mxu0 0.0
        %5933 = vmatmul.mubr.f32.gmra.mxu0 %v3734
        %v5934 = vpop.f32.mrf.mxu0
        %v5935 = vadd.f32 0.0, %v5934
        %v5936 = vpop.f32.mrf.mxu0
        %5937 = vmatprep.mubr.f32.mxu0 0.0
        %5938 = vmatmul.mubr.f32.gmra.mxu0 %v3737
        %v5939 = vpop.f32.mrf.mxu0
        %v5940 = vadd.f32 0.0, %v5939
        %v5941 = vpop.f32.mrf.mxu0
        %5942 = vmatprep.mubr.f32.mxu0 0.0
        %5943 = vmatmul.mubr.f32.gmra.mxu0 %v3739
        %v5944 = vpop.f32.mrf.mxu0
        %v5945 = vadd.f32 0.0, %v5944
        %v5946 = vpop.f32.mrf.mxu0
        %5947 = vmatprep.mubr.f32.mxu0 0.0
        %5948 = vmatmul.mubr.f32.gmra.mxu0 %v3742
        %v5949 = vpop.f32.mrf.mxu0
        %v5950 = vadd.f32 0.0, %v5949
        %v5951 = vpop.f32.mrf.mxu0
        %5952 = vmatprep.mubr.f32.mxu0 0.0
        %5953 = vmatmul.mubr.f32.gmra.mxu0 %v3744
        %v5954 = vpop.f32.mrf.mxu0
        %v5955 = vadd.f32 0.0, %v5954
        %v5956 = vpop.f32.mrf.mxu0
        %5957 = vmatprep.mubr.f32.mxu0 0.0
        %5958 = vmatmul.mubr.f32.gmra.mxu0 %v3747
        %v5959 = vpop.f32.mrf.mxu0
        %v5960 = vadd.f32 0.0, %v5959
        %v5961 = vpop.f32.mrf.mxu0
        %5962 = vmatprep.mubr.f32.mxu0 0.0
        %5963 = vmatmul.mubr.f32.gmra.mxu0 %v3749
        %v5964 = vpop.f32.mrf.mxu0
        %v5965 = vadd.f32 0.0, %v5964
        %v5966 = vpop.f32.mrf.mxu0
        %5967 = vmatprep.mubr.f32.mxu0 0.0
        %5968 = vmatmul.mubr.f32.gmra.mxu0 %v3752
        %v5969 = vpop.f32.mrf.mxu0
        %v5970 = vadd.f32 0.0, %v5969
        %v5971 = vpop.f32.mrf.mxu0
        %5972 = vmatprep.mubr.f32.mxu0 0.0
        %5973 = vmatmul.mubr.f32.gmra.mxu0 %v3754
        %v5974 = vpop.f32.mrf.mxu0
        %v5975 = vadd.f32 0.0, %v5974
        %v5976 = vpop.f32.mrf.mxu0
        %5977 = vmatprep.mubr.f32.mxu0 0.0
        %5978 = vmatmul.mubr.f32.gmra.mxu0 %v4916
        %v5979 = vpop.f32.mrf.mxu0
        %v5980 = vadd.f32 0.0, %v5979
        %v5981 = vpop.f32.mrf.mxu0
        %5982 = vmatprep.mubr.f32.mxu0 0.0
        %5983 = vmatmul.mubr.f32.gmra.mxu0 %v4918
        %v5984 = vpop.f32.mrf.mxu0
        %v5985 = vadd.f32 0.0, %v5984
        %v5986 = vpop.f32.mrf.mxu0
        %5987 = vmatprep.mubr.f32.mxu0 0.0
        %5988 = vmatmul.mubr.f32.gmra.mxu0 %v5752
        %v5989 = vpop.f32.mrf.mxu0
        %v5990 = vadd.f32 0.0, %v5989
        %v5991 = vpop.f32.mrf.mxu0
        %5992 = vmatprep.mubr.f32.mxu0 0.0
        %5993 = vmatmul.mubr.f32.gmra.mxu0 %v5754
        %v5994 = vpop.f32.mrf.mxu0
        %v5995 = vadd.f32 0.0, %v5994
        %v5996 = vpop.f32.mrf.mxu0
        %5997 = vdwg.mxu0
        %v5998 = vadd.f32 %v5715, %v5840
        %v5999 = vadd.f32 %v5716, %v5845
        %v6000 = vadd.f32 %v5717, %v5850
        %v6001 = vadd.f32 %v5718, %v5855
        %v6002 = vadd.f32 %v5719, %v5860
        %v6003 = vadd.f32 %v5720, %v5865
        %v6004 = vadd.f32 %v5721, %v5870
        %v6005 = vadd.f32 %v5722, %v5875
        %v6006 = vadd.f32 %v5723, %v5880
        %v6007 = vadd.f32 %v5724, %v5885
        %v6008 = vadd.f32 %v5725, %v5890
        %v6009 = vadd.f32 %v5726, %v5895
        %v6010 = vadd.f32 %v5727, %v5900
        %v6011 = vadd.f32 %v5728, %v5905
        %v6012 = vadd.f32 %v5729, %v5910
        %v6013 = vadd.f32 %v5730, %v5915
        %v6014 = vadd.f32 %v5731, %v5920
        %v6015 = vadd.f32 %v5732, %v5925
        %v6016 = vadd.f32 %v5733, %v5930
        %v6017 = vadd.f32 %v5734, %v5935
        %v6018 = vadd.f32 %v5735, %v5940
        %v6019 = vadd.f32 %v5736, %v5945
        %v6020 = vadd.f32 %v5737, %v5950
        %v6021 = vadd.f32 %v5738, %v5955
        %v6022 = vadd.f32 %v5739, %v5960
        %v6023 = vadd.f32 %v5740, %v5965
        %v6024 = vadd.f32 %v5741, %v5970
        %v6025 = vadd.f32 %v5742, %v5975
        %v6026 = vadd.f32 %v5743, %v5980
        %v6027 = vadd.f32 %v5744, %v5985
        %v6028 = vadd.f32 %v5745, %v5990
        %v6029 = vadd.f32 %v5746, %v5995
        %v6030 = vrot.slane %v3608, 2
        %v6031 = vrot.slane %v3609, 2
        %v6032 = vsel %vm1110, %v6030, %v6031
        %v6033 = vrot.slane %v3610, 2
        %v6034 = vsel %vm1110, %v6031, %v6033
        %v6037 = vld [vmem:[#allocation4 + $0x400] sm:$0xff]
        %v6038 = vld [vmem:[#allocation4 + $0x408] sm:$0xff]
        %v6039 = vld [vmem:[#allocation4 + $0x410] sm:$0xff]
        %v6040 = vld [vmem:[#allocation4 + $0x418] sm:$0xff]
        %v6041 = vld [vmem:[#allocation4 + $0x420] sm:$0xff]
        %v6042 = vld [vmem:[#allocation4 + $0x428] sm:$0xff]
        %v6043 = vld [vmem:[#allocation4 + $0x430] sm:$0xff]
        %v6044 = vld [vmem:[#allocation4 + $0x438] sm:$0xff]
        %v6045 = vld [vmem:[#allocation4 + $0x440] sm:$0xff]
        %v6046 = vld [vmem:[#allocation4 + $0x448] sm:$0xff]
        %v6047 = vld [vmem:[#allocation4 + $0x450] sm:$0xff]
        %v6048 = vld [vmem:[#allocation4 + $0x458] sm:$0xff]
        %v6049 = vld [vmem:[#allocation4 + $0x460] sm:$0xff]
        %v6050 = vld [vmem:[#allocation4 + $0x468] sm:$0xff]
        %v6051 = vld [vmem:[#allocation4 + $0x470] sm:$0xff]
        %v6052 = vld [vmem:[#allocation4 + $0x478] sm:$0xff]
        %6053 = vmatprep.subr.mxu0 0.0
        %6054 = vmatpush1.msra.mxu0 %v6052
        %6055 = vmatprep.subr.mxu0 0.0
        %6056 = vmatpush1.msra.mxu0 %v6051
        %6057 = vmatprep.subr.mxu0 0.0
        %6058 = vmatpush1.msra.mxu0 %v6050
        %6059 = vmatprep.subr.mxu0 0.0
        %6060 = vmatpush1.msra.mxu0 %v6049
        %6061 = vmatprep.subr.mxu0 0.0
        %6062 = vmatpush1.msra.mxu0 %v6048
        %6063 = vmatprep.subr.mxu0 0.0
        %6064 = vmatpush1.msra.mxu0 %v6047
        %6065 = vmatprep.subr.mxu0 0.0
        %6066 = vmatpush1.msra.mxu0 %v6046
        %6067 = vmatprep.subr.mxu0 0.0
        %6068 = vmatpush1.msra.mxu0 %v6045
        %6069 = vmatprep.subr.mxu0 0.0
        %6070 = vmatpush1.msra.mxu0 %v6044
        %6071 = vmatprep.subr.mxu0 0.0
        %6072 = vmatpush1.msra.mxu0 %v6043
        %6073 = vmatprep.subr.mxu0 0.0
        %6074 = vmatpush1.msra.mxu0 %v6042
        %6075 = vmatprep.subr.mxu0 0.0
        %6076 = vmatpush1.msra.mxu0 %v6041
        %6077 = vmatprep.subr.mxu0 0.0
        %6078 = vmatpush1.msra.mxu0 %v6040
        %6079 = vmatprep.subr.mxu0 0.0
        %6080 = vmatpush1.msra.mxu0 %v6039
        %6081 = vmatprep.subr.mxu0 0.0
        %6082 = vmatpush1.msra.mxu0 %v6038
        %6083 = vmatprep.subr.mxu0 0.0
        %6084 = vmatpush1.msra.mxu0 %v6037
        %6085 = vmatprep.subr.mxu0 0.0
        %6086 = vmatpush2.msra.mxu0 0.0
        %6087 = vmatprep.subr.mxu0 0.0
        %6088 = vmatpush2.msra.mxu0 0.0
        %6089 = vmatprep.subr.mxu0 0.0
        %6090 = vmatpush2.msra.mxu0 0.0
        %6091 = vmatprep.subr.mxu0 0.0
        %6092 = vmatpush2.msra.mxu0 0.0
        %6093 = vmatprep.subr.mxu0 0.0
        %6094 = vmatpush2.msra.mxu0 0.0
        %6095 = vmatprep.subr.mxu0 0.0
        %6096 = vmatpush2.msra.mxu0 0.0
        %6097 = vmatprep.subr.mxu0 0.0
        %6098 = vmatpush2.msra.mxu0 0.0
        %6099 = vmatprep.subr.mxu0 0.0
        %6100 = vmatpush2.msra.mxu0 0.0
        %6101 = vmatprep.subr.mxu0 0.0
        %6102 = vmatpush2.msra.mxu0 0.0
        %6103 = vmatprep.subr.mxu0 0.0
        %6104 = vmatpush2.msra.mxu0 0.0
        %6105 = vmatprep.subr.mxu0 0.0
        %6106 = vmatpush2.msra.mxu0 0.0
        %6107 = vmatprep.subr.mxu0 0.0
        %6108 = vmatpush2.msra.mxu0 0.0
        %6109 = vmatprep.subr.mxu0 0.0
        %6110 = vmatpush2.msra.mxu0 0.0
        %6111 = vmatprep.subr.mxu0 0.0
        %6112 = vmatpush2.msra.mxu0 0.0
        %6113 = vmatprep.subr.mxu0 0.0
        %6114 = vmatpush2.msra.mxu0 0.0
        %6115 = vmatprep.subr.mxu0 0.0
        %6116 = vmatpush2.msra.mxu0 0.0
        %6117 = vmatprep.mubr.f32.mxu0 0.0
        %6118 = vmatmul.mubr.f32.gmra.mxu0 %v4265
        %v6119 = vpop.f32.mrf.mxu0
        %v6120 = vadd.f32 0.0, %v6119
        %v6121 = vpop.f32.mrf.mxu0
        %6122 = vmatprep.mubr.f32.mxu0 0.0
        %6123 = vmatmul.mubr.f32.gmra.mxu0 %v4267
        %v6124 = vpop.f32.mrf.mxu0
        %v6125 = vadd.f32 0.0, %v6124
        %v6126 = vpop.f32.mrf.mxu0
        %6127 = vmatprep.mubr.f32.mxu0 0.0
        %6128 = vmatmul.mubr.f32.gmra.mxu0 %v4270
        %v6129 = vpop.f32.mrf.mxu0
        %v6130 = vadd.f32 0.0, %v6129
        %v6131 = vpop.f32.mrf.mxu0
        %6132 = vmatprep.mubr.f32.mxu0 0.0
        %6133 = vmatmul.mubr.f32.gmra.mxu0 %v4272
        %v6134 = vpop.f32.mrf.mxu0
        %v6135 = vadd.f32 0.0, %v6134
        %v6136 = vpop.f32.mrf.mxu0
        %6137 = vmatprep.mubr.f32.mxu0 0.0
        %6138 = vmatmul.mubr.f32.gmra.mxu0 %v4275
        %v6139 = vpop.f32.mrf.mxu0
        %v6140 = vadd.f32 0.0, %v6139
        %v6141 = vpop.f32.mrf.mxu0
        %6142 = vmatprep.mubr.f32.mxu0 0.0
        %6143 = vmatmul.mubr.f32.gmra.mxu0 %v4277
        %v6144 = vpop.f32.mrf.mxu0
        %v6145 = vadd.f32 0.0, %v6144
        %v6146 = vpop.f32.mrf.mxu0
        %6147 = vmatprep.mubr.f32.mxu0 0.0
        %6148 = vmatmul.mubr.f32.gmra.mxu0 %v4280
        %v6149 = vpop.f32.mrf.mxu0
        %v6150 = vadd.f32 0.0, %v6149
        %v6151 = vpop.f32.mrf.mxu0
        %6152 = vmatprep.mubr.f32.mxu0 0.0
        %6153 = vmatmul.mubr.f32.gmra.mxu0 %v4282
        %v6154 = vpop.f32.mrf.mxu0
        %v6155 = vadd.f32 0.0, %v6154
        %v6156 = vpop.f32.mrf.mxu0
        %6157 = vmatprep.mubr.f32.mxu0 0.0
        %6158 = vmatmul.mubr.f32.gmra.mxu0 %v4285
        %v6159 = vpop.f32.mrf.mxu0
        %v6160 = vadd.f32 0.0, %v6159
        %v6161 = vpop.f32.mrf.mxu0
        %6162 = vmatprep.mubr.f32.mxu0 0.0
        %6163 = vmatmul.mubr.f32.gmra.mxu0 %v4287
        %v6164 = vpop.f32.mrf.mxu0
        %v6165 = vadd.f32 0.0, %v6164
        %v6166 = vpop.f32.mrf.mxu0
        %6167 = vmatprep.mubr.f32.mxu0 0.0
        %6168 = vmatmul.mubr.f32.gmra.mxu0 %v4290
        %v6169 = vpop.f32.mrf.mxu0
        %v6170 = vadd.f32 0.0, %v6169
        %v6171 = vpop.f32.mrf.mxu0
        %6172 = vmatprep.mubr.f32.mxu0 0.0
        %6173 = vmatmul.mubr.f32.gmra.mxu0 %v4292
        %v6174 = vpop.f32.mrf.mxu0
        %v6175 = vadd.f32 0.0, %v6174
        %v6176 = vpop.f32.mrf.mxu0
        %6177 = vmatprep.mubr.f32.mxu0 0.0
        %6178 = vmatmul.mubr.f32.gmra.mxu0 %v4295
        %v6179 = vpop.f32.mrf.mxu0
        %v6180 = vadd.f32 0.0, %v6179
        %v6181 = vpop.f32.mrf.mxu0
        %6182 = vmatprep.mubr.f32.mxu0 0.0
        %6183 = vmatmul.mubr.f32.gmra.mxu0 %v4297
        %v6184 = vpop.f32.mrf.mxu0
        %v6185 = vadd.f32 0.0, %v6184
        %v6186 = vpop.f32.mrf.mxu0
        %6187 = vmatprep.mubr.f32.mxu0 0.0
        %6188 = vmatmul.mubr.f32.gmra.mxu0 %v4300
        %v6189 = vpop.f32.mrf.mxu0
        %v6190 = vadd.f32 0.0, %v6189
        %v6191 = vpop.f32.mrf.mxu0
        %6192 = vmatprep.mubr.f32.mxu0 0.0
        %6193 = vmatmul.mubr.f32.gmra.mxu0 %v4302
        %v6194 = vpop.f32.mrf.mxu0
        %v6195 = vadd.f32 0.0, %v6194
        %v6196 = vpop.f32.mrf.mxu0
        %6197 = vmatprep.mubr.f32.mxu0 0.0
        %6198 = vmatmul.mubr.f32.gmra.mxu0 %v4305
        %v6199 = vpop.f32.mrf.mxu0
        %v6200 = vadd.f32 0.0, %v6199
        %v6201 = vpop.f32.mrf.mxu0
        %6202 = vmatprep.mubr.f32.mxu0 0.0
        %6203 = vmatmul.mubr.f32.gmra.mxu0 %v4307
        %v6204 = vpop.f32.mrf.mxu0
        %v6205 = vadd.f32 0.0, %v6204
        %v6206 = vpop.f32.mrf.mxu0
        %6207 = vmatprep.mubr.f32.mxu0 0.0
        %6208 = vmatmul.mubr.f32.gmra.mxu0 %v4310
        %v6209 = vpop.f32.mrf.mxu0
        %v6210 = vadd.f32 0.0, %v6209
        %v6211 = vpop.f32.mrf.mxu0
        %6212 = vmatprep.mubr.f32.mxu0 0.0
        %6213 = vmatmul.mubr.f32.gmra.mxu0 %v4312
        %v6214 = vpop.f32.mrf.mxu0
        %v6215 = vadd.f32 0.0, %v6214
        %v6216 = vpop.f32.mrf.mxu0
        %6217 = vmatprep.mubr.f32.mxu0 0.0
        %6218 = vmatmul.mubr.f32.gmra.mxu0 %v4315
        %v6219 = vpop.f32.mrf.mxu0
        %v6220 = vadd.f32 0.0, %v6219
        %v6221 = vpop.f32.mrf.mxu0
        %6222 = vmatprep.mubr.f32.mxu0 0.0
        %6223 = vmatmul.mubr.f32.gmra.mxu0 %v4317
        %v6224 = vpop.f32.mrf.mxu0
        %v6225 = vadd.f32 0.0, %v6224
        %v6226 = vpop.f32.mrf.mxu0
        %6227 = vmatprep.mubr.f32.mxu0 0.0
        %6228 = vmatmul.mubr.f32.gmra.mxu0 %v4320
        %v6229 = vpop.f32.mrf.mxu0
        %v6230 = vadd.f32 0.0, %v6229
        %v6231 = vpop.f32.mrf.mxu0
        %6232 = vmatprep.mubr.f32.mxu0 0.0
        %6233 = vmatmul.mubr.f32.gmra.mxu0 %v4322
        %v6234 = vpop.f32.mrf.mxu0
        %v6235 = vadd.f32 0.0, %v6234
        %v6236 = vpop.f32.mrf.mxu0
        %6237 = vmatprep.mubr.f32.mxu0 0.0
        %6238 = vmatmul.mubr.f32.gmra.mxu0 %v4325
        %v6239 = vpop.f32.mrf.mxu0
        %v6240 = vadd.f32 0.0, %v6239
        %v6241 = vpop.f32.mrf.mxu0
        %6242 = vmatprep.mubr.f32.mxu0 0.0
        %6243 = vmatmul.mubr.f32.gmra.mxu0 %v4327
        %v6244 = vpop.f32.mrf.mxu0
        %v6245 = vadd.f32 0.0, %v6244
        %v6246 = vpop.f32.mrf.mxu0
        %6247 = vmatprep.mubr.f32.mxu0 0.0
        %6248 = vmatmul.mubr.f32.gmra.mxu0 %v4330
        %v6249 = vpop.f32.mrf.mxu0
        %v6250 = vadd.f32 0.0, %v6249
        %v6251 = vpop.f32.mrf.mxu0
        %6252 = vmatprep.mubr.f32.mxu0 0.0
        %6253 = vmatmul.mubr.f32.gmra.mxu0 %v4332
        %v6254 = vpop.f32.mrf.mxu0
        %v6255 = vadd.f32 0.0, %v6254
        %v6256 = vpop.f32.mrf.mxu0
        %6257 = vmatprep.mubr.f32.mxu0 0.0
        %6258 = vmatmul.mubr.f32.gmra.mxu0 %v5196
        %v6259 = vpop.f32.mrf.mxu0
        %v6260 = vadd.f32 0.0, %v6259
        %v6261 = vpop.f32.mrf.mxu0
        %6262 = vmatprep.mubr.f32.mxu0 0.0
        %6263 = vmatmul.mubr.f32.gmra.mxu0 %v5198
        %v6264 = vpop.f32.mrf.mxu0
        %v6265 = vadd.f32 0.0, %v6264
        %v6266 = vpop.f32.mrf.mxu0
        %6267 = vmatprep.mubr.f32.mxu0 0.0
        %6268 = vmatmul.mubr.f32.gmra.mxu0 %v6032
        %v6269 = vpop.f32.mrf.mxu0
        %v6270 = vadd.f32 0.0, %v6269
        %v6271 = vpop.f32.mrf.mxu0
        %6272 = vmatprep.mubr.f32.mxu0 0.0
        %6273 = vmatmul.mubr.f32.gmra.mxu0 %v6034
        %v6274 = vpop.f32.mrf.mxu0
        %v6275 = vadd.f32 0.0, %v6274
        %v6276 = vpop.f32.mrf.mxu0
        %6277 = vdwg.mxu0
        %v6278 = vadd.f32 %v5998, %v6120
        %v6279 = vadd.f32 %v5999, %v6125
        %v6280 = vadd.f32 %v6000, %v6130
        %v6281 = vadd.f32 %v6001, %v6135
        %v6282 = vadd.f32 %v6002, %v6140
        %v6283 = vadd.f32 %v6003, %v6145
        %v6284 = vadd.f32 %v6004, %v6150
        %v6285 = vadd.f32 %v6005, %v6155
        %v6286 = vadd.f32 %v6006, %v6160
        %v6287 = vadd.f32 %v6007, %v6165
        %v6288 = vadd.f32 %v6008, %v6170
        %v6289 = vadd.f32 %v6009, %v6175
        %v6290 = vadd.f32 %v6010, %v6180
        %v6291 = vadd.f32 %v6011, %v6185
        %v6292 = vadd.f32 %v6012, %v6190
        %v6293 = vadd.f32 %v6013, %v6195
        %v6294 = vadd.f32 %v6014, %v6200
        %v6295 = vadd.f32 %v6015, %v6205
        %v6296 = vadd.f32 %v6016, %v6210
        %v6297 = vadd.f32 %v6017, %v6215
        %v6298 = vadd.f32 %v6018, %v6220
        %v6299 = vadd.f32 %v6019, %v6225
        %v6300 = vadd.f32 %v6020, %v6230
        %v6301 = vadd.f32 %v6021, %v6235
        %v6302 = vadd.f32 %v6022, %v6240
        %v6303 = vadd.f32 %v6023, %v6245
        %v6304 = vadd.f32 %v6024, %v6250
        %v6305 = vadd.f32 %v6025, %v6255
        %v6306 = vadd.f32 %v6026, %v6260
        %v6307 = vadd.f32 %v6027, %v6265
        %v6308 = vadd.f32 %v6028, %v6270
        %v6309 = vadd.f32 %v6029, %v6275
        %v6310 = vld [vmem:[%s5] sm:$0x1]
        %v6312 = vlaneseq
        %v6313 = vshrl.u32 %v6312, 7
        %v6314 = vsub.s32 0, %v6313
        %v6315 = vrot.slane %v6310, %v6314
        %v6317 = vmul.f32 %v6278, %v6315
        %v6318 = vmul.f32 %v6279, %v6315
        %v6319 = vmul.f32 %v6280, %v6315
        %v6320 = vmul.f32 %v6281, %v6315
        %v6321 = vmul.f32 %v6282, %v6315
        %v6322 = vmul.f32 %v6283, %v6315
        %v6323 = vmul.f32 %v6284, %v6315
        %v6324 = vmul.f32 %v6285, %v6315
        %v6325 = vmul.f32 %v6286, %v6315
        %v6326 = vmul.f32 %v6287, %v6315
        %v6327 = vmul.f32 %v6288, %v6315
        %v6328 = vmul.f32 %v6289, %v6315
        %v6329 = vmul.f32 %v6290, %v6315
        %v6330 = vmul.f32 %v6291, %v6315
        %v6331 = vmul.f32 %v6292, %v6315
        %v6332 = vmul.f32 %v6293, %v6315
        %v6333 = vmul.f32 %v6294, %v6315
        %v6334 = vmul.f32 %v6295, %v6315
        %v6335 = vmul.f32 %v6296, %v6315
        %v6336 = vmul.f32 %v6297, %v6315
        %v6337 = vmul.f32 %v6298, %v6315
        %v6338 = vmul.f32 %v6299, %v6315
        %v6339 = vmul.f32 %v6300, %v6315
        %v6340 = vmul.f32 %v6301, %v6315
        %v6341 = vmul.f32 %v6302, %v6315
        %v6342 = vmul.f32 %v6303, %v6315
        %v6343 = vmul.f32 %v6304, %v6315
        %v6344 = vmul.f32 %v6305, %v6315
        %v6345 = vmul.f32 %v6306, %v6315
        %v6346 = vmul.f32 %v6307, %v6315
        %v6347 = vmul.f32 %v6308, %v6315
        %v6348 = vmul.f32 %v6309, %v6315
        %v6349 = vld [vmem:[%s6] sm:$0x1]
        %v6351 = vlaneseq
        %v6352 = vshrl.u32 %v6351, 7
        %v6353 = vsub.s32 0, %v6352
        %v6354 = vrot.slane %v6349, %v6353
        %v6356 = vadd.f32 %v6317, %v6354
        %v6357 = vadd.f32 %v6318, %v6354
        %v6358 = vadd.f32 %v6319, %v6354
        %v6359 = vadd.f32 %v6320, %v6354
        %v6360 = vadd.f32 %v6321, %v6354
        %v6361 = vadd.f32 %v6322, %v6354
        %v6362 = vadd.f32 %v6323, %v6354
        %v6363 = vadd.f32 %v6324, %v6354
        %v6364 = vadd.f32 %v6325, %v6354
        %v6365 = vadd.f32 %v6326, %v6354
        %v6366 = vadd.f32 %v6327, %v6354
        %v6367 = vadd.f32 %v6328, %v6354
        %v6368 = vadd.f32 %v6329, %v6354
        %v6369 = vadd.f32 %v6330, %v6354
        %v6370 = vadd.f32 %v6331, %v6354
        %v6371 = vadd.f32 %v6332, %v6354
        %v6372 = vadd.f32 %v6333, %v6354
        %v6373 = vadd.f32 %v6334, %v6354
        %v6374 = vadd.f32 %v6335, %v6354
        %v6375 = vadd.f32 %v6336, %v6354
        %v6376 = vadd.f32 %v6337, %v6354
        %v6377 = vadd.f32 %v6338, %v6354
        %v6378 = vadd.f32 %v6339, %v6354
        %v6379 = vadd.f32 %v6340, %v6354
        %v6380 = vadd.f32 %v6341, %v6354
        %v6381 = vadd.f32 %v6342, %v6354
        %v6382 = vadd.f32 %v6343, %v6354
        %v6383 = vadd.f32 %v6344, %v6354
        %v6384 = vadd.f32 %v6345, %v6354
        %v6385 = vadd.f32 %v6346, %v6354
        %v6386 = vadd.f32 %v6347, %v6354
        %v6387 = vadd.f32 %v6348, %v6354
        %v6388 = vxor.u32 %v6356, 2147483648
        %v6389 = vxor.u32 %v6357, 2147483648
        %v6390 = vxor.u32 %v6358, 2147483648
        %v6391 = vxor.u32 %v6359, 2147483648
        %v6392 = vxor.u32 %v6360, 2147483648
        %v6393 = vxor.u32 %v6361, 2147483648
        %v6394 = vxor.u32 %v6362, 2147483648
        %v6395 = vxor.u32 %v6363, 2147483648
        %v6396 = vxor.u32 %v6364, 2147483648
        %v6397 = vxor.u32 %v6365, 2147483648
        %v6398 = vxor.u32 %v6366, 2147483648
        %v6399 = vxor.u32 %v6367, 2147483648
        %v6400 = vxor.u32 %v6368, 2147483648
        %v6401 = vxor.u32 %v6369, 2147483648
        %v6402 = vxor.u32 %v6370, 2147483648
        %v6403 = vxor.u32 %v6371, 2147483648
        %v6404 = vxor.u32 %v6372, 2147483648
        %v6405 = vxor.u32 %v6373, 2147483648
        %v6406 = vxor.u32 %v6374, 2147483648
        %v6407 = vxor.u32 %v6375, 2147483648
        %v6408 = vxor.u32 %v6376, 2147483648
        %v6409 = vxor.u32 %v6377, 2147483648
        %v6410 = vxor.u32 %v6378, 2147483648
        %v6411 = vxor.u32 %v6379, 2147483648
        %v6412 = vxor.u32 %v6380, 2147483648
        %v6413 = vxor.u32 %v6381, 2147483648
        %v6414 = vxor.u32 %v6382, 2147483648
        %v6415 = vxor.u32 %v6383, 2147483648
        %v6416 = vxor.u32 %v6384, 2147483648
        %v6417 = vxor.u32 %v6385, 2147483648
        %v6418 = vxor.u32 %v6386, 2147483648
        %v6419 = vxor.u32 %v6387, 2147483648
        %v6420 = vmul.f32 %v6388, 1.442695
        %v6421 = vpow.pop %v6420
        %v6422 = vmul.f32 %v6389, 1.442695
        %v6423 = vpow.pop %v6422
        %v6424 = vmul.f32 %v6390, 1.442695
        %v6425 = vpow.pop %v6424
        %v6426 = vmul.f32 %v6391, 1.442695
        %v6427 = vpow.pop %v6426
        %v6428 = vmul.f32 %v6392, 1.442695
        %v6429 = vpow.pop %v6428
        %v6430 = vmul.f32 %v6393, 1.442695
        %v6431 = vpow.pop %v6430
        %v6432 = vmul.f32 %v6394, 1.442695
        %v6433 = vpow.pop %v6432
        %v6434 = vmul.f32 %v6395, 1.442695
        %v6435 = vpow.pop %v6434
        %v6436 = vmul.f32 %v6396, 1.442695
        %v6437 = vpow.pop %v6436
        %v6438 = vmul.f32 %v6397, 1.442695
        %v6439 = vpow.pop %v6438
        %v6440 = vmul.f32 %v6398, 1.442695
        %v6441 = vpow.pop %v6440
        %v6442 = vmul.f32 %v6399, 1.442695
        %v6443 = vpow.pop %v6442
        %v6444 = vmul.f32 %v6400, 1.442695
        %v6445 = vpow.pop %v6444
        %v6446 = vmul.f32 %v6401, 1.442695
        %v6447 = vpow.pop %v6446
        %v6448 = vmul.f32 %v6402, 1.442695
        %v6449 = vpow.pop %v6448
        %v6450 = vmul.f32 %v6403, 1.442695
        %v6451 = vpow.pop %v6450
        %v6452 = vmul.f32 %v6404, 1.442695
        %v6453 = vpow.pop %v6452
        %v6454 = vmul.f32 %v6405, 1.442695
        %v6455 = vpow.pop %v6454
        %v6456 = vmul.f32 %v6406, 1.442695
        %v6457 = vpow.pop %v6456
        %v6458 = vmul.f32 %v6407, 1.442695
        %v6459 = vpow.pop %v6458
        %v6460 = vmul.f32 %v6408, 1.442695
        %v6461 = vpow.pop %v6460
        %v6462 = vmul.f32 %v6409, 1.442695
        %v6463 = vpow.pop %v6462
        %v6464 = vmul.f32 %v6410, 1.442695
        %v6465 = vpow.pop %v6464
        %v6466 = vmul.f32 %v6411, 1.442695
        %v6467 = vpow.pop %v6466
        %v6468 = vmul.f32 %v6412, 1.442695
        %v6469 = vpow.pop %v6468
        %v6470 = vmul.f32 %v6413, 1.442695
        %v6471 = vpow.pop %v6470
        %v6472 = vmul.f32 %v6414, 1.442695
        %v6473 = vpow.pop %v6472
        %v6474 = vmul.f32 %v6415, 1.442695
        %v6475 = vpow.pop %v6474
        %v6476 = vmul.f32 %v6416, 1.442695
        %v6477 = vpow.pop %v6476
        %v6478 = vmul.f32 %v6417, 1.442695
        %v6479 = vpow.pop %v6478
        %v6480 = vmul.f32 %v6418, 1.442695
        %v6481 = vpow.pop %v6480
        %v6482 = vmul.f32 %v6419, 1.442695
        %v6483 = vpow.pop %v6482
        %v6484 = vadd.f32 %v6421, 1.0
        %v6485 = vadd.f32 %v6423, 1.0
        %v6486 = vadd.f32 %v6425, 1.0
        %v6487 = vadd.f32 %v6427, 1.0
        %v6488 = vadd.f32 %v6429, 1.0
        %v6489 = vadd.f32 %v6431, 1.0
        %v6490 = vadd.f32 %v6433, 1.0
        %v6491 = vadd.f32 %v6435, 1.0
        %v6492 = vadd.f32 %v6437, 1.0
        %v6493 = vadd.f32 %v6439, 1.0
        %v6494 = vadd.f32 %v6441, 1.0
        %v6495 = vadd.f32 %v6443, 1.0
        %v6496 = vadd.f32 %v6445, 1.0
        %v6497 = vadd.f32 %v6447, 1.0
        %v6498 = vadd.f32 %v6449, 1.0
        %v6499 = vadd.f32 %v6451, 1.0
        %v6500 = vadd.f32 %v6453, 1.0
        %v6501 = vadd.f32 %v6455, 1.0
        %v6502 = vadd.f32 %v6457, 1.0
        %v6503 = vadd.f32 %v6459, 1.0
        %v6504 = vadd.f32 %v6461, 1.0
        %v6505 = vadd.f32 %v6463, 1.0
        %v6506 = vadd.f32 %v6465, 1.0
        %v6507 = vadd.f32 %v6467, 1.0
        %v6508 = vadd.f32 %v6469, 1.0
        %v6509 = vadd.f32 %v6471, 1.0
        %v6510 = vadd.f32 %v6473, 1.0
        %v6511 = vadd.f32 %v6475, 1.0
        %v6512 = vadd.f32 %v6477, 1.0
        %v6513 = vadd.f32 %v6479, 1.0
        %v6514 = vadd.f32 %v6481, 1.0
        %v6515 = vadd.f32 %v6483, 1.0
        %v6516 = vrcp.pop %v6484
        %v6517 = vmul.f32 1.0, %v6516
        %v6518 = vrcp.pop %v6485
        %v6519 = vmul.f32 1.0, %v6518
        %v6520 = vrcp.pop %v6486
        %v6521 = vmul.f32 1.0, %v6520
        %v6522 = vrcp.pop %v6487
        %v6523 = vmul.f32 1.0, %v6522
        %v6524 = vrcp.pop %v6488
        %v6525 = vmul.f32 1.0, %v6524
        %v6526 = vrcp.pop %v6489
        %v6527 = vmul.f32 1.0, %v6526
        %v6528 = vrcp.pop %v6490
        %v6529 = vmul.f32 1.0, %v6528
        %v6530 = vrcp.pop %v6491
        %v6531 = vmul.f32 1.0, %v6530
        %v6532 = vrcp.pop %v6492
        %v6533 = vmul.f32 1.0, %v6532
        %v6534 = vrcp.pop %v6493
        %v6535 = vmul.f32 1.0, %v6534
        %v6536 = vrcp.pop %v6494
        %v6537 = vmul.f32 1.0, %v6536
        %v6538 = vrcp.pop %v6495
        %v6539 = vmul.f32 1.0, %v6538
        %v6540 = vrcp.pop %v6496
        %v6541 = vmul.f32 1.0, %v6540
        %v6542 = vrcp.pop %v6497
        %v6543 = vmul.f32 1.0, %v6542
        %v6544 = vrcp.pop %v6498
        %v6545 = vmul.f32 1.0, %v6544
        %v6546 = vrcp.pop %v6499
        %v6547 = vmul.f32 1.0, %v6546
        %v6548 = vrcp.pop %v6500
        %v6549 = vmul.f32 1.0, %v6548
        %v6550 = vrcp.pop %v6501
        %v6551 = vmul.f32 1.0, %v6550
        %v6552 = vrcp.pop %v6502
        %v6553 = vmul.f32 1.0, %v6552
        %v6554 = vrcp.pop %v6503
        %v6555 = vmul.f32 1.0, %v6554
        %v6556 = vrcp.pop %v6504
        %v6557 = vmul.f32 1.0, %v6556
        %v6558 = vrcp.pop %v6505
        %v6559 = vmul.f32 1.0, %v6558
        %v6560 = vrcp.pop %v6506
        %v6561 = vmul.f32 1.0, %v6560
        %v6562 = vrcp.pop %v6507
        %v6563 = vmul.f32 1.0, %v6562
        %v6564 = vrcp.pop %v6508
        %v6565 = vmul.f32 1.0, %v6564
        %v6566 = vrcp.pop %v6509
        %v6567 = vmul.f32 1.0, %v6566
        %v6568 = vrcp.pop %v6510
        %v6569 = vmul.f32 1.0, %v6568
        %v6570 = vrcp.pop %v6511
        %v6571 = vmul.f32 1.0, %v6570
        %v6572 = vrcp.pop %v6512
        %v6573 = vmul.f32 1.0, %v6572
        %v6574 = vrcp.pop %v6513
        %v6575 = vmul.f32 1.0, %v6574
        %v6576 = vrcp.pop %v6514
        %v6577 = vmul.f32 1.0, %v6576
        %v6578 = vrcp.pop %v6515
        %v6579 = vmul.f32 1.0, %v6578
        %v6580 = vmul.f32 %v6356, %v6517
        %v6581 = vmul.f32 %v6357, %v6519
        %v6582 = vmul.f32 %v6358, %v6521
        %v6583 = vmul.f32 %v6359, %v6523
        %v6584 = vmul.f32 %v6360, %v6525
        %v6585 = vmul.f32 %v6361, %v6527
        %v6586 = vmul.f32 %v6362, %v6529
        %v6587 = vmul.f32 %v6363, %v6531
        %v6588 = vmul.f32 %v6364, %v6533
        %v6589 = vmul.f32 %v6365, %v6535
        %v6590 = vmul.f32 %v6366, %v6537
        %v6591 = vmul.f32 %v6367, %v6539
        %v6592 = vmul.f32 %v6368, %v6541
        %v6593 = vmul.f32 %v6369, %v6543
        %v6594 = vmul.f32 %v6370, %v6545
        %v6595 = vmul.f32 %v6371, %v6547
        %v6596 = vmul.f32 %v6372, %v6549
        %v6597 = vmul.f32 %v6373, %v6551
        %v6598 = vmul.f32 %v6374, %v6553
        %v6599 = vmul.f32 %v6375, %v6555
        %v6600 = vmul.f32 %v6376, %v6557
        %v6601 = vmul.f32 %v6377, %v6559
        %v6602 = vmul.f32 %v6378, %v6561
        %v6603 = vmul.f32 %v6379, %v6563
        %v6604 = vmul.f32 %v6380, %v6565
        %v6605 = vmul.f32 %v6381, %v6567
        %v6606 = vmul.f32 %v6382, %v6569
        %v6607 = vmul.f32 %v6383, %v6571
        %v6608 = vmul.f32 %v6384, %v6573
        %v6609 = vmul.f32 %v6385, %v6575
        %v6610 = vmul.f32 %v6386, %v6577
        %v6611 = vmul.f32 %v6387, %v6579
        %v6612 = vld [vmem:[%s288] sm:$0xff]
        %v6613 = vld [vmem:[%s288 + $0x8] sm:$0xff]
        %v6614 = vld [vmem:[%s288 + $0x10] sm:$0xff]
        %v6615 = vld [vmem:[%s288 + $0x18] sm:$0xff]
        %v6616 = vld [vmem:[%s288 + $0x20] sm:$0xff]
        %v6617 = vld [vmem:[%s288 + $0x28] sm:$0xff]
        %v6618 = vld [vmem:[%s288 + $0x30] sm:$0xff]
        %v6619 = vld [vmem:[%s288 + $0x38] sm:$0xff]
        %v6620 = vld [vmem:[%s288 + $0x40] sm:$0xff]
        %v6621 = vld [vmem:[%s288 + $0x48] sm:$0xff]
        %v6622 = vld [vmem:[%s288 + $0x50] sm:$0xff]
        %v6623 = vld [vmem:[%s288 + $0x58] sm:$0xff]
        %v6624 = vld [vmem:[%s288 + $0x60] sm:$0xff]
        %v6625 = vld [vmem:[%s288 + $0x68] sm:$0xff]
        %v6626 = vld [vmem:[%s288 + $0x70] sm:$0xff]
        %v6627 = vld [vmem:[%s288 + $0x78] sm:$0xff]
        %v6628 = vld [vmem:[%s288 + $0x80] sm:$0xff]
        %v6629 = vld [vmem:[%s288 + $0x88] sm:$0xff]
        %v6630 = vld [vmem:[%s288 + $0x90] sm:$0xff]
        %v6631 = vld [vmem:[%s288 + $0x98] sm:$0xff]
        %v6632 = vld [vmem:[%s288 + $0xa0] sm:$0xff]
        %v6633 = vld [vmem:[%s288 + $0xa8] sm:$0xff]
        %v6634 = vld [vmem:[%s288 + $0xb0] sm:$0xff]
        %v6635 = vld [vmem:[%s288 + $0xb8] sm:$0xff]
        %v6636 = vld [vmem:[%s288 + $0xc0] sm:$0xff]
        %v6637 = vld [vmem:[%s288 + $0xc8] sm:$0xff]
        %v6638 = vld [vmem:[%s288 + $0xd0] sm:$0xff]
        %v6639 = vld [vmem:[%s288 + $0xd8] sm:$0xff]
        %v6640 = vld [vmem:[%s288 + $0xe0] sm:$0xff]
        %v6641 = vld [vmem:[%s288 + $0xe8] sm:$0xff]
        %v6642 = vld [vmem:[%s288 + $0xf0] sm:$0xff]
        %v6643 = vld [vmem:[%s288 + $0xf8] sm:$0xff]
        %v6644 = vadd.f32 %v6580, %v6612
        %v6645 = vadd.f32 %v6581, %v6613
        %v6646 = vadd.f32 %v6582, %v6614
        %v6647 = vadd.f32 %v6583, %v6615
        %v6648 = vadd.f32 %v6584, %v6616
        %v6649 = vadd.f32 %v6585, %v6617
        %v6650 = vadd.f32 %v6586, %v6618
        %v6651 = vadd.f32 %v6587, %v6619
        %v6652 = vadd.f32 %v6588, %v6620
        %v6653 = vadd.f32 %v6589, %v6621
        %v6654 = vadd.f32 %v6590, %v6622
        %v6655 = vadd.f32 %v6591, %v6623
        %v6656 = vadd.f32 %v6592, %v6624
        %v6657 = vadd.f32 %v6593, %v6625
        %v6658 = vadd.f32 %v6594, %v6626
        %v6659 = vadd.f32 %v6595, %v6627
        %v6660 = vadd.f32 %v6596, %v6628
        %v6661 = vadd.f32 %v6597, %v6629
        %v6662 = vadd.f32 %v6598, %v6630
        %v6663 = vadd.f32 %v6599, %v6631
        %v6664 = vadd.f32 %v6600, %v6632
        %v6665 = vadd.f32 %v6601, %v6633
        %v6666 = vadd.f32 %v6602, %v6634
        %v6667 = vadd.f32 %v6603, %v6635
        %v6668 = vadd.f32 %v6604, %v6636
        %v6669 = vadd.f32 %v6605, %v6637
        %v6670 = vadd.f32 %v6606, %v6638
        %v6671 = vadd.f32 %v6607, %v6639
        %v6672 = vadd.f32 %v6608, %v6640
        %v6673 = vadd.f32 %v6609, %v6641
        %v6674 = vadd.f32 %v6610, %v6642
        %v6675 = vadd.f32 %v6611, %v6643
        %6676 = vst [vmem:[%s293] sm:$0xff] %v6644
        %6677 = vst [vmem:[%s293 + $0x8] sm:$0xff] %v6645
        %6678 = vst [vmem:[%s293 + $0x10] sm:$0xff] %v6646
        %6679 = vst [vmem:[%s293 + $0x18] sm:$0xff] %v6647
        %6680 = vst [vmem:[%s293 + $0x20] sm:$0xff] %v6648
        %6681 = vst [vmem:[%s293 + $0x28] sm:$0xff] %v6649
        %6682 = vst [vmem:[%s293 + $0x30] sm:$0xff] %v6650
        %6683 = vst [vmem:[%s293 + $0x38] sm:$0xff] %v6651
        %6684 = vst [vmem:[%s293 + $0x40] sm:$0xff] %v6652
        %6685 = vst [vmem:[%s293 + $0x48] sm:$0xff] %v6653
        %6686 = vst [vmem:[%s293 + $0x50] sm:$0xff] %v6654
        %6687 = vst [vmem:[%s293 + $0x58] sm:$0xff] %v6655
        %6688 = vst [vmem:[%s293 + $0x60] sm:$0xff] %v6656
        %6689 = vst [vmem:[%s293 + $0x68] sm:$0xff] %v6657
        %6690 = vst [vmem:[%s293 + $0x70] sm:$0xff] %v6658
        %6691 = vst [vmem:[%s293 + $0x78] sm:$0xff] %v6659
        %6692 = vst [vmem:[%s293 + $0x80] sm:$0xff] %v6660
        %6693 = vst [vmem:[%s293 + $0x88] sm:$0xff] %v6661
        %6694 = vst [vmem:[%s293 + $0x90] sm:$0xff] %v6662
        %6695 = vst [vmem:[%s293 + $0x98] sm:$0xff] %v6663
        %6696 = vst [vmem:[%s293 + $0xa0] sm:$0xff] %v6664
        %6697 = vst [vmem:[%s293 + $0xa8] sm:$0xff] %v6665
        %6698 = vst [vmem:[%s293 + $0xb0] sm:$0xff] %v6666
        %6699 = vst [vmem:[%s293 + $0xb8] sm:$0xff] %v6667
        %6700 = vst [vmem:[%s293 + $0xc0] sm:$0xff] %v6668
        %6701 = vst [vmem:[%s293 + $0xc8] sm:$0xff] %v6669
        %6702 = vst [vmem:[%s293 + $0xd0] sm:$0xff] %v6670
        %6703 = vst [vmem:[%s293 + $0xd8] sm:$0xff] %v6671
        %6704 = vst [vmem:[%s293 + $0xe0] sm:$0xff] %v6672
        %6705 = vst [vmem:[%s293 + $0xe8] sm:$0xff] %v6673
        %6706 = vst [vmem:[%s293 + $0xf0] sm:$0xff] %v6674
        %6707 = vst [vmem:[%s293 + $0xf8] sm:$0xff] %v6675
        %p6708 = scmp.lt.s32.totalorder %s19, 1
        %s6709 = scalar_select %p6708, %s19, 1
        %s6710 = smul.addr %s6709, 32
        %s6711 = smul.addr %s6710, 8
        %s6712 = scalar_lea.vmem %s7, %s6711
        // Predicated region
        $region53: #{bottleneck_forward.1} parent=47 // pred_check
          %p6713 = pneg %p189
        $region54: #{bottleneck_forward.1} parent=47 // pred_check_branch
          %6715 = sbr.rel (%p6713) target = $region56
        $region55: #{bottleneck_forward.1} parent=47 // pred_region
          _
        $region56: #{bottleneck_forward.1} parent=47 // pred_fallthru
          _
      $region48: #{bottleneck_forward.1} parent=5 // pred_fallthru
        _
      %p6716 = scmp.le.s32.totalorder 2, %s14
      // Predicated region
      $region57: #{bottleneck_forward.1} parent=5 // pred_check
        %p6717 = pneg %p6716
      $region58: #{bottleneck_forward.1} parent=5 // pred_check_branch
        %6719 = sbr.rel (%p6717) target = $region60
      $region59: #{bottleneck_forward.1} parent=5 // pred_region
        %s6720 = ssub.s32 %s14, 2
        // Predicated region
        $region61: #{bottleneck_forward.1} parent=59 // pred_check
          %p6721 = pneg %p195
        $region62: #{bottleneck_forward.1} parent=59 // pred_check_branch
          %6723 = sbr.rel (%p6721) target = $region64
        $region63: #{bottleneck_forward.1} parent=59 // pred_region
          %p6724 = scmp.lt.s32.totalorder %s20, 1
          %s6725 = scalar_select %p6724, %s20, 1
          %s6726 = smul.addr %s6725, 32
          %s6727 = smul.addr %s6726, 8
          %s6728 = scalar_lea.vmem %s7, %s6727
        $region64: #{bottleneck_forward.1} parent=59 // pred_fallthru
          _
      $region60: #{bottleneck_forward.1} parent=5 // pred_fallthru
        _
    $region6: #{bottleneck_forward.1} parent=1 // loop_footer
      %s18 = sadd.s32 1, %s14
    $region7: #{bottleneck_forward.1} parent=1 // loop_footer_branch
      %13 = sbr.rel target = $region3
    $region8: #{bottleneck_forward.1} parent=1 // loop_exit
      _
    %6729 = vsyncpa [#allocation5], 1
    %s6730 = scalar_lea.sflag [#allocation5], 1
    %6731 = vsyncpa %s6730, 1

</llo_original>
